<compile_context>
chip_gen: v7x
topology: tpu7x:2x2x1
jax: 0.10.0
libtpu: 0.0.40
codegen_flags: <defaults>
</compile_context>

<pallas_src>
import functools

import jax
import jax.numpy as jnp
from jax.experimental import pallas as pl
from jax.experimental.pallas import tpu as pltpu


def _round_up(x, m):
    return (x + m - 1) // m * m


# ----------------------------- fused Pallas kernel ------------------------------

def _fused_chain_kernel(x_ref, w_ref, b_ref, o_ref, *, relu_flags, nsample, cout, cin_p):
    """One batch element: full MLP chain (+ optional nsample max-pool).

    x_ref: (1, cin_p, L)   input activations (channel-first, points on lanes)
    w_ref: (nlayers, Cp, Cp) stacked, zero-padded weights
    b_ref: (nlayers, Cp, 1)  stacked, zero-padded biases
    o_ref: (1, cout, L // nsample)
    """
    h = x_ref[0]                                  # (cin_p, L) f32
    cp = w_ref.shape[1]
    for l, relu in enumerate(relu_flags):
        w = w_ref[l]                              # (Cp, Cp)
        if l == 0 and cin_p != cp:
            w = w[:, :cin_p]                      # (Cp, cin_p) -- padded cols are zero
        y = jnp.dot(w, h, preferred_element_type=jnp.float32) + b_ref[l]
        if relu:
            y = jnp.maximum(y, 0.0)
        h = y                                     # (Cp, L), stays on-chip
    out = h[:cout] if cout != cp else h           # (cout, L)
    if nsample > 1:
        L = out.shape[1]
        P = L // nsample
        m = out[:, 0:P]
        for s in range(1, nsample):               # max over the nsample groups (fused pool)
            m = jnp.maximum(m, out[:, s * P:(s + 1) * P])
        out = m                                   # (cout, P)
    o_ref[0] = out.astype(o_ref.dtype)


def fused_mlp_chain(x, chain, nsample=1):
    """Run a whole SharedMLP / FC chain (+ optional group max-pool) in one kernel.

    x: (B, Cin, L) channel-first. Returns (B, Cout, L // nsample).
    """
    B, Cin, L = x.shape
    dims = chain["dims"]
    assert Cin == dims[0], (Cin, dims)
    cp = chain["cp"]
    nl = len(dims) - 1
    cin_p = _round_up(Cin, 8)
    if cin_p > Cin:
        # single tiny channel pad per chain (zero rows contribute 0 to the dot)
        x = jnp.pad(x, ((0, 0), (0, cin_p - Cin), (0, 0)))
    cout = dims[-1]
    P = L // nsample

    kernel = functools.partial(_fused_chain_kernel,
                               relu_flags=chain["relu"], nsample=nsample,
                               cout=cout, cin_p=cin_p)
    return pl.pallas_call(
        kernel,
        out_shape=jax.ShapeDtypeStruct((B, cout, P), jnp.float32),
        grid=(B,),
        in_specs=[
            pl.BlockSpec((1, cin_p, L), lambda b: (b, 0, 0)),
            pl.BlockSpec((nl, cp, cp), lambda b: (0, 0, 0)),
            pl.BlockSpec((nl, cp, 1), lambda b: (0, 0, 0)),
        ],
        out_specs=pl.BlockSpec((1, cout, P), lambda b: (b, 0, 0)),
        compiler_params=pltpu.CompilerParams(dimension_semantics=("parallel",)),
    )(x, chain["w"], chain["b"])


# ------------------------------ JAX glue ops --------------------------------

def gather_points(points, idx):
    """points: (B, N, C); idx: (B, ...) int -> (B, ..., C)."""
    return jax.vmap(lambda p, i: p[i])(points, idx)


def gather_channels(feats, idx):
    """feats: (B, C, N); idx: (B, ...) int -> (B, C, ...). Keeps channel-first layout."""
    return jax.vmap(lambda f, i: f[:, i])(feats, idx)


def farthest_point_sample(xyz, npoint):
    """Deterministic FPS (starts at index 0). xyz: (B, N, 3) -> (B, npoint) int32."""
    N = xyz.shape[1]

    def one(x):
        def body(i, carry):
            idxs, mind, last = carry
            dist = jnp.sum((x - x[last]) ** 2, axis=-1)
            mind = jnp.minimum(mind, dist)
            nxt = jnp.argmax(mind).astype(jnp.int32)
            idxs = idxs.at[i].set(last)
            return idxs, mind, nxt

        init = (jnp.zeros((npoint,), jnp.int32),
                jnp.full((N,), 1e10, jnp.float32),
                jnp.int32(0))
        idxs, _, _ = jax.lax.fori_loop(0, npoint, body, init)
        return idxs

    return jax.vmap(one)(xyz)


def ball_query(radius, nsample, xyz, new_xyz):
    """(B,N,3),(B,S,3) -> (B,S,nsample) indices; unfilled slots repeat first hit."""
    N = xyz.shape[1]
    d2 = jnp.sum((new_xyz[:, :, None, :] - xyz[:, None, :, :]) ** 2, axis=-1)
    within = d2 < radius * radius
    keys = jnp.where(within, jnp.arange(N)[None, None, :], N)
    order = jnp.argsort(keys, axis=-1)[..., :nsample]
    found = jnp.take_along_axis(keys, order, axis=-1) < N
    first = order[..., :1]
    return jnp.where(found, order, first).astype(jnp.int32)


def sa_module_msg(xyz, features, npoint, radii, nsamples, chains, use_xyz=True):
    """PointnetSAModuleMSG forward. features: (B, C, N) channel-first or None."""
    B = xyz.shape[0]
    fps_idx = farthest_point_sample(xyz, npoint)
    new_xyz = gather_points(xyz, fps_idx)                       # (B, npoint, 3)
    xyz_t = jnp.transpose(xyz, (0, 2, 1))                       # (B, 3, N)
    new_xyz_t = jnp.transpose(new_xyz, (0, 2, 1))               # (B, 3, npoint)
    outs = []
    for radius, ns, chain in zip(radii, nsamples, chains):
        idx = ball_query(radius, ns, xyz, new_xyz)              # (B, npoint, ns)
        idx_t = jnp.transpose(idx, (0, 2, 1))                   # (B, ns, npoint)
        # gather directly in channel-first, (ns, npoint)-major layout
        g_xyz = gather_channels(xyz_t, idx_t) - new_xyz_t[:, :, None, :]   # (B, 3, ns, npoint)
        if features is not None:
            g_feat = gather_channels(features, idx_t)           # (B, C, ns, npoint)
            grouped = jnp.concatenate([g_xyz, g_feat], axis=1) if use_xyz else g_feat
        else:
            grouped = g_xyz
        Ct = grouped.shape[1]
        x = grouped.reshape(B, Ct, ns * npoint)                 # (B, Ctot, ns*npoint)
        # fused SharedMLP + nsample max-pool -> (B, Cout, npoint)
        outs.append(fused_mlp_chain(x, chain, nsample=ns))
    return new_xyz, jnp.concatenate(outs, axis=1)


def fp_module(unknown, known, unknown_feats, known_feats, chain):
    """PointnetFPModule: 3-NN inverse-distance interpolation + fused SharedMLP."""
    d2 = jnp.sum((unknown[:, :, None, :] - known[:, None, :, :]) ** 2, axis=-1)
    neg_d2, idx = jax.lax.top_k(-d2, 3)                          # (B, n, 3)
    dist = jnp.sqrt(jnp.maximum(-neg_d2, 0.0))
    dist_recip = 1.0 / (dist + 1e-8)
    weight = dist_recip / jnp.sum(dist_recip, axis=2, keepdims=True)   # (B, n, 3)
    gathered = gather_channels(known_feats, idx)                 # (B, C, n, 3)
    interp = jnp.sum(gathered * weight[:, None, :, :], axis=-1)  # (B, C, n)
    x = (jnp.concatenate([interp, unknown_feats], axis=1)
         if unknown_feats is not None else interp)
    return fused_mlp_chain(x, chain, nsample=1)


# ---------------------------- parameter building ----------------------------

def make_layer_params(key, cin, cout, bn=True, bias=True):
    kw, kb = jax.random.split(key)
    w = jax.random.normal(kw, (cout, cin), jnp.float32) * jnp.sqrt(2.0 / cin)
    if bn:
        # BN (eval mode) folded: gamma=1, beta=0, running_mean=0, running_var=1, eps=1e-5.
        # NOTE: only valid for this random-weight demo; trained BN stats must be folded here.
        scale = 1.0 / jnp.sqrt(1.0 + 1e-5)
        return w * scale, jnp.zeros((cout,), jnp.float32)
    b = (jax.random.normal(kb, (cout,), jnp.float32) * 0.01
         if bias else jnp.zeros((cout,), jnp.float32))
    return w, b


def stack_chain(layers, relu_flags=None):
    """Stack per-layer (w, b) into zero-padded (nl, Cp, Cp) / (nl, Cp, 1) tensors."""
    dims = [layers[0][0].shape[1]] + [w.shape[0] for (w, _) in layers]
    cp = _round_up(max(dims), 8)
    nl = len(layers)
    W = jnp.zeros((nl, cp, cp), jnp.float32)
    Bv = jnp.zeros((nl, cp, 1), jnp.float32)
    for l, (w, b) in enumerate(layers):
        W = W.at[l, :w.shape[0], :w.shape[1]].set(w)
        Bv = Bv.at[l, :b.shape[0], 0].set(b)
    if relu_flags is None:
        relu_flags = (True,) * nl
    return dict(w=W, b=Bv, dims=tuple(dims), cp=cp, relu=tuple(relu_flags))


def make_shared_mlp_chain(key, dims, bn=True):
    keys = jax.random.split(key, len(dims) - 1)
    layers = [make_layer_params(k, dims[i], dims[i + 1], bn=bn) for i, k in enumerate(keys)]
    return stack_chain(layers)


def build_pointnet2_msg_params(key, num_classes, input_channels, use_xyz=True):
    sf = 4
    keys = jax.random.split(key, 9)

    def _mlps(specs, k):
        ks = jax.random.split(k, len(specs))
        out = []
        for spec, kk in zip(specs, ks):
            spec = list(spec)
            if use_xyz:
                spec[0] += 3
            out.append(make_shared_mlp_chain(kk, spec, bn=True))
        return out

    c_in = input_channels
    sa = [dict(npoint=512 // sf, radii=[1.0, 3.0], nsamples=[8 // sf, 32 // sf],
               chains=_mlps([[c_in, 32 // sf, 32 // sf, 64 // sf],
                             [c_in, 64 // sf, 64 // sf, 128 // sf]], keys[0]))]
    c_out_1 = 64 // sf + 128 // sf
    c_in = c_out_1
    sa.append(dict(npoint=512 // sf, radii=[2.0, 4.0], nsamples=[8 // sf, 32 // sf],
                   chains=_mlps([[c_in, 32 // sf, 32 // sf, 64 // sf],
                                 [c_in, 64 // sf, 64 // sf, 128 // sf]], keys[1])))
    c_out_2 = 64 // sf + 128 // sf
    c_in = c_out_2
    sa.append(dict(npoint=256 // sf, radii=[3.0, 6.0], nsamples=[16 // sf, 32 // sf],
                   chains=_mlps([[c_in, 64 // sf, 64 // sf, 128 // sf],
                                 [c_in, 64 // sf, 64 // sf, 128 // sf]], keys[2])))
    c_out_3 = 128 // sf + 128 // sf

    fp = [
        make_shared_mlp_chain(keys[3], [128 // sf + input_channels,
                                        128 // sf, 128 // sf, 128 // sf]),
        make_shared_mlp_chain(keys[4], [256 // sf + c_out_1, 128 // sf, 128 // sf]),
        make_shared_mlp_chain(keys[5], [c_out_2 + c_out_3, 256 // sf, 256 // sf]),
    ]

    # FC head: conv1d(+BN)+ReLU -> dropout -> conv1d+ReLU -> dropout -> conv1d (no act)
    # TODO(synk): dropout layers are identity here (eval/inference semantics).
    fc_layers = [
        make_layer_params(keys[6], 128 // sf, 256 // sf, bn=True),
        make_layer_params(keys[7], 256 // sf, 128 // sf, bn=False),
        make_layer_params(keys[8], 128 // sf, num_classes, bn=False),
    ]
    fc = stack_chain(fc_layers, relu_flags=(True, True, False))
    return dict(sa=sa, fp=fp, fc=fc, use_xyz=use_xyz)


# ------------------------------- full forward --------------------------------

def pointnet2_msg_forward(params, pointcloud):
    """pointcloud: (B, N, 3 + input_channels) -> (B, N, num_classes)."""
    xyz = pointcloud[..., 0:3]
    features = (jnp.transpose(pointcloud[..., 3:], (0, 2, 1))
                if pointcloud.shape[-1] > 3 else None)

    l_xyz, l_features = [xyz], [features]
    for sa in params["sa"]:
        nx, nf = sa_module_msg(l_xyz[-1], l_features[-1], sa["npoint"], sa["radii"],
                               sa["nsamples"], sa["chains"], use_xyz=params["use_xyz"])
        l_xyz.append(nx)
        l_features.append(nf)

    fp = params["fp"]
    for i in range(-1, -(len(fp) + 1), -1):
        l_features[i - 1] = fp_module(l_xyz[i - 1], l_xyz[i],
                                      l_features[i - 1], l_features[i], fp[i])

    x = fused_mlp_chain(l_features[0], params["fc"], nsample=1)   # fused 3-layer FC head
    return jnp.transpose(x, (0, 2, 1))


if __name__ == "__main__":
    key = jax.random.PRNGKey(0)
    k_param, k_data = jax.random.split(key)

    B, N = 2, 256
    input_channels = 5
    num_classes = 6

    params = build_pointnet2_msg_params(k_param, num_classes, input_channels, use_xyz=True)
    pc = jax.random.normal(k_data, (B, N, 3 + input_channels), jnp.float32)
    pc = pc.at[..., :3].multiply(2.0)  # spread xyz so ball-query radii find neighbors

    fwd = jax.jit(functools.partial(pointnet2_msg_forward, params))
    out = jax.block_until_ready(fwd(pc))
    assert out.shape == (B, N, num_classes) and out.dtype == jnp.float32
    assert bool(jnp.all(jnp.isfinite(out)))
    print("KERNEL_OK")
</pallas_src>

<mosaic_0001>
module attributes {stable_mosaic.version = 11 : i64} {
  func.func private @main(%arg0: i32) attributes {dimension_semantics = [#tpu.dimension_semantics<core_parallel>], iteration_bounds = array<i64: 2>, tpu.core_type = #tpu.core_type<sc_scalar_subcore>, window_params = []} {
    return
  }
}

module attributes {stable_mosaic.version = 11 : i64} {
  func.func private @main(%arg0: i32) attributes {dimension_semantics = [#tpu.dimension_semantics<core_parallel>], iteration_bounds = array<i64: 2>, tpu.core_type = #tpu.core_type<sc_scalar_subcore>, window_params = []} {
    return
  }
}

module attributes {stable_mosaic.version = 11 : i64} {
  func.func @_fused_chain_kernel(%arg0: i32, %arg1: memref<1x8x256xf32, #tpu.memory_space<vmem>>, %arg2: memref<3x16x16xf32, #tpu.memory_space<vmem>>, %arg3: memref<3x16x1xf32, #tpu.memory_space<vmem>>, %arg4: memref<1x16x128xf32, #tpu.memory_space<vmem>>) attributes {dimension_semantics = [#tpu.dimension_semantics<parallel>], iteration_bounds = array<i64: 2>, scalar_prefetch = 0 : i64, scratch_operands = 0 : i64, tpu.core_type = #tpu.core_type<tc>, window_params = [{transform_indices = @transform_0, window_bounds = array<i64: 1, 8, 256>}, {pipeline_mode = #tpu.pipeline_mode<synchronous>, transform_indices = @transform_1, window_bounds = array<i64: 3, 16, 16>}, {pipeline_mode = #tpu.pipeline_mode<synchronous>, transform_indices = @transform_2, window_bounds = array<i64: 3, 16, 1>}, {transform_indices = @transform_3, window_bounds = array<i64: 1, 16, 128>}]} {
    %c0 = arith.constant 0 : index
    %c0_0 = arith.constant 0 : index
    %c0_1 = arith.constant 0 : index
    %0 = vector.load %arg1[%c0, %c0_0, %c0_1] : memref<1x8x256xf32, #tpu.memory_space<vmem>>, vector<1x8x256xf32>
    %1 = vector.shape_cast %0 : vector<1x8x256xf32> to vector<8x256xf32>
    %c0_2 = arith.constant 0 : index
    %c0_3 = arith.constant 0 : index
    %c0_4 = arith.constant 0 : index
    %2 = vector.load %arg2[%c0_2, %c0_3, %c0_4] : memref<3x16x16xf32, #tpu.memory_space<vmem>>, vector<1x16x16xf32>
    %3 = vector.shape_cast %2 : vector<1x16x16xf32> to vector<16x16xf32>
    %4 = vector.extract_strided_slice %3 {offsets = [0, 0], sizes = [16, 8], strides = [1, 1]} : vector<16x16xf32> to vector<16x8xf32>
    %cst = arith.constant dense<0.000000e+00> : vector<16x256xf32>
    %5 = tpu.matmul %4, %1, %cst {dimension_numbers = #tpu.dot_dimension_numbers<[1], [0], [0], [1], [0, 0, 1, 1], [], []>} : vector<16x8xf32>, vector<8x256xf32>, vector<16x256xf32> -> vector<16x256xf32>
    %c0_5 = arith.constant 0 : index
    %c0_6 = arith.constant 0 : index
    %c0_7 = arith.constant 0 : index
    %6 = vector.load %arg3[%c0_5, %c0_6, %c0_7] : memref<3x16x1xf32, #tpu.memory_space<vmem>>, vector<1x16x1xf32>
    %7 = vector.shape_cast %6 : vector<1x16x1xf32> to vector<16x1xf32>
    %8 = vector.broadcast %7 : vector<16x1xf32> to vector<16x256xf32>
    %9 = arith.addf %5, %8 : vector<16x256xf32>
    %cst_8 = arith.constant 0.000000e+00 : f32
    %10 = vector.broadcast %cst_8 : f32 to vector<16x256xf32>
    %11 = arith.maximumf %9, %10 : vector<16x256xf32>
    %c1 = arith.constant 1 : index
    %c0_9 = arith.constant 0 : index
    %c0_10 = arith.constant 0 : index
    %12 = vector.load %arg2[%c1, %c0_9, %c0_10] : memref<3x16x16xf32, #tpu.memory_space<vmem>>, vector<1x16x16xf32>
    %13 = vector.shape_cast %12 : vector<1x16x16xf32> to vector<16x16xf32>
    %cst_11 = arith.constant dense<0.000000e+00> : vector<16x256xf32>
    %14 = tpu.matmul %13, %11, %cst_11 {dimension_numbers = #tpu.dot_dimension_numbers<[1], [0], [0], [1], [0, 0, 1, 1], [], []>} : vector<16x16xf32>, vector<16x256xf32>, vector<16x256xf32> -> vector<16x256xf32>
    %c1_12 = arith.constant 1 : index
    %c0_13 = arith.constant 0 : index
    %c0_14 = arith.constant 0 : index
    %15 = vector.load %arg3[%c1_12, %c0_13, %c0_14] : memref<3x16x1xf32, #tpu.memory_space<vmem>>, vector<1x16x1xf32>
    %16 = vector.shape_cast %15 : vector<1x16x1xf32> to vector<16x1xf32>
    %17 = vector.broadcast %16 : vector<16x1xf32> to vector<16x256xf32>
    %18 = arith.addf %14, %17 : vector<16x256xf32>
    %cst_15 = arith.constant 0.000000e+00 : f32
    %19 = vector.broadcast %cst_15 : f32 to vector<16x256xf32>
    %20 = arith.maximumf %18, %19 : vector<16x256xf32>
    %c2 = arith.constant 2 : index
    %c0_16 = arith.constant 0 : index
    %c0_17 = arith.constant 0 : index
    %21 = vector.load %arg2[%c2, %c0_16, %c0_17] : memref<3x16x16xf32, #tpu.memory_space<vmem>>, vector<1x16x16xf32>
    %22 = vector.shape_cast %21 : vector<1x16x16xf32> to vector<16x16xf32>
    %cst_18 = arith.constant dense<0.000000e+00> : vector<16x256xf32>
    %23 = tpu.matmul %22, %20, %cst_18 {dimension_numbers = #tpu.dot_dimension_numbers<[1], [0], [0], [1], [0, 0, 1, 1], [], []>} : vector<16x16xf32>, vector<16x256xf32>, vector<16x256xf32> -> vector<16x256xf32>
    %c2_19 = arith.constant 2 : index
    %c0_20 = arith.constant 0 : index
    %c0_21 = arith.constant 0 : index
    %24 = vector.load %arg3[%c2_19, %c0_20, %c0_21] : memref<3x16x1xf32, #tpu.memory_space<vmem>>, vector<1x16x1xf32>
    %25 = vector.shape_cast %24 : vector<1x16x1xf32> to vector<16x1xf32>
    %26 = vector.broadcast %25 : vector<16x1xf32> to vector<16x256xf32>
    %27 = arith.addf %23, %26 : vector<16x256xf32>
    %cst_22 = arith.constant 0.000000e+00 : f32
    %28 = vector.broadcast %cst_22 : f32 to vector<16x256xf32>
    %29 = arith.maximumf %27, %28 : vector<16x256xf32>
    %30 = vector.extract_strided_slice %29 {offsets = [0, 0], sizes = [16, 128], strides = [1, 1]} : vector<16x256xf32> to vector<16x128xf32>
    %31 = vector.extract_strided_slice %29 {offsets = [0, 128], sizes = [16, 128], strides = [1, 1]} : vector<16x256xf32> to vector<16x128xf32>
    %32 = arith.maximumf %30, %31 : vector<16x128xf32>
    %c0_23 = arith.constant 0 : index
    %c0_24 = arith.constant 0 : index
    %c0_25 = arith.constant 0 : index
    %33 = vector.load %arg4[%c0_23, %c0_24, %c0_25] : memref<1x16x128xf32, #tpu.memory_space<vmem>>, vector<1x16x128xf32>
    %34 = vector.shape_cast %33 : vector<1x16x128xf32> to vector<16x128xf32>
    %35 = vector.shape_cast %32 : vector<16x128xf32> to vector<1x16x128xf32>
    tpu.vector_store %arg4[%c0_23, %c0_24, %c0_25], %35 {strides = array<i32>} : memref<1x16x128xf32, #tpu.memory_space<vmem>>, vector<1x16x128xf32>,
    return
  }
  func.func @transform_0(%arg0: i32) -> (i32, i32, i32) {
    %c0_i32 = arith.constant 0 : i32
    %c0_i32_0 = arith.constant 0 : i32
    %c0_i32_1 = arith.constant 0 : i32
    return %arg0, %c0_i32, %c0_i32_0 : i32, i32, i32
  }
  func.func @transform_1(%arg0: i32) -> (i32, i32, i32) {
    %c0_i32 = arith.constant 0 : i32
    %c0_i32_0 = arith.constant 0 : i32
    %c0_i32_1 = arith.constant 0 : i32
    %c0_i32_2 = arith.constant 0 : i32
    return %c0_i32, %c0_i32_0, %c0_i32_1 : i32, i32, i32
  }
  func.func @transform_2(%arg0: i32) -> (i32, i32, i32) {
    %c0_i32 = arith.constant 0 : i32
    %c0_i32_0 = arith.constant 0 : i32
    %c0_i32_1 = arith.constant 0 : i32
    %c0_i32_2 = arith.constant 0 : i32
    return %c0_i32, %c0_i32_0, %c0_i32_1 : i32, i32, i32
  }
  func.func @transform_3(%arg0: i32) -> (i32, i32, i32) {
    %c0_i32 = arith.constant 0 : i32
    %c0_i32_0 = arith.constant 0 : i32
    %c0_i32_1 = arith.constant 0 : i32
    return %arg0, %c0_i32, %c0_i32_0 : i32, i32, i32
  }
}

module attributes {stable_mosaic.version = 11 : i64} {
  func.func @_fused_chain_kernel(%arg0: i32, %arg1: memref<1x8x1024xf32, #tpu.memory_space<vmem>>, %arg2: memref<3x32x32xf32, #tpu.memory_space<vmem>>, %arg3: memref<3x32x1xf32, #tpu.memory_space<vmem>>, %arg4: memref<1x32x128xf32, #tpu.memory_space<vmem>>) attributes {dimension_semantics = [#tpu.dimension_semantics<parallel>], iteration_bounds = array<i64: 2>, scalar_prefetch = 0 : i64, scratch_operands = 0 : i64, tpu.core_type = #tpu.core_type<tc>, window_params = [{transform_indices = @transform_0, window_bounds = array<i64: 1, 8, 1024>}, {pipeline_mode = #tpu.pipeline_mode<synchronous>, transform_indices = @transform_1, window_bounds = array<i64: 3, 32, 32>}, {pipeline_mode = #tpu.pipeline_mode<synchronous>, transform_indices = @transform_2, window_bounds = array<i64: 3, 32, 1>}, {transform_indices = @transform_3, window_bounds = array<i64: 1, 32, 128>}]} {
    %c0 = arith.constant 0 : index
    %c0_0 = arith.constant 0 : index
    %c0_1 = arith.constant 0 : index
    %0 = vector.load %arg1[%c0, %c0_0, %c0_1] : memref<1x8x1024xf32, #tpu.memory_space<vmem>>, vector<1x8x1024xf32>
    %1 = vector.shape_cast %0 : vector<1x8x1024xf32> to vector<8x1024xf32>
    %c0_2 = arith.constant 0 : index
    %c0_3 = arith.constant 0 : index
    %c0_4 = arith.constant 0 : index
    %2 = vector.load %arg2[%c0_2, %c0_3, %c0_4] : memref<3x32x32xf32, #tpu.memory_space<vmem>>, vector<1x32x32xf32>
    %3 = vector.shape_cast %2 : vector<1x32x32xf32> to vector<32x32xf32>
    %4 = vector.extract_strided_slice %3 {offsets = [0, 0], sizes = [32, 8], strides = [1, 1]} : vector<32x32xf32> to vector<32x8xf32>
    %cst = arith.constant dense<0.000000e+00> : vector<32x1024xf32>
    %5 = tpu.matmul %4, %1, %cst {dimension_numbers = #tpu.dot_dimension_numbers<[1], [0], [0], [1], [0, 0, 1, 1], [], []>} : vector<32x8xf32>, vector<8x1024xf32>, vector<32x1024xf32> -> vector<32x1024xf32>
    %c0_5 = arith.constant 0 : index
    %c0_6 = arith.constant 0 : index
    %c0_7 = arith.constant 0 : index
    %6 = vector.load %arg3[%c0_5, %c0_6, %c0_7] : memref<3x32x1xf32, #tpu.memory_space<vmem>>, vector<1x32x1xf32>
    %7 = vector.shape_cast %6 : vector<1x32x1xf32> to vector<32x1xf32>
    %8 = vector.broadcast %7 : vector<32x1xf32> to vector<32x1024xf32>
    %9 = arith.addf %5, %8 : vector<32x1024xf32>
    %cst_8 = arith.constant 0.000000e+00 : f32
    %10 = vector.broadcast %cst_8 : f32 to vector<32x1024xf32>
    %11 = arith.maximumf %9, %10 : vector<32x1024xf32>
    %c1 = arith.constant 1 : index
    %c0_9 = arith.constant 0 : index
    %c0_10 = arith.constant 0 : index
    %12 = vector.load %arg2[%c1, %c0_9, %c0_10] : memref<3x32x32xf32, #tpu.memory_space<vmem>>, vector<1x32x32xf32>
    %13 = vector.shape_cast %12 : vector<1x32x32xf32> to vector<32x32xf32>
    %cst_11 = arith.constant dense<0.000000e+00> : vector<32x1024xf32>
    %14 = tpu.matmul %13, %11, %cst_11 {dimension_numbers = #tpu.dot_dimension_numbers<[1], [0], [0], [1], [0, 0, 1, 1], [], []>} : vector<32x32xf32>, vector<32x1024xf32>, vector<32x1024xf32> -> vector<32x1024xf32>
    %c1_12 = arith.constant 1 : index
    %c0_13 = arith.constant 0 : index
    %c0_14 = arith.constant 0 : index
    %15 = vector.load %arg3[%c1_12, %c0_13, %c0_14] : memref<3x32x1xf32, #tpu.memory_space<vmem>>, vector<1x32x1xf32>
    %16 = vector.shape_cast %15 : vector<1x32x1xf32> to vector<32x1xf32>
    %17 = vector.broadcast %16 : vector<32x1xf32> to vector<32x1024xf32>
    %18 = arith.addf %14, %17 : vector<32x1024xf32>
    %cst_15 = arith.constant 0.000000e+00 : f32
    %19 = vector.broadcast %cst_15 : f32 to vector<32x1024xf32>
    %20 = arith.maximumf %18, %19 : vector<32x1024xf32>
    %c2 = arith.constant 2 : index
    %c0_16 = arith.constant 0 : index
    %c0_17 = arith.constant 0 : index
    %21 = vector.load %arg2[%c2, %c0_16, %c0_17] : memref<3x32x32xf32, #tpu.memory_space<vmem>>, vector<1x32x32xf32>
    %22 = vector.shape_cast %21 : vector<1x32x32xf32> to vector<32x32xf32>
    %cst_18 = arith.constant dense<0.000000e+00> : vector<32x1024xf32>
    %23 = tpu.matmul %22, %20, %cst_18 {dimension_numbers = #tpu.dot_dimension_numbers<[1], [0], [0], [1], [0, 0, 1, 1], [], []>} : vector<32x32xf32>, vector<32x1024xf32>, vector<32x1024xf32> -> vector<32x1024xf32>
    %c2_19 = arith.constant 2 : index
    %c0_20 = arith.constant 0 : index
    %c0_21 = arith.constant 0 : index
    %24 = vector.load %arg3[%c2_19, %c0_20, %c0_21] : memref<3x32x1xf32, #tpu.memory_space<vmem>>, vector<1x32x1xf32>
    %25 = vector.shape_cast %24 : vector<1x32x1xf32> to vector<32x1xf32>
    %26 = vector.broadcast %25 : vector<32x1xf32> to vector<32x1024xf32>
    %27 = arith.addf %23, %26 : vector<32x1024xf32>
    %cst_22 = arith.constant 0.000000e+00 : f32
    %28 = vector.broadcast %cst_22 : f32 to vector<32x1024xf32>
    %29 = arith.maximumf %27, %28 : vector<32x1024xf32>
    %30 = vector.extract_strided_slice %29 {offsets = [0, 0], sizes = [32, 128], strides = [1, 1]} : vector<32x1024xf32> to vector<32x128xf32>
    %31 = vector.extract_strided_slice %29 {offsets = [0, 128], sizes = [32, 128], strides = [1, 1]} : vector<32x1024xf32> to vector<32x128xf32>
    %32 = arith.maximumf %30, %31 : vector<32x128xf32>
    %33 = vector.extract_strided_slice %29 {offsets = [0, 256], sizes = [32, 128], strides = [1, 1]} : vector<32x1024xf32> to vector<32x128xf32>
    %34 = arith.maximumf %32, %33 : vector<32x128xf32>
    %35 = vector.extract_strided_slice %29 {offsets = [0, 384], sizes = [32, 128], strides = [1, 1]} : vector<32x1024xf32> to vector<32x128xf32>
    %36 = arith.maximumf %34, %35 : vector<32x128xf32>
    %37 = vector.extract_strided_slice %29 {offsets = [0, 512], sizes = [32, 128], strides = [1, 1]} : vector<32x1024xf32> to vector<32x128xf32>
    %38 = arith.maximumf %36, %37 : vector<32x128xf32>
    %39 = vector.extract_strided_slice %29 {offsets = [0, 640], sizes = [32, 128], strides = [1, 1]} : vector<32x1024xf32> to vector<32x128xf32>
    %40 = arith.maximumf %38, %39 : vector<32x128xf32>
    %41 = vector.extract_strided_slice %29 {offsets = [0, 768], sizes = [32, 128], strides = [1, 1]} : vector<32x1024xf32> to vector<32x128xf32>
    %42 = arith.maximumf %40, %41 : vector<32x128xf32>
    %43 = vector.extract_strided_slice %29 {offsets = [0, 896], sizes = [32, 128], strides = [1, 1]} : vector<32x1024xf32> to vector<32x128xf32>
    %44 = arith.maximumf %42, %43 : vector<32x128xf32>
    %c0_23 = arith.constant 0 : index
    %c0_24 = arith.constant 0 : index
    %c0_25 = arith.constant 0 : index
    %45 = vector.load %arg4[%c0_23, %c0_24, %c0_25] : memref<1x32x128xf32, #tpu.memory_space<vmem>>, vector<1x32x128xf32>
    %46 = vector.shape_cast %45 : vector<1x32x128xf32> to vector<32x128xf32>
    %47 = vector.shape_cast %44 : vector<32x128xf32> to vector<1x32x128xf32>
    tpu.vector_store %arg4[%c0_23, %c0_24, %c0_25], %47 {strides = array<i32>} : memref<1x32x128xf32, #tpu.memory_space<vmem>>, vector<1x32x128xf32>,
    return
  }
  func.func @transform_0(%arg0: i32) -> (i32, i32, i32) {
    %c0_i32 = arith.constant 0 : i32
    %c0_i32_0 = arith.constant 0 : i32
    %c0_i32_1 = arith.constant 0 : i32
    return %arg0, %c0_i32, %c0_i32_0 : i32, i32, i32
  }
  func.func @transform_1(%arg0: i32) -> (i32, i32, i32) {
    %c0_i32 = arith.constant 0 : i32
    %c0_i32_0 = arith.constant 0 : i32
    %c0_i32_1 = arith.constant 0 : i32
    %c0_i32_2 = arith.constant 0 : i32
    return %c0_i32, %c0_i32_0, %c0_i32_1 : i32, i32, i32
  }
  func.func @transform_2(%arg0: i32) -> (i32, i32, i32) {
    %c0_i32 = arith.constant 0 : i32
    %c0_i32_0 = arith.constant 0 : i32
    %c0_i32_1 = arith.constant 0 : i32
    %c0_i32_2 = arith.constant 0 : i32
    return %c0_i32, %c0_i32_0, %c0_i32_1 : i32, i32, i32
  }
  func.func @transform_3(%arg0: i32) -> (i32, i32, i32) {
    %c0_i32 = arith.constant 0 : i32
    %c0_i32_0 = arith.constant 0 : i32
    %c0_i32_1 = arith.constant 0 : i32
    return %arg0, %c0_i32, %c0_i32_0 : i32, i32, i32
  }
}

module attributes {stable_mosaic.version = 11 : i64} {
  func.func @_fused_chain_kernel(%arg0: i32, %arg1: memref<1x56x256xf32, #tpu.memory_space<vmem>>, %arg2: memref<3x56x56xf32, #tpu.memory_space<vmem>>, %arg3: memref<3x56x1xf32, #tpu.memory_space<vmem>>, %arg4: memref<1x16x128xf32, #tpu.memory_space<vmem>>) attributes {dimension_semantics = [#tpu.dimension_semantics<parallel>], iteration_bounds = array<i64: 2>, scalar_prefetch = 0 : i64, scratch_operands = 0 : i64, tpu.core_type = #tpu.core_type<tc>, window_params = [{transform_indices = @transform_0, window_bounds = array<i64: 1, 56, 256>}, {pipeline_mode = #tpu.pipeline_mode<synchronous>, transform_indices = @transform_1, window_bounds = array<i64: 3, 56, 56>}, {pipeline_mode = #tpu.pipeline_mode<synchronous>, transform_indices = @transform_2, window_bounds = array<i64: 3, 56, 1>}, {transform_indices = @transform_3, window_bounds = array<i64: 1, 16, 128>}]} {
    %c0 = arith.constant 0 : index
    %c0_0 = arith.constant 0 : index
    %c0_1 = arith.constant 0 : index
    %0 = vector.load %arg1[%c0, %c0_0, %c0_1] : memref<1x56x256xf32, #tpu.memory_space<vmem>>, vector<1x56x256xf32>
    %1 = vector.shape_cast %0 : vector<1x56x256xf32> to vector<56x256xf32>
    %c0_2 = arith.constant 0 : index
    %c0_3 = arith.constant 0 : index
    %c0_4 = arith.constant 0 : index
    %2 = vector.load %arg2[%c0_2, %c0_3, %c0_4] : memref<3x56x56xf32, #tpu.memory_space<vmem>>, vector<1x56x56xf32>
    %3 = vector.shape_cast %2 : vector<1x56x56xf32> to vector<56x56xf32>
    %cst = arith.constant dense<0.000000e+00> : vector<56x256xf32>
    %4 = tpu.matmul %3, %1, %cst {dimension_numbers = #tpu.dot_dimension_numbers<[1], [0], [0], [1], [0, 0, 1, 1], [], []>} : vector<56x56xf32>, vector<56x256xf32>, vector<56x256xf32> -> vector<56x256xf32>
    %c0_5 = arith.constant 0 : index
    %c0_6 = arith.constant 0 : index
    %c0_7 = arith.constant 0 : index
    %5 = vector.load %arg3[%c0_5, %c0_6, %c0_7] : memref<3x56x1xf32, #tpu.memory_space<vmem>>, vector<1x56x1xf32>
    %6 = vector.shape_cast %5 : vector<1x56x1xf32> to vector<56x1xf32>
    %7 = vector.broadcast %6 : vector<56x1xf32> to vector<56x256xf32>
    %8 = arith.addf %4, %7 : vector<56x256xf32>
    %cst_8 = arith.constant 0.000000e+00 : f32
    %9 = vector.broadcast %cst_8 : f32 to vector<56x256xf32>
    %10 = arith.maximumf %8, %9 : vector<56x256xf32>
    %c1 = arith.constant 1 : index
    %c0_9 = arith.constant 0 : index
    %c0_10 = arith.constant 0 : index
    %11 = vector.load %arg2[%c1, %c0_9, %c0_10] : memref<3x56x56xf32, #tpu.memory_space<vmem>>, vector<1x56x56xf32>
    %12 = vector.shape_cast %11 : vector<1x56x56xf32> to vector<56x56xf32>
    %cst_11 = arith.constant dense<0.000000e+00> : vector<56x256xf32>
    %13 = tpu.matmul %12, %10, %cst_11 {dimension_numbers = #tpu.dot_dimension_numbers<[1], [0], [0], [1], [0, 0, 1, 1], [], []>} : vector<56x56xf32>, vector<56x256xf32>, vector<56x256xf32> -> vector<56x256xf32>
    %c1_12 = arith.constant 1 : index
    %c0_13 = arith.constant 0 : index
    %c0_14 = arith.constant 0 : index
    %14 = vector.load %arg3[%c1_12, %c0_13, %c0_14] : memref<3x56x1xf32, #tpu.memory_space<vmem>>, vector<1x56x1xf32>
    %15 = vector.shape_cast %14 : vector<1x56x1xf32> to vector<56x1xf32>
    %16 = vector.broadcast %15 : vector<56x1xf32> to vector<56x256xf32>
    %17 = arith.addf %13, %16 : vector<56x256xf32>
    %cst_15 = arith.constant 0.000000e+00 : f32
    %18 = vector.broadcast %cst_15 : f32 to vector<56x256xf32>
    %19 = arith.maximumf %17, %18 : vector<56x256xf32>
    %c2 = arith.constant 2 : index
    %c0_16 = arith.constant 0 : index
    %c0_17 = arith.constant 0 : index
    %20 = vector.load %arg2[%c2, %c0_16, %c0_17] : memref<3x56x56xf32, #tpu.memory_space<vmem>>, vector<1x56x56xf32>
    %21 = vector.shape_cast %20 : vector<1x56x56xf32> to vector<56x56xf32>
    %cst_18 = arith.constant dense<0.000000e+00> : vector<56x256xf32>
    %22 = tpu.matmul %21, %19, %cst_18 {dimension_numbers = #tpu.dot_dimension_numbers<[1], [0], [0], [1], [0, 0, 1, 1], [], []>} : vector<56x56xf32>, vector<56x256xf32>, vector<56x256xf32> -> vector<56x256xf32>
    %c2_19 = arith.constant 2 : index
    %c0_20 = arith.constant 0 : index
    %c0_21 = arith.constant 0 : index
    %23 = vector.load %arg3[%c2_19, %c0_20, %c0_21] : memref<3x56x1xf32, #tpu.memory_space<vmem>>, vector<1x56x1xf32>
    %24 = vector.shape_cast %23 : vector<1x56x1xf32> to vector<56x1xf32>
    %25 = vector.broadcast %24 : vector<56x1xf32> to vector<56x256xf32>
    %26 = arith.addf %22, %25 : vector<56x256xf32>
    %cst_22 = arith.constant 0.000000e+00 : f32
    %27 = vector.broadcast %cst_22 : f32 to vector<56x256xf32>
    %28 = arith.maximumf %26, %27 : vector<56x256xf32>
    %29 = vector.extract_strided_slice %28 {offsets = [0, 0], sizes = [16, 256], strides = [1, 1]} : vector<56x256xf32> to vector<16x256xf32>
    %30 = vector.extract_strided_slice %29 {offsets = [0, 0], sizes = [16, 128], strides = [1, 1]} : vector<16x256xf32> to vector<16x128xf32>
    %31 = vector.extract_strided_slice %29 {offsets = [0, 128], sizes = [16, 128], strides = [1, 1]} : vector<16x256xf32> to vector<16x128xf32>
    %32 = arith.maximumf %30, %31 : vector<16x128xf32>
    %c0_23 = arith.constant 0 : index
    %c0_24 = arith.constant 0 : index
    %c0_25 = arith.constant 0 : index
    %33 = vector.load %arg4[%c0_23, %c0_24, %c0_25] : memref<1x16x128xf32, #tpu.memory_space<vmem>>, vector<1x16x128xf32>
    %34 = vector.shape_cast %33 : vector<1x16x128xf32> to vector<16x128xf32>
    %35 = vector.shape_cast %32 : vector<16x128xf32> to vector<1x16x128xf32>
    tpu.vector_store %arg4[%c0_23, %c0_24, %c0_25], %35 {strides = array<i32>} : memref<1x16x128xf32, #tpu.memory_space<vmem>>, vector<1x16x128xf32>,
    return
  }
  func.func @transform_0(%arg0: i32) -> (i32, i32, i32) {
    %c0_i32 = arith.constant 0 : i32
    %c0_i32_0 = arith.constant 0 : i32
    %c0_i32_1 = arith.constant 0 : i32
    return %arg0, %c0_i32, %c0_i32_0 : i32, i32, i32
  }
  func.func @transform_1(%arg0: i32) -> (i32, i32, i32) {
    %c0_i32 = arith.constant 0 : i32
    %c0_i32_0 = arith.constant 0 : i32
    %c0_i32_1 = arith.constant 0 : i32
    %c0_i32_2 = arith.constant 0 : i32
    return %c0_i32, %c0_i32_0, %c0_i32_1 : i32, i32, i32
  }
  func.func @transform_2(%arg0: i32) -> (i32, i32, i32) {
    %c0_i32 = arith.constant 0 : i32
    %c0_i32_0 = arith.constant 0 : i32
    %c0_i32_1 = arith.constant 0 : i32
    %c0_i32_2 = arith.constant 0 : i32
    return %c0_i32, %c0_i32_0, %c0_i32_1 : i32, i32, i32
  }
  func.func @transform_3(%arg0: i32) -> (i32, i32, i32) {
    %c0_i32 = arith.constant 0 : i32
    %c0_i32_0 = arith.constant 0 : i32
    %c0_i32_1 = arith.constant 0 : i32
    return %arg0, %c0_i32, %c0_i32_0 : i32, i32, i32
  }
}

module attributes {stable_mosaic.version = 11 : i64} {
  func.func @_fused_chain_kernel(%arg0: i32, %arg1: memref<1x56x1024xf32, #tpu.memory_space<vmem>>, %arg2: memref<3x56x56xf32, #tpu.memory_space<vmem>>, %arg3: memref<3x56x1xf32, #tpu.memory_space<vmem>>, %arg4: memref<1x32x128xf32, #tpu.memory_space<vmem>>) attributes {dimension_semantics = [#tpu.dimension_semantics<parallel>], iteration_bounds = array<i64: 2>, scalar_prefetch = 0 : i64, scratch_operands = 0 : i64, tpu.core_type = #tpu.core_type<tc>, window_params = [{transform_indices = @transform_0, window_bounds = array<i64: 1, 56, 1024>}, {pipeline_mode = #tpu.pipeline_mode<synchronous>, transform_indices = @transform_1, window_bounds = array<i64: 3, 56, 56>}, {pipeline_mode = #tpu.pipeline_mode<synchronous>, transform_indices = @transform_2, window_bounds = array<i64: 3, 56, 1>}, {transform_indices = @transform_3, window_bounds = array<i64: 1, 32, 128>}]} {
    %c0 = arith.constant 0 : index
    %c0_0 = arith.constant 0 : index
    %c0_1 = arith.constant 0 : index
    %0 = vector.load %arg1[%c0, %c0_0, %c0_1] : memref<1x56x1024xf32, #tpu.memory_space<vmem>>, vector<1x56x1024xf32>
    %1 = vector.shape_cast %0 : vector<1x56x1024xf32> to vector<56x1024xf32>
    %c0_2 = arith.constant 0 : index
    %c0_3 = arith.constant 0 : index
    %c0_4 = arith.constant 0 : index
    %2 = vector.load %arg2[%c0_2, %c0_3, %c0_4] : memref<3x56x56xf32, #tpu.memory_space<vmem>>, vector<1x56x56xf32>
    %3 = vector.shape_cast %2 : vector<1x56x56xf32> to vector<56x56xf32>
    %cst = arith.constant dense<0.000000e+00> : vector<56x1024xf32>
    %4 = tpu.matmul %3, %1, %cst {dimension_numbers = #tpu.dot_dimension_numbers<[1], [0], [0], [1], [0, 0, 1, 1], [], []>} : vector<56x56xf32>, vector<56x1024xf32>, vector<56x1024xf32> -> vector<56x1024xf32>
    %c0_5 = arith.constant 0 : index
    %c0_6 = arith.constant 0 : index
    %c0_7 = arith.constant 0 : index
    %5 = vector.load %arg3[%c0_5, %c0_6, %c0_7] : memref<3x56x1xf32, #tpu.memory_space<vmem>>, vector<1x56x1xf32>
    %6 = vector.shape_cast %5 : vector<1x56x1xf32> to vector<56x1xf32>
    %7 = vector.broadcast %6 : vector<56x1xf32> to vector<56x1024xf32>
    %8 = arith.addf %4, %7 : vector<56x1024xf32>
    %cst_8 = arith.constant 0.000000e+00 : f32
    %9 = vector.broadcast %cst_8 : f32 to vector<56x1024xf32>
    %10 = arith.maximumf %8, %9 : vector<56x1024xf32>
    %c1 = arith.constant 1 : index
    %c0_9 = arith.constant 0 : index
    %c0_10 = arith.constant 0 : index
    %11 = vector.load %arg2[%c1, %c0_9, %c0_10] : memref<3x56x56xf32, #tpu.memory_space<vmem>>, vector<1x56x56xf32>
    %12 = vector.shape_cast %11 : vector<1x56x56xf32> to vector<56x56xf32>
    %cst_11 = arith.constant dense<0.000000e+00> : vector<56x1024xf32>
    %13 = tpu.matmul %12, %10, %cst_11 {dimension_numbers = #tpu.dot_dimension_numbers<[1], [0], [0], [1], [0, 0, 1, 1], [], []>} : vector<56x56xf32>, vector<56x1024xf32>, vector<56x1024xf32> -> vector<56x1024xf32>
    %c1_12 = arith.constant 1 : index
    %c0_13 = arith.constant 0 : index
    %c0_14 = arith.constant 0 : index
    %14 = vector.load %arg3[%c1_12, %c0_13, %c0_14] : memref<3x56x1xf32, #tpu.memory_space<vmem>>, vector<1x56x1xf32>
    %15 = vector.shape_cast %14 : vector<1x56x1xf32> to vector<56x1xf32>
    %16 = vector.broadcast %15 : vector<56x1xf32> to vector<56x1024xf32>
    %17 = arith.addf %13, %16 : vector<56x1024xf32>
    %cst_15 = arith.constant 0.000000e+00 : f32
    %18 = vector.broadcast %cst_15 : f32 to vector<56x1024xf32>
    %19 = arith.maximumf %17, %18 : vector<56x1024xf32>
    %c2 = arith.constant 2 : index
    %c0_16 = arith.constant 0 : index
    %c0_17 = arith.constant 0 : index
    %20 = vector.load %arg2[%c2, %c0_16, %c0_17] : memref<3x56x56xf32, #tpu.memory_space<vmem>>, vector<1x56x56xf32>
    %21 = vector.shape_cast %20 : vector<1x56x56xf32> to vector<56x56xf32>
    %cst_18 = arith.constant dense<0.000000e+00> : vector<56x1024xf32>
    %22 = tpu.matmul %21, %19, %cst_18 {dimension_numbers = #tpu.dot_dimension_numbers<[1], [0], [0], [1], [0, 0, 1, 1], [], []>} : vector<56x56xf32>, vector<56x1024xf32>, vector<56x1024xf32> -> vector<56x1024xf32>
    %c2_19 = arith.constant 2 : index
    %c0_20 = arith.constant 0 : index
    %c0_21 = arith.constant 0 : index
    %23 = vector.load %arg3[%c2_19, %c0_20, %c0_21] : memref<3x56x1xf32, #tpu.memory_space<vmem>>, vector<1x56x1xf32>
    %24 = vector.shape_cast %23 : vector<1x56x1xf32> to vector<56x1xf32>
    %25 = vector.broadcast %24 : vector<56x1xf32> to vector<56x1024xf32>
    %26 = arith.addf %22, %25 : vector<56x1024xf32>
    %cst_22 = arith.constant 0.000000e+00 : f32
    %27 = vector.broadcast %cst_22 : f32 to vector<56x1024xf32>
    %28 = arith.maximumf %26, %27 : vector<56x1024xf32>
    %29 = vector.extract_strided_slice %28 {offsets = [0, 0], sizes = [32, 1024], strides = [1, 1]} : vector<56x1024xf32> to vector<32x1024xf32>
    %30 = vector.extract_strided_slice %29 {offsets = [0, 0], sizes = [32, 128], strides = [1, 1]} : vector<32x1024xf32> to vector<32x128xf32>
    %31 = vector.extract_strided_slice %29 {offsets = [0, 128], sizes = [32, 128], strides = [1, 1]} : vector<32x1024xf32> to vector<32x128xf32>
    %32 = arith.maximumf %30, %31 : vector<32x128xf32>
    %33 = vector.extract_strided_slice %29 {offsets = [0, 256], sizes = [32, 128], strides = [1, 1]} : vector<32x1024xf32> to vector<32x128xf32>
    %34 = arith.maximumf %32, %33 : vector<32x128xf32>
    %35 = vector.extract_strided_slice %29 {offsets = [0, 384], sizes = [32, 128], strides = [1, 1]} : vector<32x1024xf32> to vector<32x128xf32>
    %36 = arith.maximumf %34, %35 : vector<32x128xf32>
    %37 = vector.extract_strided_slice %29 {offsets = [0, 512], sizes = [32, 128], strides = [1, 1]} : vector<32x1024xf32> to vector<32x128xf32>
    %38 = arith.maximumf %36, %37 : vector<32x128xf32>
    %39 = vector.extract_strided_slice %29 {offsets = [0, 640], sizes = [32, 128], strides = [1, 1]} : vector<32x1024xf32> to vector<32x128xf32>
    %40 = arith.maximumf %38, %39 : vector<32x128xf32>
    %41 = vector.extract_strided_slice %29 {offsets = [0, 768], sizes = [32, 128], strides = [1, 1]} : vector<32x1024xf32> to vector<32x128xf32>
    %42 = arith.maximumf %40, %41 : vector<32x128xf32>
    %43 = vector.extract_strided_slice %29 {offsets = [0, 896], sizes = [32, 128], strides = [1, 1]} : vector<32x1024xf32> to vector<32x128xf32>
    %44 = arith.maximumf %42, %43 : vector<32x128xf32>
    %c0_23 = arith.constant 0 : index
    %c0_24 = arith.constant 0 : index
    %c0_25 = arith.constant 0 : index
    %45 = vector.load %arg4[%c0_23, %c0_24, %c0_25] : memref<1x32x128xf32, #tpu.memory_space<vmem>>, vector<1x32x128xf32>
    %46 = vector.shape_cast %45 : vector<1x32x128xf32> to vector<32x128xf32>
    %47 = vector.shape_cast %44 : vector<32x128xf32> to vector<1x32x128xf32>
    tpu.vector_store %arg4[%c0_23, %c0_24, %c0_25], %47 {strides = array<i32>} : memref<1x32x128xf32, #tpu.memory_space<vmem>>, vector<1x32x128xf32>,
    return
  }
  func.func @transform_0(%arg0: i32) -> (i32, i32, i32) {
    %c0_i32 = arith.constant 0 : i32
    %c0_i32_0 = arith.constant 0 : i32
    %c0_i32_1 = arith.constant 0 : i32
    return %arg0, %c0_i32, %c0_i32_0 : i32, i32, i32
  }
  func.func @transform_1(%arg0: i32) -> (i32, i32, i32) {
    %c0_i32 = arith.constant 0 : i32
    %c0_i32_0 = arith.constant 0 : i32
    %c0_i32_1 = arith.constant 0 : i32
    %c0_i32_2 = arith.constant 0 : i32
    return %c0_i32, %c0_i32_0, %c0_i32_1 : i32, i32, i32
  }
  func.func @transform_2(%arg0: i32) -> (i32, i32, i32) {
    %c0_i32 = arith.constant 0 : i32
    %c0_i32_0 = arith.constant 0 : i32
    %c0_i32_1 = arith.constant 0 : i32
    %c0_i32_2 = arith.constant 0 : i32
    return %c0_i32, %c0_i32_0, %c0_i32_1 : i32, i32, i32
  }
  func.func @transform_3(%arg0: i32) -> (i32, i32, i32) {
    %c0_i32 = arith.constant 0 : i32
    %c0_i32_0 = arith.constant 0 : i32
    %c0_i32_1 = arith.constant 0 : i32
    return %arg0, %c0_i32, %c0_i32_0 : i32, i32, i32
  }
}

module attributes {stable_mosaic.version = 11 : i64} {
  func.func @_fused_chain_kernel(%arg0: i32, %arg1: memref<1x56x256xf32, #tpu.memory_space<vmem>>, %arg2: memref<3x56x56xf32, #tpu.memory_space<vmem>>, %arg3: memref<3x56x1xf32, #tpu.memory_space<vmem>>, %arg4: memref<1x32x64xf32, #tpu.memory_space<vmem>>) attributes {dimension_semantics = [#tpu.dimension_semantics<parallel>], iteration_bounds = array<i64: 2>, scalar_prefetch = 0 : i64, scratch_operands = 0 : i64, tpu.core_type = #tpu.core_type<tc>, window_params = [{transform_indices = @transform_0, window_bounds = array<i64: 1, 56, 256>}, {pipeline_mode = #tpu.pipeline_mode<synchronous>, transform_indices = @transform_1, window_bounds = array<i64: 3, 56, 56>}, {pipeline_mode = #tpu.pipeline_mode<synchronous>, transform_indices = @transform_2, window_bounds = array<i64: 3, 56, 1>}, {transform_indices = @transform_3, window_bounds = array<i64: 1, 32, 64>}]} {
    %c0 = arith.constant 0 : index
    %c0_0 = arith.constant 0 : index
    %c0_1 = arith.constant 0 : index
    %0 = vector.load %arg1[%c0, %c0_0, %c0_1] : memref<1x56x256xf32, #tpu.memory_space<vmem>>, vector<1x56x256xf32>
    %1 = vector.shape_cast %0 : vector<1x56x256xf32> to vector<56x256xf32>
    %c0_2 = arith.constant 0 : index
    %c0_3 = arith.constant 0 : index
    %c0_4 = arith.constant 0 : index
    %2 = vector.load %arg2[%c0_2, %c0_3, %c0_4] : memref<3x56x56xf32, #tpu.memory_space<vmem>>, vector<1x56x56xf32>
    %3 = vector.shape_cast %2 : vector<1x56x56xf32> to vector<56x56xf32>
    %cst = arith.constant dense<0.000000e+00> : vector<56x256xf32>
    %4 = tpu.matmul %3, %1, %cst {dimension_numbers = #tpu.dot_dimension_numbers<[1], [0], [0], [1], [0, 0, 1, 1], [], []>} : vector<56x56xf32>, vector<56x256xf32>, vector<56x256xf32> -> vector<56x256xf32>
    %c0_5 = arith.constant 0 : index
    %c0_6 = arith.constant 0 : index
    %c0_7 = arith.constant 0 : index
    %5 = vector.load %arg3[%c0_5, %c0_6, %c0_7] : memref<3x56x1xf32, #tpu.memory_space<vmem>>, vector<1x56x1xf32>
    %6 = vector.shape_cast %5 : vector<1x56x1xf32> to vector<56x1xf32>
    %7 = vector.broadcast %6 : vector<56x1xf32> to vector<56x256xf32>
    %8 = arith.addf %4, %7 : vector<56x256xf32>
    %cst_8 = arith.constant 0.000000e+00 : f32
    %9 = vector.broadcast %cst_8 : f32 to vector<56x256xf32>
    %10 = arith.maximumf %8, %9 : vector<56x256xf32>
    %c1 = arith.constant 1 : index
    %c0_9 = arith.constant 0 : index
    %c0_10 = arith.constant 0 : index
    %11 = vector.load %arg2[%c1, %c0_9, %c0_10] : memref<3x56x56xf32, #tpu.memory_space<vmem>>, vector<1x56x56xf32>
    %12 = vector.shape_cast %11 : vector<1x56x56xf32> to vector<56x56xf32>
    %cst_11 = arith.constant dense<0.000000e+00> : vector<56x256xf32>
    %13 = tpu.matmul %12, %10, %cst_11 {dimension_numbers = #tpu.dot_dimension_numbers<[1], [0], [0], [1], [0, 0, 1, 1], [], []>} : vector<56x56xf32>, vector<56x256xf32>, vector<56x256xf32> -> vector<56x256xf32>
    %c1_12 = arith.constant 1 : index
    %c0_13 = arith.constant 0 : index
    %c0_14 = arith.constant 0 : index
    %14 = vector.load %arg3[%c1_12, %c0_13, %c0_14] : memref<3x56x1xf32, #tpu.memory_space<vmem>>, vector<1x56x1xf32>
    %15 = vector.shape_cast %14 : vector<1x56x1xf32> to vector<56x1xf32>
    %16 = vector.broadcast %15 : vector<56x1xf32> to vector<56x256xf32>
    %17 = arith.addf %13, %16 : vector<56x256xf32>
    %cst_15 = arith.constant 0.000000e+00 : f32
    %18 = vector.broadcast %cst_15 : f32 to vector<56x256xf32>
    %19 = arith.maximumf %17, %18 : vector<56x256xf32>
    %c2 = arith.constant 2 : index
    %c0_16 = arith.constant 0 : index
    %c0_17 = arith.constant 0 : index
    %20 = vector.load %arg2[%c2, %c0_16, %c0_17] : memref<3x56x56xf32, #tpu.memory_space<vmem>>, vector<1x56x56xf32>
    %21 = vector.shape_cast %20 : vector<1x56x56xf32> to vector<56x56xf32>
    %cst_18 = arith.constant dense<0.000000e+00> : vector<56x256xf32>
    %22 = tpu.matmul %21, %19, %cst_18 {dimension_numbers = #tpu.dot_dimension_numbers<[1], [0], [0], [1], [0, 0, 1, 1], [], []>} : vector<56x56xf32>, vector<56x256xf32>, vector<56x256xf32> -> vector<56x256xf32>
    %c2_19 = arith.constant 2 : index
    %c0_20 = arith.constant 0 : index
    %c0_21 = arith.constant 0 : index
    %23 = vector.load %arg3[%c2_19, %c0_20, %c0_21] : memref<3x56x1xf32, #tpu.memory_space<vmem>>, vector<1x56x1xf32>
    %24 = vector.shape_cast %23 : vector<1x56x1xf32> to vector<56x1xf32>
    %25 = vector.broadcast %24 : vector<56x1xf32> to vector<56x256xf32>
    %26 = arith.addf %22, %25 : vector<56x256xf32>
    %cst_22 = arith.constant 0.000000e+00 : f32
    %27 = vector.broadcast %cst_22 : f32 to vector<56x256xf32>
    %28 = arith.maximumf %26, %27 : vector<56x256xf32>
    %29 = vector.extract_strided_slice %28 {offsets = [0, 0], sizes = [32, 256], strides = [1, 1]} : vector<56x256xf32> to vector<32x256xf32>
    %30 = vector.extract_strided_slice %29 {offsets = [0, 0], sizes = [32, 64], strides = [1, 1]} : vector<32x256xf32> to vector<32x64xf32>
    %31 = vector.extract_strided_slice %29 {offsets = [0, 64], sizes = [32, 64], strides = [1, 1]} : vector<32x256xf32> to vector<32x64xf32>
    %32 = arith.maximumf %30, %31 : vector<32x64xf32>
    %33 = vector.extract_strided_slice %29 {offsets = [0, 128], sizes = [32, 64], strides = [1, 1]} : vector<32x256xf32> to vector<32x64xf32>
    %34 = arith.maximumf %32, %33 : vector<32x64xf32>
    %35 = vector.extract_strided_slice %29 {offsets = [0, 192], sizes = [32, 64], strides = [1, 1]} : vector<32x256xf32> to vector<32x64xf32>
    %36 = arith.maximumf %34, %35 : vector<32x64xf32>
    %c0_23 = arith.constant 0 : index
    %c0_24 = arith.constant 0 : index
    %c0_25 = arith.constant 0 : index
    %37 = vector.load %arg4[%c0_23, %c0_24, %c0_25] : memref<1x32x64xf32, #tpu.memory_space<vmem>>, vector<1x32x64xf32>
    %38 = vector.shape_cast %37 : vector<1x32x64xf32> to vector<32x64xf32>
    %39 = vector.shape_cast %36 : vector<32x64xf32> to vector<1x32x64xf32>
    tpu.vector_store %arg4[%c0_23, %c0_24, %c0_25], %39 {strides = array<i32>} : memref<1x32x64xf32, #tpu.memory_space<vmem>>, vector<1x32x64xf32>,
    return
  }
  func.func @transform_0(%arg0: i32) -> (i32, i32, i32) {
    %c0_i32 = arith.constant 0 : i32
    %c0_i32_0 = arith.constant 0 : i32
    %c0_i32_1 = arith.constant 0 : i32
    return %arg0, %c0_i32, %c0_i32_0 : i32, i32, i32
  }
  func.func @transform_1(%arg0: i32) -> (i32, i32, i32) {
    %c0_i32 = arith.constant 0 : i32
    %c0_i32_0 = arith.constant 0 : i32
    %c0_i32_1 = arith.constant 0 : i32
    %c0_i32_2 = arith.constant 0 : i32
    return %c0_i32, %c0_i32_0, %c0_i32_1 : i32, i32, i32
  }
  func.func @transform_2(%arg0: i32) -> (i32, i32, i32) {
    %c0_i32 = arith.constant 0 : i32
    %c0_i32_0 = arith.constant 0 : i32
    %c0_i32_1 = arith.constant 0 : i32
    %c0_i32_2 = arith.constant 0 : i32
    return %c0_i32, %c0_i32_0, %c0_i32_1 : i32, i32, i32
  }
  func.func @transform_3(%arg0: i32) -> (i32, i32, i32) {
    %c0_i32 = arith.constant 0 : i32
    %c0_i32_0 = arith.constant 0 : i32
    %c0_i32_1 = arith.constant 0 : i32
    return %arg0, %c0_i32, %c0_i32_0 : i32, i32, i32
  }
}

module attributes {stable_mosaic.version = 11 : i64} {
  func.func @_fused_chain_kernel(%arg0: i32, %arg1: memref<1x56x512xf32, #tpu.memory_space<vmem>>, %arg2: memref<3x56x56xf32, #tpu.memory_space<vmem>>, %arg3: memref<3x56x1xf32, #tpu.memory_space<vmem>>, %arg4: memref<1x32x64xf32, #tpu.memory_space<vmem>>) attributes {dimension_semantics = [#tpu.dimension_semantics<parallel>], iteration_bounds = array<i64: 2>, scalar_prefetch = 0 : i64, scratch_operands = 0 : i64, tpu.core_type = #tpu.core_type<tc>, window_params = [{transform_indices = @transform_0, window_bounds = array<i64: 1, 56, 512>}, {pipeline_mode = #tpu.pipeline_mode<synchronous>, transform_indices = @transform_1, window_bounds = array<i64: 3, 56, 56>}, {pipeline_mode = #tpu.pipeline_mode<synchronous>, transform_indices = @transform_2, window_bounds = array<i64: 3, 56, 1>}, {transform_indices = @transform_3, window_bounds = array<i64: 1, 32, 64>}]} {
    %c0 = arith.constant 0 : index
    %c0_0 = arith.constant 0 : index
    %c0_1 = arith.constant 0 : index
    %0 = vector.load %arg1[%c0, %c0_0, %c0_1] : memref<1x56x512xf32, #tpu.memory_space<vmem>>, vector<1x56x512xf32>
    %1 = vector.shape_cast %0 : vector<1x56x512xf32> to vector<56x512xf32>
    %c0_2 = arith.constant 0 : index
    %c0_3 = arith.constant 0 : index
    %c0_4 = arith.constant 0 : index
    %2 = vector.load %arg2[%c0_2, %c0_3, %c0_4] : memref<3x56x56xf32, #tpu.memory_space<vmem>>, vector<1x56x56xf32>
    %3 = vector.shape_cast %2 : vector<1x56x56xf32> to vector<56x56xf32>
    %cst = arith.constant dense<0.000000e+00> : vector<56x512xf32>
    %4 = tpu.matmul %3, %1, %cst {dimension_numbers = #tpu.dot_dimension_numbers<[1], [0], [0], [1], [0, 0, 1, 1], [], []>} : vector<56x56xf32>, vector<56x512xf32>, vector<56x512xf32> -> vector<56x512xf32>
    %c0_5 = arith.constant 0 : index
    %c0_6 = arith.constant 0 : index
    %c0_7 = arith.constant 0 : index
    %5 = vector.load %arg3[%c0_5, %c0_6, %c0_7] : memref<3x56x1xf32, #tpu.memory_space<vmem>>, vector<1x56x1xf32>
    %6 = vector.shape_cast %5 : vector<1x56x1xf32> to vector<56x1xf32>
    %7 = vector.broadcast %6 : vector<56x1xf32> to vector<56x512xf32>
    %8 = arith.addf %4, %7 : vector<56x512xf32>
    %cst_8 = arith.constant 0.000000e+00 : f32
    %9 = vector.broadcast %cst_8 : f32 to vector<56x512xf32>
    %10 = arith.maximumf %8, %9 : vector<56x512xf32>
    %c1 = arith.constant 1 : index
    %c0_9 = arith.constant 0 : index
    %c0_10 = arith.constant 0 : index
    %11 = vector.load %arg2[%c1, %c0_9, %c0_10] : memref<3x56x56xf32, #tpu.memory_space<vmem>>, vector<1x56x56xf32>
    %12 = vector.shape_cast %11 : vector<1x56x56xf32> to vector<56x56xf32>
    %cst_11 = arith.constant dense<0.000000e+00> : vector<56x512xf32>
    %13 = tpu.matmul %12, %10, %cst_11 {dimension_numbers = #tpu.dot_dimension_numbers<[1], [0], [0], [1], [0, 0, 1, 1], [], []>} : vector<56x56xf32>, vector<56x512xf32>, vector<56x512xf32> -> vector<56x512xf32>
    %c1_12 = arith.constant 1 : index
    %c0_13 = arith.constant 0 : index
    %c0_14 = arith.constant 0 : index
    %14 = vector.load %arg3[%c1_12, %c0_13, %c0_14] : memref<3x56x1xf32, #tpu.memory_space<vmem>>, vector<1x56x1xf32>
    %15 = vector.shape_cast %14 : vector<1x56x1xf32> to vector<56x1xf32>
    %16 = vector.broadcast %15 : vector<56x1xf32> to vector<56x512xf32>
    %17 = arith.addf %13, %16 : vector<56x512xf32>
    %cst_15 = arith.constant 0.000000e+00 : f32
    %18 = vector.broadcast %cst_15 : f32 to vector<56x512xf32>
    %19 = arith.maximumf %17, %18 : vector<56x512xf32>
    %c2 = arith.constant 2 : index
    %c0_16 = arith.constant 0 : index
    %c0_17 = arith.constant 0 : index
    %20 = vector.load %arg2[%c2, %c0_16, %c0_17] : memref<3x56x56xf32, #tpu.memory_space<vmem>>, vector<1x56x56xf32>
    %21 = vector.shape_cast %20 : vector<1x56x56xf32> to vector<56x56xf32>
    %cst_18 = arith.constant dense<0.000000e+00> : vector<56x512xf32>
    %22 = tpu.matmul %21, %19, %cst_18 {dimension_numbers = #tpu.dot_dimension_numbers<[1], [0], [0], [1], [0, 0, 1, 1], [], []>} : vector<56x56xf32>, vector<56x512xf32>, vector<56x512xf32> -> vector<56x512xf32>
    %c2_19 = arith.constant 2 : index
    %c0_20 = arith.constant 0 : index
    %c0_21 = arith.constant 0 : index
    %23 = vector.load %arg3[%c2_19, %c0_20, %c0_21] : memref<3x56x1xf32, #tpu.memory_space<vmem>>, vector<1x56x1xf32>
    %24 = vector.shape_cast %23 : vector<1x56x1xf32> to vector<56x1xf32>
    %25 = vector.broadcast %24 : vector<56x1xf32> to vector<56x512xf32>
    %26 = arith.addf %22, %25 : vector<56x512xf32>
    %cst_22 = arith.constant 0.000000e+00 : f32
    %27 = vector.broadcast %cst_22 : f32 to vector<56x512xf32>
    %28 = arith.maximumf %26, %27 : vector<56x512xf32>
    %29 = vector.extract_strided_slice %28 {offsets = [0, 0], sizes = [32, 512], strides = [1, 1]} : vector<56x512xf32> to vector<32x512xf32>
    %30 = vector.extract_strided_slice %29 {offsets = [0, 0], sizes = [32, 64], strides = [1, 1]} : vector<32x512xf32> to vector<32x64xf32>
    %31 = vector.extract_strided_slice %29 {offsets = [0, 64], sizes = [32, 64], strides = [1, 1]} : vector<32x512xf32> to vector<32x64xf32>
    %32 = arith.maximumf %30, %31 : vector<32x64xf32>
    %33 = vector.extract_strided_slice %29 {offsets = [0, 128], sizes = [32, 64], strides = [1, 1]} : vector<32x512xf32> to vector<32x64xf32>
    %34 = arith.maximumf %32, %33 : vector<32x64xf32>
    %35 = vector.extract_strided_slice %29 {offsets = [0, 192], sizes = [32, 64], strides = [1, 1]} : vector<32x512xf32> to vector<32x64xf32>
    %36 = arith.maximumf %34, %35 : vector<32x64xf32>
    %37 = vector.extract_strided_slice %29 {offsets = [0, 256], sizes = [32, 64], strides = [1, 1]} : vector<32x512xf32> to vector<32x64xf32>
    %38 = arith.maximumf %36, %37 : vector<32x64xf32>
    %39 = vector.extract_strided_slice %29 {offsets = [0, 320], sizes = [32, 64], strides = [1, 1]} : vector<32x512xf32> to vector<32x64xf32>
    %40 = arith.maximumf %38, %39 : vector<32x64xf32>
    %41 = vector.extract_strided_slice %29 {offsets = [0, 384], sizes = [32, 64], strides = [1, 1]} : vector<32x512xf32> to vector<32x64xf32>
    %42 = arith.maximumf %40, %41 : vector<32x64xf32>
    %43 = vector.extract_strided_slice %29 {offsets = [0, 448], sizes = [32, 64], strides = [1, 1]} : vector<32x512xf32> to vector<32x64xf32>
    %44 = arith.maximumf %42, %43 : vector<32x64xf32>
    %c0_23 = arith.constant 0 : index
    %c0_24 = arith.constant 0 : index
    %c0_25 = arith.constant 0 : index
    %45 = vector.load %arg4[%c0_23, %c0_24, %c0_25] : memref<1x32x64xf32, #tpu.memory_space<vmem>>, vector<1x32x64xf32>
    %46 = vector.shape_cast %45 : vector<1x32x64xf32> to vector<32x64xf32>
    %47 = vector.shape_cast %44 : vector<32x64xf32> to vector<1x32x64xf32>
    tpu.vector_store %arg4[%c0_23, %c0_24, %c0_25], %47 {strides = array<i32>} : memref<1x32x64xf32, #tpu.memory_space<vmem>>, vector<1x32x64xf32>,
    return
  }
  func.func @transform_0(%arg0: i32) -> (i32, i32, i32) {
    %c0_i32 = arith.constant 0 : i32
    %c0_i32_0 = arith.constant 0 : i32
    %c0_i32_1 = arith.constant 0 : i32
    return %arg0, %c0_i32, %c0_i32_0 : i32, i32, i32
  }
  func.func @transform_1(%arg0: i32) -> (i32, i32, i32) {
    %c0_i32 = arith.constant 0 : i32
    %c0_i32_0 = arith.constant 0 : i32
    %c0_i32_1 = arith.constant 0 : i32
    %c0_i32_2 = arith.constant 0 : i32
    return %c0_i32, %c0_i32_0, %c0_i32_1 : i32, i32, i32
  }
  func.func @transform_2(%arg0: i32) -> (i32, i32, i32) {
    %c0_i32 = arith.constant 0 : i32
    %c0_i32_0 = arith.constant 0 : i32
    %c0_i32_1 = arith.constant 0 : i32
    %c0_i32_2 = arith.constant 0 : i32
    return %c0_i32, %c0_i32_0, %c0_i32_1 : i32, i32, i32
  }
  func.func @transform_3(%arg0: i32) -> (i32, i32, i32) {
    %c0_i32 = arith.constant 0 : i32
    %c0_i32_0 = arith.constant 0 : i32
    %c0_i32_1 = arith.constant 0 : i32
    return %arg0, %c0_i32, %c0_i32_0 : i32, i32, i32
  }
}

module attributes {stable_mosaic.version = 11 : i64} {
  func.func @_fused_chain_kernel(%arg0: i32, %arg1: memref<1x112x128xf32, #tpu.memory_space<vmem>>, %arg2: memref<2x112x112xf32, #tpu.memory_space<vmem>>, %arg3: memref<2x112x1xf32, #tpu.memory_space<vmem>>, %arg4: memref<1x64x128xf32, #tpu.memory_space<vmem>>) attributes {dimension_semantics = [#tpu.dimension_semantics<parallel>], iteration_bounds = array<i64: 2>, scalar_prefetch = 0 : i64, scratch_operands = 0 : i64, tpu.core_type = #tpu.core_type<tc>, window_params = [{transform_indices = @transform_0, window_bounds = array<i64: 1, 112, 128>}, {pipeline_mode = #tpu.pipeline_mode<synchronous>, transform_indices = @transform_1, window_bounds = array<i64: 2, 112, 112>}, {pipeline_mode = #tpu.pipeline_mode<synchronous>, transform_indices = @transform_2, window_bounds = array<i64: 2, 112, 1>}, {transform_indices = @transform_3, window_bounds = array<i64: 1, 64, 128>}]} {
    %c0 = arith.constant 0 : index
    %c0_0 = arith.constant 0 : index
    %c0_1 = arith.constant 0 : index
    %0 = vector.load %arg1[%c0, %c0_0, %c0_1] : memref<1x112x128xf32, #tpu.memory_space<vmem>>, vector<1x112x128xf32>
    %1 = vector.shape_cast %0 : vector<1x112x128xf32> to vector<112x128xf32>
    %c0_2 = arith.constant 0 : index
    %c0_3 = arith.constant 0 : index
    %c0_4 = arith.constant 0 : index
    %2 = vector.load %arg2[%c0_2, %c0_3, %c0_4] : memref<2x112x112xf32, #tpu.memory_space<vmem>>, vector<1x112x112xf32>
    %3 = vector.shape_cast %2 : vector<1x112x112xf32> to vector<112x112xf32>
    %cst = arith.constant dense<0.000000e+00> : vector<112x128xf32>
    %4 = tpu.matmul %3, %1, %cst {dimension_numbers = #tpu.dot_dimension_numbers<[1], [0], [0], [1], [0, 0, 1, 1], [], []>} : vector<112x112xf32>, vector<112x128xf32>, vector<112x128xf32> -> vector<112x128xf32>
    %c0_5 = arith.constant 0 : index
    %c0_6 = arith.constant 0 : index
    %c0_7 = arith.constant 0 : index
    %5 = vector.load %arg3[%c0_5, %c0_6, %c0_7] : memref<2x112x1xf32, #tpu.memory_space<vmem>>, vector<1x112x1xf32>
    %6 = vector.shape_cast %5 : vector<1x112x1xf32> to vector<112x1xf32>
    %7 = vector.broadcast %6 : vector<112x1xf32> to vector<112x128xf32>
    %8 = arith.addf %4, %7 : vector<112x128xf32>
    %cst_8 = arith.constant 0.000000e+00 : f32
    %9 = vector.broadcast %cst_8 : f32 to vector<112x128xf32>
    %10 = arith.maximumf %8, %9 : vector<112x128xf32>
    %c1 = arith.constant 1 : index
    %c0_9 = arith.constant 0 : index
    %c0_10 = arith.constant 0 : index
    %11 = vector.load %arg2[%c1, %c0_9, %c0_10] : memref<2x112x112xf32, #tpu.memory_space<vmem>>, vector<1x112x112xf32>
    %12 = vector.shape_cast %11 : vector<1x112x112xf32> to vector<112x112xf32>
    %cst_11 = arith.constant dense<0.000000e+00> : vector<112x128xf32>
    %13 = tpu.matmul %12, %10, %cst_11 {dimension_numbers = #tpu.dot_dimension_numbers<[1], [0], [0], [1], [0, 0, 1, 1], [], []>} : vector<112x112xf32>, vector<112x128xf32>, vector<112x128xf32> -> vector<112x128xf32>
    %c1_12 = arith.constant 1 : index
    %c0_13 = arith.constant 0 : index
    %c0_14 = arith.constant 0 : index
    %14 = vector.load %arg3[%c1_12, %c0_13, %c0_14] : memref<2x112x1xf32, #tpu.memory_space<vmem>>, vector<1x112x1xf32>
    %15 = vector.shape_cast %14 : vector<1x112x1xf32> to vector<112x1xf32>
    %16 = vector.broadcast %15 : vector<112x1xf32> to vector<112x128xf32>
    %17 = arith.addf %13, %16 : vector<112x128xf32>
    %cst_15 = arith.constant 0.000000e+00 : f32
    %18 = vector.broadcast %cst_15 : f32 to vector<112x128xf32>
    %19 = arith.maximumf %17, %18 : vector<112x128xf32>
    %20 = vector.extract_strided_slice %19 {offsets = [0, 0], sizes = [64, 128], strides = [1, 1]} : vector<112x128xf32> to vector<64x128xf32>
    %c0_16 = arith.constant 0 : index
    %c0_17 = arith.constant 0 : index
    %c0_18 = arith.constant 0 : index
    %21 = vector.load %arg4[%c0_16, %c0_17, %c0_18] : memref<1x64x128xf32, #tpu.memory_space<vmem>>, vector<1x64x128xf32>
    %22 = vector.shape_cast %21 : vector<1x64x128xf32> to vector<64x128xf32>
    %23 = vector.shape_cast %20 : vector<64x128xf32> to vector<1x64x128xf32>
    tpu.vector_store %arg4[%c0_16, %c0_17, %c0_18], %23 {strides = array<i32>} : memref<1x64x128xf32, #tpu.memory_space<vmem>>, vector<1x64x128xf32>,
    return
  }
  func.func @transform_0(%arg0: i32) -> (i32, i32, i32) {
    %c0_i32 = arith.constant 0 : i32
    %c0_i32_0 = arith.constant 0 : i32
    %c0_i32_1 = arith.constant 0 : i32
    return %arg0, %c0_i32, %c0_i32_0 : i32, i32, i32
  }
  func.func @transform_1(%arg0: i32) -> (i32, i32, i32) {
    %c0_i32 = arith.constant 0 : i32
    %c0_i32_0 = arith.constant 0 : i32
    %c0_i32_1 = arith.constant 0 : i32
    %c0_i32_2 = arith.constant 0 : i32
    return %c0_i32, %c0_i32_0, %c0_i32_1 : i32, i32, i32
  }
  func.func @transform_2(%arg0: i32) -> (i32, i32, i32) {
    %c0_i32 = arith.constant 0 : i32
    %c0_i32_0 = arith.constant 0 : i32
    %c0_i32_1 = arith.constant 0 : i32
    %c0_i32_2 = arith.constant 0 : i32
    return %c0_i32, %c0_i32_0, %c0_i32_1 : i32, i32, i32
  }
  func.func @transform_3(%arg0: i32) -> (i32, i32, i32) {
    %c0_i32 = arith.constant 0 : i32
    %c0_i32_0 = arith.constant 0 : i32
    %c0_i32_1 = arith.constant 0 : i32
    return %arg0, %c0_i32, %c0_i32_0 : i32, i32, i32
  }
}

module attributes {stable_mosaic.version = 11 : i64} {
  func.func @_fused_chain_kernel(%arg0: i32, %arg1: memref<1x112x128xf32, #tpu.memory_space<vmem>>, %arg2: memref<2x112x112xf32, #tpu.memory_space<vmem>>, %arg3: memref<2x112x1xf32, #tpu.memory_space<vmem>>, %arg4: memref<1x32x128xf32, #tpu.memory_space<vmem>>) attributes {dimension_semantics = [#tpu.dimension_semantics<parallel>], iteration_bounds = array<i64: 2>, scalar_prefetch = 0 : i64, scratch_operands = 0 : i64, tpu.core_type = #tpu.core_type<tc>, window_params = [{transform_indices = @transform_0, window_bounds = array<i64: 1, 112, 128>}, {pipeline_mode = #tpu.pipeline_mode<synchronous>, transform_indices = @transform_1, window_bounds = array<i64: 2, 112, 112>}, {pipeline_mode = #tpu.pipeline_mode<synchronous>, transform_indices = @transform_2, window_bounds = array<i64: 2, 112, 1>}, {transform_indices = @transform_3, window_bounds = array<i64: 1, 32, 128>}]} {
    %c0 = arith.constant 0 : index
    %c0_0 = arith.constant 0 : index
    %c0_1 = arith.constant 0 : index
    %0 = vector.load %arg1[%c0, %c0_0, %c0_1] : memref<1x112x128xf32, #tpu.memory_space<vmem>>, vector<1x112x128xf32>
    %1 = vector.shape_cast %0 : vector<1x112x128xf32> to vector<112x128xf32>
    %c0_2 = arith.constant 0 : index
    %c0_3 = arith.constant 0 : index
    %c0_4 = arith.constant 0 : index
    %2 = vector.load %arg2[%c0_2, %c0_3, %c0_4] : memref<2x112x112xf32, #tpu.memory_space<vmem>>, vector<1x112x112xf32>
    %3 = vector.shape_cast %2 : vector<1x112x112xf32> to vector<112x112xf32>
    %cst = arith.constant dense<0.000000e+00> : vector<112x128xf32>
    %4 = tpu.matmul %3, %1, %cst {dimension_numbers = #tpu.dot_dimension_numbers<[1], [0], [0], [1], [0, 0, 1, 1], [], []>} : vector<112x112xf32>, vector<112x128xf32>, vector<112x128xf32> -> vector<112x128xf32>
    %c0_5 = arith.constant 0 : index
    %c0_6 = arith.constant 0 : index
    %c0_7 = arith.constant 0 : index
    %5 = vector.load %arg3[%c0_5, %c0_6, %c0_7] : memref<2x112x1xf32, #tpu.memory_space<vmem>>, vector<1x112x1xf32>
    %6 = vector.shape_cast %5 : vector<1x112x1xf32> to vector<112x1xf32>
    %7 = vector.broadcast %6 : vector<112x1xf32> to vector<112x128xf32>
    %8 = arith.addf %4, %7 : vector<112x128xf32>
    %cst_8 = arith.constant 0.000000e+00 : f32
    %9 = vector.broadcast %cst_8 : f32 to vector<112x128xf32>
    %10 = arith.maximumf %8, %9 : vector<112x128xf32>
    %c1 = arith.constant 1 : index
    %c0_9 = arith.constant 0 : index
    %c0_10 = arith.constant 0 : index
    %11 = vector.load %arg2[%c1, %c0_9, %c0_10] : memref<2x112x112xf32, #tpu.memory_space<vmem>>, vector<1x112x112xf32>
    %12 = vector.shape_cast %11 : vector<1x112x112xf32> to vector<112x112xf32>
    %cst_11 = arith.constant dense<0.000000e+00> : vector<112x128xf32>
    %13 = tpu.matmul %12, %10, %cst_11 {dimension_numbers = #tpu.dot_dimension_numbers<[1], [0], [0], [1], [0, 0, 1, 1], [], []>} : vector<112x112xf32>, vector<112x128xf32>, vector<112x128xf32> -> vector<112x128xf32>
    %c1_12 = arith.constant 1 : index
    %c0_13 = arith.constant 0 : index
    %c0_14 = arith.constant 0 : index
    %14 = vector.load %arg3[%c1_12, %c0_13, %c0_14] : memref<2x112x1xf32, #tpu.memory_space<vmem>>, vector<1x112x1xf32>
    %15 = vector.shape_cast %14 : vector<1x112x1xf32> to vector<112x1xf32>
    %16 = vector.broadcast %15 : vector<112x1xf32> to vector<112x128xf32>
    %17 = arith.addf %13, %16 : vector<112x128xf32>
    %cst_15 = arith.constant 0.000000e+00 : f32
    %18 = vector.broadcast %cst_15 : f32 to vector<112x128xf32>
    %19 = arith.maximumf %17, %18 : vector<112x128xf32>
    %20 = vector.extract_strided_slice %19 {offsets = [0, 0], sizes = [32, 128], strides = [1, 1]} : vector<112x128xf32> to vector<32x128xf32>
    %c0_16 = arith.constant 0 : index
    %c0_17 = arith.constant 0 : index
    %c0_18 = arith.constant 0 : index
    %21 = vector.load %arg4[%c0_16, %c0_17, %c0_18] : memref<1x32x128xf32, #tpu.memory_space<vmem>>, vector<1x32x128xf32>
    %22 = vector.shape_cast %21 : vector<1x32x128xf32> to vector<32x128xf32>
    %23 = vector.shape_cast %20 : vector<32x128xf32> to vector<1x32x128xf32>
    tpu.vector_store %arg4[%c0_16, %c0_17, %c0_18], %23 {strides = array<i32>} : memref<1x32x128xf32, #tpu.memory_space<vmem>>, vector<1x32x128xf32>,
    return
  }
  func.func @transform_0(%arg0: i32) -> (i32, i32, i32) {
    %c0_i32 = arith.constant 0 : i32
    %c0_i32_0 = arith.constant 0 : i32
    %c0_i32_1 = arith.constant 0 : i32
    return %arg0, %c0_i32, %c0_i32_0 : i32, i32, i32
  }
  func.func @transform_1(%arg0: i32) -> (i32, i32, i32) {
    %c0_i32 = arith.constant 0 : i32
    %c0_i32_0 = arith.constant 0 : i32
    %c0_i32_1 = arith.constant 0 : i32
    %c0_i32_2 = arith.constant 0 : i32
    return %c0_i32, %c0_i32_0, %c0_i32_1 : i32, i32, i32
  }
  func.func @transform_2(%arg0: i32) -> (i32, i32, i32) {
    %c0_i32 = arith.constant 0 : i32
    %c0_i32_0 = arith.constant 0 : i32
    %c0_i32_1 = arith.constant 0 : i32
    %c0_i32_2 = arith.constant 0 : i32
    return %c0_i32, %c0_i32_0, %c0_i32_1 : i32, i32, i32
  }
  func.func @transform_3(%arg0: i32) -> (i32, i32, i32) {
    %c0_i32 = arith.constant 0 : i32
    %c0_i32_0 = arith.constant 0 : i32
    %c0_i32_1 = arith.constant 0 : i32
    return %arg0, %c0_i32, %c0_i32_0 : i32, i32, i32
  }
}

module attributes {stable_mosaic.version = 11 : i64} {
  func.func @_fused_chain_kernel(%arg0: i32, %arg1: memref<1x40x256xf32, #tpu.memory_space<vmem>>, %arg2: memref<3x40x40xf32, #tpu.memory_space<vmem>>, %arg3: memref<3x40x1xf32, #tpu.memory_space<vmem>>, %arg4: memref<1x32x256xf32, #tpu.memory_space<vmem>>) attributes {dimension_semantics = [#tpu.dimension_semantics<parallel>], iteration_bounds = array<i64: 2>, scalar_prefetch = 0 : i64, scratch_operands = 0 : i64, tpu.core_type = #tpu.core_type<tc>, window_params = [{transform_indices = @transform_0, window_bounds = array<i64: 1, 40, 256>}, {pipeline_mode = #tpu.pipeline_mode<synchronous>, transform_indices = @transform_1, window_bounds = array<i64: 3, 40, 40>}, {pipeline_mode = #tpu.pipeline_mode<synchronous>, transform_indices = @transform_2, window_bounds = array<i64: 3, 40, 1>}, {transform_indices = @transform_3, window_bounds = array<i64: 1, 32, 256>}]} {
    %c0 = arith.constant 0 : index
    %c0_0 = arith.constant 0 : index
    %c0_1 = arith.constant 0 : index
    %0 = vector.load %arg1[%c0, %c0_0, %c0_1] : memref<1x40x256xf32, #tpu.memory_space<vmem>>, vector<1x40x256xf32>
    %1 = vector.shape_cast %0 : vector<1x40x256xf32> to vector<40x256xf32>
    %c0_2 = arith.constant 0 : index
    %c0_3 = arith.constant 0 : index
    %c0_4 = arith.constant 0 : index
    %2 = vector.load %arg2[%c0_2, %c0_3, %c0_4] : memref<3x40x40xf32, #tpu.memory_space<vmem>>, vector<1x40x40xf32>
    %3 = vector.shape_cast %2 : vector<1x40x40xf32> to vector<40x40xf32>
    %cst = arith.constant dense<0.000000e+00> : vector<40x256xf32>
    %4 = tpu.matmul %3, %1, %cst {dimension_numbers = #tpu.dot_dimension_numbers<[1], [0], [0], [1], [0, 0, 1, 1], [], []>} : vector<40x40xf32>, vector<40x256xf32>, vector<40x256xf32> -> vector<40x256xf32>
    %c0_5 = arith.constant 0 : index
    %c0_6 = arith.constant 0 : index
    %c0_7 = arith.constant 0 : index
    %5 = vector.load %arg3[%c0_5, %c0_6, %c0_7] : memref<3x40x1xf32, #tpu.memory_space<vmem>>, vector<1x40x1xf32>
    %6 = vector.shape_cast %5 : vector<1x40x1xf32> to vector<40x1xf32>
    %7 = vector.broadcast %6 : vector<40x1xf32> to vector<40x256xf32>
    %8 = arith.addf %4, %7 : vector<40x256xf32>
    %cst_8 = arith.constant 0.000000e+00 : f32
    %9 = vector.broadcast %cst_8 : f32 to vector<40x256xf32>
    %10 = arith.maximumf %8, %9 : vector<40x256xf32>
    %c1 = arith.constant 1 : index
    %c0_9 = arith.constant 0 : index
    %c0_10 = arith.constant 0 : index
    %11 = vector.load %arg2[%c1, %c0_9, %c0_10] : memref<3x40x40xf32, #tpu.memory_space<vmem>>, vector<1x40x40xf32>
    %12 = vector.shape_cast %11 : vector<1x40x40xf32> to vector<40x40xf32>
    %cst_11 = arith.constant dense<0.000000e+00> : vector<40x256xf32>
    %13 = tpu.matmul %12, %10, %cst_11 {dimension_numbers = #tpu.dot_dimension_numbers<[1], [0], [0], [1], [0, 0, 1, 1], [], []>} : vector<40x40xf32>, vector<40x256xf32>, vector<40x256xf32> -> vector<40x256xf32>
    %c1_12 = arith.constant 1 : index
    %c0_13 = arith.constant 0 : index
    %c0_14 = arith.constant 0 : index
    %14 = vector.load %arg3[%c1_12, %c0_13, %c0_14] : memref<3x40x1xf32, #tpu.memory_space<vmem>>, vector<1x40x1xf32>
    %15 = vector.shape_cast %14 : vector<1x40x1xf32> to vector<40x1xf32>
    %16 = vector.broadcast %15 : vector<40x1xf32> to vector<40x256xf32>
    %17 = arith.addf %13, %16 : vector<40x256xf32>
    %cst_15 = arith.constant 0.000000e+00 : f32
    %18 = vector.broadcast %cst_15 : f32 to vector<40x256xf32>
    %19 = arith.maximumf %17, %18 : vector<40x256xf32>
    %c2 = arith.constant 2 : index
    %c0_16 = arith.constant 0 : index
    %c0_17 = arith.constant 0 : index
    %20 = vector.load %arg2[%c2, %c0_16, %c0_17] : memref<3x40x40xf32, #tpu.memory_space<vmem>>, vector<1x40x40xf32>
    %21 = vector.shape_cast %20 : vector<1x40x40xf32> to vector<40x40xf32>
    %cst_18 = arith.constant dense<0.000000e+00> : vector<40x256xf32>
    %22 = tpu.matmul %21, %19, %cst_18 {dimension_numbers = #tpu.dot_dimension_numbers<[1], [0], [0], [1], [0, 0, 1, 1], [], []>} : vector<40x40xf32>, vector<40x256xf32>, vector<40x256xf32> -> vector<40x256xf32>
    %c2_19 = arith.constant 2 : index
    %c0_20 = arith.constant 0 : index
    %c0_21 = arith.constant 0 : index
    %23 = vector.load %arg3[%c2_19, %c0_20, %c0_21] : memref<3x40x1xf32, #tpu.memory_space<vmem>>, vector<1x40x1xf32>
    %24 = vector.shape_cast %23 : vector<1x40x1xf32> to vector<40x1xf32>
    %25 = vector.broadcast %24 : vector<40x1xf32> to vector<40x256xf32>
    %26 = arith.addf %22, %25 : vector<40x256xf32>
    %cst_22 = arith.constant 0.000000e+00 : f32
    %27 = vector.broadcast %cst_22 : f32 to vector<40x256xf32>
    %28 = arith.maximumf %26, %27 : vector<40x256xf32>
    %29 = vector.extract_strided_slice %28 {offsets = [0, 0], sizes = [32, 256], strides = [1, 1]} : vector<40x256xf32> to vector<32x256xf32>
    %c0_23 = arith.constant 0 : index
    %c0_24 = arith.constant 0 : index
    %c0_25 = arith.constant 0 : index
    %30 = vector.load %arg4[%c0_23, %c0_24, %c0_25] : memref<1x32x256xf32, #tpu.memory_space<vmem>>, vector<1x32x256xf32>
    %31 = vector.shape_cast %30 : vector<1x32x256xf32> to vector<32x256xf32>
    %32 = vector.shape_cast %29 : vector<32x256xf32> to vector<1x32x256xf32>
    tpu.vector_store %arg4[%c0_23, %c0_24, %c0_25], %32 {strides = array<i32>} : memref<1x32x256xf32, #tpu.memory_space<vmem>>, vector<1x32x256xf32>,
    return
  }
  func.func @transform_0(%arg0: i32) -> (i32, i32, i32) {
    %c0_i32 = arith.constant 0 : i32
    %c0_i32_0 = arith.constant 0 : i32
    %c0_i32_1 = arith.constant 0 : i32
    return %arg0, %c0_i32, %c0_i32_0 : i32, i32, i32
  }
  func.func @transform_1(%arg0: i32) -> (i32, i32, i32) {
    %c0_i32 = arith.constant 0 : i32
    %c0_i32_0 = arith.constant 0 : i32
    %c0_i32_1 = arith.constant 0 : i32
    %c0_i32_2 = arith.constant 0 : i32
    return %c0_i32, %c0_i32_0, %c0_i32_1 : i32, i32, i32
  }
  func.func @transform_2(%arg0: i32) -> (i32, i32, i32) {
    %c0_i32 = arith.constant 0 : i32
    %c0_i32_0 = arith.constant 0 : i32
    %c0_i32_1 = arith.constant 0 : i32
    %c0_i32_2 = arith.constant 0 : i32
    return %c0_i32, %c0_i32_0, %c0_i32_1 : i32, i32, i32
  }
  func.func @transform_3(%arg0: i32) -> (i32, i32, i32) {
    %c0_i32 = arith.constant 0 : i32
    %c0_i32_0 = arith.constant 0 : i32
    %c0_i32_1 = arith.constant 0 : i32
    return %arg0, %c0_i32, %c0_i32_0 : i32, i32, i32
  }
}

module attributes {stable_mosaic.version = 11 : i64} {
  func.func @_fused_chain_kernel(%arg0: i32, %arg1: memref<1x32x256xf32, #tpu.memory_space<vmem>>, %arg2: memref<3x64x64xf32, #tpu.memory_space<vmem>>, %arg3: memref<3x64x1xf32, #tpu.memory_space<vmem>>, %arg4: memref<1x6x256xf32, #tpu.memory_space<vmem>>) attributes {dimension_semantics = [#tpu.dimension_semantics<parallel>], iteration_bounds = array<i64: 2>, scalar_prefetch = 0 : i64, scratch_operands = 0 : i64, tpu.core_type = #tpu.core_type<tc>, window_params = [{transform_indices = @transform_0, window_bounds = array<i64: 1, 32, 256>}, {pipeline_mode = #tpu.pipeline_mode<synchronous>, transform_indices = @transform_1, window_bounds = array<i64: 3, 64, 64>}, {pipeline_mode = #tpu.pipeline_mode<synchronous>, transform_indices = @transform_2, window_bounds = array<i64: 3, 64, 1>}, {transform_indices = @transform_3, window_bounds = array<i64: 1, 6, 256>}]} {
    %c0 = arith.constant 0 : index
    %c0_0 = arith.constant 0 : index
    %c0_1 = arith.constant 0 : index
    %0 = vector.load %arg1[%c0, %c0_0, %c0_1] : memref<1x32x256xf32, #tpu.memory_space<vmem>>, vector<1x32x256xf32>
    %1 = vector.shape_cast %0 : vector<1x32x256xf32> to vector<32x256xf32>
    %c0_2 = arith.constant 0 : index
    %c0_3 = arith.constant 0 : index
    %c0_4 = arith.constant 0 : index
    %2 = vector.load %arg2[%c0_2, %c0_3, %c0_4] : memref<3x64x64xf32, #tpu.memory_space<vmem>>, vector<1x64x64xf32>
    %3 = vector.shape_cast %2 : vector<1x64x64xf32> to vector<64x64xf32>
    %4 = vector.extract_strided_slice %3 {offsets = [0, 0], sizes = [64, 32], strides = [1, 1]} : vector<64x64xf32> to vector<64x32xf32>
    %cst = arith.constant dense<0.000000e+00> : vector<64x256xf32>
    %5 = tpu.matmul %4, %1, %cst {dimension_numbers = #tpu.dot_dimension_numbers<[1], [0], [0], [1], [0, 0, 1, 1], [], []>} : vector<64x32xf32>, vector<32x256xf32>, vector<64x256xf32> -> vector<64x256xf32>
    %c0_5 = arith.constant 0 : index
    %c0_6 = arith.constant 0 : index
    %c0_7 = arith.constant 0 : index
    %6 = vector.load %arg3[%c0_5, %c0_6, %c0_7] : memref<3x64x1xf32, #tpu.memory_space<vmem>>, vector<1x64x1xf32>
    %7 = vector.shape_cast %6 : vector<1x64x1xf32> to vector<64x1xf32>
    %8 = vector.broadcast %7 : vector<64x1xf32> to vector<64x256xf32>
    %9 = arith.addf %5, %8 : vector<64x256xf32>
    %cst_8 = arith.constant 0.000000e+00 : f32
    %10 = vector.broadcast %cst_8 : f32 to vector<64x256xf32>
    %11 = arith.maximumf %9, %10 : vector<64x256xf32>
    %c1 = arith.constant 1 : index
    %c0_9 = arith.constant 0 : index
    %c0_10 = arith.constant 0 : index
    %12 = vector.load %arg2[%c1, %c0_9, %c0_10] : memref<3x64x64xf32, #tpu.memory_space<vmem>>, vector<1x64x64xf32>
    %13 = vector.shape_cast %12 : vector<1x64x64xf32> to vector<64x64xf32>
    %cst_11 = arith.constant dense<0.000000e+00> : vector<64x256xf32>
    %14 = tpu.matmul %13, %11, %cst_11 {dimension_numbers = #tpu.dot_dimension_numbers<[1], [0], [0], [1], [0, 0, 1, 1], [], []>} : vector<64x64xf32>, vector<64x256xf32>, vector<64x256xf32> -> vector<64x256xf32>
    %c1_12 = arith.constant 1 : index
    %c0_13 = arith.constant 0 : index
    %c0_14 = arith.constant 0 : index
    %15 = vector.load %arg3[%c1_12, %c0_13, %c0_14] : memref<3x64x1xf32, #tpu.memory_space<vmem>>, vector<1x64x1xf32>
    %16 = vector.shape_cast %15 : vector<1x64x1xf32> to vector<64x1xf32>
    %17 = vector.broadcast %16 : vector<64x1xf32> to vector<64x256xf32>
    %18 = arith.addf %14, %17 : vector<64x256xf32>
    %cst_15 = arith.constant 0.000000e+00 : f32
    %19 = vector.broadcast %cst_15 : f32 to vector<64x256xf32>
    %20 = arith.maximumf %18, %19 : vector<64x256xf32>
    %c2 = arith.constant 2 : index
    %c0_16 = arith.constant 0 : index
    %c0_17 = arith.constant 0 : index
    %21 = vector.load %arg2[%c2, %c0_16, %c0_17] : memref<3x64x64xf32, #tpu.memory_space<vmem>>, vector<1x64x64xf32>
    %22 = vector.shape_cast %21 : vector<1x64x64xf32> to vector<64x64xf32>
    %cst_18 = arith.constant dense<0.000000e+00> : vector<64x256xf32>
    %23 = tpu.matmul %22, %20, %cst_18 {dimension_numbers = #tpu.dot_dimension_numbers<[1], [0], [0], [1], [0, 0, 1, 1], [], []>} : vector<64x64xf32>, vector<64x256xf32>, vector<64x256xf32> -> vector<64x256xf32>
    %c2_19 = arith.constant 2 : index
    %c0_20 = arith.constant 0 : index
    %c0_21 = arith.constant 0 : index
    %24 = vector.load %arg3[%c2_19, %c0_20, %c0_21] : memref<3x64x1xf32, #tpu.memory_space<vmem>>, vector<1x64x1xf32>
    %25 = vector.shape_cast %24 : vector<1x64x1xf32> to vector<64x1xf32>
    %26 = vector.broadcast %25 : vector<64x1xf32> to vector<64x256xf32>
    %27 = arith.addf %23, %26 : vector<64x256xf32>
    %28 = vector.extract_strided_slice %27 {offsets = [0, 0], sizes = [6, 256], strides = [1, 1]} : vector<64x256xf32> to vector<6x256xf32>
    %c0_22 = arith.constant 0 : index
    %c0_23 = arith.constant 0 : index
    %c0_24 = arith.constant 0 : index
    %29 = vector.load %arg4[%c0_22, %c0_23, %c0_24] : memref<1x6x256xf32, #tpu.memory_space<vmem>>, vector<1x6x256xf32>
    %30 = vector.shape_cast %29 : vector<1x6x256xf32> to vector<6x256xf32>
    %31 = vector.shape_cast %28 : vector<6x256xf32> to vector<1x6x256xf32>
    tpu.vector_store %arg4[%c0_22, %c0_23, %c0_24], %31 {strides = array<i32>} : memref<1x6x256xf32, #tpu.memory_space<vmem>>, vector<1x6x256xf32>,
    return
  }
  func.func @transform_0(%arg0: i32) -> (i32, i32, i32) {
    %c0_i32 = arith.constant 0 : i32
    %c0_i32_0 = arith.constant 0 : i32
    %c0_i32_1 = arith.constant 0 : i32
    return %arg0, %c0_i32, %c0_i32_0 : i32, i32, i32
  }
  func.func @transform_1(%arg0: i32) -> (i32, i32, i32) {
    %c0_i32 = arith.constant 0 : i32
    %c0_i32_0 = arith.constant 0 : i32
    %c0_i32_1 = arith.constant 0 : i32
    %c0_i32_2 = arith.constant 0 : i32
    return %c0_i32, %c0_i32_0, %c0_i32_1 : i32, i32, i32
  }
  func.func @transform_2(%arg0: i32) -> (i32, i32, i32) {
    %c0_i32 = arith.constant 0 : i32
    %c0_i32_0 = arith.constant 0 : i32
    %c0_i32_1 = arith.constant 0 : i32
    %c0_i32_2 = arith.constant 0 : i32
    return %c0_i32, %c0_i32_0, %c0_i32_1 : i32, i32, i32
  }
  func.func @transform_3(%arg0: i32) -> (i32, i32, i32) {
    %c0_i32 = arith.constant 0 : i32
    %c0_i32_0 = arith.constant 0 : i32
    %c0_i32_1 = arith.constant 0 : i32
    return %arg0, %c0_i32, %c0_i32_0 : i32, i32, i32
  }
}

</mosaic_0001>

<llo_original>
// kernel: custom-call.54
$region0: #{custom-call.54}
  %s0 = inlined_call_operand.vmem [shape: f32[2,256], index: 0, kind: output, shape index: {}]

// kernel: custom-call.55
$region0: #{custom-call.55}
  %s0 = inlined_call_operand.vmem [shape: f32[2,128], index: 0, kind: output, shape index: {}]

// kernel: neg.6
$region0: #{neg.6}
  #allocation0 [shape = 's32[1]{0}', space=sflag, size = 0x4, scoped, tag = 'scoped memory for neg.6']
  %s0 = inlined_call_operand.vmem [shape: f32[2,128,64], index: 0, kind: input, shape index: {}]
  %s1 = inlined_call_operand.vmem [shape: f32[2,128,64], index: 1, kind: output, shape index: {}]
  %v2 = vld [vmem:[%s0] sm:$0xff]
  %3 = xla_tuple %v2
  %4 = xla_tuple %3
  %v5 = vxor.u32 %v2, 2147483648
  %6 = xla_tuple %v5
  %7 = vst [vmem:[%s1] sm:$0xff] %v5
  %s8 = scalar_lea.vmem %s0, 64
  %v9 = vld [vmem:[%s8] sm:$0xff]
  %10 = xla_tuple %v9
  %11 = xla_tuple %10
  %v12 = vxor.u32 %v9, 2147483648
  %13 = xla_tuple %v12
  %s14 = scalar_lea.vmem %s1, 64
  %15 = vst [vmem:[%s14] sm:$0xff] %v12
  %s16 = scalar_lea.vmem %s0, 8
  %v17 = vld [vmem:[%s16] sm:$0xff]
  %18 = xla_tuple %v17
  %19 = xla_tuple %18
  %v20 = vxor.u32 %v17, 2147483648
  %21 = xla_tuple %v20
  %s22 = scalar_lea.vmem %s1, 8
  %23 = vst [vmem:[%s22] sm:$0xff] %v20
  %s24 = scalar_lea.vmem %s0, 72
  %v25 = vld [vmem:[%s24] sm:$0xff]
  %26 = xla_tuple %v25
  %27 = xla_tuple %26
  %v28 = vxor.u32 %v25, 2147483648
  %29 = xla_tuple %v28
  %s30 = scalar_lea.vmem %s1, 72
  %31 = vst [vmem:[%s30] sm:$0xff] %v28
  %s32 = scalar_lea.vmem %s0, 16
  %v33 = vld [vmem:[%s32] sm:$0xff]
  %34 = xla_tuple %v33
  %35 = xla_tuple %34
  %v36 = vxor.u32 %v33, 2147483648
  %37 = xla_tuple %v36
  %s38 = scalar_lea.vmem %s1, 16
  %39 = vst [vmem:[%s38] sm:$0xff] %v36
  %s40 = scalar_lea.vmem %s0, 80
  %v41 = vld [vmem:[%s40] sm:$0xff]
  %42 = xla_tuple %v41
  %43 = xla_tuple %42
  %v44 = vxor.u32 %v41, 2147483648
  %45 = xla_tuple %v44
  %s46 = scalar_lea.vmem %s1, 80
  %47 = vst [vmem:[%s46] sm:$0xff] %v44
  %s48 = scalar_lea.vmem %s0, 24
  %v49 = vld [vmem:[%s48] sm:$0xff]
  %50 = xla_tuple %v49
  %51 = xla_tuple %50
  %v52 = vxor.u32 %v49, 2147483648
  %53 = xla_tuple %v52
  %s54 = scalar_lea.vmem %s1, 24
  %55 = vst [vmem:[%s54] sm:$0xff] %v52
  %s56 = scalar_lea.vmem %s0, 88
  %v57 = vld [vmem:[%s56] sm:$0xff]
  %58 = xla_tuple %v57
  %59 = xla_tuple %58
  %v60 = vxor.u32 %v57, 2147483648
  %61 = xla_tuple %v60
  %s62 = scalar_lea.vmem %s1, 88
  %63 = vst [vmem:[%s62] sm:$0xff] %v60
  %s64 = scalar_lea.vmem %s0, 32
  %v65 = vld [vmem:[%s64] sm:$0xff]
  %66 = xla_tuple %v65
  %67 = xla_tuple %66
  %v68 = vxor.u32 %v65, 2147483648
  %69 = xla_tuple %v68
  %s70 = scalar_lea.vmem %s1, 32
  %71 = vst [vmem:[%s70] sm:$0xff] %v68
  %s72 = scalar_lea.vmem %s0, 96
  %v73 = vld [vmem:[%s72] sm:$0xff]
  %74 = xla_tuple %v73
  %75 = xla_tuple %74
  %v76 = vxor.u32 %v73, 2147483648
  %77 = xla_tuple %v76
  %s78 = scalar_lea.vmem %s1, 96
  %79 = vst [vmem:[%s78] sm:$0xff] %v76
  %s80 = scalar_lea.vmem %s0, 40
  %v81 = vld [vmem:[%s80] sm:$0xff]
  %82 = xla_tuple %v81
  %83 = xla_tuple %82
  %v84 = vxor.u32 %v81, 2147483648
  %85 = xla_tuple %v84
  %s86 = scalar_lea.vmem %s1, 40
  %87 = vst [vmem:[%s86] sm:$0xff] %v84
  %s88 = scalar_lea.vmem %s0, 104
  %v89 = vld [vmem:[%s88] sm:$0xff]
  %90 = xla_tuple %v89
  %91 = xla_tuple %90
  %v92 = vxor.u32 %v89, 2147483648
  %93 = xla_tuple %v92
  %s94 = scalar_lea.vmem %s1, 104
  %95 = vst [vmem:[%s94] sm:$0xff] %v92
  %s96 = scalar_lea.vmem %s0, 48
  %v97 = vld [vmem:[%s96] sm:$0xff]
  %98 = xla_tuple %v97
  %99 = xla_tuple %98
  %v100 = vxor.u32 %v97, 2147483648
  %101 = xla_tuple %v100
  %s102 = scalar_lea.vmem %s1, 48
  %103 = vst [vmem:[%s102] sm:$0xff] %v100
  %s104 = scalar_lea.vmem %s0, 112
  %v105 = vld [vmem:[%s104] sm:$0xff]
  %106 = xla_tuple %v105
  %107 = xla_tuple %106
  %v108 = vxor.u32 %v105, 2147483648
  %109 = xla_tuple %v108
  %s110 = scalar_lea.vmem %s1, 112
  %111 = vst [vmem:[%s110] sm:$0xff] %v108
  %s112 = scalar_lea.vmem %s0, 56
  %v113 = vld [vmem:[%s112] sm:$0xff]
  %114 = xla_tuple %v113
  %115 = xla_tuple %114
  %v116 = vxor.u32 %v113, 2147483648
  %117 = xla_tuple %v116
  %s118 = scalar_lea.vmem %s1, 56
  %119 = vst [vmem:[%s118] sm:$0xff] %v116
  %s120 = scalar_lea.vmem %s0, 120
  %v121 = vld [vmem:[%s120] sm:$0xff]
  %122 = xla_tuple %v121
  %123 = xla_tuple %122
  %v124 = vxor.u32 %v121, 2147483648
  %125 = xla_tuple %v124
  %s126 = scalar_lea.vmem %s1, 120
  %127 = vst [vmem:[%s126] sm:$0xff] %v124

// kernel: neg.8
$region0: #{neg.8}
  #allocation0 [shape = 's32[1]{0}', space=sflag, size = 0x4, scoped, tag = 'scoped memory for neg.8']
  %s0 = inlined_call_operand.vmem [shape: f32[2,128,128], index: 0, kind: input, shape index: {}]
  %s1 = inlined_call_operand.vmem [shape: f32[2,128,128], index: 1, kind: output, shape index: {}]
  %v2 = vld [vmem:[%s0] sm:$0xff]
  %3 = xla_tuple %v2
  %4 = xla_tuple %3
  %v5 = vxor.u32 %v2, 2147483648
  %6 = xla_tuple %v5
  %7 = vst [vmem:[%s1] sm:$0xff] %v5
  %s8 = scalar_lea.vmem %s0, 128
  %v9 = vld [vmem:[%s8] sm:$0xff]
  %10 = xla_tuple %v9
  %11 = xla_tuple %10
  %v12 = vxor.u32 %v9, 2147483648
  %13 = xla_tuple %v12
  %s14 = scalar_lea.vmem %s1, 128
  %15 = vst [vmem:[%s14] sm:$0xff] %v12
  %s16 = scalar_lea.vmem %s0, 8
  %v17 = vld [vmem:[%s16] sm:$0xff]
  %18 = xla_tuple %v17
  %19 = xla_tuple %18
  %v20 = vxor.u32 %v17, 2147483648
  %21 = xla_tuple %v20
  %s22 = scalar_lea.vmem %s1, 8
  %23 = vst [vmem:[%s22] sm:$0xff] %v20
  %s24 = scalar_lea.vmem %s0, 136
  %v25 = vld [vmem:[%s24] sm:$0xff]
  %26 = xla_tuple %v25
  %27 = xla_tuple %26
  %v28 = vxor.u32 %v25, 2147483648
  %29 = xla_tuple %v28
  %s30 = scalar_lea.vmem %s1, 136
  %31 = vst [vmem:[%s30] sm:$0xff] %v28
  %s32 = scalar_lea.vmem %s0, 16
  %v33 = vld [vmem:[%s32] sm:$0xff]
  %34 = xla_tuple %v33
  %35 = xla_tuple %34
  %v36 = vxor.u32 %v33, 2147483648
  %37 = xla_tuple %v36
  %s38 = scalar_lea.vmem %s1, 16
  %39 = vst [vmem:[%s38] sm:$0xff] %v36
  %s40 = scalar_lea.vmem %s0, 144
  %v41 = vld [vmem:[%s40] sm:$0xff]
  %42 = xla_tuple %v41
  %43 = xla_tuple %42
  %v44 = vxor.u32 %v41, 2147483648
  %45 = xla_tuple %v44
  %s46 = scalar_lea.vmem %s1, 144
  %47 = vst [vmem:[%s46] sm:$0xff] %v44
  %s48 = scalar_lea.vmem %s0, 24
  %v49 = vld [vmem:[%s48] sm:$0xff]
  %50 = xla_tuple %v49
  %51 = xla_tuple %50
  %v52 = vxor.u32 %v49, 2147483648
  %53 = xla_tuple %v52
  %s54 = scalar_lea.vmem %s1, 24
  %55 = vst [vmem:[%s54] sm:$0xff] %v52
  %s56 = scalar_lea.vmem %s0, 152
  %v57 = vld [vmem:[%s56] sm:$0xff]
  %58 = xla_tuple %v57
  %59 = xla_tuple %58
  %v60 = vxor.u32 %v57, 2147483648
  %61 = xla_tuple %v60
  %s62 = scalar_lea.vmem %s1, 152
  %63 = vst [vmem:[%s62] sm:$0xff] %v60
  %s64 = scalar_lea.vmem %s0, 32
  %v65 = vld [vmem:[%s64] sm:$0xff]
  %66 = xla_tuple %v65
  %67 = xla_tuple %66
  %v68 = vxor.u32 %v65, 2147483648
  %69 = xla_tuple %v68
  %s70 = scalar_lea.vmem %s1, 32
  %71 = vst [vmem:[%s70] sm:$0xff] %v68
  %s72 = scalar_lea.vmem %s0, 160
  %v73 = vld [vmem:[%s72] sm:$0xff]
  %74 = xla_tuple %v73
  %75 = xla_tuple %74
  %v76 = vxor.u32 %v73, 2147483648
  %77 = xla_tuple %v76
  %s78 = scalar_lea.vmem %s1, 160
  %79 = vst [vmem:[%s78] sm:$0xff] %v76
  %s80 = scalar_lea.vmem %s0, 40
  %v81 = vld [vmem:[%s80] sm:$0xff]
  %82 = xla_tuple %v81
  %83 = xla_tuple %82
  %v84 = vxor.u32 %v81, 2147483648
  %85 = xla_tuple %v84
  %s86 = scalar_lea.vmem %s1, 40
  %87 = vst [vmem:[%s86] sm:$0xff] %v84
  %s88 = scalar_lea.vmem %s0, 168
  %v89 = vld [vmem:[%s88] sm:$0xff]
  %90 = xla_tuple %v89
  %91 = xla_tuple %90
  %v92 = vxor.u32 %v89, 2147483648
  %93 = xla_tuple %v92
  %s94 = scalar_lea.vmem %s1, 168
  %95 = vst [vmem:[%s94] sm:$0xff] %v92
  %s96 = scalar_lea.vmem %s0, 48
  %v97 = vld [vmem:[%s96] sm:$0xff]
  %98 = xla_tuple %v97
  %99 = xla_tuple %98
  %v100 = vxor.u32 %v97, 2147483648
  %101 = xla_tuple %v100
  %s102 = scalar_lea.vmem %s1, 48
  %103 = vst [vmem:[%s102] sm:$0xff] %v100
  %s104 = scalar_lea.vmem %s0, 176
  %v105 = vld [vmem:[%s104] sm:$0xff]
  %106 = xla_tuple %v105
  %107 = xla_tuple %106
  %v108 = vxor.u32 %v105, 2147483648
  %109 = xla_tuple %v108
  %s110 = scalar_lea.vmem %s1, 176
  %111 = vst [vmem:[%s110] sm:$0xff] %v108
  %s112 = scalar_lea.vmem %s0, 56
  %v113 = vld [vmem:[%s112] sm:$0xff]
  %114 = xla_tuple %v113
  %115 = xla_tuple %114
  %v116 = vxor.u32 %v113, 2147483648
  %117 = xla_tuple %v116
  %s118 = scalar_lea.vmem %s1, 56
  %119 = vst [vmem:[%s118] sm:$0xff] %v116
  %s120 = scalar_lea.vmem %s0, 184
  %v121 = vld [vmem:[%s120] sm:$0xff]
  %122 = xla_tuple %v121
  %123 = xla_tuple %122
  %v124 = vxor.u32 %v121, 2147483648
  %125 = xla_tuple %v124
  %s126 = scalar_lea.vmem %s1, 184
  %127 = vst [vmem:[%s126] sm:$0xff] %v124
  %s128 = scalar_lea.vmem %s0, 64
  %v129 = vld [vmem:[%s128] sm:$0xff]
  %130 = xla_tuple %v129
  %131 = xla_tuple %130
  %v132 = vxor.u32 %v129, 2147483648
  %133 = xla_tuple %v132
  %s134 = scalar_lea.vmem %s1, 64
  %135 = vst [vmem:[%s134] sm:$0xff] %v132
  %s136 = scalar_lea.vmem %s0, 192
  %v137 = vld [vmem:[%s136] sm:$0xff]
  %138 = xla_tuple %v137
  %139 = xla_tuple %138
  %v140 = vxor.u32 %v137, 2147483648
  %141 = xla_tuple %v140
  %s142 = scalar_lea.vmem %s1, 192
  %143 = vst [vmem:[%s142] sm:$0xff] %v140
  %s144 = scalar_lea.vmem %s0, 72
  %v145 = vld [vmem:[%s144] sm:$0xff]
  %146 = xla_tuple %v145
  %147 = xla_tuple %146
  %v148 = vxor.u32 %v145, 2147483648
  %149 = xla_tuple %v148
  %s150 = scalar_lea.vmem %s1, 72
  %151 = vst [vmem:[%s150] sm:$0xff] %v148
  %s152 = scalar_lea.vmem %s0, 200
  %v153 = vld [vmem:[%s152] sm:$0xff]
  %154 = xla_tuple %v153
  %155 = xla_tuple %154
  %v156 = vxor.u32 %v153, 2147483648
  %157 = xla_tuple %v156
  %s158 = scalar_lea.vmem %s1, 200
  %159 = vst [vmem:[%s158] sm:$0xff] %v156
  %s160 = scalar_lea.vmem %s0, 80
  %v161 = vld [vmem:[%s160] sm:$0xff]
  %162 = xla_tuple %v161
  %163 = xla_tuple %162
  %v164 = vxor.u32 %v161, 2147483648
  %165 = xla_tuple %v164
  %s166 = scalar_lea.vmem %s1, 80
  %167 = vst [vmem:[%s166] sm:$0xff] %v164
  %s168 = scalar_lea.vmem %s0, 208
  %v169 = vld [vmem:[%s168] sm:$0xff]
  %170 = xla_tuple %v169
  %171 = xla_tuple %170
  %v172 = vxor.u32 %v169, 2147483648
  %173 = xla_tuple %v172
  %s174 = scalar_lea.vmem %s1, 208
  %175 = vst [vmem:[%s174] sm:$0xff] %v172
  %s176 = scalar_lea.vmem %s0, 88
  %v177 = vld [vmem:[%s176] sm:$0xff]
  %178 = xla_tuple %v177
  %179 = xla_tuple %178
  %v180 = vxor.u32 %v177, 2147483648
  %181 = xla_tuple %v180
  %s182 = scalar_lea.vmem %s1, 88
  %183 = vst [vmem:[%s182] sm:$0xff] %v180
  %s184 = scalar_lea.vmem %s0, 216
  %v185 = vld [vmem:[%s184] sm:$0xff]
  %186 = xla_tuple %v185
  %187 = xla_tuple %186
  %v188 = vxor.u32 %v185, 2147483648
  %189 = xla_tuple %v188
  %s190 = scalar_lea.vmem %s1, 216
  %191 = vst [vmem:[%s190] sm:$0xff] %v188
  %s192 = scalar_lea.vmem %s0, 96
  %v193 = vld [vmem:[%s192] sm:$0xff]
  %194 = xla_tuple %v193
  %195 = xla_tuple %194
  %v196 = vxor.u32 %v193, 2147483648
  %197 = xla_tuple %v196
  %s198 = scalar_lea.vmem %s1, 96
  %199 = vst [vmem:[%s198] sm:$0xff] %v196
  %s200 = scalar_lea.vmem %s0, 224
  %v201 = vld [vmem:[%s200] sm:$0xff]
  %202 = xla_tuple %v201
  %203 = xla_tuple %202
  %v204 = vxor.u32 %v201, 2147483648
  %205 = xla_tuple %v204
  %s206 = scalar_lea.vmem %s1, 224
  %207 = vst [vmem:[%s206] sm:$0xff] %v204
  %s208 = scalar_lea.vmem %s0, 104
  %v209 = vld [vmem:[%s208] sm:$0xff]
  %210 = xla_tuple %v209
  %211 = xla_tuple %210
  %v212 = vxor.u32 %v209, 2147483648
  %213 = xla_tuple %v212
  %s214 = scalar_lea.vmem %s1, 104
  %215 = vst [vmem:[%s214] sm:$0xff] %v212
  %s216 = scalar_lea.vmem %s0, 232
  %v217 = vld [vmem:[%s216] sm:$0xff]
  %218 = xla_tuple %v217
  %219 = xla_tuple %218
  %v220 = vxor.u32 %v217, 2147483648
  %221 = xla_tuple %v220
  %s222 = scalar_lea.vmem %s1, 232
  %223 = vst [vmem:[%s222] sm:$0xff] %v220
  %s224 = scalar_lea.vmem %s0, 112
  %v225 = vld [vmem:[%s224] sm:$0xff]
  %226 = xla_tuple %v225
  %227 = xla_tuple %226
  %v228 = vxor.u32 %v225, 2147483648
  %229 = xla_tuple %v228
  %s230 = scalar_lea.vmem %s1, 112
  %231 = vst [vmem:[%s230] sm:$0xff] %v228
  %s232 = scalar_lea.vmem %s0, 240
  %v233 = vld [vmem:[%s232] sm:$0xff]
  %234 = xla_tuple %v233
  %235 = xla_tuple %234
  %v236 = vxor.u32 %v233, 2147483648
  %237 = xla_tuple %v236
  %s238 = scalar_lea.vmem %s1, 240
  %239 = vst [vmem:[%s238] sm:$0xff] %v236
  %s240 = scalar_lea.vmem %s0, 120
  %v241 = vld [vmem:[%s240] sm:$0xff]
  %242 = xla_tuple %v241
  %243 = xla_tuple %242
  %v244 = vxor.u32 %v241, 2147483648
  %245 = xla_tuple %v244
  %s246 = scalar_lea.vmem %s1, 120
  %247 = vst [vmem:[%s246] sm:$0xff] %v244
  %s248 = scalar_lea.vmem %s0, 248
  %v249 = vld [vmem:[%s248] sm:$0xff]
  %250 = xla_tuple %v249
  %251 = xla_tuple %250
  %v252 = vxor.u32 %v249, 2147483648
  %253 = xla_tuple %v252
  %s254 = scalar_lea.vmem %s1, 248
  %255 = vst [vmem:[%s254] sm:$0xff] %v252

// kernel: neg.10
$region0: #{neg.10}
  #allocation0 [shape = 's32[1]{0}', space=sflag, size = 0x4, scoped, tag = 'scoped memory for neg.10']
  %s0 = inlined_call_operand.vmem [shape: f32[2,256,128], index: 0, kind: input, shape index: {}]
  %s1 = inlined_call_operand.vmem [shape: f32[2,256,128], index: 1, kind: output, shape index: {}]
  %v2 = vld [vmem:[%s0] sm:$0xff]
  %3 = xla_tuple %v2
  %4 = xla_tuple %3
  %v5 = vxor.u32 %v2, 2147483648
  %6 = xla_tuple %v5
  %7 = vst [vmem:[%s1] sm:$0xff] %v5
  %s8 = scalar_lea.vmem %s0, 256
  %v9 = vld [vmem:[%s8] sm:$0xff]
  %10 = xla_tuple %v9
  %11 = xla_tuple %10
  %v12 = vxor.u32 %v9, 2147483648
  %13 = xla_tuple %v12
  %s14 = scalar_lea.vmem %s1, 256
  %15 = vst [vmem:[%s14] sm:$0xff] %v12
  %s16 = scalar_lea.vmem %s0, 8
  %v17 = vld [vmem:[%s16] sm:$0xff]
  %18 = xla_tuple %v17
  %19 = xla_tuple %18
  %v20 = vxor.u32 %v17, 2147483648
  %21 = xla_tuple %v20
  %s22 = scalar_lea.vmem %s1, 8
  %23 = vst [vmem:[%s22] sm:$0xff] %v20
  %s24 = scalar_lea.vmem %s0, 264
  %v25 = vld [vmem:[%s24] sm:$0xff]
  %26 = xla_tuple %v25
  %27 = xla_tuple %26
  %v28 = vxor.u32 %v25, 2147483648
  %29 = xla_tuple %v28
  %s30 = scalar_lea.vmem %s1, 264
  %31 = vst [vmem:[%s30] sm:$0xff] %v28
  %s32 = scalar_lea.vmem %s0, 16
  %v33 = vld [vmem:[%s32] sm:$0xff]
  %34 = xla_tuple %v33
  %35 = xla_tuple %34
  %v36 = vxor.u32 %v33, 2147483648
  %37 = xla_tuple %v36
  %s38 = scalar_lea.vmem %s1, 16
  %39 = vst [vmem:[%s38] sm:$0xff] %v36
  %s40 = scalar_lea.vmem %s0, 272
  %v41 = vld [vmem:[%s40] sm:$0xff]
  %42 = xla_tuple %v41
  %43 = xla_tuple %42
  %v44 = vxor.u32 %v41, 2147483648
  %45 = xla_tuple %v44
  %s46 = scalar_lea.vmem %s1, 272
  %47 = vst [vmem:[%s46] sm:$0xff] %v44
  %s48 = scalar_lea.vmem %s0, 24
  %v49 = vld [vmem:[%s48] sm:$0xff]
  %50 = xla_tuple %v49
  %51 = xla_tuple %50
  %v52 = vxor.u32 %v49, 2147483648
  %53 = xla_tuple %v52
  %s54 = scalar_lea.vmem %s1, 24
  %55 = vst [vmem:[%s54] sm:$0xff] %v52
  %s56 = scalar_lea.vmem %s0, 280
  %v57 = vld [vmem:[%s56] sm:$0xff]
  %58 = xla_tuple %v57
  %59 = xla_tuple %58
  %v60 = vxor.u32 %v57, 2147483648
  %61 = xla_tuple %v60
  %s62 = scalar_lea.vmem %s1, 280
  %63 = vst [vmem:[%s62] sm:$0xff] %v60
  %s64 = scalar_lea.vmem %s0, 32
  %v65 = vld [vmem:[%s64] sm:$0xff]
  %66 = xla_tuple %v65
  %67 = xla_tuple %66
  %v68 = vxor.u32 %v65, 2147483648
  %69 = xla_tuple %v68
  %s70 = scalar_lea.vmem %s1, 32
  %71 = vst [vmem:[%s70] sm:$0xff] %v68
  %s72 = scalar_lea.vmem %s0, 288
  %v73 = vld [vmem:[%s72] sm:$0xff]
  %74 = xla_tuple %v73
  %75 = xla_tuple %74
  %v76 = vxor.u32 %v73, 2147483648
  %77 = xla_tuple %v76
  %s78 = scalar_lea.vmem %s1, 288
  %79 = vst [vmem:[%s78] sm:$0xff] %v76
  %s80 = scalar_lea.vmem %s0, 40
  %v81 = vld [vmem:[%s80] sm:$0xff]
  %82 = xla_tuple %v81
  %83 = xla_tuple %82
  %v84 = vxor.u32 %v81, 2147483648
  %85 = xla_tuple %v84
  %s86 = scalar_lea.vmem %s1, 40
  %87 = vst [vmem:[%s86] sm:$0xff] %v84
  %s88 = scalar_lea.vmem %s0, 296
  %v89 = vld [vmem:[%s88] sm:$0xff]
  %90 = xla_tuple %v89
  %91 = xla_tuple %90
  %v92 = vxor.u32 %v89, 2147483648
  %93 = xla_tuple %v92
  %s94 = scalar_lea.vmem %s1, 296
  %95 = vst [vmem:[%s94] sm:$0xff] %v92
  %s96 = scalar_lea.vmem %s0, 48
  %v97 = vld [vmem:[%s96] sm:$0xff]
  %98 = xla_tuple %v97
  %99 = xla_tuple %98
  %v100 = vxor.u32 %v97, 2147483648
  %101 = xla_tuple %v100
  %s102 = scalar_lea.vmem %s1, 48
  %103 = vst [vmem:[%s102] sm:$0xff] %v100
  %s104 = scalar_lea.vmem %s0, 304
  %v105 = vld [vmem:[%s104] sm:$0xff]
  %106 = xla_tuple %v105
  %107 = xla_tuple %106
  %v108 = vxor.u32 %v105, 2147483648
  %109 = xla_tuple %v108
  %s110 = scalar_lea.vmem %s1, 304
  %111 = vst [vmem:[%s110] sm:$0xff] %v108
  %s112 = scalar_lea.vmem %s0, 56
  %v113 = vld [vmem:[%s112] sm:$0xff]
  %114 = xla_tuple %v113
  %115 = xla_tuple %114
  %v116 = vxor.u32 %v113, 2147483648
  %117 = xla_tuple %v116
  %s118 = scalar_lea.vmem %s1, 56
  %119 = vst [vmem:[%s118] sm:$0xff] %v116
  %s120 = scalar_lea.vmem %s0, 312
  %v121 = vld [vmem:[%s120] sm:$0xff]
  %122 = xla_tuple %v121
  %123 = xla_tuple %122
  %v124 = vxor.u32 %v121, 2147483648
  %125 = xla_tuple %v124
  %s126 = scalar_lea.vmem %s1, 312
  %127 = vst [vmem:[%s126] sm:$0xff] %v124
  %s128 = scalar_lea.vmem %s0, 64
  %v129 = vld [vmem:[%s128] sm:$0xff]
  %130 = xla_tuple %v129
  %131 = xla_tuple %130
  %v132 = vxor.u32 %v129, 2147483648
  %133 = xla_tuple %v132
  %s134 = scalar_lea.vmem %s1, 64
  %135 = vst [vmem:[%s134] sm:$0xff] %v132
  %s136 = scalar_lea.vmem %s0, 320
  %v137 = vld [vmem:[%s136] sm:$0xff]
  %138 = xla_tuple %v137
  %139 = xla_tuple %138
  %v140 = vxor.u32 %v137, 2147483648
  %141 = xla_tuple %v140
  %s142 = scalar_lea.vmem %s1, 320
  %143 = vst [vmem:[%s142] sm:$0xff] %v140
  %s144 = scalar_lea.vmem %s0, 72
  %v145 = vld [vmem:[%s144] sm:$0xff]
  %146 = xla_tuple %v145
  %147 = xla_tuple %146
  %v148 = vxor.u32 %v145, 2147483648
  %149 = xla_tuple %v148
  %s150 = scalar_lea.vmem %s1, 72
  %151 = vst [vmem:[%s150] sm:$0xff] %v148
  %s152 = scalar_lea.vmem %s0, 328
  %v153 = vld [vmem:[%s152] sm:$0xff]
  %154 = xla_tuple %v153
  %155 = xla_tuple %154
  %v156 = vxor.u32 %v153, 2147483648
  %157 = xla_tuple %v156
  %s158 = scalar_lea.vmem %s1, 328
  %159 = vst [vmem:[%s158] sm:$0xff] %v156
  %s160 = scalar_lea.vmem %s0, 80
  %v161 = vld [vmem:[%s160] sm:$0xff]
  %162 = xla_tuple %v161
  %163 = xla_tuple %162
  %v164 = vxor.u32 %v161, 2147483648
  %165 = xla_tuple %v164
  %s166 = scalar_lea.vmem %s1, 80
  %167 = vst [vmem:[%s166] sm:$0xff] %v164
  %s168 = scalar_lea.vmem %s0, 336
  %v169 = vld [vmem:[%s168] sm:$0xff]
  %170 = xla_tuple %v169
  %171 = xla_tuple %170
  %v172 = vxor.u32 %v169, 2147483648
  %173 = xla_tuple %v172
  %s174 = scalar_lea.vmem %s1, 336
  %175 = vst [vmem:[%s174] sm:$0xff] %v172
  %s176 = scalar_lea.vmem %s0, 88
  %v177 = vld [vmem:[%s176] sm:$0xff]
  %178 = xla_tuple %v177
  %179 = xla_tuple %178
  %v180 = vxor.u32 %v177, 2147483648
  %181 = xla_tuple %v180
  %s182 = scalar_lea.vmem %s1, 88
  %183 = vst [vmem:[%s182] sm:$0xff] %v180
  %s184 = scalar_lea.vmem %s0, 344
  %v185 = vld [vmem:[%s184] sm:$0xff]
  %186 = xla_tuple %v185
  %187 = xla_tuple %186
  %v188 = vxor.u32 %v185, 2147483648
  %189 = xla_tuple %v188
  %s190 = scalar_lea.vmem %s1, 344
  %191 = vst [vmem:[%s190] sm:$0xff] %v188
  %s192 = scalar_lea.vmem %s0, 96
  %v193 = vld [vmem:[%s192] sm:$0xff]
  %194 = xla_tuple %v193
  %195 = xla_tuple %194
  %v196 = vxor.u32 %v193, 2147483648
  %197 = xla_tuple %v196
  %s198 = scalar_lea.vmem %s1, 96
  %199 = vst [vmem:[%s198] sm:$0xff] %v196
  %s200 = scalar_lea.vmem %s0, 352
  %v201 = vld [vmem:[%s200] sm:$0xff]
  %202 = xla_tuple %v201
  %203 = xla_tuple %202
  %v204 = vxor.u32 %v201, 2147483648
  %205 = xla_tuple %v204
  %s206 = scalar_lea.vmem %s1, 352
  %207 = vst [vmem:[%s206] sm:$0xff] %v204
  %s208 = scalar_lea.vmem %s0, 104
  %v209 = vld [vmem:[%s208] sm:$0xff]
  %210 = xla_tuple %v209
  %211 = xla_tuple %210
  %v212 = vxor.u32 %v209, 2147483648
  %213 = xla_tuple %v212
  %s214 = scalar_lea.vmem %s1, 104
  %215 = vst [vmem:[%s214] sm:$0xff] %v212
  %s216 = scalar_lea.vmem %s0, 360
  %v217 = vld [vmem:[%s216] sm:$0xff]
  %218 = xla_tuple %v217
  %219 = xla_tuple %218
  %v220 = vxor.u32 %v217, 2147483648
  %221 = xla_tuple %v220
  %s222 = scalar_lea.vmem %s1, 360
  %223 = vst [vmem:[%s222] sm:$0xff] %v220
  %s224 = scalar_lea.vmem %s0, 112
  %v225 = vld [vmem:[%s224] sm:$0xff]
  %226 = xla_tuple %v225
  %227 = xla_tuple %226
  %v228 = vxor.u32 %v225, 2147483648
  %229 = xla_tuple %v228
  %s230 = scalar_lea.vmem %s1, 112
  %231 = vst [vmem:[%s230] sm:$0xff] %v228
  %s232 = scalar_lea.vmem %s0, 368
  %v233 = vld [vmem:[%s232] sm:$0xff]
  %234 = xla_tuple %v233
  %235 = xla_tuple %234
  %v236 = vxor.u32 %v233, 2147483648
  %237 = xla_tuple %v236
  %s238 = scalar_lea.vmem %s1, 368
  %239 = vst [vmem:[%s238] sm:$0xff] %v236
  %s240 = scalar_lea.vmem %s0, 120
  %v241 = vld [vmem:[%s240] sm:$0xff]
  %242 = xla_tuple %v241
  %243 = xla_tuple %242
  %v244 = vxor.u32 %v241, 2147483648
  %245 = xla_tuple %v244
  %s246 = scalar_lea.vmem %s1, 120
  %247 = vst [vmem:[%s246] sm:$0xff] %v244
  %s248 = scalar_lea.vmem %s0, 376
  %v249 = vld [vmem:[%s248] sm:$0xff]
  %250 = xla_tuple %v249
  %251 = xla_tuple %250
  %v252 = vxor.u32 %v249, 2147483648
  %253 = xla_tuple %v252
  %s254 = scalar_lea.vmem %s1, 376
  %255 = vst [vmem:[%s254] sm:$0xff] %v252
  %s256 = scalar_lea.vmem %s0, 128
  %v257 = vld [vmem:[%s256] sm:$0xff]
  %258 = xla_tuple %v257
  %259 = xla_tuple %258
  %v260 = vxor.u32 %v257, 2147483648
  %261 = xla_tuple %v260
  %s262 = scalar_lea.vmem %s1, 128
  %263 = vst [vmem:[%s262] sm:$0xff] %v260
  %s264 = scalar_lea.vmem %s0, 384
  %v265 = vld [vmem:[%s264] sm:$0xff]
  %266 = xla_tuple %v265
  %267 = xla_tuple %266
  %v268 = vxor.u32 %v265, 2147483648
  %269 = xla_tuple %v268
  %s270 = scalar_lea.vmem %s1, 384
  %271 = vst [vmem:[%s270] sm:$0xff] %v268
  %s272 = scalar_lea.vmem %s0, 136
  %v273 = vld [vmem:[%s272] sm:$0xff]
  %274 = xla_tuple %v273
  %275 = xla_tuple %274
  %v276 = vxor.u32 %v273, 2147483648
  %277 = xla_tuple %v276
  %s278 = scalar_lea.vmem %s1, 136
  %279 = vst [vmem:[%s278] sm:$0xff] %v276
  %s280 = scalar_lea.vmem %s0, 392
  %v281 = vld [vmem:[%s280] sm:$0xff]
  %282 = xla_tuple %v281
  %283 = xla_tuple %282
  %v284 = vxor.u32 %v281, 2147483648
  %285 = xla_tuple %v284
  %s286 = scalar_lea.vmem %s1, 392
  %287 = vst [vmem:[%s286] sm:$0xff] %v284
  %s288 = scalar_lea.vmem %s0, 144
  %v289 = vld [vmem:[%s288] sm:$0xff]
  %290 = xla_tuple %v289
  %291 = xla_tuple %290
  %v292 = vxor.u32 %v289, 2147483648
  %293 = xla_tuple %v292
  %s294 = scalar_lea.vmem %s1, 144
  %295 = vst [vmem:[%s294] sm:$0xff] %v292
  %s296 = scalar_lea.vmem %s0, 400
  %v297 = vld [vmem:[%s296] sm:$0xff]
  %298 = xla_tuple %v297
  %299 = xla_tuple %298
  %v300 = vxor.u32 %v297, 2147483648
  %301 = xla_tuple %v300
  %s302 = scalar_lea.vmem %s1, 400
  %303 = vst [vmem:[%s302] sm:$0xff] %v300
  %s304 = scalar_lea.vmem %s0, 152
  %v305 = vld [vmem:[%s304] sm:$0xff]
  %306 = xla_tuple %v305
  %307 = xla_tuple %306
  %v308 = vxor.u32 %v305, 2147483648
  %309 = xla_tuple %v308
  %s310 = scalar_lea.vmem %s1, 152
  %311 = vst [vmem:[%s310] sm:$0xff] %v308
  %s312 = scalar_lea.vmem %s0, 408
  %v313 = vld [vmem:[%s312] sm:$0xff]
  %314 = xla_tuple %v313
  %315 = xla_tuple %314
  %v316 = vxor.u32 %v313, 2147483648
  %317 = xla_tuple %v316
  %s318 = scalar_lea.vmem %s1, 408
  %319 = vst [vmem:[%s318] sm:$0xff] %v316
  %s320 = scalar_lea.vmem %s0, 160
  %v321 = vld [vmem:[%s320] sm:$0xff]
  %322 = xla_tuple %v321
  %323 = xla_tuple %322
  %v324 = vxor.u32 %v321, 2147483648
  %325 = xla_tuple %v324
  %s326 = scalar_lea.vmem %s1, 160
  %327 = vst [vmem:[%s326] sm:$0xff] %v324
  %s328 = scalar_lea.vmem %s0, 416
  %v329 = vld [vmem:[%s328] sm:$0xff]
  %330 = xla_tuple %v329
  %331 = xla_tuple %330
  %v332 = vxor.u32 %v329, 2147483648
  %333 = xla_tuple %v332
  %s334 = scalar_lea.vmem %s1, 416
  %335 = vst [vmem:[%s334] sm:$0xff] %v332
  %s336 = scalar_lea.vmem %s0, 168
  %v337 = vld [vmem:[%s336] sm:$0xff]
  %338 = xla_tuple %v337
  %339 = xla_tuple %338
  %v340 = vxor.u32 %v337, 2147483648
  %341 = xla_tuple %v340
  %s342 = scalar_lea.vmem %s1, 168
  %343 = vst [vmem:[%s342] sm:$0xff] %v340
  %s344 = scalar_lea.vmem %s0, 424
  %v345 = vld [vmem:[%s344] sm:$0xff]
  %346 = xla_tuple %v345
  %347 = xla_tuple %346
  %v348 = vxor.u32 %v345, 2147483648
  %349 = xla_tuple %v348
  %s350 = scalar_lea.vmem %s1, 424
  %351 = vst [vmem:[%s350] sm:$0xff] %v348
  %s352 = scalar_lea.vmem %s0, 176
  %v353 = vld [vmem:[%s352] sm:$0xff]
  %354 = xla_tuple %v353
  %355 = xla_tuple %354
  %v356 = vxor.u32 %v353, 2147483648
  %357 = xla_tuple %v356
  %s358 = scalar_lea.vmem %s1, 176
  %359 = vst [vmem:[%s358] sm:$0xff] %v356
  %s360 = scalar_lea.vmem %s0, 432
  %v361 = vld [vmem:[%s360] sm:$0xff]
  %362 = xla_tuple %v361
  %363 = xla_tuple %362
  %v364 = vxor.u32 %v361, 2147483648
  %365 = xla_tuple %v364
  %s366 = scalar_lea.vmem %s1, 432
  %367 = vst [vmem:[%s366] sm:$0xff] %v364
  %s368 = scalar_lea.vmem %s0, 184
  %v369 = vld [vmem:[%s368] sm:$0xff]
  %370 = xla_tuple %v369
  %371 = xla_tuple %370
  %v372 = vxor.u32 %v369, 2147483648
  %373 = xla_tuple %v372
  %s374 = scalar_lea.vmem %s1, 184
  %375 = vst [vmem:[%s374] sm:$0xff] %v372
  %s376 = scalar_lea.vmem %s0, 440
  %v377 = vld [vmem:[%s376] sm:$0xff]
  %378 = xla_tuple %v377
  %379 = xla_tuple %378
  %v380 = vxor.u32 %v377, 2147483648
  %381 = xla_tuple %v380
  %s382 = scalar_lea.vmem %s1, 440
  %383 = vst [vmem:[%s382] sm:$0xff] %v380
  %s384 = scalar_lea.vmem %s0, 192
  %v385 = vld [vmem:[%s384] sm:$0xff]
  %386 = xla_tuple %v385
  %387 = xla_tuple %386
  %v388 = vxor.u32 %v385, 2147483648
  %389 = xla_tuple %v388
  %s390 = scalar_lea.vmem %s1, 192
  %391 = vst [vmem:[%s390] sm:$0xff] %v388
  %s392 = scalar_lea.vmem %s0, 448
  %v393 = vld [vmem:[%s392] sm:$0xff]
  %394 = xla_tuple %v393
  %395 = xla_tuple %394
  %v396 = vxor.u32 %v393, 2147483648
  %397 = xla_tuple %v396
  %s398 = scalar_lea.vmem %s1, 448
  %399 = vst [vmem:[%s398] sm:$0xff] %v396
  %s400 = scalar_lea.vmem %s0, 200
  %v401 = vld [vmem:[%s400] sm:$0xff]
  %402 = xla_tuple %v401
  %403 = xla_tuple %402
  %v404 = vxor.u32 %v401, 2147483648
  %405 = xla_tuple %v404
  %s406 = scalar_lea.vmem %s1, 200
  %407 = vst [vmem:[%s406] sm:$0xff] %v404
  %s408 = scalar_lea.vmem %s0, 456
  %v409 = vld [vmem:[%s408] sm:$0xff]
  %410 = xla_tuple %v409
  %411 = xla_tuple %410
  %v412 = vxor.u32 %v409, 2147483648
  %413 = xla_tuple %v412
  %s414 = scalar_lea.vmem %s1, 456
  %415 = vst [vmem:[%s414] sm:$0xff] %v412
  %s416 = scalar_lea.vmem %s0, 208
  %v417 = vld [vmem:[%s416] sm:$0xff]
  %418 = xla_tuple %v417
  %419 = xla_tuple %418
  %v420 = vxor.u32 %v417, 2147483648
  %421 = xla_tuple %v420
  %s422 = scalar_lea.vmem %s1, 208
  %423 = vst [vmem:[%s422] sm:$0xff] %v420
  %s424 = scalar_lea.vmem %s0, 464
  %v425 = vld [vmem:[%s424] sm:$0xff]
  %426 = xla_tuple %v425
  %427 = xla_tuple %426
  %v428 = vxor.u32 %v425, 2147483648
  %429 = xla_tuple %v428
  %s430 = scalar_lea.vmem %s1, 464
  %431 = vst [vmem:[%s430] sm:$0xff] %v428
  %s432 = scalar_lea.vmem %s0, 216
  %v433 = vld [vmem:[%s432] sm:$0xff]
  %434 = xla_tuple %v433
  %435 = xla_tuple %434
  %v436 = vxor.u32 %v433, 2147483648
  %437 = xla_tuple %v436
  %s438 = scalar_lea.vmem %s1, 216
  %439 = vst [vmem:[%s438] sm:$0xff] %v436
  %s440 = scalar_lea.vmem %s0, 472
  %v441 = vld [vmem:[%s440] sm:$0xff]
  %442 = xla_tuple %v441
  %443 = xla_tuple %442
  %v444 = vxor.u32 %v441, 2147483648
  %445 = xla_tuple %v444
  %s446 = scalar_lea.vmem %s1, 472
  %447 = vst [vmem:[%s446] sm:$0xff] %v444
  %s448 = scalar_lea.vmem %s0, 224
  %v449 = vld [vmem:[%s448] sm:$0xff]
  %450 = xla_tuple %v449
  %451 = xla_tuple %450
  %v452 = vxor.u32 %v449, 2147483648
  %453 = xla_tuple %v452
  %s454 = scalar_lea.vmem %s1, 224
  %455 = vst [vmem:[%s454] sm:$0xff] %v452
  %s456 = scalar_lea.vmem %s0, 480
  %v457 = vld [vmem:[%s456] sm:$0xff]
  %458 = xla_tuple %v457
  %459 = xla_tuple %458
  %v460 = vxor.u32 %v457, 2147483648
  %461 = xla_tuple %v460
  %s462 = scalar_lea.vmem %s1, 480
  %463 = vst [vmem:[%s462] sm:$0xff] %v460
  %s464 = scalar_lea.vmem %s0, 232
  %v465 = vld [vmem:[%s464] sm:$0xff]
  %466 = xla_tuple %v465
  %467 = xla_tuple %466
  %v468 = vxor.u32 %v465, 2147483648
  %469 = xla_tuple %v468
  %s470 = scalar_lea.vmem %s1, 232
  %471 = vst [vmem:[%s470] sm:$0xff] %v468
  %s472 = scalar_lea.vmem %s0, 488
  %v473 = vld [vmem:[%s472] sm:$0xff]
  %474 = xla_tuple %v473
  %475 = xla_tuple %474
  %v476 = vxor.u32 %v473, 2147483648
  %477 = xla_tuple %v476
  %s478 = scalar_lea.vmem %s1, 488
  %479 = vst [vmem:[%s478] sm:$0xff] %v476
  %s480 = scalar_lea.vmem %s0, 240
  %v481 = vld [vmem:[%s480] sm:$0xff]
  %482 = xla_tuple %v481
  %483 = xla_tuple %482
  %v484 = vxor.u32 %v481, 2147483648
  %485 = xla_tuple %v484
  %s486 = scalar_lea.vmem %s1, 240
  %487 = vst [vmem:[%s486] sm:$0xff] %v484
  %s488 = scalar_lea.vmem %s0, 496
  %v489 = vld [vmem:[%s488] sm:$0xff]
  %490 = xla_tuple %v489
  %491 = xla_tuple %490
  %v492 = vxor.u32 %v489, 2147483648
  %493 = xla_tuple %v492
  %s494 = scalar_lea.vmem %s1, 496
  %495 = vst [vmem:[%s494] sm:$0xff] %v492
  %s496 = scalar_lea.vmem %s0, 248
  %v497 = vld [vmem:[%s496] sm:$0xff]
  %498 = xla_tuple %v497
  %499 = xla_tuple %498
  %v500 = vxor.u32 %v497, 2147483648
  %501 = xla_tuple %v500
  %s502 = scalar_lea.vmem %s1, 248
  %503 = vst [vmem:[%s502] sm:$0xff] %v500
  %s504 = scalar_lea.vmem %s0, 504
  %v505 = vld [vmem:[%s504] sm:$0xff]
  %506 = xla_tuple %v505
  %507 = xla_tuple %506
  %v508 = vxor.u32 %v505, 2147483648
  %509 = xla_tuple %v508
  %s510 = scalar_lea.vmem %s1, 504
  %511 = vst [vmem:[%s510] sm:$0xff] %v508

// kernel: pointnet2_msg_forward.10
$region0: #{pointnet2_msg_forward.10}
  #allocation0 [shape = 'u32[]', space=smem, size = 0x4, offset = 0x4, fixed_abs, tag = 'smem constant byte address 0x4 - core index']
  #allocation1 [shape = 'u32[144,128]{1,0:T(1,128)}', space=vmem, size = 0x12000, scoped, tag = 'internal scratch']
  %s0 = inlined_call_operand.vmem [shape: f32[2,8,256], index: 0, kind: input, shape index: {}]
  %s1 = inlined_call_operand.vmem [shape: f32[3,16,16], index: 1, kind: input, shape index: {}]
  %s2 = inlined_call_operand.vmem [shape: f32[3,16,1], index: 2, kind: input, shape index: {}]
  %s3 = inlined_call_operand.vmem [shape: f32[2,16,128], index: 3, kind: output, shape index: {}]
  %s4 = sld [smem:[#allocation0]]
  $region45: #{pointnet2_msg_forward.10} parent=0
    _
  %s6 = ssub.s32 1, %s4
  %s7 = scalar_select 0, %s6, %s4
  loop: start=0, step=1, limit=4
  $region2: #{pointnet2_msg_forward.10} parent=0 // loop_pre_header
    _
  $region3: #{pointnet2_msg_forward.10} parent=0 // loop_header
    %s9 = sphi 0, %s13
    %p10 = scmp.ge.s32.totalorder %s9, 4
    %s19 = sphi 0, %s21
    %s22 = sphi 0, %s19
    %s23 = sphi 0, %s22
    %s39 = sphi 0, %s23
    %s43 = sphi 0, %s43
    %s45 = sphi 0, %s43
    %s46 = sphi 0, %s45
    %s60 = sphi 0, %s46
    %s64 = sphi 0, %s64
    %s66 = sphi 0, %s64
    %s67 = sphi 0, %s66
    %s81 = sphi 0, %s67
    %s87 = sphi 0, %s89
    %s90 = sphi 0, %s87
    %s91 = sphi 0, %s90
    %s107 = sphi 0, %s91
  $region4: #{pointnet2_msg_forward.10} parent=0 // loop_header_branch
    %12 = sbr.rel (%p10) target = $region8
  $region5: #{pointnet2_msg_forward.10} parent=0 // loop_body
    %s14 = ssub.s32 %s9, 1
    %s15 = ssub.s32 %s9, 2
    %s16 = sadd.s32 %s9, 1
    %s17 = ssub.s32 %s9, %s16
    %p18 = scmp.eq.s32.totalorder %s17, 0
    %s20 = sadd.s32 %s19, 1
    %s21 = scalar_select %p18, %s19, %s20
    %p24 = pneg %p18
    %p25 = scmp.eq.s32.totalorder %s9, 1
    %p26 = por %p24, %p25
    %p27 = scmp.ne.s32.totalorder %s19, %s22
    %p28 = scmp.eq.s32.totalorder %s9, 0
    %p29 = por %p27, %p28
    %p30 = scmp.ne.s32.totalorder %s19, %s22
    %p31 = scmp.eq.s32.totalorder %s14, 1
    %p32 = por %p30, %p31
    %p33 = scmp.ne.s32.totalorder %s22, %s23
    %p34 = scmp.eq.s32.totalorder %s14, 0
    %p35 = por %p33, %p34
    %p36 = scmp.ne.s32.totalorder %s22, %s23
    %p37 = scmp.eq.s32.totalorder %s15, 1
    %p38 = por %p36, %p37
    %p40 = scmp.ne.s32.totalorder %s23, %s39
    %p41 = scmp.eq.s32.totalorder %s15, 0
    %p42 = por %p40, %p41
    %s44 = sadd.s32 %s43, 1
    %p47 = scmp.eq.s32.totalorder %s9, 1
    %p48 = scmp.ne.s32.totalorder %s43, %s45
    %p49 = scmp.eq.s32.totalorder %s9, 0
    %p50 = por %p48, %p49
    %p51 = scmp.ne.s32.totalorder %s43, %s45
    %p52 = scmp.eq.s32.totalorder %s14, 1
    %p53 = por %p51, %p52
    %p54 = scmp.ne.s32.totalorder %s45, %s46
    %p55 = scmp.eq.s32.totalorder %s14, 0
    %p56 = por %p54, %p55
    %p57 = scmp.ne.s32.totalorder %s45, %s46
    %p58 = scmp.eq.s32.totalorder %s15, 1
    %p59 = por %p57, %p58
    %p61 = scmp.ne.s32.totalorder %s46, %s60
    %p62 = scmp.eq.s32.totalorder %s15, 0
    %p63 = por %p61, %p62
    %s65 = sadd.s32 %s64, 1
    %p68 = scmp.eq.s32.totalorder %s9, 1
    %p69 = scmp.ne.s32.totalorder %s64, %s66
    %p70 = scmp.eq.s32.totalorder %s9, 0
    %p71 = por %p69, %p70
    %p72 = scmp.ne.s32.totalorder %s64, %s66
    %p73 = scmp.eq.s32.totalorder %s14, 1
    %p74 = por %p72, %p73
    %p75 = scmp.ne.s32.totalorder %s66, %s67
    %p76 = scmp.eq.s32.totalorder %s14, 0
    %p77 = por %p75, %p76
    %p78 = scmp.ne.s32.totalorder %s66, %s67
    %p79 = scmp.eq.s32.totalorder %s15, 1
    %p80 = por %p78, %p79
    %p82 = scmp.ne.s32.totalorder %s67, %s81
    %p83 = scmp.eq.s32.totalorder %s15, 0
    %p84 = por %p82, %p83
    %s85 = ssub.s32 %s9, %s16
    %p86 = scmp.eq.s32.totalorder %s85, 0
    %s88 = sadd.s32 %s87, 1
    %s89 = scalar_select %p86, %s87, %s88
    %p92 = pneg %p86
    %p93 = scmp.eq.s32.totalorder %s9, 1
    %p94 = por %p92, %p93
    %p95 = scmp.ne.s32.totalorder %s87, %s90
    %p96 = scmp.eq.s32.totalorder %s9, 0
    %p97 = por %p95, %p96
    %p98 = scmp.ne.s32.totalorder %s87, %s90
    %p99 = scmp.eq.s32.totalorder %s14, 1
    %p100 = por %p98, %p99
    %p101 = scmp.ne.s32.totalorder %s90, %s91
    %p102 = scmp.eq.s32.totalorder %s14, 0
    %p103 = por %p101, %p102
    %p104 = scmp.ne.s32.totalorder %s90, %s91
    %p105 = scmp.eq.s32.totalorder %s15, 1
    %p106 = por %p104, %p105
    %p108 = scmp.ne.s32.totalorder %s91, %s107
    %p109 = scmp.eq.s32.totalorder %s15, 0
    %p110 = por %p108, %p109
    %p111 = scmp.le.s32.totalorder 1, %s9
    %p112 = scmp.lt.s32.totalorder %s9, 3
    %p113 = pnand %p111, %p112
    %p114 = pneg %p113
    // Predicated region
    $region9: #{pointnet2_msg_forward.10} parent=5 // pred_check
      _
    $region10: #{pointnet2_msg_forward.10} parent=5 // pred_check_branch
      %116 = sbr.rel (%p113) target = $region12
    $region11: #{pointnet2_msg_forward.10} parent=5 // pred_region
      %s117 = ssub.s32 %s9, 1
      // Predicated region
      $region13: #{pointnet2_msg_forward.10} parent=11 // pred_check
        %p118 = pneg %p56
      $region14: #{pointnet2_msg_forward.10} parent=11 // pred_check_branch
        %120 = sbr.rel (%p118) target = $region16
      $region15: #{pointnet2_msg_forward.10} parent=11 // pred_region
        _
      $region16: #{pointnet2_msg_forward.10} parent=11 // pred_fallthru
        _
      // Predicated region
      $region17: #{pointnet2_msg_forward.10} parent=11 // pred_check
        %p121 = pneg %p77
      $region18: #{pointnet2_msg_forward.10} parent=11 // pred_check_branch
        %123 = sbr.rel (%p121) target = $region20
      $region19: #{pointnet2_msg_forward.10} parent=11 // pred_region
        _
      $region20: #{pointnet2_msg_forward.10} parent=11 // pred_fallthru
        _
    $region12: #{pointnet2_msg_forward.10} parent=5 // pred_fallthru
      _
    %p124 = scmp.lt.s32.totalorder %s9, 2
    // Predicated region
    $region21: #{pointnet2_msg_forward.10} parent=5 // pred_check
      %p125 = pneg %p124
    $region22: #{pointnet2_msg_forward.10} parent=5 // pred_check_branch
      %127 = sbr.rel (%p125) target = $region24
    $region23: #{pointnet2_msg_forward.10} parent=5 // pred_region
      // Predicated region
      $region25: #{pointnet2_msg_forward.10} parent=23 // pred_check
        %p128 = pneg %p29
      $region26: #{pointnet2_msg_forward.10} parent=23 // pred_check_branch
        %130 = sbr.rel (%p128) target = $region28
      $region27: #{pointnet2_msg_forward.10} parent=23 // pred_region
        %p131 = scmp.lt.s32.totalorder %s9, 1
        %s132 = scalar_select %p131, %s9, 1
        %s133 = smul.addr %s132, 2
        %s134 = smul.addr %s133, 8
        %s135 = scalar_lea.vmem %s0, %s134
      $region28: #{pointnet2_msg_forward.10} parent=23 // pred_fallthru
        _
    $region24: #{pointnet2_msg_forward.10} parent=5 // pred_fallthru
      _
    %p136 = scmp.le.s32.totalorder 1, %s9
    %p137 = scmp.lt.s32.totalorder %s9, 3
    %p138 = pnand %p136, %p137
    %p139 = pneg %p138
    // Predicated region
    $region29: #{pointnet2_msg_forward.10} parent=5 // pred_check
      _
    $region30: #{pointnet2_msg_forward.10} parent=5 // pred_check_branch
      %141 = sbr.rel (%p138) target = $region32
    $region31: #{pointnet2_msg_forward.10} parent=5 // pred_region
      %s142 = ssub.s32 %s9, 1
      %p143 = scmp.lt.s32.totalorder %s14, 1
      %s144 = scalar_select %p143, %s14, 1
      %s145 = smul.addr %s144, 2
      %s146 = smul.addr %s145, 8
      %s147 = scalar_lea.vmem %s0, %s146
      %p148 = pneg %p35
      %p149 = pneg %p32
      %p150 = pneg %p56
      %p151 = pneg %p53
      %p152 = pneg %p77
      %p153 = pneg %p74
      %p154 = pneg %p103
      %p155 = pneg %p100
      %p156 = scmp.lt.s32.totalorder %s14, 1
      %s157 = scalar_select %p156, %s14, 1
      %s158 = smul.addr %s157, 2
      %s159 = smul.addr %s158, 8
      %s160 = scalar_lea.vmem %s3, %s159
      %p161 = scmp.lt.s32.totalorder %s14, 1
      %s162 = scalar_select %p161, %s14, 1
      %s163 = smul.addr %s162, 2
      %s164 = smul.addr %s163, 8
      %s165 = scalar_lea.vmem %s0, %s164
      %p166 = scmp.lt.s32.totalorder %s14, 1
      %s167 = scalar_select %p166, %s14, 1
      %s168 = smul.addr %s167, 2
      %s169 = smul.addr %s168, 8
      %s170 = scalar_lea.vmem %s3, %s169
      %v171 = vld [vmem:[%s165] sm:$0xff]
      %v172 = vld [vmem:[%s165 + $0x8] sm:$0xff]
      %v173 = vld [vmem:[%s1] sm:$0xff]
      %v174 = vld [vmem:[%s1 + $0x8] sm:$0xff]
      %v175 = vld [vmem:[%s2] sm:$0xff]
      %v176 = vld [vmem:[%s2 + $0x8] sm:$0xff]
      %178 = vset.pattern.permute.xlu0 0
      %179 = vperm.xlu0 %178, %v175
      %v180 = vpop.permute.xlu0 %179
      %183 = vset.pattern.permute.xlu0 0
      %184 = vperm.xlu0 %183, %v176
      %v185 = vpop.permute.xlu0 %184
      %vm187 = vcmask 64512
      %v189 = vsel %vm187, %v173, 0
      %v192 = vsel %vm187, %v174, 0
      %194 = vmatprep.subr.mxu0 %v172
      %195 = vmatpush1.msra.mxu0 %v171
      %196 = vmatprep.subr.mxu0 0.0
      %197 = vmatpush1.msra.mxu0 0.0
      %198 = vmatprep.subr.mxu0 0.0
      %199 = vmatpush1.msra.mxu0 0.0
      %200 = vmatprep.subr.mxu0 0.0
      %201 = vmatpush1.msra.mxu0 0.0
      %202 = vmatprep.subr.mxu0 0.0
      %203 = vmatpush1.msra.mxu0 0.0
      %204 = vmatprep.subr.mxu0 0.0
      %205 = vmatpush1.msra.mxu0 0.0
      %206 = vmatprep.subr.mxu0 0.0
      %207 = vmatpush1.msra.mxu0 0.0
      %208 = vmatprep.subr.mxu0 0.0
      %209 = vmatpush1.msra.mxu0 0.0
      %210 = vmatprep.subr.mxu0 0.0
      %211 = vmatpush1.msra.mxu0 0.0
      %212 = vmatprep.subr.mxu0 0.0
      %213 = vmatpush1.msra.mxu0 0.0
      %214 = vmatprep.subr.mxu0 0.0
      %215 = vmatpush1.msra.mxu0 0.0
      %216 = vmatprep.subr.mxu0 0.0
      %217 = vmatpush1.msra.mxu0 0.0
      %218 = vmatprep.subr.mxu0 0.0
      %219 = vmatpush1.msra.mxu0 0.0
      %220 = vmatprep.subr.mxu0 0.0
      %221 = vmatpush1.msra.mxu0 0.0
      %222 = vmatprep.subr.mxu0 0.0
      %223 = vmatpush1.msra.mxu0 0.0
      %224 = vmatprep.subr.mxu0 0.0
      %225 = vmatpush1.msra.mxu0 0.0
      %226 = vmatprep.subr.mxu0 0.0
      %227 = vmatpush1.msra.mxu0 0.0
      %228 = vmatprep.subr.mxu0 0.0
      %229 = vmatpush1.msra.mxu0 0.0
      %230 = vmatprep.subr.mxu0 0.0
      %231 = vmatpush1.msra.mxu0 0.0
      %232 = vmatprep.subr.mxu0 0.0
      %233 = vmatpush1.msra.mxu0 0.0
      %234 = vmatprep.subr.mxu0 0.0
      %235 = vmatpush1.msra.mxu0 0.0
      %236 = vmatprep.subr.mxu0 0.0
      %237 = vmatpush1.msra.mxu0 0.0
      %238 = vmatprep.subr.mxu0 0.0
      %239 = vmatpush1.msra.mxu0 0.0
      %240 = vmatprep.subr.mxu0 0.0
      %241 = vmatpush1.msra.mxu0 0.0
      %242 = vmatprep.subr.mxu0 0.0
      %243 = vmatpush1.msra.mxu0 0.0
      %244 = vmatprep.subr.mxu0 0.0
      %245 = vmatpush1.msra.mxu0 0.0
      %246 = vmatprep.subr.mxu0 0.0
      %247 = vmatpush1.msra.mxu0 0.0
      %248 = vmatprep.subr.mxu0 0.0
      %249 = vmatpush1.msra.mxu0 0.0
      %250 = vmatprep.subr.mxu0 0.0
      %251 = vmatpush1.msra.mxu0 0.0
      %252 = vmatprep.subr.mxu0 0.0
      %253 = vmatpush1.msra.mxu0 0.0
      %254 = vmatprep.subr.mxu0 0.0
      %255 = vmatpush1.msra.mxu0 0.0
      %256 = vmatprep.subr.mxu0 0.0
      %257 = vmatpush1.msra.mxu0 0.0
      %258 = vmatprep.mubr.f32.mxu0 0.0
      %259 = vmatmul.mubr.f32.gmra.mrb[0].mxu0 %v189
      %v260 = vpop.f32.mrb[0].mxu0
      %v261 = vadd.f32 %v180, %v260
      %v262 = vpop.f32.mrb[0].mxu0
      %v263 = vadd.f32 %v180, %v262
      %264 = vmatprep.mubr.f32.mxu0 0.0
      %265 = vmatmul.mubr.f32.gmra.mrb[0].mxu0 %v192
      %v266 = vpop.f32.mrb[0].mxu0
      %v267 = vadd.f32 %v185, %v266
      %v268 = vpop.f32.mrb[0].mxu0
      %v269 = vadd.f32 %v185, %v268
      %270 = vdwg.mxu0
      %v271 = vmax.f32 %v261, 0.0
      %v272 = vmax.f32 %v263, 0.0
      %v273 = vmax.f32 %v267, 0.0
      %v274 = vmax.f32 %v269, 0.0
      %s275 = scalar_lea.vmem %s1, 16
      %v276 = vld [vmem:[%s275] sm:$0xff]
      %v277 = vld [vmem:[%s275 + $0x8] sm:$0xff]
      %s278 = scalar_lea.vmem %s2, 16
      %v279 = vld [vmem:[%s278] sm:$0xff]
      %v280 = vld [vmem:[%s278 + $0x8] sm:$0xff]
      %282 = vset.pattern.permute.xlu0 0
      %283 = vperm.xlu0 %282, %v279
      %v284 = vpop.permute.xlu0 %283
      %287 = vset.pattern.permute.xlu0 0
      %288 = vperm.xlu0 %287, %v280
      %v289 = vpop.permute.xlu0 %288
      %vm291 = vcmask 130048
      %v293 = vsel %vm291, %v276, 0
      %v296 = vsel %vm291, %v277, 0
      %298 = vmatprep.subr.mxu0 %v272
      %299 = vmatpush1.msra.mxu0 %v271
      %300 = vmatprep.subr.mxu0 %v274
      %301 = vmatpush1.msra.mxu0 %v273
      %302 = vmatprep.subr.mxu0 0.0
      %303 = vmatpush1.msra.mxu0 0.0
      %304 = vmatprep.subr.mxu0 0.0
      %305 = vmatpush1.msra.mxu0 0.0
      %306 = vmatprep.subr.mxu0 0.0
      %307 = vmatpush1.msra.mxu0 0.0
      %308 = vmatprep.subr.mxu0 0.0
      %309 = vmatpush1.msra.mxu0 0.0
      %310 = vmatprep.subr.mxu0 0.0
      %311 = vmatpush1.msra.mxu0 0.0
      %312 = vmatprep.subr.mxu0 0.0
      %313 = vmatpush1.msra.mxu0 0.0
      %314 = vmatprep.subr.mxu0 0.0
      %315 = vmatpush1.msra.mxu0 0.0
      %316 = vmatprep.subr.mxu0 0.0
      %317 = vmatpush1.msra.mxu0 0.0
      %318 = vmatprep.subr.mxu0 0.0
      %319 = vmatpush1.msra.mxu0 0.0
      %320 = vmatprep.subr.mxu0 0.0
      %321 = vmatpush1.msra.mxu0 0.0
      %322 = vmatprep.subr.mxu0 0.0
      %323 = vmatpush1.msra.mxu0 0.0
      %324 = vmatprep.subr.mxu0 0.0
      %325 = vmatpush1.msra.mxu0 0.0
      %326 = vmatprep.subr.mxu0 0.0
      %327 = vmatpush1.msra.mxu0 0.0
      %328 = vmatprep.subr.mxu0 0.0
      %329 = vmatpush1.msra.mxu0 0.0
      %330 = vmatprep.subr.mxu0 0.0
      %331 = vmatpush1.msra.mxu0 0.0
      %332 = vmatprep.subr.mxu0 0.0
      %333 = vmatpush1.msra.mxu0 0.0
      %334 = vmatprep.subr.mxu0 0.0
      %335 = vmatpush1.msra.mxu0 0.0
      %336 = vmatprep.subr.mxu0 0.0
      %337 = vmatpush1.msra.mxu0 0.0
      %338 = vmatprep.subr.mxu0 0.0
      %339 = vmatpush1.msra.mxu0 0.0
      %340 = vmatprep.subr.mxu0 0.0
      %341 = vmatpush1.msra.mxu0 0.0
      %342 = vmatprep.subr.mxu0 0.0
      %343 = vmatpush1.msra.mxu0 0.0
      %344 = vmatprep.subr.mxu0 0.0
      %345 = vmatpush1.msra.mxu0 0.0
      %346 = vmatprep.subr.mxu0 0.0
      %347 = vmatpush1.msra.mxu0 0.0
      %348 = vmatprep.subr.mxu0 0.0
      %349 = vmatpush1.msra.mxu0 0.0
      %350 = vmatprep.subr.mxu0 0.0
      %351 = vmatpush1.msra.mxu0 0.0
      %352 = vmatprep.subr.mxu0 0.0
      %353 = vmatpush1.msra.mxu0 0.0
      %354 = vmatprep.subr.mxu0 0.0
      %355 = vmatpush1.msra.mxu0 0.0
      %356 = vmatprep.subr.mxu0 0.0
      %357 = vmatpush1.msra.mxu0 0.0
      %358 = vmatprep.subr.mxu0 0.0
      %359 = vmatpush1.msra.mxu0 0.0
      %360 = vmatprep.subr.mxu0 0.0
      %361 = vmatpush1.msra.mxu0 0.0
      %362 = vmatprep.mubr.f32.mxu0 0.0
      %363 = vmatmul.mubr.f32.gmra.mrb[0].mxu0 %v293
      %v364 = vpop.f32.mrb[0].mxu0
      %v365 = vadd.f32 %v284, %v364
      %v366 = vpop.f32.mrb[0].mxu0
      %v367 = vadd.f32 %v284, %v366
      %368 = vmatprep.mubr.f32.mxu0 0.0
      %369 = vmatmul.mubr.f32.gmra.mrb[0].mxu0 %v296
      %v370 = vpop.f32.mrb[0].mxu0
      %v371 = vadd.f32 %v289, %v370
      %v372 = vpop.f32.mrb[0].mxu0
      %v373 = vadd.f32 %v289, %v372
      %374 = vdwg.mxu0
      %v375 = vmax.f32 %v365, 0.0
      %v376 = vmax.f32 %v367, 0.0
      %v377 = vmax.f32 %v371, 0.0
      %v378 = vmax.f32 %v373, 0.0
      %s379 = scalar_lea.vmem %s1, 32
      %v380 = vld [vmem:[%s379] sm:$0xff]
      %v381 = vld [vmem:[%s379 + $0x8] sm:$0xff]
      %s382 = scalar_lea.vmem %s2, 32
      %v383 = vld [vmem:[%s382] sm:$0xff]
      %v384 = vld [vmem:[%s382 + $0x8] sm:$0xff]
      %386 = vset.pattern.permute.xlu0 0
      %387 = vperm.xlu0 %386, %v383
      %v388 = vpop.permute.xlu0 %387
      %391 = vset.pattern.permute.xlu0 0
      %392 = vperm.xlu0 %391, %v384
      %v393 = vpop.permute.xlu0 %392
      %v396 = vsel %vm291, %v380, 0
      %v399 = vsel %vm291, %v381, 0
      %401 = vmatprep.subr.mxu0 %v376
      %402 = vmatpush1.msra.mxu0 %v375
      %403 = vmatprep.subr.mxu0 %v378
      %404 = vmatpush1.msra.mxu0 %v377
      %405 = vmatprep.subr.mxu0 0.0
      %406 = vmatpush1.msra.mxu0 0.0
      %407 = vmatprep.subr.mxu0 0.0
      %408 = vmatpush1.msra.mxu0 0.0
      %409 = vmatprep.subr.mxu0 0.0
      %410 = vmatpush1.msra.mxu0 0.0
      %411 = vmatprep.subr.mxu0 0.0
      %412 = vmatpush1.msra.mxu0 0.0
      %413 = vmatprep.subr.mxu0 0.0
      %414 = vmatpush1.msra.mxu0 0.0
      %415 = vmatprep.subr.mxu0 0.0
      %416 = vmatpush1.msra.mxu0 0.0
      %417 = vmatprep.subr.mxu0 0.0
      %418 = vmatpush1.msra.mxu0 0.0
      %419 = vmatprep.subr.mxu0 0.0
      %420 = vmatpush1.msra.mxu0 0.0
      %421 = vmatprep.subr.mxu0 0.0
      %422 = vmatpush1.msra.mxu0 0.0
      %423 = vmatprep.subr.mxu0 0.0
      %424 = vmatpush1.msra.mxu0 0.0
      %425 = vmatprep.subr.mxu0 0.0
      %426 = vmatpush1.msra.mxu0 0.0
      %427 = vmatprep.subr.mxu0 0.0
      %428 = vmatpush1.msra.mxu0 0.0
      %429 = vmatprep.subr.mxu0 0.0
      %430 = vmatpush1.msra.mxu0 0.0
      %431 = vmatprep.subr.mxu0 0.0
      %432 = vmatpush1.msra.mxu0 0.0
      %433 = vmatprep.subr.mxu0 0.0
      %434 = vmatpush1.msra.mxu0 0.0
      %435 = vmatprep.subr.mxu0 0.0
      %436 = vmatpush1.msra.mxu0 0.0
      %437 = vmatprep.subr.mxu0 0.0
      %438 = vmatpush1.msra.mxu0 0.0
      %439 = vmatprep.subr.mxu0 0.0
      %440 = vmatpush1.msra.mxu0 0.0
      %441 = vmatprep.subr.mxu0 0.0
      %442 = vmatpush1.msra.mxu0 0.0
      %443 = vmatprep.subr.mxu0 0.0
      %444 = vmatpush1.msra.mxu0 0.0
      %445 = vmatprep.subr.mxu0 0.0
      %446 = vmatpush1.msra.mxu0 0.0
      %447 = vmatprep.subr.mxu0 0.0
      %448 = vmatpush1.msra.mxu0 0.0
      %449 = vmatprep.subr.mxu0 0.0
      %450 = vmatpush1.msra.mxu0 0.0
      %451 = vmatprep.subr.mxu0 0.0
      %452 = vmatpush1.msra.mxu0 0.0
      %453 = vmatprep.subr.mxu0 0.0
      %454 = vmatpush1.msra.mxu0 0.0
      %455 = vmatprep.subr.mxu0 0.0
      %456 = vmatpush1.msra.mxu0 0.0
      %457 = vmatprep.subr.mxu0 0.0
      %458 = vmatpush1.msra.mxu0 0.0
      %459 = vmatprep.subr.mxu0 0.0
      %460 = vmatpush1.msra.mxu0 0.0
      %461 = vmatprep.subr.mxu0 0.0
      %462 = vmatpush1.msra.mxu0 0.0
      %463 = vmatprep.subr.mxu0 0.0
      %464 = vmatpush1.msra.mxu0 0.0
      %465 = vmatprep.mubr.f32.mxu0 0.0
      %466 = vmatmul.mubr.f32.gmra.mrb[0].mxu0 %v396
      %v467 = vpop.f32.mrb[0].mxu0
      %v468 = vadd.f32 %v388, %v467
      %v469 = vpop.f32.mrb[0].mxu0
      %v470 = vadd.f32 %v388, %v469
      %471 = vmatprep.mubr.f32.mxu0 0.0
      %472 = vmatmul.mubr.f32.gmra.mrb[0].mxu0 %v399
      %v473 = vpop.f32.mrb[0].mxu0
      %v474 = vadd.f32 %v393, %v473
      %v475 = vpop.f32.mrb[0].mxu0
      %v476 = vadd.f32 %v393, %v475
      %477 = vdwg.mxu0
      %v478 = vmax.f32 %v468, 0.0
      %v479 = vmax.f32 %v470, 0.0
      %v480 = vmax.f32 %v474, 0.0
      %v481 = vmax.f32 %v476, 0.0
      %v482 = vmax.f32 %v478, %v479
      %v483 = vmax.f32 %v480, %v481
      %484 = vst [vmem:[%s170] sm:$0xff] %v482
      %485 = vst [vmem:[%s170 + $0x8] sm:$0xff] %v483
      %p486 = scmp.lt.s32.totalorder %s14, 1
      %s487 = scalar_select %p486, %s14, 1
      %s488 = smul.addr %s487, 2
      %s489 = smul.addr %s488, 8
      %s490 = scalar_lea.vmem %s3, %s489
      // Predicated region
      $region33: #{pointnet2_msg_forward.10} parent=31 // pred_check
        %p491 = pneg %p100
      $region34: #{pointnet2_msg_forward.10} parent=31 // pred_check_branch
        %493 = sbr.rel (%p491) target = $region36
      $region35: #{pointnet2_msg_forward.10} parent=31 // pred_region
        _
      $region36: #{pointnet2_msg_forward.10} parent=31 // pred_fallthru
        _
    $region32: #{pointnet2_msg_forward.10} parent=5 // pred_fallthru
      _
    %p494 = scmp.le.s32.totalorder 2, %s9
    // Predicated region
    $region37: #{pointnet2_msg_forward.10} parent=5 // pred_check
      %p495 = pneg %p494
    $region38: #{pointnet2_msg_forward.10} parent=5 // pred_check_branch
      %497 = sbr.rel (%p495) target = $region40
    $region39: #{pointnet2_msg_forward.10} parent=5 // pred_region
      %s498 = ssub.s32 %s9, 2
      // Predicated region
      $region41: #{pointnet2_msg_forward.10} parent=39 // pred_check
        %p499 = pneg %p106
      $region42: #{pointnet2_msg_forward.10} parent=39 // pred_check_branch
        %501 = sbr.rel (%p499) target = $region44
      $region43: #{pointnet2_msg_forward.10} parent=39 // pred_region
        %p502 = scmp.lt.s32.totalorder %s15, 1
        %s503 = scalar_select %p502, %s15, 1
        %s504 = smul.addr %s503, 2
        %s505 = smul.addr %s504, 8
        %s506 = scalar_lea.vmem %s3, %s505
      $region44: #{pointnet2_msg_forward.10} parent=39 // pred_fallthru
        _
    $region40: #{pointnet2_msg_forward.10} parent=5 // pred_fallthru
      _
  $region6: #{pointnet2_msg_forward.10} parent=0 // loop_footer
    %s13 = sadd.s32 1, %s9
  $region7: #{pointnet2_msg_forward.10} parent=0 // loop_footer_branch
    %8 = sbr.rel target = $region3
  $region8: #{pointnet2_msg_forward.10} parent=0 // loop_exit
    _

// kernel: pointnet2_msg_forward.11
$region0: #{pointnet2_msg_forward.11}
  #allocation0 [shape = 'u32[]', space=smem, size = 0x4, offset = 0x4, fixed_abs, tag = 'smem constant byte address 0x4 - core index']
  #allocation1 [shape = 'u32[144,128]{1,0:T(1,128)}', space=vmem, size = 0x12000, scoped, tag = 'internal scratch']
  %s0 = inlined_call_operand.vmem [shape: f32[2,8,1024], index: 0, kind: input, shape index: {}]
  %s1 = inlined_call_operand.vmem [shape: f32[3,32,32], index: 1, kind: input, shape index: {}]
  %s2 = inlined_call_operand.vmem [shape: f32[3,32,1], index: 2, kind: input, shape index: {}]
  %s3 = inlined_call_operand.vmem [shape: f32[2,32,128], index: 3, kind: output, shape index: {}]
  %s4 = sld [smem:[#allocation0]]
  $region45: #{pointnet2_msg_forward.11} parent=0
    _
  %s6 = ssub.s32 1, %s4
  %s7 = scalar_select 0, %s6, %s4
  loop: start=0, step=1, limit=4
  $region2: #{pointnet2_msg_forward.11} parent=0 // loop_pre_header
    _
  $region3: #{pointnet2_msg_forward.11} parent=0 // loop_header
    %s9 = sphi 0, %s13
    %p10 = scmp.ge.s32.totalorder %s9, 4
    %s19 = sphi 0, %s21
    %s22 = sphi 0, %s19
    %s23 = sphi 0, %s22
    %s39 = sphi 0, %s23
    %s43 = sphi 0, %s43
    %s45 = sphi 0, %s43
    %s46 = sphi 0, %s45
    %s60 = sphi 0, %s46
    %s64 = sphi 0, %s64
    %s66 = sphi 0, %s64
    %s67 = sphi 0, %s66
    %s81 = sphi 0, %s67
    %s87 = sphi 0, %s89
    %s90 = sphi 0, %s87
    %s91 = sphi 0, %s90
    %s107 = sphi 0, %s91
  $region4: #{pointnet2_msg_forward.11} parent=0 // loop_header_branch
    %12 = sbr.rel (%p10) target = $region8
  $region5: #{pointnet2_msg_forward.11} parent=0 // loop_body
    %s14 = ssub.s32 %s9, 1
    %s15 = ssub.s32 %s9, 2
    %s16 = sadd.s32 %s9, 1
    %s17 = ssub.s32 %s9, %s16
    %p18 = scmp.eq.s32.totalorder %s17, 0
    %s20 = sadd.s32 %s19, 1
    %s21 = scalar_select %p18, %s19, %s20
    %p24 = pneg %p18
    %p25 = scmp.eq.s32.totalorder %s9, 1
    %p26 = por %p24, %p25
    %p27 = scmp.ne.s32.totalorder %s19, %s22
    %p28 = scmp.eq.s32.totalorder %s9, 0
    %p29 = por %p27, %p28
    %p30 = scmp.ne.s32.totalorder %s19, %s22
    %p31 = scmp.eq.s32.totalorder %s14, 1
    %p32 = por %p30, %p31
    %p33 = scmp.ne.s32.totalorder %s22, %s23
    %p34 = scmp.eq.s32.totalorder %s14, 0
    %p35 = por %p33, %p34
    %p36 = scmp.ne.s32.totalorder %s22, %s23
    %p37 = scmp.eq.s32.totalorder %s15, 1
    %p38 = por %p36, %p37
    %p40 = scmp.ne.s32.totalorder %s23, %s39
    %p41 = scmp.eq.s32.totalorder %s15, 0
    %p42 = por %p40, %p41
    %s44 = sadd.s32 %s43, 1
    %p47 = scmp.eq.s32.totalorder %s9, 1
    %p48 = scmp.ne.s32.totalorder %s43, %s45
    %p49 = scmp.eq.s32.totalorder %s9, 0
    %p50 = por %p48, %p49
    %p51 = scmp.ne.s32.totalorder %s43, %s45
    %p52 = scmp.eq.s32.totalorder %s14, 1
    %p53 = por %p51, %p52
    %p54 = scmp.ne.s32.totalorder %s45, %s46
    %p55 = scmp.eq.s32.totalorder %s14, 0
    %p56 = por %p54, %p55
    %p57 = scmp.ne.s32.totalorder %s45, %s46
    %p58 = scmp.eq.s32.totalorder %s15, 1
    %p59 = por %p57, %p58
    %p61 = scmp.ne.s32.totalorder %s46, %s60
    %p62 = scmp.eq.s32.totalorder %s15, 0
    %p63 = por %p61, %p62
    %s65 = sadd.s32 %s64, 1
    %p68 = scmp.eq.s32.totalorder %s9, 1
    %p69 = scmp.ne.s32.totalorder %s64, %s66
    %p70 = scmp.eq.s32.totalorder %s9, 0
    %p71 = por %p69, %p70
    %p72 = scmp.ne.s32.totalorder %s64, %s66
    %p73 = scmp.eq.s32.totalorder %s14, 1
    %p74 = por %p72, %p73
    %p75 = scmp.ne.s32.totalorder %s66, %s67
    %p76 = scmp.eq.s32.totalorder %s14, 0
    %p77 = por %p75, %p76
    %p78 = scmp.ne.s32.totalorder %s66, %s67
    %p79 = scmp.eq.s32.totalorder %s15, 1
    %p80 = por %p78, %p79
    %p82 = scmp.ne.s32.totalorder %s67, %s81
    %p83 = scmp.eq.s32.totalorder %s15, 0
    %p84 = por %p82, %p83
    %s85 = ssub.s32 %s9, %s16
    %p86 = scmp.eq.s32.totalorder %s85, 0
    %s88 = sadd.s32 %s87, 1
    %s89 = scalar_select %p86, %s87, %s88
    %p92 = pneg %p86
    %p93 = scmp.eq.s32.totalorder %s9, 1
    %p94 = por %p92, %p93
    %p95 = scmp.ne.s32.totalorder %s87, %s90
    %p96 = scmp.eq.s32.totalorder %s9, 0
    %p97 = por %p95, %p96
    %p98 = scmp.ne.s32.totalorder %s87, %s90
    %p99 = scmp.eq.s32.totalorder %s14, 1
    %p100 = por %p98, %p99
    %p101 = scmp.ne.s32.totalorder %s90, %s91
    %p102 = scmp.eq.s32.totalorder %s14, 0
    %p103 = por %p101, %p102
    %p104 = scmp.ne.s32.totalorder %s90, %s91
    %p105 = scmp.eq.s32.totalorder %s15, 1
    %p106 = por %p104, %p105
    %p108 = scmp.ne.s32.totalorder %s91, %s107
    %p109 = scmp.eq.s32.totalorder %s15, 0
    %p110 = por %p108, %p109
    %p111 = scmp.le.s32.totalorder 1, %s9
    %p112 = scmp.lt.s32.totalorder %s9, 3
    %p113 = pnand %p111, %p112
    %p114 = pneg %p113
    // Predicated region
    $region9: #{pointnet2_msg_forward.11} parent=5 // pred_check
      _
    $region10: #{pointnet2_msg_forward.11} parent=5 // pred_check_branch
      %116 = sbr.rel (%p113) target = $region12
    $region11: #{pointnet2_msg_forward.11} parent=5 // pred_region
      %s117 = ssub.s32 %s9, 1
      // Predicated region
      $region13: #{pointnet2_msg_forward.11} parent=11 // pred_check
        %p118 = pneg %p56
      $region14: #{pointnet2_msg_forward.11} parent=11 // pred_check_branch
        %120 = sbr.rel (%p118) target = $region16
      $region15: #{pointnet2_msg_forward.11} parent=11 // pred_region
        _
      $region16: #{pointnet2_msg_forward.11} parent=11 // pred_fallthru
        _
      // Predicated region
      $region17: #{pointnet2_msg_forward.11} parent=11 // pred_check
        %p121 = pneg %p77
      $region18: #{pointnet2_msg_forward.11} parent=11 // pred_check_branch
        %123 = sbr.rel (%p121) target = $region20
      $region19: #{pointnet2_msg_forward.11} parent=11 // pred_region
        _
      $region20: #{pointnet2_msg_forward.11} parent=11 // pred_fallthru
        _
    $region12: #{pointnet2_msg_forward.11} parent=5 // pred_fallthru
      _
    %p124 = scmp.lt.s32.totalorder %s9, 2
    // Predicated region
    $region21: #{pointnet2_msg_forward.11} parent=5 // pred_check
      %p125 = pneg %p124
    $region22: #{pointnet2_msg_forward.11} parent=5 // pred_check_branch
      %127 = sbr.rel (%p125) target = $region24
    $region23: #{pointnet2_msg_forward.11} parent=5 // pred_region
      // Predicated region
      $region25: #{pointnet2_msg_forward.11} parent=23 // pred_check
        %p128 = pneg %p29
      $region26: #{pointnet2_msg_forward.11} parent=23 // pred_check_branch
        %130 = sbr.rel (%p128) target = $region28
      $region27: #{pointnet2_msg_forward.11} parent=23 // pred_region
        %p131 = scmp.lt.s32.totalorder %s9, 1
        %s132 = scalar_select %p131, %s9, 1
        %s133 = smul.addr %s132, 8
        %s134 = smul.addr %s133, 8
        %s135 = scalar_lea.vmem %s0, %s134
      $region28: #{pointnet2_msg_forward.11} parent=23 // pred_fallthru
        _
    $region24: #{pointnet2_msg_forward.11} parent=5 // pred_fallthru
      _
    %p136 = scmp.le.s32.totalorder 1, %s9
    %p137 = scmp.lt.s32.totalorder %s9, 3
    %p138 = pnand %p136, %p137
    %p139 = pneg %p138
    // Predicated region
    $region29: #{pointnet2_msg_forward.11} parent=5 // pred_check
      _
    $region30: #{pointnet2_msg_forward.11} parent=5 // pred_check_branch
      %141 = sbr.rel (%p138) target = $region32
    $region31: #{pointnet2_msg_forward.11} parent=5 // pred_region
      %s142 = ssub.s32 %s9, 1
      %p143 = scmp.lt.s32.totalorder %s14, 1
      %s144 = scalar_select %p143, %s14, 1
      %s145 = smul.addr %s144, 8
      %s146 = smul.addr %s145, 8
      %s147 = scalar_lea.vmem %s0, %s146
      %p148 = pneg %p35
      %p149 = pneg %p32
      %p150 = pneg %p56
      %p151 = pneg %p53
      %p152 = pneg %p77
      %p153 = pneg %p74
      %p154 = pneg %p103
      %p155 = pneg %p100
      %p156 = scmp.lt.s32.totalorder %s14, 1
      %s157 = scalar_select %p156, %s14, 1
      %s158 = smul.addr %s157, 4
      %s159 = smul.addr %s158, 8
      %s160 = scalar_lea.vmem %s3, %s159
      %p161 = scmp.lt.s32.totalorder %s14, 1
      %s162 = scalar_select %p161, %s14, 1
      %s163 = smul.addr %s162, 8
      %s164 = smul.addr %s163, 8
      %s165 = scalar_lea.vmem %s0, %s164
      %p166 = scmp.lt.s32.totalorder %s14, 1
      %s167 = scalar_select %p166, %s14, 1
      %s168 = smul.addr %s167, 4
      %s169 = smul.addr %s168, 8
      %s170 = scalar_lea.vmem %s3, %s169
      %v171 = vld [vmem:[%s165] sm:$0xff]
      %v172 = vld [vmem:[%s165 + $0x8] sm:$0xff]
      %v173 = vld [vmem:[%s165 + $0x10] sm:$0xff]
      %v174 = vld [vmem:[%s165 + $0x18] sm:$0xff]
      %v175 = vld [vmem:[%s165 + $0x20] sm:$0xff]
      %v176 = vld [vmem:[%s165 + $0x28] sm:$0xff]
      %v177 = vld [vmem:[%s165 + $0x30] sm:$0xff]
      %v178 = vld [vmem:[%s165 + $0x38] sm:$0xff]
      %v179 = vld [vmem:[%s1] sm:$0xff]
      %v180 = vld [vmem:[%s1 + $0x8] sm:$0xff]
      %v181 = vld [vmem:[%s1 + $0x10] sm:$0xff]
      %v182 = vld [vmem:[%s1 + $0x18] sm:$0xff]
      %v183 = vld [vmem:[%s2] sm:$0xff]
      %v184 = vld [vmem:[%s2 + $0x8] sm:$0xff]
      %v185 = vld [vmem:[%s2 + $0x10] sm:$0xff]
      %v186 = vld [vmem:[%s2 + $0x18] sm:$0xff]
      %188 = vset.pattern.permute.xlu0 0
      %189 = vperm.xlu0 %188, %v183
      %v190 = vpop.permute.xlu0 %189
      %193 = vset.pattern.permute.xlu0 0
      %194 = vperm.xlu0 %193, %v184
      %v195 = vpop.permute.xlu0 %194
      %198 = vset.pattern.permute.xlu0 0
      %199 = vperm.xlu0 %198, %v185
      %v200 = vpop.permute.xlu0 %199
      %203 = vset.pattern.permute.xlu0 0
      %204 = vperm.xlu0 %203, %v186
      %v205 = vpop.permute.xlu0 %204
      %vm207 = vcmask 64512
      %v209 = vsel %vm207, %v179, 0
      %v212 = vsel %vm207, %v180, 0
      %v215 = vsel %vm207, %v181, 0
      %v218 = vsel %vm207, %v182, 0
      %220 = vmatprep.subr.mxu0 %v172
      %221 = vmatpush1.msra.mxu0 %v171
      %222 = vmatprep.subr.mxu0 0.0
      %223 = vmatpush1.msra.mxu0 0.0
      %224 = vmatprep.subr.mxu0 0.0
      %225 = vmatpush1.msra.mxu0 0.0
      %226 = vmatprep.subr.mxu0 0.0
      %227 = vmatpush1.msra.mxu0 0.0
      %228 = vmatprep.subr.mxu0 0.0
      %229 = vmatpush1.msra.mxu0 0.0
      %230 = vmatprep.subr.mxu0 0.0
      %231 = vmatpush1.msra.mxu0 0.0
      %232 = vmatprep.subr.mxu0 0.0
      %233 = vmatpush1.msra.mxu0 0.0
      %234 = vmatprep.subr.mxu0 0.0
      %235 = vmatpush1.msra.mxu0 0.0
      %236 = vmatprep.subr.mxu0 0.0
      %237 = vmatpush1.msra.mxu0 0.0
      %238 = vmatprep.subr.mxu0 0.0
      %239 = vmatpush1.msra.mxu0 0.0
      %240 = vmatprep.subr.mxu0 0.0
      %241 = vmatpush1.msra.mxu0 0.0
      %242 = vmatprep.subr.mxu0 0.0
      %243 = vmatpush1.msra.mxu0 0.0
      %244 = vmatprep.subr.mxu0 0.0
      %245 = vmatpush1.msra.mxu0 0.0
      %246 = vmatprep.subr.mxu0 0.0
      %247 = vmatpush1.msra.mxu0 0.0
      %248 = vmatprep.subr.mxu0 0.0
      %249 = vmatpush1.msra.mxu0 0.0
      %250 = vmatprep.subr.mxu0 0.0
      %251 = vmatpush1.msra.mxu0 0.0
      %252 = vmatprep.subr.mxu0 0.0
      %253 = vmatpush1.msra.mxu0 0.0
      %254 = vmatprep.subr.mxu0 0.0
      %255 = vmatpush1.msra.mxu0 0.0
      %256 = vmatprep.subr.mxu0 0.0
      %257 = vmatpush1.msra.mxu0 0.0
      %258 = vmatprep.subr.mxu0 0.0
      %259 = vmatpush1.msra.mxu0 0.0
      %260 = vmatprep.subr.mxu0 0.0
      %261 = vmatpush1.msra.mxu0 0.0
      %262 = vmatprep.subr.mxu0 0.0
      %263 = vmatpush1.msra.mxu0 0.0
      %264 = vmatprep.subr.mxu0 0.0
      %265 = vmatpush1.msra.mxu0 0.0
      %266 = vmatprep.subr.mxu0 0.0
      %267 = vmatpush1.msra.mxu0 0.0
      %268 = vmatprep.subr.mxu0 0.0
      %269 = vmatpush1.msra.mxu0 0.0
      %270 = vmatprep.subr.mxu0 0.0
      %271 = vmatpush1.msra.mxu0 0.0
      %272 = vmatprep.subr.mxu0 0.0
      %273 = vmatpush1.msra.mxu0 0.0
      %274 = vmatprep.subr.mxu0 0.0
      %275 = vmatpush1.msra.mxu0 0.0
      %276 = vmatprep.subr.mxu0 0.0
      %277 = vmatpush1.msra.mxu0 0.0
      %278 = vmatprep.subr.mxu0 0.0
      %279 = vmatpush1.msra.mxu0 0.0
      %280 = vmatprep.subr.mxu0 0.0
      %281 = vmatpush1.msra.mxu0 0.0
      %282 = vmatprep.subr.mxu0 0.0
      %283 = vmatpush1.msra.mxu0 0.0
      %284 = vmatprep.mubr.f32.mxu0 0.0
      %285 = vmatmul.mubr.f32.gmra.mrb[0].mxu0 %v209
      %v286 = vpop.f32.mrb[0].mxu0
      %v287 = vadd.f32 %v190, %v286
      %v288 = vpop.f32.mrb[0].mxu0
      %v289 = vadd.f32 %v190, %v288
      %290 = vmatprep.mubr.f32.mxu0 0.0
      %291 = vmatmul.mubr.f32.gmra.mrb[0].mxu0 %v212
      %v292 = vpop.f32.mrb[0].mxu0
      %v293 = vadd.f32 %v195, %v292
      %v294 = vpop.f32.mrb[0].mxu0
      %v295 = vadd.f32 %v195, %v294
      %296 = vmatprep.mubr.f32.mxu0 0.0
      %297 = vmatmul.mubr.f32.gmra.mrb[0].mxu0 %v215
      %v298 = vpop.f32.mrb[0].mxu0
      %v299 = vadd.f32 %v200, %v298
      %v300 = vpop.f32.mrb[0].mxu0
      %v301 = vadd.f32 %v200, %v300
      %302 = vmatprep.mubr.f32.mxu0 0.0
      %303 = vmatmul.mubr.f32.gmra.mrb[0].mxu0 %v218
      %v304 = vpop.f32.mrb[0].mxu0
      %v305 = vadd.f32 %v205, %v304
      %v306 = vpop.f32.mrb[0].mxu0
      %v307 = vadd.f32 %v205, %v306
      %308 = vdwg.mxu0
      %309 = vmatprep.subr.mxu0 %v174
      %310 = vmatpush1.msra.mxu0 %v173
      %311 = vmatprep.subr.mxu0 0.0
      %312 = vmatpush1.msra.mxu0 0.0
      %313 = vmatprep.subr.mxu0 0.0
      %314 = vmatpush1.msra.mxu0 0.0
      %315 = vmatprep.subr.mxu0 0.0
      %316 = vmatpush1.msra.mxu0 0.0
      %317 = vmatprep.subr.mxu0 0.0
      %318 = vmatpush1.msra.mxu0 0.0
      %319 = vmatprep.subr.mxu0 0.0
      %320 = vmatpush1.msra.mxu0 0.0
      %321 = vmatprep.subr.mxu0 0.0
      %322 = vmatpush1.msra.mxu0 0.0
      %323 = vmatprep.subr.mxu0 0.0
      %324 = vmatpush1.msra.mxu0 0.0
      %325 = vmatprep.subr.mxu0 0.0
      %326 = vmatpush1.msra.mxu0 0.0
      %327 = vmatprep.subr.mxu0 0.0
      %328 = vmatpush1.msra.mxu0 0.0
      %329 = vmatprep.subr.mxu0 0.0
      %330 = vmatpush1.msra.mxu0 0.0
      %331 = vmatprep.subr.mxu0 0.0
      %332 = vmatpush1.msra.mxu0 0.0
      %333 = vmatprep.subr.mxu0 0.0
      %334 = vmatpush1.msra.mxu0 0.0
      %335 = vmatprep.subr.mxu0 0.0
      %336 = vmatpush1.msra.mxu0 0.0
      %337 = vmatprep.subr.mxu0 0.0
      %338 = vmatpush1.msra.mxu0 0.0
      %339 = vmatprep.subr.mxu0 0.0
      %340 = vmatpush1.msra.mxu0 0.0
      %341 = vmatprep.subr.mxu0 0.0
      %342 = vmatpush1.msra.mxu0 0.0
      %343 = vmatprep.subr.mxu0 0.0
      %344 = vmatpush1.msra.mxu0 0.0
      %345 = vmatprep.subr.mxu0 0.0
      %346 = vmatpush1.msra.mxu0 0.0
      %347 = vmatprep.subr.mxu0 0.0
      %348 = vmatpush1.msra.mxu0 0.0
      %349 = vmatprep.subr.mxu0 0.0
      %350 = vmatpush1.msra.mxu0 0.0
      %351 = vmatprep.subr.mxu0 0.0
      %352 = vmatpush1.msra.mxu0 0.0
      %353 = vmatprep.subr.mxu0 0.0
      %354 = vmatpush1.msra.mxu0 0.0
      %355 = vmatprep.subr.mxu0 0.0
      %356 = vmatpush1.msra.mxu0 0.0
      %357 = vmatprep.subr.mxu0 0.0
      %358 = vmatpush1.msra.mxu0 0.0
      %359 = vmatprep.subr.mxu0 0.0
      %360 = vmatpush1.msra.mxu0 0.0
      %361 = vmatprep.subr.mxu0 0.0
      %362 = vmatpush1.msra.mxu0 0.0
      %363 = vmatprep.subr.mxu0 0.0
      %364 = vmatpush1.msra.mxu0 0.0
      %365 = vmatprep.subr.mxu0 0.0
      %366 = vmatpush1.msra.mxu0 0.0
      %367 = vmatprep.subr.mxu0 0.0
      %368 = vmatpush1.msra.mxu0 0.0
      %369 = vmatprep.subr.mxu0 0.0
      %370 = vmatpush1.msra.mxu0 0.0
      %371 = vmatprep.subr.mxu0 0.0
      %372 = vmatpush1.msra.mxu0 0.0
      %373 = vmatprep.mubr.f32.mxu0 0.0
      %374 = vmatmul.mubr.f32.gmra.mrb[0].mxu0 %v209
      %v375 = vpop.f32.mrb[0].mxu0
      %v376 = vadd.f32 %v190, %v375
      %v377 = vpop.f32.mrb[0].mxu0
      %v378 = vadd.f32 %v190, %v377
      %379 = vmatprep.mubr.f32.mxu0 0.0
      %380 = vmatmul.mubr.f32.gmra.mrb[0].mxu0 %v212
      %v381 = vpop.f32.mrb[0].mxu0
      %v382 = vadd.f32 %v195, %v381
      %v383 = vpop.f32.mrb[0].mxu0
      %v384 = vadd.f32 %v195, %v383
      %385 = vmatprep.mubr.f32.mxu0 0.0
      %386 = vmatmul.mubr.f32.gmra.mrb[0].mxu0 %v215
      %v387 = vpop.f32.mrb[0].mxu0
      %v388 = vadd.f32 %v200, %v387
      %v389 = vpop.f32.mrb[0].mxu0
      %v390 = vadd.f32 %v200, %v389
      %391 = vmatprep.mubr.f32.mxu0 0.0
      %392 = vmatmul.mubr.f32.gmra.mrb[0].mxu0 %v218
      %v393 = vpop.f32.mrb[0].mxu0
      %v394 = vadd.f32 %v205, %v393
      %v395 = vpop.f32.mrb[0].mxu0
      %v396 = vadd.f32 %v205, %v395
      %397 = vdwg.mxu0
      %398 = vmatprep.subr.mxu0 %v176
      %399 = vmatpush1.msra.mxu0 %v175
      %400 = vmatprep.subr.mxu0 0.0
      %401 = vmatpush1.msra.mxu0 0.0
      %402 = vmatprep.subr.mxu0 0.0
      %403 = vmatpush1.msra.mxu0 0.0
      %404 = vmatprep.subr.mxu0 0.0
      %405 = vmatpush1.msra.mxu0 0.0
      %406 = vmatprep.subr.mxu0 0.0
      %407 = vmatpush1.msra.mxu0 0.0
      %408 = vmatprep.subr.mxu0 0.0
      %409 = vmatpush1.msra.mxu0 0.0
      %410 = vmatprep.subr.mxu0 0.0
      %411 = vmatpush1.msra.mxu0 0.0
      %412 = vmatprep.subr.mxu0 0.0
      %413 = vmatpush1.msra.mxu0 0.0
      %414 = vmatprep.subr.mxu0 0.0
      %415 = vmatpush1.msra.mxu0 0.0
      %416 = vmatprep.subr.mxu0 0.0
      %417 = vmatpush1.msra.mxu0 0.0
      %418 = vmatprep.subr.mxu0 0.0
      %419 = vmatpush1.msra.mxu0 0.0
      %420 = vmatprep.subr.mxu0 0.0
      %421 = vmatpush1.msra.mxu0 0.0
      %422 = vmatprep.subr.mxu0 0.0
      %423 = vmatpush1.msra.mxu0 0.0
      %424 = vmatprep.subr.mxu0 0.0
      %425 = vmatpush1.msra.mxu0 0.0
      %426 = vmatprep.subr.mxu0 0.0
      %427 = vmatpush1.msra.mxu0 0.0
      %428 = vmatprep.subr.mxu0 0.0
      %429 = vmatpush1.msra.mxu0 0.0
      %430 = vmatprep.subr.mxu0 0.0
      %431 = vmatpush1.msra.mxu0 0.0
      %432 = vmatprep.subr.mxu0 0.0
      %433 = vmatpush1.msra.mxu0 0.0
      %434 = vmatprep.subr.mxu0 0.0
      %435 = vmatpush1.msra.mxu0 0.0
      %436 = vmatprep.subr.mxu0 0.0
      %437 = vmatpush1.msra.mxu0 0.0
      %438 = vmatprep.subr.mxu0 0.0
      %439 = vmatpush1.msra.mxu0 0.0
      %440 = vmatprep.subr.mxu0 0.0
      %441 = vmatpush1.msra.mxu0 0.0
      %442 = vmatprep.subr.mxu0 0.0
      %443 = vmatpush1.msra.mxu0 0.0
      %444 = vmatprep.subr.mxu0 0.0
      %445 = vmatpush1.msra.mxu0 0.0
      %446 = vmatprep.subr.mxu0 0.0
      %447 = vmatpush1.msra.mxu0 0.0
      %448 = vmatprep.subr.mxu0 0.0
      %449 = vmatpush1.msra.mxu0 0.0
      %450 = vmatprep.subr.mxu0 0.0
      %451 = vmatpush1.msra.mxu0 0.0
      %452 = vmatprep.subr.mxu0 0.0
      %453 = vmatpush1.msra.mxu0 0.0
      %454 = vmatprep.subr.mxu0 0.0
      %455 = vmatpush1.msra.mxu0 0.0
      %456 = vmatprep.subr.mxu0 0.0
      %457 = vmatpush1.msra.mxu0 0.0
      %458 = vmatprep.subr.mxu0 0.0
      %459 = vmatpush1.msra.mxu0 0.0
      %460 = vmatprep.subr.mxu0 0.0
      %461 = vmatpush1.msra.mxu0 0.0
      %462 = vmatprep.mubr.f32.mxu0 0.0
      %463 = vmatmul.mubr.f32.gmra.mrb[0].mxu0 %v209
      %v464 = vpop.f32.mrb[0].mxu0
      %v465 = vadd.f32 %v190, %v464
      %v466 = vpop.f32.mrb[0].mxu0
      %v467 = vadd.f32 %v190, %v466
      %468 = vmatprep.mubr.f32.mxu0 0.0
      %469 = vmatmul.mubr.f32.gmra.mrb[0].mxu0 %v212
      %v470 = vpop.f32.mrb[0].mxu0
      %v471 = vadd.f32 %v195, %v470
      %v472 = vpop.f32.mrb[0].mxu0
      %v473 = vadd.f32 %v195, %v472
      %474 = vmatprep.mubr.f32.mxu0 0.0
      %475 = vmatmul.mubr.f32.gmra.mrb[0].mxu0 %v215
      %v476 = vpop.f32.mrb[0].mxu0
      %v477 = vadd.f32 %v200, %v476
      %v478 = vpop.f32.mrb[0].mxu0
      %v479 = vadd.f32 %v200, %v478
      %480 = vmatprep.mubr.f32.mxu0 0.0
      %481 = vmatmul.mubr.f32.gmra.mrb[0].mxu0 %v218
      %v482 = vpop.f32.mrb[0].mxu0
      %v483 = vadd.f32 %v205, %v482
      %v484 = vpop.f32.mrb[0].mxu0
      %v485 = vadd.f32 %v205, %v484
      %486 = vdwg.mxu0
      %487 = vmatprep.subr.mxu0 %v178
      %488 = vmatpush1.msra.mxu0 %v177
      %489 = vmatprep.subr.mxu0 0.0
      %490 = vmatpush1.msra.mxu0 0.0
      %491 = vmatprep.subr.mxu0 0.0
      %492 = vmatpush1.msra.mxu0 0.0
      %493 = vmatprep.subr.mxu0 0.0
      %494 = vmatpush1.msra.mxu0 0.0
      %495 = vmatprep.subr.mxu0 0.0
      %496 = vmatpush1.msra.mxu0 0.0
      %497 = vmatprep.subr.mxu0 0.0
      %498 = vmatpush1.msra.mxu0 0.0
      %499 = vmatprep.subr.mxu0 0.0
      %500 = vmatpush1.msra.mxu0 0.0
      %501 = vmatprep.subr.mxu0 0.0
      %502 = vmatpush1.msra.mxu0 0.0
      %503 = vmatprep.subr.mxu0 0.0
      %504 = vmatpush1.msra.mxu0 0.0
      %505 = vmatprep.subr.mxu0 0.0
      %506 = vmatpush1.msra.mxu0 0.0
      %507 = vmatprep.subr.mxu0 0.0
      %508 = vmatpush1.msra.mxu0 0.0
      %509 = vmatprep.subr.mxu0 0.0
      %510 = vmatpush1.msra.mxu0 0.0
      %511 = vmatprep.subr.mxu0 0.0
      %512 = vmatpush1.msra.mxu0 0.0
      %513 = vmatprep.subr.mxu0 0.0
      %514 = vmatpush1.msra.mxu0 0.0
      %515 = vmatprep.subr.mxu0 0.0
      %516 = vmatpush1.msra.mxu0 0.0
      %517 = vmatprep.subr.mxu0 0.0
      %518 = vmatpush1.msra.mxu0 0.0
      %519 = vmatprep.subr.mxu0 0.0
      %520 = vmatpush1.msra.mxu0 0.0
      %521 = vmatprep.subr.mxu0 0.0
      %522 = vmatpush1.msra.mxu0 0.0
      %523 = vmatprep.subr.mxu0 0.0
      %524 = vmatpush1.msra.mxu0 0.0
      %525 = vmatprep.subr.mxu0 0.0
      %526 = vmatpush1.msra.mxu0 0.0
      %527 = vmatprep.subr.mxu0 0.0
      %528 = vmatpush1.msra.mxu0 0.0
      %529 = vmatprep.subr.mxu0 0.0
      %530 = vmatpush1.msra.mxu0 0.0
      %531 = vmatprep.subr.mxu0 0.0
      %532 = vmatpush1.msra.mxu0 0.0
      %533 = vmatprep.subr.mxu0 0.0
      %534 = vmatpush1.msra.mxu0 0.0
      %535 = vmatprep.subr.mxu0 0.0
      %536 = vmatpush1.msra.mxu0 0.0
      %537 = vmatprep.subr.mxu0 0.0
      %538 = vmatpush1.msra.mxu0 0.0
      %539 = vmatprep.subr.mxu0 0.0
      %540 = vmatpush1.msra.mxu0 0.0
      %541 = vmatprep.subr.mxu0 0.0
      %542 = vmatpush1.msra.mxu0 0.0
      %543 = vmatprep.subr.mxu0 0.0
      %544 = vmatpush1.msra.mxu0 0.0
      %545 = vmatprep.subr.mxu0 0.0
      %546 = vmatpush1.msra.mxu0 0.0
      %547 = vmatprep.subr.mxu0 0.0
      %548 = vmatpush1.msra.mxu0 0.0
      %549 = vmatprep.subr.mxu0 0.0
      %550 = vmatpush1.msra.mxu0 0.0
      %551 = vmatprep.mubr.f32.mxu0 0.0
      %552 = vmatmul.mubr.f32.gmra.mrb[0].mxu0 %v209
      %v553 = vpop.f32.mrb[0].mxu0
      %v554 = vadd.f32 %v190, %v553
      %v555 = vpop.f32.mrb[0].mxu0
      %v556 = vadd.f32 %v190, %v555
      %557 = vmatprep.mubr.f32.mxu0 0.0
      %558 = vmatmul.mubr.f32.gmra.mrb[0].mxu0 %v212
      %v559 = vpop.f32.mrb[0].mxu0
      %v560 = vadd.f32 %v195, %v559
      %v561 = vpop.f32.mrb[0].mxu0
      %v562 = vadd.f32 %v195, %v561
      %563 = vmatprep.mubr.f32.mxu0 0.0
      %564 = vmatmul.mubr.f32.gmra.mrb[0].mxu0 %v215
      %v565 = vpop.f32.mrb[0].mxu0
      %v566 = vadd.f32 %v200, %v565
      %v567 = vpop.f32.mrb[0].mxu0
      %v568 = vadd.f32 %v200, %v567
      %569 = vmatprep.mubr.f32.mxu0 0.0
      %570 = vmatmul.mubr.f32.gmra.mrb[0].mxu0 %v218
      %v571 = vpop.f32.mrb[0].mxu0
      %v572 = vadd.f32 %v205, %v571
      %v573 = vpop.f32.mrb[0].mxu0
      %v574 = vadd.f32 %v205, %v573
      %575 = vdwg.mxu0
      %v576 = vmax.f32 %v287, 0.0
      %v577 = vmax.f32 %v289, 0.0
      %v578 = vmax.f32 %v376, 0.0
      %v579 = vmax.f32 %v378, 0.0
      %v580 = vmax.f32 %v465, 0.0
      %v581 = vmax.f32 %v467, 0.0
      %v582 = vmax.f32 %v554, 0.0
      %v583 = vmax.f32 %v556, 0.0
      %v584 = vmax.f32 %v293, 0.0
      %v585 = vmax.f32 %v295, 0.0
      %v586 = vmax.f32 %v382, 0.0
      %v587 = vmax.f32 %v384, 0.0
      %v588 = vmax.f32 %v471, 0.0
      %v589 = vmax.f32 %v473, 0.0
      %v590 = vmax.f32 %v560, 0.0
      %v591 = vmax.f32 %v562, 0.0
      %v592 = vmax.f32 %v299, 0.0
      %v593 = vmax.f32 %v301, 0.0
      %v594 = vmax.f32 %v388, 0.0
      %v595 = vmax.f32 %v390, 0.0
      %v596 = vmax.f32 %v477, 0.0
      %v597 = vmax.f32 %v479, 0.0
      %v598 = vmax.f32 %v566, 0.0
      %v599 = vmax.f32 %v568, 0.0
      %v600 = vmax.f32 %v305, 0.0
      %v601 = vmax.f32 %v307, 0.0
      %v602 = vmax.f32 %v394, 0.0
      %v603 = vmax.f32 %v396, 0.0
      %v604 = vmax.f32 %v483, 0.0
      %v605 = vmax.f32 %v485, 0.0
      %v606 = vmax.f32 %v572, 0.0
      %v607 = vmax.f32 %v574, 0.0
      %s608 = scalar_lea.vmem %s1, 32
      %v609 = vld [vmem:[%s608] sm:$0xff]
      %v610 = vld [vmem:[%s608 + $0x8] sm:$0xff]
      %v611 = vld [vmem:[%s608 + $0x10] sm:$0xff]
      %v612 = vld [vmem:[%s608 + $0x18] sm:$0xff]
      %s613 = scalar_lea.vmem %s2, 32
      %v614 = vld [vmem:[%s613] sm:$0xff]
      %v615 = vld [vmem:[%s613 + $0x8] sm:$0xff]
      %v616 = vld [vmem:[%s613 + $0x10] sm:$0xff]
      %v617 = vld [vmem:[%s613 + $0x18] sm:$0xff]
      %619 = vset.pattern.permute.xlu0 0
      %620 = vperm.xlu0 %619, %v614
      %v621 = vpop.permute.xlu0 %620
      %624 = vset.pattern.permute.xlu0 0
      %625 = vperm.xlu0 %624, %v615
      %v626 = vpop.permute.xlu0 %625
      %629 = vset.pattern.permute.xlu0 0
      %630 = vperm.xlu0 %629, %v616
      %v631 = vpop.permute.xlu0 %630
      %634 = vset.pattern.permute.xlu0 0
      %635 = vperm.xlu0 %634, %v617
      %v636 = vpop.permute.xlu0 %635
      %vm638 = vcmask 261120
      %v640 = vsel %vm638, %v609, 0
      %v643 = vsel %vm638, %v610, 0
      %v646 = vsel %vm638, %v611, 0
      %v649 = vsel %vm638, %v612, 0
      %651 = vmatprep.subr.mxu0 %v577
      %652 = vmatpush1.msra.mxu0 %v576
      %653 = vmatprep.subr.mxu0 %v585
      %654 = vmatpush1.msra.mxu0 %v584
      %655 = vmatprep.subr.mxu0 %v593
      %656 = vmatpush1.msra.mxu0 %v592
      %657 = vmatprep.subr.mxu0 %v601
      %658 = vmatpush1.msra.mxu0 %v600
      %659 = vmatprep.subr.mxu0 0.0
      %660 = vmatpush1.msra.mxu0 0.0
      %661 = vmatprep.subr.mxu0 0.0
      %662 = vmatpush1.msra.mxu0 0.0
      %663 = vmatprep.subr.mxu0 0.0
      %664 = vmatpush1.msra.mxu0 0.0
      %665 = vmatprep.subr.mxu0 0.0
      %666 = vmatpush1.msra.mxu0 0.0
      %667 = vmatprep.subr.mxu0 0.0
      %668 = vmatpush1.msra.mxu0 0.0
      %669 = vmatprep.subr.mxu0 0.0
      %670 = vmatpush1.msra.mxu0 0.0
      %671 = vmatprep.subr.mxu0 0.0
      %672 = vmatpush1.msra.mxu0 0.0
      %673 = vmatprep.subr.mxu0 0.0
      %674 = vmatpush1.msra.mxu0 0.0
      %675 = vmatprep.subr.mxu0 0.0
      %676 = vmatpush1.msra.mxu0 0.0
      %677 = vmatprep.subr.mxu0 0.0
      %678 = vmatpush1.msra.mxu0 0.0
      %679 = vmatprep.subr.mxu0 0.0
      %680 = vmatpush1.msra.mxu0 0.0
      %681 = vmatprep.subr.mxu0 0.0
      %682 = vmatpush1.msra.mxu0 0.0
      %683 = vmatprep.subr.mxu0 0.0
      %684 = vmatpush1.msra.mxu0 0.0
      %685 = vmatprep.subr.mxu0 0.0
      %686 = vmatpush1.msra.mxu0 0.0
      %687 = vmatprep.subr.mxu0 0.0
      %688 = vmatpush1.msra.mxu0 0.0
      %689 = vmatprep.subr.mxu0 0.0
      %690 = vmatpush1.msra.mxu0 0.0
      %691 = vmatprep.subr.mxu0 0.0
      %692 = vmatpush1.msra.mxu0 0.0
      %693 = vmatprep.subr.mxu0 0.0
      %694 = vmatpush1.msra.mxu0 0.0
      %695 = vmatprep.subr.mxu0 0.0
      %696 = vmatpush1.msra.mxu0 0.0
      %697 = vmatprep.subr.mxu0 0.0
      %698 = vmatpush1.msra.mxu0 0.0
      %699 = vmatprep.subr.mxu0 0.0
      %700 = vmatpush1.msra.mxu0 0.0
      %701 = vmatprep.subr.mxu0 0.0
      %702 = vmatpush1.msra.mxu0 0.0
      %703 = vmatprep.subr.mxu0 0.0
      %704 = vmatpush1.msra.mxu0 0.0
      %705 = vmatprep.subr.mxu0 0.0
      %706 = vmatpush1.msra.mxu0 0.0
      %707 = vmatprep.subr.mxu0 0.0
      %708 = vmatpush1.msra.mxu0 0.0
      %709 = vmatprep.subr.mxu0 0.0
      %710 = vmatpush1.msra.mxu0 0.0
      %711 = vmatprep.subr.mxu0 0.0
      %712 = vmatpush1.msra.mxu0 0.0
      %713 = vmatprep.subr.mxu0 0.0
      %714 = vmatpush1.msra.mxu0 0.0
      %715 = vmatprep.mubr.f32.mxu0 0.0
      %716 = vmatmul.mubr.f32.gmra.mrb[0].mxu0 %v640
      %v717 = vpop.f32.mrb[0].mxu0
      %v718 = vadd.f32 %v621, %v717
      %v719 = vpop.f32.mrb[0].mxu0
      %v720 = vadd.f32 %v621, %v719
      %721 = vmatprep.mubr.f32.mxu0 0.0
      %722 = vmatmul.mubr.f32.gmra.mrb[0].mxu0 %v643
      %v723 = vpop.f32.mrb[0].mxu0
      %v724 = vadd.f32 %v626, %v723
      %v725 = vpop.f32.mrb[0].mxu0
      %v726 = vadd.f32 %v626, %v725
      %727 = vmatprep.mubr.f32.mxu0 0.0
      %728 = vmatmul.mubr.f32.gmra.mrb[0].mxu0 %v646
      %v729 = vpop.f32.mrb[0].mxu0
      %v730 = vadd.f32 %v631, %v729
      %v731 = vpop.f32.mrb[0].mxu0
      %v732 = vadd.f32 %v631, %v731
      %733 = vmatprep.mubr.f32.mxu0 0.0
      %734 = vmatmul.mubr.f32.gmra.mrb[0].mxu0 %v649
      %v735 = vpop.f32.mrb[0].mxu0
      %v736 = vadd.f32 %v636, %v735
      %v737 = vpop.f32.mrb[0].mxu0
      %v738 = vadd.f32 %v636, %v737
      %739 = vdwg.mxu0
      %740 = vmatprep.subr.mxu0 %v579
      %741 = vmatpush1.msra.mxu0 %v578
      %742 = vmatprep.subr.mxu0 %v587
      %743 = vmatpush1.msra.mxu0 %v586
      %744 = vmatprep.subr.mxu0 %v595
      %745 = vmatpush1.msra.mxu0 %v594
      %746 = vmatprep.subr.mxu0 %v603
      %747 = vmatpush1.msra.mxu0 %v602
      %748 = vmatprep.subr.mxu0 0.0
      %749 = vmatpush1.msra.mxu0 0.0
      %750 = vmatprep.subr.mxu0 0.0
      %751 = vmatpush1.msra.mxu0 0.0
      %752 = vmatprep.subr.mxu0 0.0
      %753 = vmatpush1.msra.mxu0 0.0
      %754 = vmatprep.subr.mxu0 0.0
      %755 = vmatpush1.msra.mxu0 0.0
      %756 = vmatprep.subr.mxu0 0.0
      %757 = vmatpush1.msra.mxu0 0.0
      %758 = vmatprep.subr.mxu0 0.0
      %759 = vmatpush1.msra.mxu0 0.0
      %760 = vmatprep.subr.mxu0 0.0
      %761 = vmatpush1.msra.mxu0 0.0
      %762 = vmatprep.subr.mxu0 0.0
      %763 = vmatpush1.msra.mxu0 0.0
      %764 = vmatprep.subr.mxu0 0.0
      %765 = vmatpush1.msra.mxu0 0.0
      %766 = vmatprep.subr.mxu0 0.0
      %767 = vmatpush1.msra.mxu0 0.0
      %768 = vmatprep.subr.mxu0 0.0
      %769 = vmatpush1.msra.mxu0 0.0
      %770 = vmatprep.subr.mxu0 0.0
      %771 = vmatpush1.msra.mxu0 0.0
      %772 = vmatprep.subr.mxu0 0.0
      %773 = vmatpush1.msra.mxu0 0.0
      %774 = vmatprep.subr.mxu0 0.0
      %775 = vmatpush1.msra.mxu0 0.0
      %776 = vmatprep.subr.mxu0 0.0
      %777 = vmatpush1.msra.mxu0 0.0
      %778 = vmatprep.subr.mxu0 0.0
      %779 = vmatpush1.msra.mxu0 0.0
      %780 = vmatprep.subr.mxu0 0.0
      %781 = vmatpush1.msra.mxu0 0.0
      %782 = vmatprep.subr.mxu0 0.0
      %783 = vmatpush1.msra.mxu0 0.0
      %784 = vmatprep.subr.mxu0 0.0
      %785 = vmatpush1.msra.mxu0 0.0
      %786 = vmatprep.subr.mxu0 0.0
      %787 = vmatpush1.msra.mxu0 0.0
      %788 = vmatprep.subr.mxu0 0.0
      %789 = vmatpush1.msra.mxu0 0.0
      %790 = vmatprep.subr.mxu0 0.0
      %791 = vmatpush1.msra.mxu0 0.0
      %792 = vmatprep.subr.mxu0 0.0
      %793 = vmatpush1.msra.mxu0 0.0
      %794 = vmatprep.subr.mxu0 0.0
      %795 = vmatpush1.msra.mxu0 0.0
      %796 = vmatprep.subr.mxu0 0.0
      %797 = vmatpush1.msra.mxu0 0.0
      %798 = vmatprep.subr.mxu0 0.0
      %799 = vmatpush1.msra.mxu0 0.0
      %800 = vmatprep.subr.mxu0 0.0
      %801 = vmatpush1.msra.mxu0 0.0
      %802 = vmatprep.subr.mxu0 0.0
      %803 = vmatpush1.msra.mxu0 0.0
      %804 = vmatprep.mubr.f32.mxu0 0.0
      %805 = vmatmul.mubr.f32.gmra.mrb[0].mxu0 %v640
      %v806 = vpop.f32.mrb[0].mxu0
      %v807 = vadd.f32 %v621, %v806
      %v808 = vpop.f32.mrb[0].mxu0
      %v809 = vadd.f32 %v621, %v808
      %810 = vmatprep.mubr.f32.mxu0 0.0
      %811 = vmatmul.mubr.f32.gmra.mrb[0].mxu0 %v643
      %v812 = vpop.f32.mrb[0].mxu0
      %v813 = vadd.f32 %v626, %v812
      %v814 = vpop.f32.mrb[0].mxu0
      %v815 = vadd.f32 %v626, %v814
      %816 = vmatprep.mubr.f32.mxu0 0.0
      %817 = vmatmul.mubr.f32.gmra.mrb[0].mxu0 %v646
      %v818 = vpop.f32.mrb[0].mxu0
      %v819 = vadd.f32 %v631, %v818
      %v820 = vpop.f32.mrb[0].mxu0
      %v821 = vadd.f32 %v631, %v820
      %822 = vmatprep.mubr.f32.mxu0 0.0
      %823 = vmatmul.mubr.f32.gmra.mrb[0].mxu0 %v649
      %v824 = vpop.f32.mrb[0].mxu0
      %v825 = vadd.f32 %v636, %v824
      %v826 = vpop.f32.mrb[0].mxu0
      %v827 = vadd.f32 %v636, %v826
      %828 = vdwg.mxu0
      %829 = vmatprep.subr.mxu0 %v581
      %830 = vmatpush1.msra.mxu0 %v580
      %831 = vmatprep.subr.mxu0 %v589
      %832 = vmatpush1.msra.mxu0 %v588
      %833 = vmatprep.subr.mxu0 %v597
      %834 = vmatpush1.msra.mxu0 %v596
      %835 = vmatprep.subr.mxu0 %v605
      %836 = vmatpush1.msra.mxu0 %v604
      %837 = vmatprep.subr.mxu0 0.0
      %838 = vmatpush1.msra.mxu0 0.0
      %839 = vmatprep.subr.mxu0 0.0
      %840 = vmatpush1.msra.mxu0 0.0
      %841 = vmatprep.subr.mxu0 0.0
      %842 = vmatpush1.msra.mxu0 0.0
      %843 = vmatprep.subr.mxu0 0.0
      %844 = vmatpush1.msra.mxu0 0.0
      %845 = vmatprep.subr.mxu0 0.0
      %846 = vmatpush1.msra.mxu0 0.0
      %847 = vmatprep.subr.mxu0 0.0
      %848 = vmatpush1.msra.mxu0 0.0
      %849 = vmatprep.subr.mxu0 0.0
      %850 = vmatpush1.msra.mxu0 0.0
      %851 = vmatprep.subr.mxu0 0.0
      %852 = vmatpush1.msra.mxu0 0.0
      %853 = vmatprep.subr.mxu0 0.0
      %854 = vmatpush1.msra.mxu0 0.0
      %855 = vmatprep.subr.mxu0 0.0
      %856 = vmatpush1.msra.mxu0 0.0
      %857 = vmatprep.subr.mxu0 0.0
      %858 = vmatpush1.msra.mxu0 0.0
      %859 = vmatprep.subr.mxu0 0.0
      %860 = vmatpush1.msra.mxu0 0.0
      %861 = vmatprep.subr.mxu0 0.0
      %862 = vmatpush1.msra.mxu0 0.0
      %863 = vmatprep.subr.mxu0 0.0
      %864 = vmatpush1.msra.mxu0 0.0
      %865 = vmatprep.subr.mxu0 0.0
      %866 = vmatpush1.msra.mxu0 0.0
      %867 = vmatprep.subr.mxu0 0.0
      %868 = vmatpush1.msra.mxu0 0.0
      %869 = vmatprep.subr.mxu0 0.0
      %870 = vmatpush1.msra.mxu0 0.0
      %871 = vmatprep.subr.mxu0 0.0
      %872 = vmatpush1.msra.mxu0 0.0
      %873 = vmatprep.subr.mxu0 0.0
      %874 = vmatpush1.msra.mxu0 0.0
      %875 = vmatprep.subr.mxu0 0.0
      %876 = vmatpush1.msra.mxu0 0.0
      %877 = vmatprep.subr.mxu0 0.0
      %878 = vmatpush1.msra.mxu0 0.0
      %879 = vmatprep.subr.mxu0 0.0
      %880 = vmatpush1.msra.mxu0 0.0
      %881 = vmatprep.subr.mxu0 0.0
      %882 = vmatpush1.msra.mxu0 0.0
      %883 = vmatprep.subr.mxu0 0.0
      %884 = vmatpush1.msra.mxu0 0.0
      %885 = vmatprep.subr.mxu0 0.0
      %886 = vmatpush1.msra.mxu0 0.0
      %887 = vmatprep.subr.mxu0 0.0
      %888 = vmatpush1.msra.mxu0 0.0
      %889 = vmatprep.subr.mxu0 0.0
      %890 = vmatpush1.msra.mxu0 0.0
      %891 = vmatprep.subr.mxu0 0.0
      %892 = vmatpush1.msra.mxu0 0.0
      %893 = vmatprep.mubr.f32.mxu0 0.0
      %894 = vmatmul.mubr.f32.gmra.mrb[0].mxu0 %v640
      %v895 = vpop.f32.mrb[0].mxu0
      %v896 = vadd.f32 %v621, %v895
      %v897 = vpop.f32.mrb[0].mxu0
      %v898 = vadd.f32 %v621, %v897
      %899 = vmatprep.mubr.f32.mxu0 0.0
      %900 = vmatmul.mubr.f32.gmra.mrb[0].mxu0 %v643
      %v901 = vpop.f32.mrb[0].mxu0
      %v902 = vadd.f32 %v626, %v901
      %v903 = vpop.f32.mrb[0].mxu0
      %v904 = vadd.f32 %v626, %v903
      %905 = vmatprep.mubr.f32.mxu0 0.0
      %906 = vmatmul.mubr.f32.gmra.mrb[0].mxu0 %v646
      %v907 = vpop.f32.mrb[0].mxu0
      %v908 = vadd.f32 %v631, %v907
      %v909 = vpop.f32.mrb[0].mxu0
      %v910 = vadd.f32 %v631, %v909
      %911 = vmatprep.mubr.f32.mxu0 0.0
      %912 = vmatmul.mubr.f32.gmra.mrb[0].mxu0 %v649
      %v913 = vpop.f32.mrb[0].mxu0
      %v914 = vadd.f32 %v636, %v913
      %v915 = vpop.f32.mrb[0].mxu0
      %v916 = vadd.f32 %v636, %v915
      %917 = vdwg.mxu0
      %918 = vmatprep.subr.mxu0 %v583
      %919 = vmatpush1.msra.mxu0 %v582
      %920 = vmatprep.subr.mxu0 %v591
      %921 = vmatpush1.msra.mxu0 %v590
      %922 = vmatprep.subr.mxu0 %v599
      %923 = vmatpush1.msra.mxu0 %v598
      %924 = vmatprep.subr.mxu0 %v607
      %925 = vmatpush1.msra.mxu0 %v606
      %926 = vmatprep.subr.mxu0 0.0
      %927 = vmatpush1.msra.mxu0 0.0
      %928 = vmatprep.subr.mxu0 0.0
      %929 = vmatpush1.msra.mxu0 0.0
      %930 = vmatprep.subr.mxu0 0.0
      %931 = vmatpush1.msra.mxu0 0.0
      %932 = vmatprep.subr.mxu0 0.0
      %933 = vmatpush1.msra.mxu0 0.0
      %934 = vmatprep.subr.mxu0 0.0
      %935 = vmatpush1.msra.mxu0 0.0
      %936 = vmatprep.subr.mxu0 0.0
      %937 = vmatpush1.msra.mxu0 0.0
      %938 = vmatprep.subr.mxu0 0.0
      %939 = vmatpush1.msra.mxu0 0.0
      %940 = vmatprep.subr.mxu0 0.0
      %941 = vmatpush1.msra.mxu0 0.0
      %942 = vmatprep.subr.mxu0 0.0
      %943 = vmatpush1.msra.mxu0 0.0
      %944 = vmatprep.subr.mxu0 0.0
      %945 = vmatpush1.msra.mxu0 0.0
      %946 = vmatprep.subr.mxu0 0.0
      %947 = vmatpush1.msra.mxu0 0.0
      %948 = vmatprep.subr.mxu0 0.0
      %949 = vmatpush1.msra.mxu0 0.0
      %950 = vmatprep.subr.mxu0 0.0
      %951 = vmatpush1.msra.mxu0 0.0
      %952 = vmatprep.subr.mxu0 0.0
      %953 = vmatpush1.msra.mxu0 0.0
      %954 = vmatprep.subr.mxu0 0.0
      %955 = vmatpush1.msra.mxu0 0.0
      %956 = vmatprep.subr.mxu0 0.0
      %957 = vmatpush1.msra.mxu0 0.0
      %958 = vmatprep.subr.mxu0 0.0
      %959 = vmatpush1.msra.mxu0 0.0
      %960 = vmatprep.subr.mxu0 0.0
      %961 = vmatpush1.msra.mxu0 0.0
      %962 = vmatprep.subr.mxu0 0.0
      %963 = vmatpush1.msra.mxu0 0.0
      %964 = vmatprep.subr.mxu0 0.0
      %965 = vmatpush1.msra.mxu0 0.0
      %966 = vmatprep.subr.mxu0 0.0
      %967 = vmatpush1.msra.mxu0 0.0
      %968 = vmatprep.subr.mxu0 0.0
      %969 = vmatpush1.msra.mxu0 0.0
      %970 = vmatprep.subr.mxu0 0.0
      %971 = vmatpush1.msra.mxu0 0.0
      %972 = vmatprep.subr.mxu0 0.0
      %973 = vmatpush1.msra.mxu0 0.0
      %974 = vmatprep.subr.mxu0 0.0
      %975 = vmatpush1.msra.mxu0 0.0
      %976 = vmatprep.subr.mxu0 0.0
      %977 = vmatpush1.msra.mxu0 0.0
      %978 = vmatprep.subr.mxu0 0.0
      %979 = vmatpush1.msra.mxu0 0.0
      %980 = vmatprep.subr.mxu0 0.0
      %981 = vmatpush1.msra.mxu0 0.0
      %982 = vmatprep.mubr.f32.mxu0 0.0
      %983 = vmatmul.mubr.f32.gmra.mrb[0].mxu0 %v640
      %v984 = vpop.f32.mrb[0].mxu0
      %v985 = vadd.f32 %v621, %v984
      %v986 = vpop.f32.mrb[0].mxu0
      %v987 = vadd.f32 %v621, %v986
      %988 = vmatprep.mubr.f32.mxu0 0.0
      %989 = vmatmul.mubr.f32.gmra.mrb[0].mxu0 %v643
      %v990 = vpop.f32.mrb[0].mxu0
      %v991 = vadd.f32 %v626, %v990
      %v992 = vpop.f32.mrb[0].mxu0
      %v993 = vadd.f32 %v626, %v992
      %994 = vmatprep.mubr.f32.mxu0 0.0
      %995 = vmatmul.mubr.f32.gmra.mrb[0].mxu0 %v646
      %v996 = vpop.f32.mrb[0].mxu0
      %v997 = vadd.f32 %v631, %v996
      %v998 = vpop.f32.mrb[0].mxu0
      %v999 = vadd.f32 %v631, %v998
      %1000 = vmatprep.mubr.f32.mxu0 0.0
      %1001 = vmatmul.mubr.f32.gmra.mrb[0].mxu0 %v649
      %v1002 = vpop.f32.mrb[0].mxu0
      %v1003 = vadd.f32 %v636, %v1002
      %v1004 = vpop.f32.mrb[0].mxu0
      %v1005 = vadd.f32 %v636, %v1004
      %1006 = vdwg.mxu0
      %v1007 = vmax.f32 %v718, 0.0
      %v1008 = vmax.f32 %v720, 0.0
      %v1009 = vmax.f32 %v807, 0.0
      %v1010 = vmax.f32 %v809, 0.0
      %v1011 = vmax.f32 %v896, 0.0
      %v1012 = vmax.f32 %v898, 0.0
      %v1013 = vmax.f32 %v985, 0.0
      %v1014 = vmax.f32 %v987, 0.0
      %v1015 = vmax.f32 %v724, 0.0
      %v1016 = vmax.f32 %v726, 0.0
      %v1017 = vmax.f32 %v813, 0.0
      %v1018 = vmax.f32 %v815, 0.0
      %v1019 = vmax.f32 %v902, 0.0
      %v1020 = vmax.f32 %v904, 0.0
      %v1021 = vmax.f32 %v991, 0.0
      %v1022 = vmax.f32 %v993, 0.0
      %v1023 = vmax.f32 %v730, 0.0
      %v1024 = vmax.f32 %v732, 0.0
      %v1025 = vmax.f32 %v819, 0.0
      %v1026 = vmax.f32 %v821, 0.0
      %v1027 = vmax.f32 %v908, 0.0
      %v1028 = vmax.f32 %v910, 0.0
      %v1029 = vmax.f32 %v997, 0.0
      %v1030 = vmax.f32 %v999, 0.0
      %v1031 = vmax.f32 %v736, 0.0
      %v1032 = vmax.f32 %v738, 0.0
      %v1033 = vmax.f32 %v825, 0.0
      %v1034 = vmax.f32 %v827, 0.0
      %v1035 = vmax.f32 %v914, 0.0
      %v1036 = vmax.f32 %v916, 0.0
      %v1037 = vmax.f32 %v1003, 0.0
      %v1038 = vmax.f32 %v1005, 0.0
      %s1039 = scalar_lea.vmem %s1, 64
      %v1040 = vld [vmem:[%s1039] sm:$0xff]
      %v1041 = vld [vmem:[%s1039 + $0x8] sm:$0xff]
      %v1042 = vld [vmem:[%s1039 + $0x10] sm:$0xff]
      %v1043 = vld [vmem:[%s1039 + $0x18] sm:$0xff]
      %s1044 = scalar_lea.vmem %s2, 64
      %v1045 = vld [vmem:[%s1044] sm:$0xff]
      %v1046 = vld [vmem:[%s1044 + $0x8] sm:$0xff]
      %v1047 = vld [vmem:[%s1044 + $0x10] sm:$0xff]
      %v1048 = vld [vmem:[%s1044 + $0x18] sm:$0xff]
      %1050 = vset.pattern.permute.xlu0 0
      %1051 = vperm.xlu0 %1050, %v1045
      %v1052 = vpop.permute.xlu0 %1051
      %1055 = vset.pattern.permute.xlu0 0
      %1056 = vperm.xlu0 %1055, %v1046
      %v1057 = vpop.permute.xlu0 %1056
      %1060 = vset.pattern.permute.xlu0 0
      %1061 = vperm.xlu0 %1060, %v1047
      %v1062 = vpop.permute.xlu0 %1061
      %1065 = vset.pattern.permute.xlu0 0
      %1066 = vperm.xlu0 %1065, %v1048
      %v1067 = vpop.permute.xlu0 %1066
      %v1070 = vsel %vm638, %v1040, 0
      %v1073 = vsel %vm638, %v1041, 0
      %v1076 = vsel %vm638, %v1042, 0
      %v1079 = vsel %vm638, %v1043, 0
      %1081 = vmatprep.subr.mxu0 %v1008
      %1082 = vmatpush1.msra.mxu0 %v1007
      %1083 = vmatprep.subr.mxu0 %v1016
      %1084 = vmatpush1.msra.mxu0 %v1015
      %1085 = vmatprep.subr.mxu0 %v1024
      %1086 = vmatpush1.msra.mxu0 %v1023
      %1087 = vmatprep.subr.mxu0 %v1032
      %1088 = vmatpush1.msra.mxu0 %v1031
      %1089 = vmatprep.subr.mxu0 0.0
      %1090 = vmatpush1.msra.mxu0 0.0
      %1091 = vmatprep.subr.mxu0 0.0
      %1092 = vmatpush1.msra.mxu0 0.0
      %1093 = vmatprep.subr.mxu0 0.0
      %1094 = vmatpush1.msra.mxu0 0.0
      %1095 = vmatprep.subr.mxu0 0.0
      %1096 = vmatpush1.msra.mxu0 0.0
      %1097 = vmatprep.subr.mxu0 0.0
      %1098 = vmatpush1.msra.mxu0 0.0
      %1099 = vmatprep.subr.mxu0 0.0
      %1100 = vmatpush1.msra.mxu0 0.0
      %1101 = vmatprep.subr.mxu0 0.0
      %1102 = vmatpush1.msra.mxu0 0.0
      %1103 = vmatprep.subr.mxu0 0.0
      %1104 = vmatpush1.msra.mxu0 0.0
      %1105 = vmatprep.subr.mxu0 0.0
      %1106 = vmatpush1.msra.mxu0 0.0
      %1107 = vmatprep.subr.mxu0 0.0
      %1108 = vmatpush1.msra.mxu0 0.0
      %1109 = vmatprep.subr.mxu0 0.0
      %1110 = vmatpush1.msra.mxu0 0.0
      %1111 = vmatprep.subr.mxu0 0.0
      %1112 = vmatpush1.msra.mxu0 0.0
      %1113 = vmatprep.subr.mxu0 0.0
      %1114 = vmatpush1.msra.mxu0 0.0
      %1115 = vmatprep.subr.mxu0 0.0
      %1116 = vmatpush1.msra.mxu0 0.0
      %1117 = vmatprep.subr.mxu0 0.0
      %1118 = vmatpush1.msra.mxu0 0.0
      %1119 = vmatprep.subr.mxu0 0.0
      %1120 = vmatpush1.msra.mxu0 0.0
      %1121 = vmatprep.subr.mxu0 0.0
      %1122 = vmatpush1.msra.mxu0 0.0
      %1123 = vmatprep.subr.mxu0 0.0
      %1124 = vmatpush1.msra.mxu0 0.0
      %1125 = vmatprep.subr.mxu0 0.0
      %1126 = vmatpush1.msra.mxu0 0.0
      %1127 = vmatprep.subr.mxu0 0.0
      %1128 = vmatpush1.msra.mxu0 0.0
      %1129 = vmatprep.subr.mxu0 0.0
      %1130 = vmatpush1.msra.mxu0 0.0
      %1131 = vmatprep.subr.mxu0 0.0
      %1132 = vmatpush1.msra.mxu0 0.0
      %1133 = vmatprep.subr.mxu0 0.0
      %1134 = vmatpush1.msra.mxu0 0.0
      %1135 = vmatprep.subr.mxu0 0.0
      %1136 = vmatpush1.msra.mxu0 0.0
      %1137 = vmatprep.subr.mxu0 0.0
      %1138 = vmatpush1.msra.mxu0 0.0
      %1139 = vmatprep.subr.mxu0 0.0
      %1140 = vmatpush1.msra.mxu0 0.0
      %1141 = vmatprep.subr.mxu0 0.0
      %1142 = vmatpush1.msra.mxu0 0.0
      %1143 = vmatprep.subr.mxu0 0.0
      %1144 = vmatpush1.msra.mxu0 0.0
      %1145 = vmatprep.mubr.f32.mxu0 0.0
      %1146 = vmatmul.mubr.f32.gmra.mrb[0].mxu0 %v1070
      %v1147 = vpop.f32.mrb[0].mxu0
      %v1148 = vadd.f32 %v1052, %v1147
      %v1149 = vpop.f32.mrb[0].mxu0
      %v1150 = vadd.f32 %v1052, %v1149
      %1151 = vmatprep.mubr.f32.mxu0 0.0
      %1152 = vmatmul.mubr.f32.gmra.mrb[0].mxu0 %v1073
      %v1153 = vpop.f32.mrb[0].mxu0
      %v1154 = vadd.f32 %v1057, %v1153
      %v1155 = vpop.f32.mrb[0].mxu0
      %v1156 = vadd.f32 %v1057, %v1155
      %1157 = vmatprep.mubr.f32.mxu0 0.0
      %1158 = vmatmul.mubr.f32.gmra.mrb[0].mxu0 %v1076
      %v1159 = vpop.f32.mrb[0].mxu0
      %v1160 = vadd.f32 %v1062, %v1159
      %v1161 = vpop.f32.mrb[0].mxu0
      %v1162 = vadd.f32 %v1062, %v1161
      %1163 = vmatprep.mubr.f32.mxu0 0.0
      %1164 = vmatmul.mubr.f32.gmra.mrb[0].mxu0 %v1079
      %v1165 = vpop.f32.mrb[0].mxu0
      %v1166 = vadd.f32 %v1067, %v1165
      %v1167 = vpop.f32.mrb[0].mxu0
      %v1168 = vadd.f32 %v1067, %v1167
      %1169 = vdwg.mxu0
      %1170 = vmatprep.subr.mxu0 %v1010
      %1171 = vmatpush1.msra.mxu0 %v1009
      %1172 = vmatprep.subr.mxu0 %v1018
      %1173 = vmatpush1.msra.mxu0 %v1017
      %1174 = vmatprep.subr.mxu0 %v1026
      %1175 = vmatpush1.msra.mxu0 %v1025
      %1176 = vmatprep.subr.mxu0 %v1034
      %1177 = vmatpush1.msra.mxu0 %v1033
      %1178 = vmatprep.subr.mxu0 0.0
      %1179 = vmatpush1.msra.mxu0 0.0
      %1180 = vmatprep.subr.mxu0 0.0
      %1181 = vmatpush1.msra.mxu0 0.0
      %1182 = vmatprep.subr.mxu0 0.0
      %1183 = vmatpush1.msra.mxu0 0.0
      %1184 = vmatprep.subr.mxu0 0.0
      %1185 = vmatpush1.msra.mxu0 0.0
      %1186 = vmatprep.subr.mxu0 0.0
      %1187 = vmatpush1.msra.mxu0 0.0
      %1188 = vmatprep.subr.mxu0 0.0
      %1189 = vmatpush1.msra.mxu0 0.0
      %1190 = vmatprep.subr.mxu0 0.0
      %1191 = vmatpush1.msra.mxu0 0.0
      %1192 = vmatprep.subr.mxu0 0.0
      %1193 = vmatpush1.msra.mxu0 0.0
      %1194 = vmatprep.subr.mxu0 0.0
      %1195 = vmatpush1.msra.mxu0 0.0
      %1196 = vmatprep.subr.mxu0 0.0
      %1197 = vmatpush1.msra.mxu0 0.0
      %1198 = vmatprep.subr.mxu0 0.0
      %1199 = vmatpush1.msra.mxu0 0.0
      %1200 = vmatprep.subr.mxu0 0.0
      %1201 = vmatpush1.msra.mxu0 0.0
      %1202 = vmatprep.subr.mxu0 0.0
      %1203 = vmatpush1.msra.mxu0 0.0
      %1204 = vmatprep.subr.mxu0 0.0
      %1205 = vmatpush1.msra.mxu0 0.0
      %1206 = vmatprep.subr.mxu0 0.0
      %1207 = vmatpush1.msra.mxu0 0.0
      %1208 = vmatprep.subr.mxu0 0.0
      %1209 = vmatpush1.msra.mxu0 0.0
      %1210 = vmatprep.subr.mxu0 0.0
      %1211 = vmatpush1.msra.mxu0 0.0
      %1212 = vmatprep.subr.mxu0 0.0
      %1213 = vmatpush1.msra.mxu0 0.0
      %1214 = vmatprep.subr.mxu0 0.0
      %1215 = vmatpush1.msra.mxu0 0.0
      %1216 = vmatprep.subr.mxu0 0.0
      %1217 = vmatpush1.msra.mxu0 0.0
      %1218 = vmatprep.subr.mxu0 0.0
      %1219 = vmatpush1.msra.mxu0 0.0
      %1220 = vmatprep.subr.mxu0 0.0
      %1221 = vmatpush1.msra.mxu0 0.0
      %1222 = vmatprep.subr.mxu0 0.0
      %1223 = vmatpush1.msra.mxu0 0.0
      %1224 = vmatprep.subr.mxu0 0.0
      %1225 = vmatpush1.msra.mxu0 0.0
      %1226 = vmatprep.subr.mxu0 0.0
      %1227 = vmatpush1.msra.mxu0 0.0
      %1228 = vmatprep.subr.mxu0 0.0
      %1229 = vmatpush1.msra.mxu0 0.0
      %1230 = vmatprep.subr.mxu0 0.0
      %1231 = vmatpush1.msra.mxu0 0.0
      %1232 = vmatprep.subr.mxu0 0.0
      %1233 = vmatpush1.msra.mxu0 0.0
      %1234 = vmatprep.mubr.f32.mxu0 0.0
      %1235 = vmatmul.mubr.f32.gmra.mrb[0].mxu0 %v1070
      %v1236 = vpop.f32.mrb[0].mxu0
      %v1237 = vadd.f32 %v1052, %v1236
      %v1238 = vpop.f32.mrb[0].mxu0
      %v1239 = vadd.f32 %v1052, %v1238
      %1240 = vmatprep.mubr.f32.mxu0 0.0
      %1241 = vmatmul.mubr.f32.gmra.mrb[0].mxu0 %v1073
      %v1242 = vpop.f32.mrb[0].mxu0
      %v1243 = vadd.f32 %v1057, %v1242
      %v1244 = vpop.f32.mrb[0].mxu0
      %v1245 = vadd.f32 %v1057, %v1244
      %1246 = vmatprep.mubr.f32.mxu0 0.0
      %1247 = vmatmul.mubr.f32.gmra.mrb[0].mxu0 %v1076
      %v1248 = vpop.f32.mrb[0].mxu0
      %v1249 = vadd.f32 %v1062, %v1248
      %v1250 = vpop.f32.mrb[0].mxu0
      %v1251 = vadd.f32 %v1062, %v1250
      %1252 = vmatprep.mubr.f32.mxu0 0.0
      %1253 = vmatmul.mubr.f32.gmra.mrb[0].mxu0 %v1079
      %v1254 = vpop.f32.mrb[0].mxu0
      %v1255 = vadd.f32 %v1067, %v1254
      %v1256 = vpop.f32.mrb[0].mxu0
      %v1257 = vadd.f32 %v1067, %v1256
      %1258 = vdwg.mxu0
      %1259 = vmatprep.subr.mxu0 %v1012
      %1260 = vmatpush1.msra.mxu0 %v1011
      %1261 = vmatprep.subr.mxu0 %v1020
      %1262 = vmatpush1.msra.mxu0 %v1019
      %1263 = vmatprep.subr.mxu0 %v1028
      %1264 = vmatpush1.msra.mxu0 %v1027
      %1265 = vmatprep.subr.mxu0 %v1036
      %1266 = vmatpush1.msra.mxu0 %v1035
      %1267 = vmatprep.subr.mxu0 0.0
      %1268 = vmatpush1.msra.mxu0 0.0
      %1269 = vmatprep.subr.mxu0 0.0
      %1270 = vmatpush1.msra.mxu0 0.0
      %1271 = vmatprep.subr.mxu0 0.0
      %1272 = vmatpush1.msra.mxu0 0.0
      %1273 = vmatprep.subr.mxu0 0.0
      %1274 = vmatpush1.msra.mxu0 0.0
      %1275 = vmatprep.subr.mxu0 0.0
      %1276 = vmatpush1.msra.mxu0 0.0
      %1277 = vmatprep.subr.mxu0 0.0
      %1278 = vmatpush1.msra.mxu0 0.0
      %1279 = vmatprep.subr.mxu0 0.0
      %1280 = vmatpush1.msra.mxu0 0.0
      %1281 = vmatprep.subr.mxu0 0.0
      %1282 = vmatpush1.msra.mxu0 0.0
      %1283 = vmatprep.subr.mxu0 0.0
      %1284 = vmatpush1.msra.mxu0 0.0
      %1285 = vmatprep.subr.mxu0 0.0
      %1286 = vmatpush1.msra.mxu0 0.0
      %1287 = vmatprep.subr.mxu0 0.0
      %1288 = vmatpush1.msra.mxu0 0.0
      %1289 = vmatprep.subr.mxu0 0.0
      %1290 = vmatpush1.msra.mxu0 0.0
      %1291 = vmatprep.subr.mxu0 0.0
      %1292 = vmatpush1.msra.mxu0 0.0
      %1293 = vmatprep.subr.mxu0 0.0
      %1294 = vmatpush1.msra.mxu0 0.0
      %1295 = vmatprep.subr.mxu0 0.0
      %1296 = vmatpush1.msra.mxu0 0.0
      %1297 = vmatprep.subr.mxu0 0.0
      %1298 = vmatpush1.msra.mxu0 0.0
      %1299 = vmatprep.subr.mxu0 0.0
      %1300 = vmatpush1.msra.mxu0 0.0
      %1301 = vmatprep.subr.mxu0 0.0
      %1302 = vmatpush1.msra.mxu0 0.0
      %1303 = vmatprep.subr.mxu0 0.0
      %1304 = vmatpush1.msra.mxu0 0.0
      %1305 = vmatprep.subr.mxu0 0.0
      %1306 = vmatpush1.msra.mxu0 0.0
      %1307 = vmatprep.subr.mxu0 0.0
      %1308 = vmatpush1.msra.mxu0 0.0
      %1309 = vmatprep.subr.mxu0 0.0
      %1310 = vmatpush1.msra.mxu0 0.0
      %1311 = vmatprep.subr.mxu0 0.0
      %1312 = vmatpush1.msra.mxu0 0.0
      %1313 = vmatprep.subr.mxu0 0.0
      %1314 = vmatpush1.msra.mxu0 0.0
      %1315 = vmatprep.subr.mxu0 0.0
      %1316 = vmatpush1.msra.mxu0 0.0
      %1317 = vmatprep.subr.mxu0 0.0
      %1318 = vmatpush1.msra.mxu0 0.0
      %1319 = vmatprep.subr.mxu0 0.0
      %1320 = vmatpush1.msra.mxu0 0.0
      %1321 = vmatprep.subr.mxu0 0.0
      %1322 = vmatpush1.msra.mxu0 0.0
      %1323 = vmatprep.mubr.f32.mxu0 0.0
      %1324 = vmatmul.mubr.f32.gmra.mrb[0].mxu0 %v1070
      %v1325 = vpop.f32.mrb[0].mxu0
      %v1326 = vadd.f32 %v1052, %v1325
      %v1327 = vpop.f32.mrb[0].mxu0
      %v1328 = vadd.f32 %v1052, %v1327
      %1329 = vmatprep.mubr.f32.mxu0 0.0
      %1330 = vmatmul.mubr.f32.gmra.mrb[0].mxu0 %v1073
      %v1331 = vpop.f32.mrb[0].mxu0
      %v1332 = vadd.f32 %v1057, %v1331
      %v1333 = vpop.f32.mrb[0].mxu0
      %v1334 = vadd.f32 %v1057, %v1333
      %1335 = vmatprep.mubr.f32.mxu0 0.0
      %1336 = vmatmul.mubr.f32.gmra.mrb[0].mxu0 %v1076
      %v1337 = vpop.f32.mrb[0].mxu0
      %v1338 = vadd.f32 %v1062, %v1337
      %v1339 = vpop.f32.mrb[0].mxu0
      %v1340 = vadd.f32 %v1062, %v1339
      %1341 = vmatprep.mubr.f32.mxu0 0.0
      %1342 = vmatmul.mubr.f32.gmra.mrb[0].mxu0 %v1079
      %v1343 = vpop.f32.mrb[0].mxu0
      %v1344 = vadd.f32 %v1067, %v1343
      %v1345 = vpop.f32.mrb[0].mxu0
      %v1346 = vadd.f32 %v1067, %v1345
      %1347 = vdwg.mxu0
      %1348 = vmatprep.subr.mxu0 %v1014
      %1349 = vmatpush1.msra.mxu0 %v1013
      %1350 = vmatprep.subr.mxu0 %v1022
      %1351 = vmatpush1.msra.mxu0 %v1021
      %1352 = vmatprep.subr.mxu0 %v1030
      %1353 = vmatpush1.msra.mxu0 %v1029
      %1354 = vmatprep.subr.mxu0 %v1038
      %1355 = vmatpush1.msra.mxu0 %v1037
      %1356 = vmatprep.subr.mxu0 0.0
      %1357 = vmatpush1.msra.mxu0 0.0
      %1358 = vmatprep.subr.mxu0 0.0
      %1359 = vmatpush1.msra.mxu0 0.0
      %1360 = vmatprep.subr.mxu0 0.0
      %1361 = vmatpush1.msra.mxu0 0.0
      %1362 = vmatprep.subr.mxu0 0.0
      %1363 = vmatpush1.msra.mxu0 0.0
      %1364 = vmatprep.subr.mxu0 0.0
      %1365 = vmatpush1.msra.mxu0 0.0
      %1366 = vmatprep.subr.mxu0 0.0
      %1367 = vmatpush1.msra.mxu0 0.0
      %1368 = vmatprep.subr.mxu0 0.0
      %1369 = vmatpush1.msra.mxu0 0.0
      %1370 = vmatprep.subr.mxu0 0.0
      %1371 = vmatpush1.msra.mxu0 0.0
      %1372 = vmatprep.subr.mxu0 0.0
      %1373 = vmatpush1.msra.mxu0 0.0
      %1374 = vmatprep.subr.mxu0 0.0
      %1375 = vmatpush1.msra.mxu0 0.0
      %1376 = vmatprep.subr.mxu0 0.0
      %1377 = vmatpush1.msra.mxu0 0.0
      %1378 = vmatprep.subr.mxu0 0.0
      %1379 = vmatpush1.msra.mxu0 0.0
      %1380 = vmatprep.subr.mxu0 0.0
      %1381 = vmatpush1.msra.mxu0 0.0
      %1382 = vmatprep.subr.mxu0 0.0
      %1383 = vmatpush1.msra.mxu0 0.0
      %1384 = vmatprep.subr.mxu0 0.0
      %1385 = vmatpush1.msra.mxu0 0.0
      %1386 = vmatprep.subr.mxu0 0.0
      %1387 = vmatpush1.msra.mxu0 0.0
      %1388 = vmatprep.subr.mxu0 0.0
      %1389 = vmatpush1.msra.mxu0 0.0
      %1390 = vmatprep.subr.mxu0 0.0
      %1391 = vmatpush1.msra.mxu0 0.0
      %1392 = vmatprep.subr.mxu0 0.0
      %1393 = vmatpush1.msra.mxu0 0.0
      %1394 = vmatprep.subr.mxu0 0.0
      %1395 = vmatpush1.msra.mxu0 0.0
      %1396 = vmatprep.subr.mxu0 0.0
      %1397 = vmatpush1.msra.mxu0 0.0
      %1398 = vmatprep.subr.mxu0 0.0
      %1399 = vmatpush1.msra.mxu0 0.0
      %1400 = vmatprep.subr.mxu0 0.0
      %1401 = vmatpush1.msra.mxu0 0.0
      %1402 = vmatprep.subr.mxu0 0.0
      %1403 = vmatpush1.msra.mxu0 0.0
      %1404 = vmatprep.subr.mxu0 0.0
      %1405 = vmatpush1.msra.mxu0 0.0
      %1406 = vmatprep.subr.mxu0 0.0
      %1407 = vmatpush1.msra.mxu0 0.0
      %1408 = vmatprep.subr.mxu0 0.0
      %1409 = vmatpush1.msra.mxu0 0.0
      %1410 = vmatprep.subr.mxu0 0.0
      %1411 = vmatpush1.msra.mxu0 0.0
      %1412 = vmatprep.mubr.f32.mxu0 0.0
      %1413 = vmatmul.mubr.f32.gmra.mrb[0].mxu0 %v1070
      %v1414 = vpop.f32.mrb[0].mxu0
      %v1415 = vadd.f32 %v1052, %v1414
      %v1416 = vpop.f32.mrb[0].mxu0
      %v1417 = vadd.f32 %v1052, %v1416
      %1418 = vmatprep.mubr.f32.mxu0 0.0
      %1419 = vmatmul.mubr.f32.gmra.mrb[0].mxu0 %v1073
      %v1420 = vpop.f32.mrb[0].mxu0
      %v1421 = vadd.f32 %v1057, %v1420
      %v1422 = vpop.f32.mrb[0].mxu0
      %v1423 = vadd.f32 %v1057, %v1422
      %1424 = vmatprep.mubr.f32.mxu0 0.0
      %1425 = vmatmul.mubr.f32.gmra.mrb[0].mxu0 %v1076
      %v1426 = vpop.f32.mrb[0].mxu0
      %v1427 = vadd.f32 %v1062, %v1426
      %v1428 = vpop.f32.mrb[0].mxu0
      %v1429 = vadd.f32 %v1062, %v1428
      %1430 = vmatprep.mubr.f32.mxu0 0.0
      %1431 = vmatmul.mubr.f32.gmra.mrb[0].mxu0 %v1079
      %v1432 = vpop.f32.mrb[0].mxu0
      %v1433 = vadd.f32 %v1067, %v1432
      %v1434 = vpop.f32.mrb[0].mxu0
      %v1435 = vadd.f32 %v1067, %v1434
      %1436 = vdwg.mxu0
      %v1437 = vmax.f32 %v1148, 0.0
      %v1438 = vmax.f32 %v1150, 0.0
      %v1439 = vmax.f32 %v1237, 0.0
      %v1440 = vmax.f32 %v1239, 0.0
      %v1441 = vmax.f32 %v1326, 0.0
      %v1442 = vmax.f32 %v1328, 0.0
      %v1443 = vmax.f32 %v1415, 0.0
      %v1444 = vmax.f32 %v1417, 0.0
      %v1445 = vmax.f32 %v1154, 0.0
      %v1446 = vmax.f32 %v1156, 0.0
      %v1447 = vmax.f32 %v1243, 0.0
      %v1448 = vmax.f32 %v1245, 0.0
      %v1449 = vmax.f32 %v1332, 0.0
      %v1450 = vmax.f32 %v1334, 0.0
      %v1451 = vmax.f32 %v1421, 0.0
      %v1452 = vmax.f32 %v1423, 0.0
      %v1453 = vmax.f32 %v1160, 0.0
      %v1454 = vmax.f32 %v1162, 0.0
      %v1455 = vmax.f32 %v1249, 0.0
      %v1456 = vmax.f32 %v1251, 0.0
      %v1457 = vmax.f32 %v1338, 0.0
      %v1458 = vmax.f32 %v1340, 0.0
      %v1459 = vmax.f32 %v1427, 0.0
      %v1460 = vmax.f32 %v1429, 0.0
      %v1461 = vmax.f32 %v1166, 0.0
      %v1462 = vmax.f32 %v1168, 0.0
      %v1463 = vmax.f32 %v1255, 0.0
      %v1464 = vmax.f32 %v1257, 0.0
      %v1465 = vmax.f32 %v1344, 0.0
      %v1466 = vmax.f32 %v1346, 0.0
      %v1467 = vmax.f32 %v1433, 0.0
      %v1468 = vmax.f32 %v1435, 0.0
      %v1469 = vmax.f32 %v1437, %v1438
      %v1470 = vmax.f32 %v1445, %v1446
      %v1471 = vmax.f32 %v1453, %v1454
      %v1472 = vmax.f32 %v1461, %v1462
      %v1473 = vmax.f32 %v1469, %v1439
      %v1474 = vmax.f32 %v1470, %v1447
      %v1475 = vmax.f32 %v1471, %v1455
      %v1476 = vmax.f32 %v1472, %v1463
      %v1477 = vmax.f32 %v1473, %v1440
      %v1478 = vmax.f32 %v1474, %v1448
      %v1479 = vmax.f32 %v1475, %v1456
      %v1480 = vmax.f32 %v1476, %v1464
      %v1481 = vmax.f32 %v1477, %v1441
      %v1482 = vmax.f32 %v1478, %v1449
      %v1483 = vmax.f32 %v1479, %v1457
      %v1484 = vmax.f32 %v1480, %v1465
      %v1485 = vmax.f32 %v1481, %v1442
      %v1486 = vmax.f32 %v1482, %v1450
      %v1487 = vmax.f32 %v1483, %v1458
      %v1488 = vmax.f32 %v1484, %v1466
      %v1489 = vmax.f32 %v1485, %v1443
      %v1490 = vmax.f32 %v1486, %v1451
      %v1491 = vmax.f32 %v1487, %v1459
      %v1492 = vmax.f32 %v1488, %v1467
      %v1493 = vmax.f32 %v1489, %v1444
      %v1494 = vmax.f32 %v1490, %v1452
      %v1495 = vmax.f32 %v1491, %v1460
      %v1496 = vmax.f32 %v1492, %v1468
      %1497 = vst [vmem:[%s170] sm:$0xff] %v1493
      %1498 = vst [vmem:[%s170 + $0x8] sm:$0xff] %v1494
      %1499 = vst [vmem:[%s170 + $0x10] sm:$0xff] %v1495
      %1500 = vst [vmem:[%s170 + $0x18] sm:$0xff] %v1496
      %p1501 = scmp.lt.s32.totalorder %s14, 1
      %s1502 = scalar_select %p1501, %s14, 1
      %s1503 = smul.addr %s1502, 4
      %s1504 = smul.addr %s1503, 8
      %s1505 = scalar_lea.vmem %s3, %s1504
      // Predicated region
      $region33: #{pointnet2_msg_forward.11} parent=31 // pred_check
        %p1506 = pneg %p100
      $region34: #{pointnet2_msg_forward.11} parent=31 // pred_check_branch
        %1508 = sbr.rel (%p1506) target = $region36
      $region35: #{pointnet2_msg_forward.11} parent=31 // pred_region
        _
      $region36: #{pointnet2_msg_forward.11} parent=31 // pred_fallthru
        _
    $region32: #{pointnet2_msg_forward.11} parent=5 // pred_fallthru
      _
    %p1509 = scmp.le.s32.totalorder 2, %s9
    // Predicated region
    $region37: #{pointnet2_msg_forward.11} parent=5 // pred_check
      %p1510 = pneg %p1509
    $region38: #{pointnet2_msg_forward.11} parent=5 // pred_check_branch
      %1512 = sbr.rel (%p1510) target = $region40
    $region39: #{pointnet2_msg_forward.11} parent=5 // pred_region
      %s1513 = ssub.s32 %s9, 2
      // Predicated region
      $region41: #{pointnet2_msg_forward.11} parent=39 // pred_check
        %p1514 = pneg %p106
      $region42: #{pointnet2_msg_forward.11} parent=39 // pred_check_branch
        %1516 = sbr.rel (%p1514) target = $region44
      $region43: #{pointnet2_msg_forward.11} parent=39 // pred_region
        %p1517 = scmp.lt.s32.totalorder %s15, 1
        %s1518 = scalar_select %p1517, %s15, 1
        %s1519 = smul.addr %s1518, 4
        %s1520 = smul.addr %s1519, 8
        %s1521 = scalar_lea.vmem %s3, %s1520
      $region44: #{pointnet2_msg_forward.11} parent=39 // pred_fallthru
        _
    $region40: #{pointnet2_msg_forward.11} parent=5 // pred_fallthru
      _
  $region6: #{pointnet2_msg_forward.11} parent=0 // loop_footer
    %s13 = sadd.s32 1, %s9
  $region7: #{pointnet2_msg_forward.11} parent=0 // loop_footer_branch
    %8 = sbr.rel target = $region3
  $region8: #{pointnet2_msg_forward.11} parent=0 // loop_exit
    _

// kernel: pointnet2_msg_forward.12
$region0: #{pointnet2_msg_forward.12}
  #allocation0 [shape = 'u32[]', space=smem, size = 0x4, offset = 0x4, fixed_abs, tag = 'smem constant byte address 0x4 - core index']
  #allocation1 [shape = 'u32[144,128]{1,0:T(1,128)}', space=vmem, size = 0x12000, scoped, tag = 'internal scratch']
  %s0 = inlined_call_operand.vmem [shape: f32[2,56,256], index: 0, kind: input, shape index: {}]
  %s1 = inlined_call_operand.vmem [shape: f32[3,56,56], index: 1, kind: input, shape index: {}]
  %s2 = inlined_call_operand.vmem [shape: f32[3,56,1], index: 2, kind: input, shape index: {}]
  %s3 = inlined_call_operand.vmem [shape: f32[2,16,128], index: 3, kind: output, shape index: {}]
  %s4 = sld [smem:[#allocation0]]
  $region45: #{pointnet2_msg_forward.12} parent=0
    _
  %s6 = ssub.s32 1, %s4
  %s7 = scalar_select 0, %s6, %s4
  loop: start=0, step=1, limit=4
  $region2: #{pointnet2_msg_forward.12} parent=0 // loop_pre_header
    _
  $region3: #{pointnet2_msg_forward.12} parent=0 // loop_header
    %s9 = sphi 0, %s13
    %p10 = scmp.ge.s32.totalorder %s9, 4
    %s19 = sphi 0, %s21
    %s22 = sphi 0, %s19
    %s23 = sphi 0, %s22
    %s39 = sphi 0, %s23
    %s43 = sphi 0, %s43
    %s45 = sphi 0, %s43
    %s46 = sphi 0, %s45
    %s60 = sphi 0, %s46
    %s64 = sphi 0, %s64
    %s66 = sphi 0, %s64
    %s67 = sphi 0, %s66
    %s81 = sphi 0, %s67
    %s87 = sphi 0, %s89
    %s90 = sphi 0, %s87
    %s91 = sphi 0, %s90
    %s107 = sphi 0, %s91
  $region4: #{pointnet2_msg_forward.12} parent=0 // loop_header_branch
    %12 = sbr.rel (%p10) target = $region8
  $region5: #{pointnet2_msg_forward.12} parent=0 // loop_body
    %s14 = ssub.s32 %s9, 1
    %s15 = ssub.s32 %s9, 2
    %s16 = sadd.s32 %s9, 1
    %s17 = ssub.s32 %s9, %s16
    %p18 = scmp.eq.s32.totalorder %s17, 0
    %s20 = sadd.s32 %s19, 1
    %s21 = scalar_select %p18, %s19, %s20
    %p24 = pneg %p18
    %p25 = scmp.eq.s32.totalorder %s9, 1
    %p26 = por %p24, %p25
    %p27 = scmp.ne.s32.totalorder %s19, %s22
    %p28 = scmp.eq.s32.totalorder %s9, 0
    %p29 = por %p27, %p28
    %p30 = scmp.ne.s32.totalorder %s19, %s22
    %p31 = scmp.eq.s32.totalorder %s14, 1
    %p32 = por %p30, %p31
    %p33 = scmp.ne.s32.totalorder %s22, %s23
    %p34 = scmp.eq.s32.totalorder %s14, 0
    %p35 = por %p33, %p34
    %p36 = scmp.ne.s32.totalorder %s22, %s23
    %p37 = scmp.eq.s32.totalorder %s15, 1
    %p38 = por %p36, %p37
    %p40 = scmp.ne.s32.totalorder %s23, %s39
    %p41 = scmp.eq.s32.totalorder %s15, 0
    %p42 = por %p40, %p41
    %s44 = sadd.s32 %s43, 1
    %p47 = scmp.eq.s32.totalorder %s9, 1
    %p48 = scmp.ne.s32.totalorder %s43, %s45
    %p49 = scmp.eq.s32.totalorder %s9, 0
    %p50 = por %p48, %p49
    %p51 = scmp.ne.s32.totalorder %s43, %s45
    %p52 = scmp.eq.s32.totalorder %s14, 1
    %p53 = por %p51, %p52
    %p54 = scmp.ne.s32.totalorder %s45, %s46
    %p55 = scmp.eq.s32.totalorder %s14, 0
    %p56 = por %p54, %p55
    %p57 = scmp.ne.s32.totalorder %s45, %s46
    %p58 = scmp.eq.s32.totalorder %s15, 1
    %p59 = por %p57, %p58
    %p61 = scmp.ne.s32.totalorder %s46, %s60
    %p62 = scmp.eq.s32.totalorder %s15, 0
    %p63 = por %p61, %p62
    %s65 = sadd.s32 %s64, 1
    %p68 = scmp.eq.s32.totalorder %s9, 1
    %p69 = scmp.ne.s32.totalorder %s64, %s66
    %p70 = scmp.eq.s32.totalorder %s9, 0
    %p71 = por %p69, %p70
    %p72 = scmp.ne.s32.totalorder %s64, %s66
    %p73 = scmp.eq.s32.totalorder %s14, 1
    %p74 = por %p72, %p73
    %p75 = scmp.ne.s32.totalorder %s66, %s67
    %p76 = scmp.eq.s32.totalorder %s14, 0
    %p77 = por %p75, %p76
    %p78 = scmp.ne.s32.totalorder %s66, %s67
    %p79 = scmp.eq.s32.totalorder %s15, 1
    %p80 = por %p78, %p79
    %p82 = scmp.ne.s32.totalorder %s67, %s81
    %p83 = scmp.eq.s32.totalorder %s15, 0
    %p84 = por %p82, %p83
    %s85 = ssub.s32 %s9, %s16
    %p86 = scmp.eq.s32.totalorder %s85, 0
    %s88 = sadd.s32 %s87, 1
    %s89 = scalar_select %p86, %s87, %s88
    %p92 = pneg %p86
    %p93 = scmp.eq.s32.totalorder %s9, 1
    %p94 = por %p92, %p93
    %p95 = scmp.ne.s32.totalorder %s87, %s90
    %p96 = scmp.eq.s32.totalorder %s9, 0
    %p97 = por %p95, %p96
    %p98 = scmp.ne.s32.totalorder %s87, %s90
    %p99 = scmp.eq.s32.totalorder %s14, 1
    %p100 = por %p98, %p99
    %p101 = scmp.ne.s32.totalorder %s90, %s91
    %p102 = scmp.eq.s32.totalorder %s14, 0
    %p103 = por %p101, %p102
    %p104 = scmp.ne.s32.totalorder %s90, %s91
    %p105 = scmp.eq.s32.totalorder %s15, 1
    %p106 = por %p104, %p105
    %p108 = scmp.ne.s32.totalorder %s91, %s107
    %p109 = scmp.eq.s32.totalorder %s15, 0
    %p110 = por %p108, %p109
    %p111 = scmp.le.s32.totalorder 1, %s9
    %p112 = scmp.lt.s32.totalorder %s9, 3
    %p113 = pnand %p111, %p112
    %p114 = pneg %p113
    // Predicated region
    $region9: #{pointnet2_msg_forward.12} parent=5 // pred_check
      _
    $region10: #{pointnet2_msg_forward.12} parent=5 // pred_check_branch
      %116 = sbr.rel (%p113) target = $region12
    $region11: #{pointnet2_msg_forward.12} parent=5 // pred_region
      %s117 = ssub.s32 %s9, 1
      // Predicated region
      $region13: #{pointnet2_msg_forward.12} parent=11 // pred_check
        %p118 = pneg %p56
      $region14: #{pointnet2_msg_forward.12} parent=11 // pred_check_branch
        %120 = sbr.rel (%p118) target = $region16
      $region15: #{pointnet2_msg_forward.12} parent=11 // pred_region
        _
      $region16: #{pointnet2_msg_forward.12} parent=11 // pred_fallthru
        _
      // Predicated region
      $region17: #{pointnet2_msg_forward.12} parent=11 // pred_check
        %p121 = pneg %p77
      $region18: #{pointnet2_msg_forward.12} parent=11 // pred_check_branch
        %123 = sbr.rel (%p121) target = $region20
      $region19: #{pointnet2_msg_forward.12} parent=11 // pred_region
        _
      $region20: #{pointnet2_msg_forward.12} parent=11 // pred_fallthru
        _
    $region12: #{pointnet2_msg_forward.12} parent=5 // pred_fallthru
      _
    %p124 = scmp.lt.s32.totalorder %s9, 2
    // Predicated region
    $region21: #{pointnet2_msg_forward.12} parent=5 // pred_check
      %p125 = pneg %p124
    $region22: #{pointnet2_msg_forward.12} parent=5 // pred_check_branch
      %127 = sbr.rel (%p125) target = $region24
    $region23: #{pointnet2_msg_forward.12} parent=5 // pred_region
      // Predicated region
      $region25: #{pointnet2_msg_forward.12} parent=23 // pred_check
        %p128 = pneg %p29
      $region26: #{pointnet2_msg_forward.12} parent=23 // pred_check_branch
        %130 = sbr.rel (%p128) target = $region28
      $region27: #{pointnet2_msg_forward.12} parent=23 // pred_region
        %p131 = scmp.lt.s32.totalorder %s9, 1
        %s132 = scalar_select %p131, %s9, 1
        %s133 = smul.addr %s132, 14
        %s134 = smul.addr %s133, 8
        %s135 = scalar_lea.vmem %s0, %s134
      $region28: #{pointnet2_msg_forward.12} parent=23 // pred_fallthru
        _
    $region24: #{pointnet2_msg_forward.12} parent=5 // pred_fallthru
      _
    %p136 = scmp.le.s32.totalorder 1, %s9
    %p137 = scmp.lt.s32.totalorder %s9, 3
    %p138 = pnand %p136, %p137
    %p139 = pneg %p138
    // Predicated region
    $region29: #{pointnet2_msg_forward.12} parent=5 // pred_check
      _
    $region30: #{pointnet2_msg_forward.12} parent=5 // pred_check_branch
      %141 = sbr.rel (%p138) target = $region32
    $region31: #{pointnet2_msg_forward.12} parent=5 // pred_region
      %s142 = ssub.s32 %s9, 1
      %p143 = scmp.lt.s32.totalorder %s14, 1
      %s144 = scalar_select %p143, %s14, 1
      %s145 = smul.addr %s144, 14
      %s146 = smul.addr %s145, 8
      %s147 = scalar_lea.vmem %s0, %s146
      %p148 = pneg %p35
      %p149 = pneg %p32
      %p150 = pneg %p56
      %p151 = pneg %p53
      %p152 = pneg %p77
      %p153 = pneg %p74
      %p154 = pneg %p103
      %p155 = pneg %p100
      %p156 = scmp.lt.s32.totalorder %s14, 1
      %s157 = scalar_select %p156, %s14, 1
      %s158 = smul.addr %s157, 2
      %s159 = smul.addr %s158, 8
      %s160 = scalar_lea.vmem %s3, %s159
      %p161 = scmp.lt.s32.totalorder %s14, 1
      %s162 = scalar_select %p161, %s14, 1
      %s163 = smul.addr %s162, 14
      %s164 = smul.addr %s163, 8
      %s165 = scalar_lea.vmem %s0, %s164
      %p166 = scmp.lt.s32.totalorder %s14, 1
      %s167 = scalar_select %p166, %s14, 1
      %s168 = smul.addr %s167, 2
      %s169 = smul.addr %s168, 8
      %s170 = scalar_lea.vmem %s3, %s169
      %v171 = vld [vmem:[%s165] sm:$0xff]
      %v172 = vld [vmem:[%s165 + $0x8] sm:$0xff]
      %v173 = vld [vmem:[%s165 + $0x10] sm:$0xff]
      %v174 = vld [vmem:[%s165 + $0x18] sm:$0xff]
      %v175 = vld [vmem:[%s165 + $0x20] sm:$0xff]
      %v176 = vld [vmem:[%s165 + $0x28] sm:$0xff]
      %v177 = vld [vmem:[%s165 + $0x30] sm:$0xff]
      %v178 = vld [vmem:[%s165 + $0x38] sm:$0xff]
      %v179 = vld [vmem:[%s165 + $0x40] sm:$0xff]
      %v180 = vld [vmem:[%s165 + $0x48] sm:$0xff]
      %v181 = vld [vmem:[%s165 + $0x50] sm:$0xff]
      %v182 = vld [vmem:[%s165 + $0x58] sm:$0xff]
      %v183 = vld [vmem:[%s165 + $0x60] sm:$0xff]
      %v184 = vld [vmem:[%s165 + $0x68] sm:$0xff]
      %v185 = vld [vmem:[%s1] sm:$0xff]
      %v186 = vld [vmem:[%s1 + $0x8] sm:$0xff]
      %v187 = vld [vmem:[%s1 + $0x10] sm:$0xff]
      %v188 = vld [vmem:[%s1 + $0x18] sm:$0xff]
      %v189 = vld [vmem:[%s1 + $0x20] sm:$0xff]
      %v190 = vld [vmem:[%s1 + $0x28] sm:$0xff]
      %v191 = vld [vmem:[%s1 + $0x30] sm:$0xff]
      %v192 = vld [vmem:[%s2] sm:$0xff]
      %v193 = vld [vmem:[%s2 + $0x8] sm:$0xff]
      %v194 = vld [vmem:[%s2 + $0x10] sm:$0xff]
      %v195 = vld [vmem:[%s2 + $0x18] sm:$0xff]
      %v196 = vld [vmem:[%s2 + $0x20] sm:$0xff]
      %v197 = vld [vmem:[%s2 + $0x28] sm:$0xff]
      %v198 = vld [vmem:[%s2 + $0x30] sm:$0xff]
      %200 = vset.pattern.permute.xlu0 0
      %201 = vperm.xlu0 %200, %v192
      %v202 = vpop.permute.xlu0 %201
      %205 = vset.pattern.permute.xlu0 0
      %206 = vperm.xlu0 %205, %v193
      %v207 = vpop.permute.xlu0 %206
      %210 = vset.pattern.permute.xlu0 0
      %211 = vperm.xlu0 %210, %v194
      %v212 = vpop.permute.xlu0 %211
      %215 = vset.pattern.permute.xlu0 0
      %216 = vperm.xlu0 %215, %v195
      %v217 = vpop.permute.xlu0 %216
      %220 = vset.pattern.permute.xlu0 0
      %221 = vperm.xlu0 %220, %v196
      %v222 = vpop.permute.xlu0 %221
      %225 = vset.pattern.permute.xlu0 0
      %226 = vperm.xlu0 %225, %v197
      %v227 = vpop.permute.xlu0 %226
      %230 = vset.pattern.permute.xlu0 0
      %231 = vperm.xlu0 %230, %v198
      %v232 = vpop.permute.xlu0 %231
      %vm234 = vcmask 457728
      %v236 = vsel %vm234, %v185, 0
      %v239 = vsel %vm234, %v186, 0
      %v242 = vsel %vm234, %v187, 0
      %v245 = vsel %vm234, %v188, 0
      %v248 = vsel %vm234, %v189, 0
      %v251 = vsel %vm234, %v190, 0
      %v254 = vsel %vm234, %v191, 0
      %256 = vmatprep.subr.mxu0 %v172
      %257 = vmatpush1.msra.mxu0 %v171
      %258 = vmatprep.subr.mxu0 %v174
      %259 = vmatpush1.msra.mxu0 %v173
      %260 = vmatprep.subr.mxu0 %v176
      %261 = vmatpush1.msra.mxu0 %v175
      %262 = vmatprep.subr.mxu0 %v178
      %263 = vmatpush1.msra.mxu0 %v177
      %264 = vmatprep.subr.mxu0 %v180
      %265 = vmatpush1.msra.mxu0 %v179
      %266 = vmatprep.subr.mxu0 %v182
      %267 = vmatpush1.msra.mxu0 %v181
      %268 = vmatprep.subr.mxu0 %v184
      %269 = vmatpush1.msra.mxu0 %v183
      %270 = vmatprep.subr.mxu0 0.0
      %271 = vmatpush1.msra.mxu0 0.0
      %272 = vmatprep.subr.mxu0 0.0
      %273 = vmatpush1.msra.mxu0 0.0
      %274 = vmatprep.subr.mxu0 0.0
      %275 = vmatpush1.msra.mxu0 0.0
      %276 = vmatprep.subr.mxu0 0.0
      %277 = vmatpush1.msra.mxu0 0.0
      %278 = vmatprep.subr.mxu0 0.0
      %279 = vmatpush1.msra.mxu0 0.0
      %280 = vmatprep.subr.mxu0 0.0
      %281 = vmatpush1.msra.mxu0 0.0
      %282 = vmatprep.subr.mxu0 0.0
      %283 = vmatpush1.msra.mxu0 0.0
      %284 = vmatprep.subr.mxu0 0.0
      %285 = vmatpush1.msra.mxu0 0.0
      %286 = vmatprep.subr.mxu0 0.0
      %287 = vmatpush1.msra.mxu0 0.0
      %288 = vmatprep.subr.mxu0 0.0
      %289 = vmatpush1.msra.mxu0 0.0
      %290 = vmatprep.subr.mxu0 0.0
      %291 = vmatpush1.msra.mxu0 0.0
      %292 = vmatprep.subr.mxu0 0.0
      %293 = vmatpush1.msra.mxu0 0.0
      %294 = vmatprep.subr.mxu0 0.0
      %295 = vmatpush1.msra.mxu0 0.0
      %296 = vmatprep.subr.mxu0 0.0
      %297 = vmatpush1.msra.mxu0 0.0
      %298 = vmatprep.subr.mxu0 0.0
      %299 = vmatpush1.msra.mxu0 0.0
      %300 = vmatprep.subr.mxu0 0.0
      %301 = vmatpush1.msra.mxu0 0.0
      %302 = vmatprep.subr.mxu0 0.0
      %303 = vmatpush1.msra.mxu0 0.0
      %304 = vmatprep.subr.mxu0 0.0
      %305 = vmatpush1.msra.mxu0 0.0
      %306 = vmatprep.subr.mxu0 0.0
      %307 = vmatpush1.msra.mxu0 0.0
      %308 = vmatprep.subr.mxu0 0.0
      %309 = vmatpush1.msra.mxu0 0.0
      %310 = vmatprep.subr.mxu0 0.0
      %311 = vmatpush1.msra.mxu0 0.0
      %312 = vmatprep.subr.mxu0 0.0
      %313 = vmatpush1.msra.mxu0 0.0
      %314 = vmatprep.subr.mxu0 0.0
      %315 = vmatpush1.msra.mxu0 0.0
      %316 = vmatprep.subr.mxu0 0.0
      %317 = vmatpush1.msra.mxu0 0.0
      %318 = vmatprep.subr.mxu0 0.0
      %319 = vmatpush1.msra.mxu0 0.0
      %320 = vmatprep.mubr.f32.mxu0 0.0
      %321 = vmatmul.mubr.f32.gmra.mrb[0].mxu0 %v236
      %v322 = vpop.f32.mrb[0].mxu0
      %v323 = vadd.f32 %v202, %v322
      %v324 = vpop.f32.mrb[0].mxu0
      %v325 = vadd.f32 %v202, %v324
      %326 = vmatprep.mubr.f32.mxu0 0.0
      %327 = vmatmul.mubr.f32.gmra.mrb[0].mxu0 %v239
      %v328 = vpop.f32.mrb[0].mxu0
      %v329 = vadd.f32 %v207, %v328
      %v330 = vpop.f32.mrb[0].mxu0
      %v331 = vadd.f32 %v207, %v330
      %332 = vmatprep.mubr.f32.mxu0 0.0
      %333 = vmatmul.mubr.f32.gmra.mrb[0].mxu0 %v242
      %v334 = vpop.f32.mrb[0].mxu0
      %v335 = vadd.f32 %v212, %v334
      %v336 = vpop.f32.mrb[0].mxu0
      %v337 = vadd.f32 %v212, %v336
      %338 = vmatprep.mubr.f32.mxu0 0.0
      %339 = vmatmul.mubr.f32.gmra.mrb[0].mxu0 %v245
      %v340 = vpop.f32.mrb[0].mxu0
      %v341 = vadd.f32 %v217, %v340
      %v342 = vpop.f32.mrb[0].mxu0
      %v343 = vadd.f32 %v217, %v342
      %344 = vmatprep.mubr.f32.mxu0 0.0
      %345 = vmatmul.mubr.f32.gmra.mrb[0].mxu0 %v248
      %v346 = vpop.f32.mrb[0].mxu0
      %v347 = vadd.f32 %v222, %v346
      %v348 = vpop.f32.mrb[0].mxu0
      %v349 = vadd.f32 %v222, %v348
      %350 = vmatprep.mubr.f32.mxu0 0.0
      %351 = vmatmul.mubr.f32.gmra.mrb[0].mxu0 %v251
      %v352 = vpop.f32.mrb[0].mxu0
      %v353 = vadd.f32 %v227, %v352
      %v354 = vpop.f32.mrb[0].mxu0
      %v355 = vadd.f32 %v227, %v354
      %356 = vmatprep.mubr.f32.mxu0 0.0
      %357 = vmatmul.mubr.f32.gmra.mrb[0].mxu0 %v254
      %v358 = vpop.f32.mrb[0].mxu0
      %v359 = vadd.f32 %v232, %v358
      %v360 = vpop.f32.mrb[0].mxu0
      %v361 = vadd.f32 %v232, %v360
      %362 = vdwg.mxu0
      %v363 = vmax.f32 %v323, 0.0
      %v364 = vmax.f32 %v325, 0.0
      %v365 = vmax.f32 %v329, 0.0
      %v366 = vmax.f32 %v331, 0.0
      %v367 = vmax.f32 %v335, 0.0
      %v368 = vmax.f32 %v337, 0.0
      %v369 = vmax.f32 %v341, 0.0
      %v370 = vmax.f32 %v343, 0.0
      %v371 = vmax.f32 %v347, 0.0
      %v372 = vmax.f32 %v349, 0.0
      %v373 = vmax.f32 %v353, 0.0
      %v374 = vmax.f32 %v355, 0.0
      %v375 = vmax.f32 %v359, 0.0
      %v376 = vmax.f32 %v361, 0.0
      %s377 = scalar_lea.vmem %s1, 56
      %v378 = vld [vmem:[%s377] sm:$0xff]
      %v379 = vld [vmem:[%s377 + $0x8] sm:$0xff]
      %v380 = vld [vmem:[%s377 + $0x10] sm:$0xff]
      %v381 = vld [vmem:[%s377 + $0x18] sm:$0xff]
      %v382 = vld [vmem:[%s377 + $0x20] sm:$0xff]
      %v383 = vld [vmem:[%s377 + $0x28] sm:$0xff]
      %v384 = vld [vmem:[%s377 + $0x30] sm:$0xff]
      %s385 = scalar_lea.vmem %s2, 56
      %v386 = vld [vmem:[%s385] sm:$0xff]
      %v387 = vld [vmem:[%s385 + $0x8] sm:$0xff]
      %v388 = vld [vmem:[%s385 + $0x10] sm:$0xff]
      %v389 = vld [vmem:[%s385 + $0x18] sm:$0xff]
      %v390 = vld [vmem:[%s385 + $0x20] sm:$0xff]
      %v391 = vld [vmem:[%s385 + $0x28] sm:$0xff]
      %v392 = vld [vmem:[%s385 + $0x30] sm:$0xff]
      %394 = vset.pattern.permute.xlu0 0
      %395 = vperm.xlu0 %394, %v386
      %v396 = vpop.permute.xlu0 %395
      %399 = vset.pattern.permute.xlu0 0
      %400 = vperm.xlu0 %399, %v387
      %v401 = vpop.permute.xlu0 %400
      %404 = vset.pattern.permute.xlu0 0
      %405 = vperm.xlu0 %404, %v388
      %v406 = vpop.permute.xlu0 %405
      %409 = vset.pattern.permute.xlu0 0
      %410 = vperm.xlu0 %409, %v389
      %v411 = vpop.permute.xlu0 %410
      %414 = vset.pattern.permute.xlu0 0
      %415 = vperm.xlu0 %414, %v390
      %v416 = vpop.permute.xlu0 %415
      %419 = vset.pattern.permute.xlu0 0
      %420 = vperm.xlu0 %419, %v391
      %v421 = vpop.permute.xlu0 %420
      %424 = vset.pattern.permute.xlu0 0
      %425 = vperm.xlu0 %424, %v392
      %v426 = vpop.permute.xlu0 %425
      %v429 = vsel %vm234, %v378, 0
      %v432 = vsel %vm234, %v379, 0
      %v435 = vsel %vm234, %v380, 0
      %v438 = vsel %vm234, %v381, 0
      %v441 = vsel %vm234, %v382, 0
      %v444 = vsel %vm234, %v383, 0
      %v447 = vsel %vm234, %v384, 0
      %449 = vmatprep.subr.mxu0 %v364
      %450 = vmatpush1.msra.mxu0 %v363
      %451 = vmatprep.subr.mxu0 %v366
      %452 = vmatpush1.msra.mxu0 %v365
      %453 = vmatprep.subr.mxu0 %v368
      %454 = vmatpush1.msra.mxu0 %v367
      %455 = vmatprep.subr.mxu0 %v370
      %456 = vmatpush1.msra.mxu0 %v369
      %457 = vmatprep.subr.mxu0 %v372
      %458 = vmatpush1.msra.mxu0 %v371
      %459 = vmatprep.subr.mxu0 %v374
      %460 = vmatpush1.msra.mxu0 %v373
      %461 = vmatprep.subr.mxu0 %v376
      %462 = vmatpush1.msra.mxu0 %v375
      %463 = vmatprep.subr.mxu0 0.0
      %464 = vmatpush1.msra.mxu0 0.0
      %465 = vmatprep.subr.mxu0 0.0
      %466 = vmatpush1.msra.mxu0 0.0
      %467 = vmatprep.subr.mxu0 0.0
      %468 = vmatpush1.msra.mxu0 0.0
      %469 = vmatprep.subr.mxu0 0.0
      %470 = vmatpush1.msra.mxu0 0.0
      %471 = vmatprep.subr.mxu0 0.0
      %472 = vmatpush1.msra.mxu0 0.0
      %473 = vmatprep.subr.mxu0 0.0
      %474 = vmatpush1.msra.mxu0 0.0
      %475 = vmatprep.subr.mxu0 0.0
      %476 = vmatpush1.msra.mxu0 0.0
      %477 = vmatprep.subr.mxu0 0.0
      %478 = vmatpush1.msra.mxu0 0.0
      %479 = vmatprep.subr.mxu0 0.0
      %480 = vmatpush1.msra.mxu0 0.0
      %481 = vmatprep.subr.mxu0 0.0
      %482 = vmatpush1.msra.mxu0 0.0
      %483 = vmatprep.subr.mxu0 0.0
      %484 = vmatpush1.msra.mxu0 0.0
      %485 = vmatprep.subr.mxu0 0.0
      %486 = vmatpush1.msra.mxu0 0.0
      %487 = vmatprep.subr.mxu0 0.0
      %488 = vmatpush1.msra.mxu0 0.0
      %489 = vmatprep.subr.mxu0 0.0
      %490 = vmatpush1.msra.mxu0 0.0
      %491 = vmatprep.subr.mxu0 0.0
      %492 = vmatpush1.msra.mxu0 0.0
      %493 = vmatprep.subr.mxu0 0.0
      %494 = vmatpush1.msra.mxu0 0.0
      %495 = vmatprep.subr.mxu0 0.0
      %496 = vmatpush1.msra.mxu0 0.0
      %497 = vmatprep.subr.mxu0 0.0
      %498 = vmatpush1.msra.mxu0 0.0
      %499 = vmatprep.subr.mxu0 0.0
      %500 = vmatpush1.msra.mxu0 0.0
      %501 = vmatprep.subr.mxu0 0.0
      %502 = vmatpush1.msra.mxu0 0.0
      %503 = vmatprep.subr.mxu0 0.0
      %504 = vmatpush1.msra.mxu0 0.0
      %505 = vmatprep.subr.mxu0 0.0
      %506 = vmatpush1.msra.mxu0 0.0
      %507 = vmatprep.subr.mxu0 0.0
      %508 = vmatpush1.msra.mxu0 0.0
      %509 = vmatprep.subr.mxu0 0.0
      %510 = vmatpush1.msra.mxu0 0.0
      %511 = vmatprep.subr.mxu0 0.0
      %512 = vmatpush1.msra.mxu0 0.0
      %513 = vmatprep.mubr.f32.mxu0 0.0
      %514 = vmatmul.mubr.f32.gmra.mrb[0].mxu0 %v429
      %v515 = vpop.f32.mrb[0].mxu0
      %v516 = vadd.f32 %v396, %v515
      %v517 = vpop.f32.mrb[0].mxu0
      %v518 = vadd.f32 %v396, %v517
      %519 = vmatprep.mubr.f32.mxu0 0.0
      %520 = vmatmul.mubr.f32.gmra.mrb[0].mxu0 %v432
      %v521 = vpop.f32.mrb[0].mxu0
      %v522 = vadd.f32 %v401, %v521
      %v523 = vpop.f32.mrb[0].mxu0
      %v524 = vadd.f32 %v401, %v523
      %525 = vmatprep.mubr.f32.mxu0 0.0
      %526 = vmatmul.mubr.f32.gmra.mrb[0].mxu0 %v435
      %v527 = vpop.f32.mrb[0].mxu0
      %v528 = vadd.f32 %v406, %v527
      %v529 = vpop.f32.mrb[0].mxu0
      %v530 = vadd.f32 %v406, %v529
      %531 = vmatprep.mubr.f32.mxu0 0.0
      %532 = vmatmul.mubr.f32.gmra.mrb[0].mxu0 %v438
      %v533 = vpop.f32.mrb[0].mxu0
      %v534 = vadd.f32 %v411, %v533
      %v535 = vpop.f32.mrb[0].mxu0
      %v536 = vadd.f32 %v411, %v535
      %537 = vmatprep.mubr.f32.mxu0 0.0
      %538 = vmatmul.mubr.f32.gmra.mrb[0].mxu0 %v441
      %v539 = vpop.f32.mrb[0].mxu0
      %v540 = vadd.f32 %v416, %v539
      %v541 = vpop.f32.mrb[0].mxu0
      %v542 = vadd.f32 %v416, %v541
      %543 = vmatprep.mubr.f32.mxu0 0.0
      %544 = vmatmul.mubr.f32.gmra.mrb[0].mxu0 %v444
      %v545 = vpop.f32.mrb[0].mxu0
      %v546 = vadd.f32 %v421, %v545
      %v547 = vpop.f32.mrb[0].mxu0
      %v548 = vadd.f32 %v421, %v547
      %549 = vmatprep.mubr.f32.mxu0 0.0
      %550 = vmatmul.mubr.f32.gmra.mrb[0].mxu0 %v447
      %v551 = vpop.f32.mrb[0].mxu0
      %v552 = vadd.f32 %v426, %v551
      %v553 = vpop.f32.mrb[0].mxu0
      %v554 = vadd.f32 %v426, %v553
      %555 = vdwg.mxu0
      %v556 = vmax.f32 %v516, 0.0
      %v557 = vmax.f32 %v518, 0.0
      %v558 = vmax.f32 %v522, 0.0
      %v559 = vmax.f32 %v524, 0.0
      %v560 = vmax.f32 %v528, 0.0
      %v561 = vmax.f32 %v530, 0.0
      %v562 = vmax.f32 %v534, 0.0
      %v563 = vmax.f32 %v536, 0.0
      %v564 = vmax.f32 %v540, 0.0
      %v565 = vmax.f32 %v542, 0.0
      %v566 = vmax.f32 %v546, 0.0
      %v567 = vmax.f32 %v548, 0.0
      %v568 = vmax.f32 %v552, 0.0
      %v569 = vmax.f32 %v554, 0.0
      %s570 = scalar_lea.vmem %s1, 112
      %v571 = vld [vmem:[%s570] sm:$0xff]
      %v572 = vld [vmem:[%s570 + $0x8] sm:$0xff]
      %v573 = vld [vmem:[%s570 + $0x10] sm:$0xff]
      %v574 = vld [vmem:[%s570 + $0x18] sm:$0xff]
      %v575 = vld [vmem:[%s570 + $0x20] sm:$0xff]
      %v576 = vld [vmem:[%s570 + $0x28] sm:$0xff]
      %v577 = vld [vmem:[%s570 + $0x30] sm:$0xff]
      %s578 = scalar_lea.vmem %s2, 112
      %v579 = vld [vmem:[%s578] sm:$0xff]
      %v580 = vld [vmem:[%s578 + $0x8] sm:$0xff]
      %v581 = vld [vmem:[%s578 + $0x10] sm:$0xff]
      %v582 = vld [vmem:[%s578 + $0x18] sm:$0xff]
      %v583 = vld [vmem:[%s578 + $0x20] sm:$0xff]
      %v584 = vld [vmem:[%s578 + $0x28] sm:$0xff]
      %v585 = vld [vmem:[%s578 + $0x30] sm:$0xff]
      %587 = vset.pattern.permute.xlu0 0
      %588 = vperm.xlu0 %587, %v579
      %v589 = vpop.permute.xlu0 %588
      %592 = vset.pattern.permute.xlu0 0
      %593 = vperm.xlu0 %592, %v580
      %v594 = vpop.permute.xlu0 %593
      %597 = vset.pattern.permute.xlu0 0
      %598 = vperm.xlu0 %597, %v581
      %v599 = vpop.permute.xlu0 %598
      %601 = vset.pattern.permute.xlu0 0
      %602 = vperm.xlu0 %601, %v582
      %v603 = vpop.permute.xlu0 %602
      %605 = vset.pattern.permute.xlu0 0
      %606 = vperm.xlu0 %605, %v583
      %v607 = vpop.permute.xlu0 %606
      %609 = vset.pattern.permute.xlu0 0
      %610 = vperm.xlu0 %609, %v584
      %v611 = vpop.permute.xlu0 %610
      %613 = vset.pattern.permute.xlu0 0
      %614 = vperm.xlu0 %613, %v585
      %v615 = vpop.permute.xlu0 %614
      %v617 = vsel %vm234, %v571, 0
      %v620 = vsel %vm234, %v572, 0
      %v623 = vsel %vm234, %v573, 0
      %v626 = vsel %vm234, %v574, 0
      %v629 = vsel %vm234, %v575, 0
      %v632 = vsel %vm234, %v576, 0
      %v635 = vsel %vm234, %v577, 0
      %637 = vmatprep.subr.mxu0 %v557
      %638 = vmatpush1.msra.mxu0 %v556
      %639 = vmatprep.subr.mxu0 %v559
      %640 = vmatpush1.msra.mxu0 %v558
      %641 = vmatprep.subr.mxu0 %v561
      %642 = vmatpush1.msra.mxu0 %v560
      %643 = vmatprep.subr.mxu0 %v563
      %644 = vmatpush1.msra.mxu0 %v562
      %645 = vmatprep.subr.mxu0 %v565
      %646 = vmatpush1.msra.mxu0 %v564
      %647 = vmatprep.subr.mxu0 %v567
      %648 = vmatpush1.msra.mxu0 %v566
      %649 = vmatprep.subr.mxu0 %v569
      %650 = vmatpush1.msra.mxu0 %v568
      %651 = vmatprep.subr.mxu0 0.0
      %652 = vmatpush1.msra.mxu0 0.0
      %653 = vmatprep.subr.mxu0 0.0
      %654 = vmatpush1.msra.mxu0 0.0
      %655 = vmatprep.subr.mxu0 0.0
      %656 = vmatpush1.msra.mxu0 0.0
      %657 = vmatprep.subr.mxu0 0.0
      %658 = vmatpush1.msra.mxu0 0.0
      %659 = vmatprep.subr.mxu0 0.0
      %660 = vmatpush1.msra.mxu0 0.0
      %661 = vmatprep.subr.mxu0 0.0
      %662 = vmatpush1.msra.mxu0 0.0
      %663 = vmatprep.subr.mxu0 0.0
      %664 = vmatpush1.msra.mxu0 0.0
      %665 = vmatprep.subr.mxu0 0.0
      %666 = vmatpush1.msra.mxu0 0.0
      %667 = vmatprep.subr.mxu0 0.0
      %668 = vmatpush1.msra.mxu0 0.0
      %669 = vmatprep.subr.mxu0 0.0
      %670 = vmatpush1.msra.mxu0 0.0
      %671 = vmatprep.subr.mxu0 0.0
      %672 = vmatpush1.msra.mxu0 0.0
      %673 = vmatprep.subr.mxu0 0.0
      %674 = vmatpush1.msra.mxu0 0.0
      %675 = vmatprep.subr.mxu0 0.0
      %676 = vmatpush1.msra.mxu0 0.0
      %677 = vmatprep.subr.mxu0 0.0
      %678 = vmatpush1.msra.mxu0 0.0
      %679 = vmatprep.subr.mxu0 0.0
      %680 = vmatpush1.msra.mxu0 0.0
      %681 = vmatprep.subr.mxu0 0.0
      %682 = vmatpush1.msra.mxu0 0.0
      %683 = vmatprep.subr.mxu0 0.0
      %684 = vmatpush1.msra.mxu0 0.0
      %685 = vmatprep.subr.mxu0 0.0
      %686 = vmatpush1.msra.mxu0 0.0
      %687 = vmatprep.subr.mxu0 0.0
      %688 = vmatpush1.msra.mxu0 0.0
      %689 = vmatprep.subr.mxu0 0.0
      %690 = vmatpush1.msra.mxu0 0.0
      %691 = vmatprep.subr.mxu0 0.0
      %692 = vmatpush1.msra.mxu0 0.0
      %693 = vmatprep.subr.mxu0 0.0
      %694 = vmatpush1.msra.mxu0 0.0
      %695 = vmatprep.subr.mxu0 0.0
      %696 = vmatpush1.msra.mxu0 0.0
      %697 = vmatprep.subr.mxu0 0.0
      %698 = vmatpush1.msra.mxu0 0.0
      %699 = vmatprep.subr.mxu0 0.0
      %700 = vmatpush1.msra.mxu0 0.0
      %701 = vmatprep.mubr.f32.mxu0 0.0
      %702 = vmatmul.mubr.f32.gmra.mrb[0].mxu0 %v617
      %v703 = vpop.f32.mrb[0].mxu0
      %v704 = vadd.f32 %v589, %v703
      %v705 = vpop.f32.mrb[0].mxu0
      %v706 = vadd.f32 %v589, %v705
      %707 = vmatprep.mubr.f32.mxu0 0.0
      %708 = vmatmul.mubr.f32.gmra.mrb[0].mxu0 %v620
      %v709 = vpop.f32.mrb[0].mxu0
      %v710 = vadd.f32 %v594, %v709
      %v711 = vpop.f32.mrb[0].mxu0
      %v712 = vadd.f32 %v594, %v711
      %713 = vmatprep.mubr.f32.mxu0 0.0
      %714 = vmatmul.mubr.f32.gmra.mrb[0].mxu0 %v623
      %v715 = vpop.f32.mrb[0].mxu0
      %v716 = vpop.f32.mrb[0].mxu0
      %717 = vmatprep.mubr.f32.mxu0 0.0
      %718 = vmatmul.mubr.f32.gmra.mrb[0].mxu0 %v626
      %v719 = vpop.f32.mrb[0].mxu0
      %v720 = vpop.f32.mrb[0].mxu0
      %721 = vmatprep.mubr.f32.mxu0 0.0
      %722 = vmatmul.mubr.f32.gmra.mrb[0].mxu0 %v629
      %v723 = vpop.f32.mrb[0].mxu0
      %v724 = vpop.f32.mrb[0].mxu0
      %725 = vmatprep.mubr.f32.mxu0 0.0
      %726 = vmatmul.mubr.f32.gmra.mrb[0].mxu0 %v632
      %v727 = vpop.f32.mrb[0].mxu0
      %v728 = vpop.f32.mrb[0].mxu0
      %729 = vmatprep.mubr.f32.mxu0 0.0
      %730 = vmatmul.mubr.f32.gmra.mrb[0].mxu0 %v635
      %v731 = vpop.f32.mrb[0].mxu0
      %v732 = vpop.f32.mrb[0].mxu0
      %733 = vdwg.mxu0
      %v734 = vmax.f32 %v704, 0.0
      %v735 = vmax.f32 %v706, 0.0
      %v736 = vmax.f32 %v710, 0.0
      %v737 = vmax.f32 %v712, 0.0
      %v738 = vmax.f32 %v734, %v735
      %v739 = vmax.f32 %v736, %v737
      %740 = vst [vmem:[%s170] sm:$0xff] %v738
      %741 = vst [vmem:[%s170 + $0x8] sm:$0xff] %v739
      %p742 = scmp.lt.s32.totalorder %s14, 1
      %s743 = scalar_select %p742, %s14, 1
      %s744 = smul.addr %s743, 2
      %s745 = smul.addr %s744, 8
      %s746 = scalar_lea.vmem %s3, %s745
      // Predicated region
      $region33: #{pointnet2_msg_forward.12} parent=31 // pred_check
        %p747 = pneg %p100
      $region34: #{pointnet2_msg_forward.12} parent=31 // pred_check_branch
        %749 = sbr.rel (%p747) target = $region36
      $region35: #{pointnet2_msg_forward.12} parent=31 // pred_region
        _
      $region36: #{pointnet2_msg_forward.12} parent=31 // pred_fallthru
        _
    $region32: #{pointnet2_msg_forward.12} parent=5 // pred_fallthru
      _
    %p750 = scmp.le.s32.totalorder 2, %s9
    // Predicated region
    $region37: #{pointnet2_msg_forward.12} parent=5 // pred_check
      %p751 = pneg %p750
    $region38: #{pointnet2_msg_forward.12} parent=5 // pred_check_branch
      %753 = sbr.rel (%p751) target = $region40
    $region39: #{pointnet2_msg_forward.12} parent=5 // pred_region
      %s754 = ssub.s32 %s9, 2
      // Predicated region
      $region41: #{pointnet2_msg_forward.12} parent=39 // pred_check
        %p755 = pneg %p106
      $region42: #{pointnet2_msg_forward.12} parent=39 // pred_check_branch
        %757 = sbr.rel (%p755) target = $region44
      $region43: #{pointnet2_msg_forward.12} parent=39 // pred_region
        %p758 = scmp.lt.s32.totalorder %s15, 1
        %s759 = scalar_select %p758, %s15, 1
        %s760 = smul.addr %s759, 2
        %s761 = smul.addr %s760, 8
        %s762 = scalar_lea.vmem %s3, %s761
      $region44: #{pointnet2_msg_forward.12} parent=39 // pred_fallthru
        _
    $region40: #{pointnet2_msg_forward.12} parent=5 // pred_fallthru
      _
  $region6: #{pointnet2_msg_forward.12} parent=0 // loop_footer
    %s13 = sadd.s32 1, %s9
  $region7: #{pointnet2_msg_forward.12} parent=0 // loop_footer_branch
    %8 = sbr.rel target = $region3
  $region8: #{pointnet2_msg_forward.12} parent=0 // loop_exit
    _

// kernel: pointnet2_msg_forward.13
$region0: #{pointnet2_msg_forward.13}
  #allocation0 [shape = 'u32[]', space=smem, size = 0x4, offset = 0x4, fixed_abs, tag = 'smem constant byte address 0x4 - core index']
  #allocation1 [shape = 'u32[144,128]{1,0:T(1,128)}', space=vmem, size = 0x12000, scoped, tag = 'internal scratch']
  %s0 = inlined_call_operand.vmem [shape: f32[2,56,1024], index: 0, kind: input, shape index: {}]
  %s1 = inlined_call_operand.vmem [shape: f32[3,56,56], index: 1, kind: input, shape index: {}]
  %s2 = inlined_call_operand.vmem [shape: f32[3,56,1], index: 2, kind: input, shape index: {}]
  %s3 = inlined_call_operand.vmem [shape: f32[2,32,128], index: 3, kind: output, shape index: {}]
  %s4 = sld [smem:[#allocation0]]
  $region45: #{pointnet2_msg_forward.13} parent=0
    _
  %s6 = ssub.s32 1, %s4
  %s7 = scalar_select 0, %s6, %s4
  loop: start=0, step=1, limit=4
  $region2: #{pointnet2_msg_forward.13} parent=0 // loop_pre_header
    _
  $region3: #{pointnet2_msg_forward.13} parent=0 // loop_header
    %s9 = sphi 0, %s13
    %p10 = scmp.ge.s32.totalorder %s9, 4
    %s19 = sphi 0, %s21
    %s22 = sphi 0, %s19
    %s23 = sphi 0, %s22
    %s39 = sphi 0, %s23
    %s43 = sphi 0, %s43
    %s45 = sphi 0, %s43
    %s46 = sphi 0, %s45
    %s60 = sphi 0, %s46
    %s64 = sphi 0, %s64
    %s66 = sphi 0, %s64
    %s67 = sphi 0, %s66
    %s81 = sphi 0, %s67
    %s87 = sphi 0, %s89
    %s90 = sphi 0, %s87
    %s91 = sphi 0, %s90
    %s107 = sphi 0, %s91
  $region4: #{pointnet2_msg_forward.13} parent=0 // loop_header_branch
    %12 = sbr.rel (%p10) target = $region8
  $region5: #{pointnet2_msg_forward.13} parent=0 // loop_body
    %s14 = ssub.s32 %s9, 1
    %s15 = ssub.s32 %s9, 2
    %s16 = sadd.s32 %s9, 1
    %s17 = ssub.s32 %s9, %s16
    %p18 = scmp.eq.s32.totalorder %s17, 0
    %s20 = sadd.s32 %s19, 1
    %s21 = scalar_select %p18, %s19, %s20
    %p24 = pneg %p18
    %p25 = scmp.eq.s32.totalorder %s9, 1
    %p26 = por %p24, %p25
    %p27 = scmp.ne.s32.totalorder %s19, %s22
    %p28 = scmp.eq.s32.totalorder %s9, 0
    %p29 = por %p27, %p28
    %p30 = scmp.ne.s32.totalorder %s19, %s22
    %p31 = scmp.eq.s32.totalorder %s14, 1
    %p32 = por %p30, %p31
    %p33 = scmp.ne.s32.totalorder %s22, %s23
    %p34 = scmp.eq.s32.totalorder %s14, 0
    %p35 = por %p33, %p34
    %p36 = scmp.ne.s32.totalorder %s22, %s23
    %p37 = scmp.eq.s32.totalorder %s15, 1
    %p38 = por %p36, %p37
    %p40 = scmp.ne.s32.totalorder %s23, %s39
    %p41 = scmp.eq.s32.totalorder %s15, 0
    %p42 = por %p40, %p41
    %s44 = sadd.s32 %s43, 1
    %p47 = scmp.eq.s32.totalorder %s9, 1
    %p48 = scmp.ne.s32.totalorder %s43, %s45
    %p49 = scmp.eq.s32.totalorder %s9, 0
    %p50 = por %p48, %p49
    %p51 = scmp.ne.s32.totalorder %s43, %s45
    %p52 = scmp.eq.s32.totalorder %s14, 1
    %p53 = por %p51, %p52
    %p54 = scmp.ne.s32.totalorder %s45, %s46
    %p55 = scmp.eq.s32.totalorder %s14, 0
    %p56 = por %p54, %p55
    %p57 = scmp.ne.s32.totalorder %s45, %s46
    %p58 = scmp.eq.s32.totalorder %s15, 1
    %p59 = por %p57, %p58
    %p61 = scmp.ne.s32.totalorder %s46, %s60
    %p62 = scmp.eq.s32.totalorder %s15, 0
    %p63 = por %p61, %p62
    %s65 = sadd.s32 %s64, 1
    %p68 = scmp.eq.s32.totalorder %s9, 1
    %p69 = scmp.ne.s32.totalorder %s64, %s66
    %p70 = scmp.eq.s32.totalorder %s9, 0
    %p71 = por %p69, %p70
    %p72 = scmp.ne.s32.totalorder %s64, %s66
    %p73 = scmp.eq.s32.totalorder %s14, 1
    %p74 = por %p72, %p73
    %p75 = scmp.ne.s32.totalorder %s66, %s67
    %p76 = scmp.eq.s32.totalorder %s14, 0
    %p77 = por %p75, %p76
    %p78 = scmp.ne.s32.totalorder %s66, %s67
    %p79 = scmp.eq.s32.totalorder %s15, 1
    %p80 = por %p78, %p79
    %p82 = scmp.ne.s32.totalorder %s67, %s81
    %p83 = scmp.eq.s32.totalorder %s15, 0
    %p84 = por %p82, %p83
    %s85 = ssub.s32 %s9, %s16
    %p86 = scmp.eq.s32.totalorder %s85, 0
    %s88 = sadd.s32 %s87, 1
    %s89 = scalar_select %p86, %s87, %s88
    %p92 = pneg %p86
    %p93 = scmp.eq.s32.totalorder %s9, 1
    %p94 = por %p92, %p93
    %p95 = scmp.ne.s32.totalorder %s87, %s90
    %p96 = scmp.eq.s32.totalorder %s9, 0
    %p97 = por %p95, %p96
    %p98 = scmp.ne.s32.totalorder %s87, %s90
    %p99 = scmp.eq.s32.totalorder %s14, 1
    %p100 = por %p98, %p99
    %p101 = scmp.ne.s32.totalorder %s90, %s91
    %p102 = scmp.eq.s32.totalorder %s14, 0
    %p103 = por %p101, %p102
    %p104 = scmp.ne.s32.totalorder %s90, %s91
    %p105 = scmp.eq.s32.totalorder %s15, 1
    %p106 = por %p104, %p105
    %p108 = scmp.ne.s32.totalorder %s91, %s107
    %p109 = scmp.eq.s32.totalorder %s15, 0
    %p110 = por %p108, %p109
    %p111 = scmp.le.s32.totalorder 1, %s9
    %p112 = scmp.lt.s32.totalorder %s9, 3
    %p113 = pnand %p111, %p112
    %p114 = pneg %p113
    // Predicated region
    $region9: #{pointnet2_msg_forward.13} parent=5 // pred_check
      _
    $region10: #{pointnet2_msg_forward.13} parent=5 // pred_check_branch
      %116 = sbr.rel (%p113) target = $region12
    $region11: #{pointnet2_msg_forward.13} parent=5 // pred_region
      %s117 = ssub.s32 %s9, 1
      // Predicated region
      $region13: #{pointnet2_msg_forward.13} parent=11 // pred_check
        %p118 = pneg %p56
      $region14: #{pointnet2_msg_forward.13} parent=11 // pred_check_branch
        %120 = sbr.rel (%p118) target = $region16
      $region15: #{pointnet2_msg_forward.13} parent=11 // pred_region
        _
      $region16: #{pointnet2_msg_forward.13} parent=11 // pred_fallthru
        _
      // Predicated region
      $region17: #{pointnet2_msg_forward.13} parent=11 // pred_check
        %p121 = pneg %p77
      $region18: #{pointnet2_msg_forward.13} parent=11 // pred_check_branch
        %123 = sbr.rel (%p121) target = $region20
      $region19: #{pointnet2_msg_forward.13} parent=11 // pred_region
        _
      $region20: #{pointnet2_msg_forward.13} parent=11 // pred_fallthru
        _
    $region12: #{pointnet2_msg_forward.13} parent=5 // pred_fallthru
      _
    %p124 = scmp.lt.s32.totalorder %s9, 2
    // Predicated region
    $region21: #{pointnet2_msg_forward.13} parent=5 // pred_check
      %p125 = pneg %p124
    $region22: #{pointnet2_msg_forward.13} parent=5 // pred_check_branch
      %127 = sbr.rel (%p125) target = $region24
    $region23: #{pointnet2_msg_forward.13} parent=5 // pred_region
      // Predicated region
      $region25: #{pointnet2_msg_forward.13} parent=23 // pred_check
        %p128 = pneg %p29
      $region26: #{pointnet2_msg_forward.13} parent=23 // pred_check_branch
        %130 = sbr.rel (%p128) target = $region28
      $region27: #{pointnet2_msg_forward.13} parent=23 // pred_region
        %p131 = scmp.lt.s32.totalorder %s9, 1
        %s132 = scalar_select %p131, %s9, 1
        %s133 = smul.addr %s132, 56
        %s134 = smul.addr %s133, 8
        %s135 = scalar_lea.vmem %s0, %s134
      $region28: #{pointnet2_msg_forward.13} parent=23 // pred_fallthru
        _
    $region24: #{pointnet2_msg_forward.13} parent=5 // pred_fallthru
      _
    %p136 = scmp.le.s32.totalorder 1, %s9
    %p137 = scmp.lt.s32.totalorder %s9, 3
    %p138 = pnand %p136, %p137
    %p139 = pneg %p138
    // Predicated region
    $region29: #{pointnet2_msg_forward.13} parent=5 // pred_check
      _
    $region30: #{pointnet2_msg_forward.13} parent=5 // pred_check_branch
      %141 = sbr.rel (%p138) target = $region32
    $region31: #{pointnet2_msg_forward.13} parent=5 // pred_region
      %s142 = ssub.s32 %s9, 1
      %p143 = scmp.lt.s32.totalorder %s14, 1
      %s144 = scalar_select %p143, %s14, 1
      %s145 = smul.addr %s144, 56
      %s146 = smul.addr %s145, 8
      %s147 = scalar_lea.vmem %s0, %s146
      %p148 = pneg %p35
      %p149 = pneg %p32
      %p150 = pneg %p56
      %p151 = pneg %p53
      %p152 = pneg %p77
      %p153 = pneg %p74
      %p154 = pneg %p103
      %p155 = pneg %p100
      %p156 = scmp.lt.s32.totalorder %s14, 1
      %s157 = scalar_select %p156, %s14, 1
      %s158 = smul.addr %s157, 4
      %s159 = smul.addr %s158, 8
      %s160 = scalar_lea.vmem %s3, %s159
      %p161 = scmp.lt.s32.totalorder %s14, 1
      %s162 = scalar_select %p161, %s14, 1
      %s163 = smul.addr %s162, 56
      %s164 = smul.addr %s163, 8
      %s165 = scalar_lea.vmem %s0, %s164
      %p166 = scmp.lt.s32.totalorder %s14, 1
      %s167 = scalar_select %p166, %s14, 1
      %s168 = smul.addr %s167, 4
      %s169 = smul.addr %s168, 8
      %s170 = scalar_lea.vmem %s3, %s169
      %v171 = vld [vmem:[%s165] sm:$0xff]
      %v172 = vld [vmem:[%s165 + $0x8] sm:$0xff]
      %v173 = vld [vmem:[%s165 + $0x10] sm:$0xff]
      %v174 = vld [vmem:[%s165 + $0x18] sm:$0xff]
      %v175 = vld [vmem:[%s165 + $0x20] sm:$0xff]
      %v176 = vld [vmem:[%s165 + $0x28] sm:$0xff]
      %v177 = vld [vmem:[%s165 + $0x30] sm:$0xff]
      %v178 = vld [vmem:[%s165 + $0x38] sm:$0xff]
      %v179 = vld [vmem:[%s165 + $0x40] sm:$0xff]
      %v180 = vld [vmem:[%s165 + $0x48] sm:$0xff]
      %v181 = vld [vmem:[%s165 + $0x50] sm:$0xff]
      %v182 = vld [vmem:[%s165 + $0x58] sm:$0xff]
      %v183 = vld [vmem:[%s165 + $0x60] sm:$0xff]
      %v184 = vld [vmem:[%s165 + $0x68] sm:$0xff]
      %v185 = vld [vmem:[%s165 + $0x70] sm:$0xff]
      %v186 = vld [vmem:[%s165 + $0x78] sm:$0xff]
      %v187 = vld [vmem:[%s165 + $0x80] sm:$0xff]
      %v188 = vld [vmem:[%s165 + $0x88] sm:$0xff]
      %v189 = vld [vmem:[%s165 + $0x90] sm:$0xff]
      %v190 = vld [vmem:[%s165 + $0x98] sm:$0xff]
      %v191 = vld [vmem:[%s165 + $0xa0] sm:$0xff]
      %v192 = vld [vmem:[%s165 + $0xa8] sm:$0xff]
      %v193 = vld [vmem:[%s165 + $0xb0] sm:$0xff]
      %v194 = vld [vmem:[%s165 + $0xb8] sm:$0xff]
      %v195 = vld [vmem:[%s165 + $0xc0] sm:$0xff]
      %v196 = vld [vmem:[%s165 + $0xc8] sm:$0xff]
      %v197 = vld [vmem:[%s165 + $0xd0] sm:$0xff]
      %v198 = vld [vmem:[%s165 + $0xd8] sm:$0xff]
      %v199 = vld [vmem:[%s165 + $0xe0] sm:$0xff]
      %v200 = vld [vmem:[%s165 + $0xe8] sm:$0xff]
      %v201 = vld [vmem:[%s165 + $0xf0] sm:$0xff]
      %v202 = vld [vmem:[%s165 + $0xf8] sm:$0xff]
      %v203 = vld [vmem:[%s165 + $0x100] sm:$0xff]
      %v204 = vld [vmem:[%s165 + $0x108] sm:$0xff]
      %v205 = vld [vmem:[%s165 + $0x110] sm:$0xff]
      %v206 = vld [vmem:[%s165 + $0x118] sm:$0xff]
      %v207 = vld [vmem:[%s165 + $0x120] sm:$0xff]
      %v208 = vld [vmem:[%s165 + $0x128] sm:$0xff]
      %v209 = vld [vmem:[%s165 + $0x130] sm:$0xff]
      %v210 = vld [vmem:[%s165 + $0x138] sm:$0xff]
      %v211 = vld [vmem:[%s165 + $0x140] sm:$0xff]
      %v212 = vld [vmem:[%s165 + $0x148] sm:$0xff]
      %v213 = vld [vmem:[%s165 + $0x150] sm:$0xff]
      %v214 = vld [vmem:[%s165 + $0x158] sm:$0xff]
      %v215 = vld [vmem:[%s165 + $0x160] sm:$0xff]
      %v216 = vld [vmem:[%s165 + $0x168] sm:$0xff]
      %v217 = vld [vmem:[%s165 + $0x170] sm:$0xff]
      %v218 = vld [vmem:[%s165 + $0x178] sm:$0xff]
      %v219 = vld [vmem:[%s165 + $0x180] sm:$0xff]
      %v220 = vld [vmem:[%s165 + $0x188] sm:$0xff]
      %v221 = vld [vmem:[%s165 + $0x190] sm:$0xff]
      %v222 = vld [vmem:[%s165 + $0x198] sm:$0xff]
      %v223 = vld [vmem:[%s165 + $0x1a0] sm:$0xff]
      %v224 = vld [vmem:[%s165 + $0x1a8] sm:$0xff]
      %v225 = vld [vmem:[%s165 + $0x1b0] sm:$0xff]
      %v226 = vld [vmem:[%s165 + $0x1b8] sm:$0xff]
      %v227 = vld [vmem:[%s1] sm:$0xff]
      %v228 = vld [vmem:[%s1 + $0x8] sm:$0xff]
      %v229 = vld [vmem:[%s1 + $0x10] sm:$0xff]
      %v230 = vld [vmem:[%s1 + $0x18] sm:$0xff]
      %v231 = vld [vmem:[%s1 + $0x20] sm:$0xff]
      %v232 = vld [vmem:[%s1 + $0x28] sm:$0xff]
      %v233 = vld [vmem:[%s1 + $0x30] sm:$0xff]
      %v234 = vld [vmem:[%s2] sm:$0xff]
      %v235 = vld [vmem:[%s2 + $0x8] sm:$0xff]
      %v236 = vld [vmem:[%s2 + $0x10] sm:$0xff]
      %v237 = vld [vmem:[%s2 + $0x18] sm:$0xff]
      %v238 = vld [vmem:[%s2 + $0x20] sm:$0xff]
      %v239 = vld [vmem:[%s2 + $0x28] sm:$0xff]
      %v240 = vld [vmem:[%s2 + $0x30] sm:$0xff]
      %242 = vset.pattern.permute.xlu0 0
      %243 = vperm.xlu0 %242, %v234
      %v244 = vpop.permute.xlu0 %243
      %247 = vset.pattern.permute.xlu0 0
      %248 = vperm.xlu0 %247, %v235
      %v249 = vpop.permute.xlu0 %248
      %252 = vset.pattern.permute.xlu0 0
      %253 = vperm.xlu0 %252, %v236
      %v254 = vpop.permute.xlu0 %253
      %257 = vset.pattern.permute.xlu0 0
      %258 = vperm.xlu0 %257, %v237
      %v259 = vpop.permute.xlu0 %258
      %262 = vset.pattern.permute.xlu0 0
      %263 = vperm.xlu0 %262, %v238
      %v264 = vpop.permute.xlu0 %263
      %267 = vset.pattern.permute.xlu0 0
      %268 = vperm.xlu0 %267, %v239
      %v269 = vpop.permute.xlu0 %268
      %272 = vset.pattern.permute.xlu0 0
      %273 = vperm.xlu0 %272, %v240
      %v274 = vpop.permute.xlu0 %273
      %vm276 = vcmask 457728
      %v278 = vsel %vm276, %v227, 0
      %v281 = vsel %vm276, %v228, 0
      %v284 = vsel %vm276, %v229, 0
      %v287 = vsel %vm276, %v230, 0
      %v290 = vsel %vm276, %v231, 0
      %v293 = vsel %vm276, %v232, 0
      %v296 = vsel %vm276, %v233, 0
      %298 = vmatprep.subr.mxu0 %v172
      %299 = vmatpush1.msra.mxu0 %v171
      %300 = vmatprep.subr.mxu0 %v180
      %301 = vmatpush1.msra.mxu0 %v179
      %302 = vmatprep.subr.mxu0 %v188
      %303 = vmatpush1.msra.mxu0 %v187
      %304 = vmatprep.subr.mxu0 %v196
      %305 = vmatpush1.msra.mxu0 %v195
      %306 = vmatprep.subr.mxu0 %v204
      %307 = vmatpush1.msra.mxu0 %v203
      %308 = vmatprep.subr.mxu0 %v212
      %309 = vmatpush1.msra.mxu0 %v211
      %310 = vmatprep.subr.mxu0 %v220
      %311 = vmatpush1.msra.mxu0 %v219
      %312 = vmatprep.subr.mxu0 0.0
      %313 = vmatpush1.msra.mxu0 0.0
      %314 = vmatprep.subr.mxu0 0.0
      %315 = vmatpush1.msra.mxu0 0.0
      %316 = vmatprep.subr.mxu0 0.0
      %317 = vmatpush1.msra.mxu0 0.0
      %318 = vmatprep.subr.mxu0 0.0
      %319 = vmatpush1.msra.mxu0 0.0
      %320 = vmatprep.subr.mxu0 0.0
      %321 = vmatpush1.msra.mxu0 0.0
      %322 = vmatprep.subr.mxu0 0.0
      %323 = vmatpush1.msra.mxu0 0.0
      %324 = vmatprep.subr.mxu0 0.0
      %325 = vmatpush1.msra.mxu0 0.0
      %326 = vmatprep.subr.mxu0 0.0
      %327 = vmatpush1.msra.mxu0 0.0
      %328 = vmatprep.subr.mxu0 0.0
      %329 = vmatpush1.msra.mxu0 0.0
      %330 = vmatprep.subr.mxu0 0.0
      %331 = vmatpush1.msra.mxu0 0.0
      %332 = vmatprep.subr.mxu0 0.0
      %333 = vmatpush1.msra.mxu0 0.0
      %334 = vmatprep.subr.mxu0 0.0
      %335 = vmatpush1.msra.mxu0 0.0
      %336 = vmatprep.subr.mxu0 0.0
      %337 = vmatpush1.msra.mxu0 0.0
      %338 = vmatprep.subr.mxu0 0.0
      %339 = vmatpush1.msra.mxu0 0.0
      %340 = vmatprep.subr.mxu0 0.0
      %341 = vmatpush1.msra.mxu0 0.0
      %342 = vmatprep.subr.mxu0 0.0
      %343 = vmatpush1.msra.mxu0 0.0
      %344 = vmatprep.subr.mxu0 0.0
      %345 = vmatpush1.msra.mxu0 0.0
      %346 = vmatprep.subr.mxu0 0.0
      %347 = vmatpush1.msra.mxu0 0.0
      %348 = vmatprep.subr.mxu0 0.0
      %349 = vmatpush1.msra.mxu0 0.0
      %350 = vmatprep.subr.mxu0 0.0
      %351 = vmatpush1.msra.mxu0 0.0
      %352 = vmatprep.subr.mxu0 0.0
      %353 = vmatpush1.msra.mxu0 0.0
      %354 = vmatprep.subr.mxu0 0.0
      %355 = vmatpush1.msra.mxu0 0.0
      %356 = vmatprep.subr.mxu0 0.0
      %357 = vmatpush1.msra.mxu0 0.0
      %358 = vmatprep.subr.mxu0 0.0
      %359 = vmatpush1.msra.mxu0 0.0
      %360 = vmatprep.subr.mxu0 0.0
      %361 = vmatpush1.msra.mxu0 0.0
      %362 = vmatprep.mubr.f32.mxu0 0.0
      %363 = vmatmul.mubr.f32.gmra.mrb[0].mxu0 %v278
      %v364 = vpop.f32.mrb[0].mxu0
      %v365 = vadd.f32 %v244, %v364
      %v366 = vpop.f32.mrb[0].mxu0
      %v367 = vadd.f32 %v244, %v366
      %368 = vmatprep.mubr.f32.mxu0 0.0
      %369 = vmatmul.mubr.f32.gmra.mrb[0].mxu0 %v281
      %v370 = vpop.f32.mrb[0].mxu0
      %v371 = vadd.f32 %v249, %v370
      %v372 = vpop.f32.mrb[0].mxu0
      %v373 = vadd.f32 %v249, %v372
      %374 = vmatprep.mubr.f32.mxu0 0.0
      %375 = vmatmul.mubr.f32.gmra.mrb[0].mxu0 %v284
      %v376 = vpop.f32.mrb[0].mxu0
      %v377 = vadd.f32 %v254, %v376
      %v378 = vpop.f32.mrb[0].mxu0
      %v379 = vadd.f32 %v254, %v378
      %380 = vmatprep.mubr.f32.mxu0 0.0
      %381 = vmatmul.mubr.f32.gmra.mrb[0].mxu0 %v287
      %v382 = vpop.f32.mrb[0].mxu0
      %v383 = vadd.f32 %v259, %v382
      %v384 = vpop.f32.mrb[0].mxu0
      %v385 = vadd.f32 %v259, %v384
      %386 = vmatprep.mubr.f32.mxu0 0.0
      %387 = vmatmul.mubr.f32.gmra.mrb[0].mxu0 %v290
      %v388 = vpop.f32.mrb[0].mxu0
      %v389 = vadd.f32 %v264, %v388
      %v390 = vpop.f32.mrb[0].mxu0
      %v391 = vadd.f32 %v264, %v390
      %392 = vmatprep.mubr.f32.mxu0 0.0
      %393 = vmatmul.mubr.f32.gmra.mrb[0].mxu0 %v293
      %v394 = vpop.f32.mrb[0].mxu0
      %v395 = vadd.f32 %v269, %v394
      %v396 = vpop.f32.mrb[0].mxu0
      %v397 = vadd.f32 %v269, %v396
      %398 = vmatprep.mubr.f32.mxu0 0.0
      %399 = vmatmul.mubr.f32.gmra.mrb[0].mxu0 %v296
      %v400 = vpop.f32.mrb[0].mxu0
      %v401 = vadd.f32 %v274, %v400
      %v402 = vpop.f32.mrb[0].mxu0
      %v403 = vadd.f32 %v274, %v402
      %404 = vdwg.mxu0
      %405 = vmatprep.subr.mxu0 %v174
      %406 = vmatpush1.msra.mxu0 %v173
      %407 = vmatprep.subr.mxu0 %v182
      %408 = vmatpush1.msra.mxu0 %v181
      %409 = vmatprep.subr.mxu0 %v190
      %410 = vmatpush1.msra.mxu0 %v189
      %411 = vmatprep.subr.mxu0 %v198
      %412 = vmatpush1.msra.mxu0 %v197
      %413 = vmatprep.subr.mxu0 %v206
      %414 = vmatpush1.msra.mxu0 %v205
      %415 = vmatprep.subr.mxu0 %v214
      %416 = vmatpush1.msra.mxu0 %v213
      %417 = vmatprep.subr.mxu0 %v222
      %418 = vmatpush1.msra.mxu0 %v221
      %419 = vmatprep.subr.mxu0 0.0
      %420 = vmatpush1.msra.mxu0 0.0
      %421 = vmatprep.subr.mxu0 0.0
      %422 = vmatpush1.msra.mxu0 0.0
      %423 = vmatprep.subr.mxu0 0.0
      %424 = vmatpush1.msra.mxu0 0.0
      %425 = vmatprep.subr.mxu0 0.0
      %426 = vmatpush1.msra.mxu0 0.0
      %427 = vmatprep.subr.mxu0 0.0
      %428 = vmatpush1.msra.mxu0 0.0
      %429 = vmatprep.subr.mxu0 0.0
      %430 = vmatpush1.msra.mxu0 0.0
      %431 = vmatprep.subr.mxu0 0.0
      %432 = vmatpush1.msra.mxu0 0.0
      %433 = vmatprep.subr.mxu0 0.0
      %434 = vmatpush1.msra.mxu0 0.0
      %435 = vmatprep.subr.mxu0 0.0
      %436 = vmatpush1.msra.mxu0 0.0
      %437 = vmatprep.subr.mxu0 0.0
      %438 = vmatpush1.msra.mxu0 0.0
      %439 = vmatprep.subr.mxu0 0.0
      %440 = vmatpush1.msra.mxu0 0.0
      %441 = vmatprep.subr.mxu0 0.0
      %442 = vmatpush1.msra.mxu0 0.0
      %443 = vmatprep.subr.mxu0 0.0
      %444 = vmatpush1.msra.mxu0 0.0
      %445 = vmatprep.subr.mxu0 0.0
      %446 = vmatpush1.msra.mxu0 0.0
      %447 = vmatprep.subr.mxu0 0.0
      %448 = vmatpush1.msra.mxu0 0.0
      %449 = vmatprep.subr.mxu0 0.0
      %450 = vmatpush1.msra.mxu0 0.0
      %451 = vmatprep.subr.mxu0 0.0
      %452 = vmatpush1.msra.mxu0 0.0
      %453 = vmatprep.subr.mxu0 0.0
      %454 = vmatpush1.msra.mxu0 0.0
      %455 = vmatprep.subr.mxu0 0.0
      %456 = vmatpush1.msra.mxu0 0.0
      %457 = vmatprep.subr.mxu0 0.0
      %458 = vmatpush1.msra.mxu0 0.0
      %459 = vmatprep.subr.mxu0 0.0
      %460 = vmatpush1.msra.mxu0 0.0
      %461 = vmatprep.subr.mxu0 0.0
      %462 = vmatpush1.msra.mxu0 0.0
      %463 = vmatprep.subr.mxu0 0.0
      %464 = vmatpush1.msra.mxu0 0.0
      %465 = vmatprep.subr.mxu0 0.0
      %466 = vmatpush1.msra.mxu0 0.0
      %467 = vmatprep.subr.mxu0 0.0
      %468 = vmatpush1.msra.mxu0 0.0
      %469 = vmatprep.mubr.f32.mxu0 0.0
      %470 = vmatmul.mubr.f32.gmra.mrb[0].mxu0 %v278
      %v471 = vpop.f32.mrb[0].mxu0
      %v472 = vadd.f32 %v244, %v471
      %v473 = vpop.f32.mrb[0].mxu0
      %v474 = vadd.f32 %v244, %v473
      %475 = vmatprep.mubr.f32.mxu0 0.0
      %476 = vmatmul.mubr.f32.gmra.mrb[0].mxu0 %v281
      %v477 = vpop.f32.mrb[0].mxu0
      %v478 = vadd.f32 %v249, %v477
      %v479 = vpop.f32.mrb[0].mxu0
      %v480 = vadd.f32 %v249, %v479
      %481 = vmatprep.mubr.f32.mxu0 0.0
      %482 = vmatmul.mubr.f32.gmra.mrb[0].mxu0 %v284
      %v483 = vpop.f32.mrb[0].mxu0
      %v484 = vadd.f32 %v254, %v483
      %v485 = vpop.f32.mrb[0].mxu0
      %v486 = vadd.f32 %v254, %v485
      %487 = vmatprep.mubr.f32.mxu0 0.0
      %488 = vmatmul.mubr.f32.gmra.mrb[0].mxu0 %v287
      %v489 = vpop.f32.mrb[0].mxu0
      %v490 = vadd.f32 %v259, %v489
      %v491 = vpop.f32.mrb[0].mxu0
      %v492 = vadd.f32 %v259, %v491
      %493 = vmatprep.mubr.f32.mxu0 0.0
      %494 = vmatmul.mubr.f32.gmra.mrb[0].mxu0 %v290
      %v495 = vpop.f32.mrb[0].mxu0
      %v496 = vadd.f32 %v264, %v495
      %v497 = vpop.f32.mrb[0].mxu0
      %v498 = vadd.f32 %v264, %v497
      %499 = vmatprep.mubr.f32.mxu0 0.0
      %500 = vmatmul.mubr.f32.gmra.mrb[0].mxu0 %v293
      %v501 = vpop.f32.mrb[0].mxu0
      %v502 = vadd.f32 %v269, %v501
      %v503 = vpop.f32.mrb[0].mxu0
      %v504 = vadd.f32 %v269, %v503
      %505 = vmatprep.mubr.f32.mxu0 0.0
      %506 = vmatmul.mubr.f32.gmra.mrb[0].mxu0 %v296
      %v507 = vpop.f32.mrb[0].mxu0
      %v508 = vadd.f32 %v274, %v507
      %v509 = vpop.f32.mrb[0].mxu0
      %v510 = vadd.f32 %v274, %v509
      %511 = vdwg.mxu0
      %512 = vmatprep.subr.mxu0 %v176
      %513 = vmatpush1.msra.mxu0 %v175
      %514 = vmatprep.subr.mxu0 %v184
      %515 = vmatpush1.msra.mxu0 %v183
      %516 = vmatprep.subr.mxu0 %v192
      %517 = vmatpush1.msra.mxu0 %v191
      %518 = vmatprep.subr.mxu0 %v200
      %519 = vmatpush1.msra.mxu0 %v199
      %520 = vmatprep.subr.mxu0 %v208
      %521 = vmatpush1.msra.mxu0 %v207
      %522 = vmatprep.subr.mxu0 %v216
      %523 = vmatpush1.msra.mxu0 %v215
      %524 = vmatprep.subr.mxu0 %v224
      %525 = vmatpush1.msra.mxu0 %v223
      %526 = vmatprep.subr.mxu0 0.0
      %527 = vmatpush1.msra.mxu0 0.0
      %528 = vmatprep.subr.mxu0 0.0
      %529 = vmatpush1.msra.mxu0 0.0
      %530 = vmatprep.subr.mxu0 0.0
      %531 = vmatpush1.msra.mxu0 0.0
      %532 = vmatprep.subr.mxu0 0.0
      %533 = vmatpush1.msra.mxu0 0.0
      %534 = vmatprep.subr.mxu0 0.0
      %535 = vmatpush1.msra.mxu0 0.0
      %536 = vmatprep.subr.mxu0 0.0
      %537 = vmatpush1.msra.mxu0 0.0
      %538 = vmatprep.subr.mxu0 0.0
      %539 = vmatpush1.msra.mxu0 0.0
      %540 = vmatprep.subr.mxu0 0.0
      %541 = vmatpush1.msra.mxu0 0.0
      %542 = vmatprep.subr.mxu0 0.0
      %543 = vmatpush1.msra.mxu0 0.0
      %544 = vmatprep.subr.mxu0 0.0
      %545 = vmatpush1.msra.mxu0 0.0
      %546 = vmatprep.subr.mxu0 0.0
      %547 = vmatpush1.msra.mxu0 0.0
      %548 = vmatprep.subr.mxu0 0.0
      %549 = vmatpush1.msra.mxu0 0.0
      %550 = vmatprep.subr.mxu0 0.0
      %551 = vmatpush1.msra.mxu0 0.0
      %552 = vmatprep.subr.mxu0 0.0
      %553 = vmatpush1.msra.mxu0 0.0
      %554 = vmatprep.subr.mxu0 0.0
      %555 = vmatpush1.msra.mxu0 0.0
      %556 = vmatprep.subr.mxu0 0.0
      %557 = vmatpush1.msra.mxu0 0.0
      %558 = vmatprep.subr.mxu0 0.0
      %559 = vmatpush1.msra.mxu0 0.0
      %560 = vmatprep.subr.mxu0 0.0
      %561 = vmatpush1.msra.mxu0 0.0
      %562 = vmatprep.subr.mxu0 0.0
      %563 = vmatpush1.msra.mxu0 0.0
      %564 = vmatprep.subr.mxu0 0.0
      %565 = vmatpush1.msra.mxu0 0.0
      %566 = vmatprep.subr.mxu0 0.0
      %567 = vmatpush1.msra.mxu0 0.0
      %568 = vmatprep.subr.mxu0 0.0
      %569 = vmatpush1.msra.mxu0 0.0
      %570 = vmatprep.subr.mxu0 0.0
      %571 = vmatpush1.msra.mxu0 0.0
      %572 = vmatprep.subr.mxu0 0.0
      %573 = vmatpush1.msra.mxu0 0.0
      %574 = vmatprep.subr.mxu0 0.0
      %575 = vmatpush1.msra.mxu0 0.0
      %576 = vmatprep.mubr.f32.mxu0 0.0
      %577 = vmatmul.mubr.f32.gmra.mrb[0].mxu0 %v278
      %v578 = vpop.f32.mrb[0].mxu0
      %v579 = vadd.f32 %v244, %v578
      %v580 = vpop.f32.mrb[0].mxu0
      %v581 = vadd.f32 %v244, %v580
      %582 = vmatprep.mubr.f32.mxu0 0.0
      %583 = vmatmul.mubr.f32.gmra.mrb[0].mxu0 %v281
      %v584 = vpop.f32.mrb[0].mxu0
      %v585 = vadd.f32 %v249, %v584
      %v586 = vpop.f32.mrb[0].mxu0
      %v587 = vadd.f32 %v249, %v586
      %588 = vmatprep.mubr.f32.mxu0 0.0
      %589 = vmatmul.mubr.f32.gmra.mrb[0].mxu0 %v284
      %v590 = vpop.f32.mrb[0].mxu0
      %v591 = vadd.f32 %v254, %v590
      %v592 = vpop.f32.mrb[0].mxu0
      %v593 = vadd.f32 %v254, %v592
      %594 = vmatprep.mubr.f32.mxu0 0.0
      %595 = vmatmul.mubr.f32.gmra.mrb[0].mxu0 %v287
      %v596 = vpop.f32.mrb[0].mxu0
      %v597 = vadd.f32 %v259, %v596
      %v598 = vpop.f32.mrb[0].mxu0
      %v599 = vadd.f32 %v259, %v598
      %600 = vmatprep.mubr.f32.mxu0 0.0
      %601 = vmatmul.mubr.f32.gmra.mrb[0].mxu0 %v290
      %v602 = vpop.f32.mrb[0].mxu0
      %v603 = vadd.f32 %v264, %v602
      %v604 = vpop.f32.mrb[0].mxu0
      %v605 = vadd.f32 %v264, %v604
      %606 = vmatprep.mubr.f32.mxu0 0.0
      %607 = vmatmul.mubr.f32.gmra.mrb[0].mxu0 %v293
      %v608 = vpop.f32.mrb[0].mxu0
      %v609 = vadd.f32 %v269, %v608
      %v610 = vpop.f32.mrb[0].mxu0
      %v611 = vadd.f32 %v269, %v610
      %612 = vmatprep.mubr.f32.mxu0 0.0
      %613 = vmatmul.mubr.f32.gmra.mrb[0].mxu0 %v296
      %v614 = vpop.f32.mrb[0].mxu0
      %v615 = vadd.f32 %v274, %v614
      %v616 = vpop.f32.mrb[0].mxu0
      %v617 = vadd.f32 %v274, %v616
      %618 = vdwg.mxu0
      %619 = vmatprep.subr.mxu0 %v178
      %620 = vmatpush1.msra.mxu0 %v177
      %621 = vmatprep.subr.mxu0 %v186
      %622 = vmatpush1.msra.mxu0 %v185
      %623 = vmatprep.subr.mxu0 %v194
      %624 = vmatpush1.msra.mxu0 %v193
      %625 = vmatprep.subr.mxu0 %v202
      %626 = vmatpush1.msra.mxu0 %v201
      %627 = vmatprep.subr.mxu0 %v210
      %628 = vmatpush1.msra.mxu0 %v209
      %629 = vmatprep.subr.mxu0 %v218
      %630 = vmatpush1.msra.mxu0 %v217
      %631 = vmatprep.subr.mxu0 %v226
      %632 = vmatpush1.msra.mxu0 %v225
      %633 = vmatprep.subr.mxu0 0.0
      %634 = vmatpush1.msra.mxu0 0.0
      %635 = vmatprep.subr.mxu0 0.0
      %636 = vmatpush1.msra.mxu0 0.0
      %637 = vmatprep.subr.mxu0 0.0
      %638 = vmatpush1.msra.mxu0 0.0
      %639 = vmatprep.subr.mxu0 0.0
      %640 = vmatpush1.msra.mxu0 0.0
      %641 = vmatprep.subr.mxu0 0.0
      %642 = vmatpush1.msra.mxu0 0.0
      %643 = vmatprep.subr.mxu0 0.0
      %644 = vmatpush1.msra.mxu0 0.0
      %645 = vmatprep.subr.mxu0 0.0
      %646 = vmatpush1.msra.mxu0 0.0
      %647 = vmatprep.subr.mxu0 0.0
      %648 = vmatpush1.msra.mxu0 0.0
      %649 = vmatprep.subr.mxu0 0.0
      %650 = vmatpush1.msra.mxu0 0.0
      %651 = vmatprep.subr.mxu0 0.0
      %652 = vmatpush1.msra.mxu0 0.0
      %653 = vmatprep.subr.mxu0 0.0
      %654 = vmatpush1.msra.mxu0 0.0
      %655 = vmatprep.subr.mxu0 0.0
      %656 = vmatpush1.msra.mxu0 0.0
      %657 = vmatprep.subr.mxu0 0.0
      %658 = vmatpush1.msra.mxu0 0.0
      %659 = vmatprep.subr.mxu0 0.0
      %660 = vmatpush1.msra.mxu0 0.0
      %661 = vmatprep.subr.mxu0 0.0
      %662 = vmatpush1.msra.mxu0 0.0
      %663 = vmatprep.subr.mxu0 0.0
      %664 = vmatpush1.msra.mxu0 0.0
      %665 = vmatprep.subr.mxu0 0.0
      %666 = vmatpush1.msra.mxu0 0.0
      %667 = vmatprep.subr.mxu0 0.0
      %668 = vmatpush1.msra.mxu0 0.0
      %669 = vmatprep.subr.mxu0 0.0
      %670 = vmatpush1.msra.mxu0 0.0
      %671 = vmatprep.subr.mxu0 0.0
      %672 = vmatpush1.msra.mxu0 0.0
      %673 = vmatprep.subr.mxu0 0.0
      %674 = vmatpush1.msra.mxu0 0.0
      %675 = vmatprep.subr.mxu0 0.0
      %676 = vmatpush1.msra.mxu0 0.0
      %677 = vmatprep.subr.mxu0 0.0
      %678 = vmatpush1.msra.mxu0 0.0
      %679 = vmatprep.subr.mxu0 0.0
      %680 = vmatpush1.msra.mxu0 0.0
      %681 = vmatprep.subr.mxu0 0.0
      %682 = vmatpush1.msra.mxu0 0.0
      %683 = vmatprep.mubr.f32.mxu0 0.0
      %684 = vmatmul.mubr.f32.gmra.mrb[0].mxu0 %v278
      %v685 = vpop.f32.mrb[0].mxu0
      %v686 = vadd.f32 %v244, %v685
      %v687 = vpop.f32.mrb[0].mxu0
      %v688 = vadd.f32 %v244, %v687
      %689 = vmatprep.mubr.f32.mxu0 0.0
      %690 = vmatmul.mubr.f32.gmra.mrb[0].mxu0 %v281
      %v691 = vpop.f32.mrb[0].mxu0
      %v692 = vadd.f32 %v249, %v691
      %v693 = vpop.f32.mrb[0].mxu0
      %v694 = vadd.f32 %v249, %v693
      %695 = vmatprep.mubr.f32.mxu0 0.0
      %696 = vmatmul.mubr.f32.gmra.mrb[0].mxu0 %v284
      %v697 = vpop.f32.mrb[0].mxu0
      %v698 = vadd.f32 %v254, %v697
      %v699 = vpop.f32.mrb[0].mxu0
      %v700 = vadd.f32 %v254, %v699
      %701 = vmatprep.mubr.f32.mxu0 0.0
      %702 = vmatmul.mubr.f32.gmra.mrb[0].mxu0 %v287
      %v703 = vpop.f32.mrb[0].mxu0
      %v704 = vadd.f32 %v259, %v703
      %v705 = vpop.f32.mrb[0].mxu0
      %v706 = vadd.f32 %v259, %v705
      %707 = vmatprep.mubr.f32.mxu0 0.0
      %708 = vmatmul.mubr.f32.gmra.mrb[0].mxu0 %v290
      %v709 = vpop.f32.mrb[0].mxu0
      %v710 = vadd.f32 %v264, %v709
      %v711 = vpop.f32.mrb[0].mxu0
      %v712 = vadd.f32 %v264, %v711
      %713 = vmatprep.mubr.f32.mxu0 0.0
      %714 = vmatmul.mubr.f32.gmra.mrb[0].mxu0 %v293
      %v715 = vpop.f32.mrb[0].mxu0
      %v716 = vadd.f32 %v269, %v715
      %v717 = vpop.f32.mrb[0].mxu0
      %v718 = vadd.f32 %v269, %v717
      %719 = vmatprep.mubr.f32.mxu0 0.0
      %720 = vmatmul.mubr.f32.gmra.mrb[0].mxu0 %v296
      %v721 = vpop.f32.mrb[0].mxu0
      %v722 = vadd.f32 %v274, %v721
      %v723 = vpop.f32.mrb[0].mxu0
      %v724 = vadd.f32 %v274, %v723
      %725 = vdwg.mxu0
      %v726 = vmax.f32 %v365, 0.0
      %v727 = vmax.f32 %v367, 0.0
      %v728 = vmax.f32 %v472, 0.0
      %v729 = vmax.f32 %v474, 0.0
      %v730 = vmax.f32 %v579, 0.0
      %v731 = vmax.f32 %v581, 0.0
      %v732 = vmax.f32 %v686, 0.0
      %v733 = vmax.f32 %v688, 0.0
      %v734 = vmax.f32 %v371, 0.0
      %v735 = vmax.f32 %v373, 0.0
      %v736 = vmax.f32 %v478, 0.0
      %v737 = vmax.f32 %v480, 0.0
      %v738 = vmax.f32 %v585, 0.0
      %v739 = vmax.f32 %v587, 0.0
      %v740 = vmax.f32 %v692, 0.0
      %v741 = vmax.f32 %v694, 0.0
      %v742 = vmax.f32 %v377, 0.0
      %v743 = vmax.f32 %v379, 0.0
      %v744 = vmax.f32 %v484, 0.0
      %v745 = vmax.f32 %v486, 0.0
      %v746 = vmax.f32 %v591, 0.0
      %v747 = vmax.f32 %v593, 0.0
      %v748 = vmax.f32 %v698, 0.0
      %v749 = vmax.f32 %v700, 0.0
      %v750 = vmax.f32 %v383, 0.0
      %v751 = vmax.f32 %v385, 0.0
      %v752 = vmax.f32 %v490, 0.0
      %v753 = vmax.f32 %v492, 0.0
      %v754 = vmax.f32 %v597, 0.0
      %v755 = vmax.f32 %v599, 0.0
      %v756 = vmax.f32 %v704, 0.0
      %v757 = vmax.f32 %v706, 0.0
      %v758 = vmax.f32 %v389, 0.0
      %v759 = vmax.f32 %v391, 0.0
      %v760 = vmax.f32 %v496, 0.0
      %v761 = vmax.f32 %v498, 0.0
      %v762 = vmax.f32 %v603, 0.0
      %v763 = vmax.f32 %v605, 0.0
      %v764 = vmax.f32 %v710, 0.0
      %v765 = vmax.f32 %v712, 0.0
      %v766 = vmax.f32 %v395, 0.0
      %v767 = vmax.f32 %v397, 0.0
      %v768 = vmax.f32 %v502, 0.0
      %v769 = vmax.f32 %v504, 0.0
      %v770 = vmax.f32 %v609, 0.0
      %v771 = vmax.f32 %v611, 0.0
      %v772 = vmax.f32 %v716, 0.0
      %v773 = vmax.f32 %v718, 0.0
      %v774 = vmax.f32 %v401, 0.0
      %v775 = vmax.f32 %v403, 0.0
      %v776 = vmax.f32 %v508, 0.0
      %v777 = vmax.f32 %v510, 0.0
      %v778 = vmax.f32 %v615, 0.0
      %v779 = vmax.f32 %v617, 0.0
      %v780 = vmax.f32 %v722, 0.0
      %v781 = vmax.f32 %v724, 0.0
      %s782 = scalar_lea.vmem %s1, 56
      %v783 = vld [vmem:[%s782] sm:$0xff]
      %v784 = vld [vmem:[%s782 + $0x8] sm:$0xff]
      %v785 = vld [vmem:[%s782 + $0x10] sm:$0xff]
      %v786 = vld [vmem:[%s782 + $0x18] sm:$0xff]
      %v787 = vld [vmem:[%s782 + $0x20] sm:$0xff]
      %v788 = vld [vmem:[%s782 + $0x28] sm:$0xff]
      %v789 = vld [vmem:[%s782 + $0x30] sm:$0xff]
      %s790 = scalar_lea.vmem %s2, 56
      %v791 = vld [vmem:[%s790] sm:$0xff]
      %v792 = vld [vmem:[%s790 + $0x8] sm:$0xff]
      %v793 = vld [vmem:[%s790 + $0x10] sm:$0xff]
      %v794 = vld [vmem:[%s790 + $0x18] sm:$0xff]
      %v795 = vld [vmem:[%s790 + $0x20] sm:$0xff]
      %v796 = vld [vmem:[%s790 + $0x28] sm:$0xff]
      %v797 = vld [vmem:[%s790 + $0x30] sm:$0xff]
      %799 = vset.pattern.permute.xlu0 0
      %800 = vperm.xlu0 %799, %v791
      %v801 = vpop.permute.xlu0 %800
      %804 = vset.pattern.permute.xlu0 0
      %805 = vperm.xlu0 %804, %v792
      %v806 = vpop.permute.xlu0 %805
      %809 = vset.pattern.permute.xlu0 0
      %810 = vperm.xlu0 %809, %v793
      %v811 = vpop.permute.xlu0 %810
      %814 = vset.pattern.permute.xlu0 0
      %815 = vperm.xlu0 %814, %v794
      %v816 = vpop.permute.xlu0 %815
      %819 = vset.pattern.permute.xlu0 0
      %820 = vperm.xlu0 %819, %v795
      %v821 = vpop.permute.xlu0 %820
      %824 = vset.pattern.permute.xlu0 0
      %825 = vperm.xlu0 %824, %v796
      %v826 = vpop.permute.xlu0 %825
      %829 = vset.pattern.permute.xlu0 0
      %830 = vperm.xlu0 %829, %v797
      %v831 = vpop.permute.xlu0 %830
      %v834 = vsel %vm276, %v783, 0
      %v837 = vsel %vm276, %v784, 0
      %v840 = vsel %vm276, %v785, 0
      %v843 = vsel %vm276, %v786, 0
      %v846 = vsel %vm276, %v787, 0
      %v849 = vsel %vm276, %v788, 0
      %v852 = vsel %vm276, %v789, 0
      %854 = vmatprep.subr.mxu0 %v727
      %855 = vmatpush1.msra.mxu0 %v726
      %856 = vmatprep.subr.mxu0 %v735
      %857 = vmatpush1.msra.mxu0 %v734
      %858 = vmatprep.subr.mxu0 %v743
      %859 = vmatpush1.msra.mxu0 %v742
      %860 = vmatprep.subr.mxu0 %v751
      %861 = vmatpush1.msra.mxu0 %v750
      %862 = vmatprep.subr.mxu0 %v759
      %863 = vmatpush1.msra.mxu0 %v758
      %864 = vmatprep.subr.mxu0 %v767
      %865 = vmatpush1.msra.mxu0 %v766
      %866 = vmatprep.subr.mxu0 %v775
      %867 = vmatpush1.msra.mxu0 %v774
      %868 = vmatprep.subr.mxu0 0.0
      %869 = vmatpush1.msra.mxu0 0.0
      %870 = vmatprep.subr.mxu0 0.0
      %871 = vmatpush1.msra.mxu0 0.0
      %872 = vmatprep.subr.mxu0 0.0
      %873 = vmatpush1.msra.mxu0 0.0
      %874 = vmatprep.subr.mxu0 0.0
      %875 = vmatpush1.msra.mxu0 0.0
      %876 = vmatprep.subr.mxu0 0.0
      %877 = vmatpush1.msra.mxu0 0.0
      %878 = vmatprep.subr.mxu0 0.0
      %879 = vmatpush1.msra.mxu0 0.0
      %880 = vmatprep.subr.mxu0 0.0
      %881 = vmatpush1.msra.mxu0 0.0
      %882 = vmatprep.subr.mxu0 0.0
      %883 = vmatpush1.msra.mxu0 0.0
      %884 = vmatprep.subr.mxu0 0.0
      %885 = vmatpush1.msra.mxu0 0.0
      %886 = vmatprep.subr.mxu0 0.0
      %887 = vmatpush1.msra.mxu0 0.0
      %888 = vmatprep.subr.mxu0 0.0
      %889 = vmatpush1.msra.mxu0 0.0
      %890 = vmatprep.subr.mxu0 0.0
      %891 = vmatpush1.msra.mxu0 0.0
      %892 = vmatprep.subr.mxu0 0.0
      %893 = vmatpush1.msra.mxu0 0.0
      %894 = vmatprep.subr.mxu0 0.0
      %895 = vmatpush1.msra.mxu0 0.0
      %896 = vmatprep.subr.mxu0 0.0
      %897 = vmatpush1.msra.mxu0 0.0
      %898 = vmatprep.subr.mxu0 0.0
      %899 = vmatpush1.msra.mxu0 0.0
      %900 = vmatprep.subr.mxu0 0.0
      %901 = vmatpush1.msra.mxu0 0.0
      %902 = vmatprep.subr.mxu0 0.0
      %903 = vmatpush1.msra.mxu0 0.0
      %904 = vmatprep.subr.mxu0 0.0
      %905 = vmatpush1.msra.mxu0 0.0
      %906 = vmatprep.subr.mxu0 0.0
      %907 = vmatpush1.msra.mxu0 0.0
      %908 = vmatprep.subr.mxu0 0.0
      %909 = vmatpush1.msra.mxu0 0.0
      %910 = vmatprep.subr.mxu0 0.0
      %911 = vmatpush1.msra.mxu0 0.0
      %912 = vmatprep.subr.mxu0 0.0
      %913 = vmatpush1.msra.mxu0 0.0
      %914 = vmatprep.subr.mxu0 0.0
      %915 = vmatpush1.msra.mxu0 0.0
      %916 = vmatprep.subr.mxu0 0.0
      %917 = vmatpush1.msra.mxu0 0.0
      %918 = vmatprep.mubr.f32.mxu0 0.0
      %919 = vmatmul.mubr.f32.gmra.mrb[0].mxu0 %v834
      %v920 = vpop.f32.mrb[0].mxu0
      %v921 = vadd.f32 %v801, %v920
      %v922 = vpop.f32.mrb[0].mxu0
      %v923 = vadd.f32 %v801, %v922
      %924 = vmatprep.mubr.f32.mxu0 0.0
      %925 = vmatmul.mubr.f32.gmra.mrb[0].mxu0 %v837
      %v926 = vpop.f32.mrb[0].mxu0
      %v927 = vadd.f32 %v806, %v926
      %v928 = vpop.f32.mrb[0].mxu0
      %v929 = vadd.f32 %v806, %v928
      %930 = vmatprep.mubr.f32.mxu0 0.0
      %931 = vmatmul.mubr.f32.gmra.mrb[0].mxu0 %v840
      %v932 = vpop.f32.mrb[0].mxu0
      %v933 = vadd.f32 %v811, %v932
      %v934 = vpop.f32.mrb[0].mxu0
      %v935 = vadd.f32 %v811, %v934
      %936 = vmatprep.mubr.f32.mxu0 0.0
      %937 = vmatmul.mubr.f32.gmra.mrb[0].mxu0 %v843
      %v938 = vpop.f32.mrb[0].mxu0
      %v939 = vadd.f32 %v816, %v938
      %v940 = vpop.f32.mrb[0].mxu0
      %v941 = vadd.f32 %v816, %v940
      %942 = vmatprep.mubr.f32.mxu0 0.0
      %943 = vmatmul.mubr.f32.gmra.mrb[0].mxu0 %v846
      %v944 = vpop.f32.mrb[0].mxu0
      %v945 = vadd.f32 %v821, %v944
      %v946 = vpop.f32.mrb[0].mxu0
      %v947 = vadd.f32 %v821, %v946
      %948 = vmatprep.mubr.f32.mxu0 0.0
      %949 = vmatmul.mubr.f32.gmra.mrb[0].mxu0 %v849
      %v950 = vpop.f32.mrb[0].mxu0
      %v951 = vadd.f32 %v826, %v950
      %v952 = vpop.f32.mrb[0].mxu0
      %v953 = vadd.f32 %v826, %v952
      %954 = vmatprep.mubr.f32.mxu0 0.0
      %955 = vmatmul.mubr.f32.gmra.mrb[0].mxu0 %v852
      %v956 = vpop.f32.mrb[0].mxu0
      %v957 = vadd.f32 %v831, %v956
      %v958 = vpop.f32.mrb[0].mxu0
      %v959 = vadd.f32 %v831, %v958
      %960 = vdwg.mxu0
      %961 = vmatprep.subr.mxu0 %v729
      %962 = vmatpush1.msra.mxu0 %v728
      %963 = vmatprep.subr.mxu0 %v737
      %964 = vmatpush1.msra.mxu0 %v736
      %965 = vmatprep.subr.mxu0 %v745
      %966 = vmatpush1.msra.mxu0 %v744
      %967 = vmatprep.subr.mxu0 %v753
      %968 = vmatpush1.msra.mxu0 %v752
      %969 = vmatprep.subr.mxu0 %v761
      %970 = vmatpush1.msra.mxu0 %v760
      %971 = vmatprep.subr.mxu0 %v769
      %972 = vmatpush1.msra.mxu0 %v768
      %973 = vmatprep.subr.mxu0 %v777
      %974 = vmatpush1.msra.mxu0 %v776
      %975 = vmatprep.subr.mxu0 0.0
      %976 = vmatpush1.msra.mxu0 0.0
      %977 = vmatprep.subr.mxu0 0.0
      %978 = vmatpush1.msra.mxu0 0.0
      %979 = vmatprep.subr.mxu0 0.0
      %980 = vmatpush1.msra.mxu0 0.0
      %981 = vmatprep.subr.mxu0 0.0
      %982 = vmatpush1.msra.mxu0 0.0
      %983 = vmatprep.subr.mxu0 0.0
      %984 = vmatpush1.msra.mxu0 0.0
      %985 = vmatprep.subr.mxu0 0.0
      %986 = vmatpush1.msra.mxu0 0.0
      %987 = vmatprep.subr.mxu0 0.0
      %988 = vmatpush1.msra.mxu0 0.0
      %989 = vmatprep.subr.mxu0 0.0
      %990 = vmatpush1.msra.mxu0 0.0
      %991 = vmatprep.subr.mxu0 0.0
      %992 = vmatpush1.msra.mxu0 0.0
      %993 = vmatprep.subr.mxu0 0.0
      %994 = vmatpush1.msra.mxu0 0.0
      %995 = vmatprep.subr.mxu0 0.0
      %996 = vmatpush1.msra.mxu0 0.0
      %997 = vmatprep.subr.mxu0 0.0
      %998 = vmatpush1.msra.mxu0 0.0
      %999 = vmatprep.subr.mxu0 0.0
      %1000 = vmatpush1.msra.mxu0 0.0
      %1001 = vmatprep.subr.mxu0 0.0
      %1002 = vmatpush1.msra.mxu0 0.0
      %1003 = vmatprep.subr.mxu0 0.0
      %1004 = vmatpush1.msra.mxu0 0.0
      %1005 = vmatprep.subr.mxu0 0.0
      %1006 = vmatpush1.msra.mxu0 0.0
      %1007 = vmatprep.subr.mxu0 0.0
      %1008 = vmatpush1.msra.mxu0 0.0
      %1009 = vmatprep.subr.mxu0 0.0
      %1010 = vmatpush1.msra.mxu0 0.0
      %1011 = vmatprep.subr.mxu0 0.0
      %1012 = vmatpush1.msra.mxu0 0.0
      %1013 = vmatprep.subr.mxu0 0.0
      %1014 = vmatpush1.msra.mxu0 0.0
      %1015 = vmatprep.subr.mxu0 0.0
      %1016 = vmatpush1.msra.mxu0 0.0
      %1017 = vmatprep.subr.mxu0 0.0
      %1018 = vmatpush1.msra.mxu0 0.0
      %1019 = vmatprep.subr.mxu0 0.0
      %1020 = vmatpush1.msra.mxu0 0.0
      %1021 = vmatprep.subr.mxu0 0.0
      %1022 = vmatpush1.msra.mxu0 0.0
      %1023 = vmatprep.subr.mxu0 0.0
      %1024 = vmatpush1.msra.mxu0 0.0
      %1025 = vmatprep.mubr.f32.mxu0 0.0
      %1026 = vmatmul.mubr.f32.gmra.mrb[0].mxu0 %v834
      %v1027 = vpop.f32.mrb[0].mxu0
      %v1028 = vadd.f32 %v801, %v1027
      %v1029 = vpop.f32.mrb[0].mxu0
      %v1030 = vadd.f32 %v801, %v1029
      %1031 = vmatprep.mubr.f32.mxu0 0.0
      %1032 = vmatmul.mubr.f32.gmra.mrb[0].mxu0 %v837
      %v1033 = vpop.f32.mrb[0].mxu0
      %v1034 = vadd.f32 %v806, %v1033
      %v1035 = vpop.f32.mrb[0].mxu0
      %v1036 = vadd.f32 %v806, %v1035
      %1037 = vmatprep.mubr.f32.mxu0 0.0
      %1038 = vmatmul.mubr.f32.gmra.mrb[0].mxu0 %v840
      %v1039 = vpop.f32.mrb[0].mxu0
      %v1040 = vadd.f32 %v811, %v1039
      %v1041 = vpop.f32.mrb[0].mxu0
      %v1042 = vadd.f32 %v811, %v1041
      %1043 = vmatprep.mubr.f32.mxu0 0.0
      %1044 = vmatmul.mubr.f32.gmra.mrb[0].mxu0 %v843
      %v1045 = vpop.f32.mrb[0].mxu0
      %v1046 = vadd.f32 %v816, %v1045
      %v1047 = vpop.f32.mrb[0].mxu0
      %v1048 = vadd.f32 %v816, %v1047
      %1049 = vmatprep.mubr.f32.mxu0 0.0
      %1050 = vmatmul.mubr.f32.gmra.mrb[0].mxu0 %v846
      %v1051 = vpop.f32.mrb[0].mxu0
      %v1052 = vadd.f32 %v821, %v1051
      %v1053 = vpop.f32.mrb[0].mxu0
      %v1054 = vadd.f32 %v821, %v1053
      %1055 = vmatprep.mubr.f32.mxu0 0.0
      %1056 = vmatmul.mubr.f32.gmra.mrb[0].mxu0 %v849
      %v1057 = vpop.f32.mrb[0].mxu0
      %v1058 = vadd.f32 %v826, %v1057
      %v1059 = vpop.f32.mrb[0].mxu0
      %v1060 = vadd.f32 %v826, %v1059
      %1061 = vmatprep.mubr.f32.mxu0 0.0
      %1062 = vmatmul.mubr.f32.gmra.mrb[0].mxu0 %v852
      %v1063 = vpop.f32.mrb[0].mxu0
      %v1064 = vadd.f32 %v831, %v1063
      %v1065 = vpop.f32.mrb[0].mxu0
      %v1066 = vadd.f32 %v831, %v1065
      %1067 = vdwg.mxu0
      %1068 = vmatprep.subr.mxu0 %v731
      %1069 = vmatpush1.msra.mxu0 %v730
      %1070 = vmatprep.subr.mxu0 %v739
      %1071 = vmatpush1.msra.mxu0 %v738
      %1072 = vmatprep.subr.mxu0 %v747
      %1073 = vmatpush1.msra.mxu0 %v746
      %1074 = vmatprep.subr.mxu0 %v755
      %1075 = vmatpush1.msra.mxu0 %v754
      %1076 = vmatprep.subr.mxu0 %v763
      %1077 = vmatpush1.msra.mxu0 %v762
      %1078 = vmatprep.subr.mxu0 %v771
      %1079 = vmatpush1.msra.mxu0 %v770
      %1080 = vmatprep.subr.mxu0 %v779
      %1081 = vmatpush1.msra.mxu0 %v778
      %1082 = vmatprep.subr.mxu0 0.0
      %1083 = vmatpush1.msra.mxu0 0.0
      %1084 = vmatprep.subr.mxu0 0.0
      %1085 = vmatpush1.msra.mxu0 0.0
      %1086 = vmatprep.subr.mxu0 0.0
      %1087 = vmatpush1.msra.mxu0 0.0
      %1088 = vmatprep.subr.mxu0 0.0
      %1089 = vmatpush1.msra.mxu0 0.0
      %1090 = vmatprep.subr.mxu0 0.0
      %1091 = vmatpush1.msra.mxu0 0.0
      %1092 = vmatprep.subr.mxu0 0.0
      %1093 = vmatpush1.msra.mxu0 0.0
      %1094 = vmatprep.subr.mxu0 0.0
      %1095 = vmatpush1.msra.mxu0 0.0
      %1096 = vmatprep.subr.mxu0 0.0
      %1097 = vmatpush1.msra.mxu0 0.0
      %1098 = vmatprep.subr.mxu0 0.0
      %1099 = vmatpush1.msra.mxu0 0.0
      %1100 = vmatprep.subr.mxu0 0.0
      %1101 = vmatpush1.msra.mxu0 0.0
      %1102 = vmatprep.subr.mxu0 0.0
      %1103 = vmatpush1.msra.mxu0 0.0
      %1104 = vmatprep.subr.mxu0 0.0
      %1105 = vmatpush1.msra.mxu0 0.0
      %1106 = vmatprep.subr.mxu0 0.0
      %1107 = vmatpush1.msra.mxu0 0.0
      %1108 = vmatprep.subr.mxu0 0.0
      %1109 = vmatpush1.msra.mxu0 0.0
      %1110 = vmatprep.subr.mxu0 0.0
      %1111 = vmatpush1.msra.mxu0 0.0
      %1112 = vmatprep.subr.mxu0 0.0
      %1113 = vmatpush1.msra.mxu0 0.0
      %1114 = vmatprep.subr.mxu0 0.0
      %1115 = vmatpush1.msra.mxu0 0.0
      %1116 = vmatprep.subr.mxu0 0.0
      %1117 = vmatpush1.msra.mxu0 0.0
      %1118 = vmatprep.subr.mxu0 0.0
      %1119 = vmatpush1.msra.mxu0 0.0
      %1120 = vmatprep.subr.mxu0 0.0
      %1121 = vmatpush1.msra.mxu0 0.0
      %1122 = vmatprep.subr.mxu0 0.0
      %1123 = vmatpush1.msra.mxu0 0.0
      %1124 = vmatprep.subr.mxu0 0.0
      %1125 = vmatpush1.msra.mxu0 0.0
      %1126 = vmatprep.subr.mxu0 0.0
      %1127 = vmatpush1.msra.mxu0 0.0
      %1128 = vmatprep.subr.mxu0 0.0
      %1129 = vmatpush1.msra.mxu0 0.0
      %1130 = vmatprep.subr.mxu0 0.0
      %1131 = vmatpush1.msra.mxu0 0.0
      %1132 = vmatprep.mubr.f32.mxu0 0.0
      %1133 = vmatmul.mubr.f32.gmra.mrb[0].mxu0 %v834
      %v1134 = vpop.f32.mrb[0].mxu0
      %v1135 = vadd.f32 %v801, %v1134
      %v1136 = vpop.f32.mrb[0].mxu0
      %v1137 = vadd.f32 %v801, %v1136
      %1138 = vmatprep.mubr.f32.mxu0 0.0
      %1139 = vmatmul.mubr.f32.gmra.mrb[0].mxu0 %v837
      %v1140 = vpop.f32.mrb[0].mxu0
      %v1141 = vadd.f32 %v806, %v1140
      %v1142 = vpop.f32.mrb[0].mxu0
      %v1143 = vadd.f32 %v806, %v1142
      %1144 = vmatprep.mubr.f32.mxu0 0.0
      %1145 = vmatmul.mubr.f32.gmra.mrb[0].mxu0 %v840
      %v1146 = vpop.f32.mrb[0].mxu0
      %v1147 = vadd.f32 %v811, %v1146
      %v1148 = vpop.f32.mrb[0].mxu0
      %v1149 = vadd.f32 %v811, %v1148
      %1150 = vmatprep.mubr.f32.mxu0 0.0
      %1151 = vmatmul.mubr.f32.gmra.mrb[0].mxu0 %v843
      %v1152 = vpop.f32.mrb[0].mxu0
      %v1153 = vadd.f32 %v816, %v1152
      %v1154 = vpop.f32.mrb[0].mxu0
      %v1155 = vadd.f32 %v816, %v1154
      %1156 = vmatprep.mubr.f32.mxu0 0.0
      %1157 = vmatmul.mubr.f32.gmra.mrb[0].mxu0 %v846
      %v1158 = vpop.f32.mrb[0].mxu0
      %v1159 = vadd.f32 %v821, %v1158
      %v1160 = vpop.f32.mrb[0].mxu0
      %v1161 = vadd.f32 %v821, %v1160
      %1162 = vmatprep.mubr.f32.mxu0 0.0
      %1163 = vmatmul.mubr.f32.gmra.mrb[0].mxu0 %v849
      %v1164 = vpop.f32.mrb[0].mxu0
      %v1165 = vadd.f32 %v826, %v1164
      %v1166 = vpop.f32.mrb[0].mxu0
      %v1167 = vadd.f32 %v826, %v1166
      %1168 = vmatprep.mubr.f32.mxu0 0.0
      %1169 = vmatmul.mubr.f32.gmra.mrb[0].mxu0 %v852
      %v1170 = vpop.f32.mrb[0].mxu0
      %v1171 = vadd.f32 %v831, %v1170
      %v1172 = vpop.f32.mrb[0].mxu0
      %v1173 = vadd.f32 %v831, %v1172
      %1174 = vdwg.mxu0
      %1175 = vmatprep.subr.mxu0 %v733
      %1176 = vmatpush1.msra.mxu0 %v732
      %1177 = vmatprep.subr.mxu0 %v741
      %1178 = vmatpush1.msra.mxu0 %v740
      %1179 = vmatprep.subr.mxu0 %v749
      %1180 = vmatpush1.msra.mxu0 %v748
      %1181 = vmatprep.subr.mxu0 %v757
      %1182 = vmatpush1.msra.mxu0 %v756
      %1183 = vmatprep.subr.mxu0 %v765
      %1184 = vmatpush1.msra.mxu0 %v764
      %1185 = vmatprep.subr.mxu0 %v773
      %1186 = vmatpush1.msra.mxu0 %v772
      %1187 = vmatprep.subr.mxu0 %v781
      %1188 = vmatpush1.msra.mxu0 %v780
      %1189 = vmatprep.subr.mxu0 0.0
      %1190 = vmatpush1.msra.mxu0 0.0
      %1191 = vmatprep.subr.mxu0 0.0
      %1192 = vmatpush1.msra.mxu0 0.0
      %1193 = vmatprep.subr.mxu0 0.0
      %1194 = vmatpush1.msra.mxu0 0.0
      %1195 = vmatprep.subr.mxu0 0.0
      %1196 = vmatpush1.msra.mxu0 0.0
      %1197 = vmatprep.subr.mxu0 0.0
      %1198 = vmatpush1.msra.mxu0 0.0
      %1199 = vmatprep.subr.mxu0 0.0
      %1200 = vmatpush1.msra.mxu0 0.0
      %1201 = vmatprep.subr.mxu0 0.0
      %1202 = vmatpush1.msra.mxu0 0.0
      %1203 = vmatprep.subr.mxu0 0.0
      %1204 = vmatpush1.msra.mxu0 0.0
      %1205 = vmatprep.subr.mxu0 0.0
      %1206 = vmatpush1.msra.mxu0 0.0
      %1207 = vmatprep.subr.mxu0 0.0
      %1208 = vmatpush1.msra.mxu0 0.0
      %1209 = vmatprep.subr.mxu0 0.0
      %1210 = vmatpush1.msra.mxu0 0.0
      %1211 = vmatprep.subr.mxu0 0.0
      %1212 = vmatpush1.msra.mxu0 0.0
      %1213 = vmatprep.subr.mxu0 0.0
      %1214 = vmatpush1.msra.mxu0 0.0
      %1215 = vmatprep.subr.mxu0 0.0
      %1216 = vmatpush1.msra.mxu0 0.0
      %1217 = vmatprep.subr.mxu0 0.0
      %1218 = vmatpush1.msra.mxu0 0.0
      %1219 = vmatprep.subr.mxu0 0.0
      %1220 = vmatpush1.msra.mxu0 0.0
      %1221 = vmatprep.subr.mxu0 0.0
      %1222 = vmatpush1.msra.mxu0 0.0
      %1223 = vmatprep.subr.mxu0 0.0
      %1224 = vmatpush1.msra.mxu0 0.0
      %1225 = vmatprep.subr.mxu0 0.0
      %1226 = vmatpush1.msra.mxu0 0.0
      %1227 = vmatprep.subr.mxu0 0.0
      %1228 = vmatpush1.msra.mxu0 0.0
      %1229 = vmatprep.subr.mxu0 0.0
      %1230 = vmatpush1.msra.mxu0 0.0
      %1231 = vmatprep.subr.mxu0 0.0
      %1232 = vmatpush1.msra.mxu0 0.0
      %1233 = vmatprep.subr.mxu0 0.0
      %1234 = vmatpush1.msra.mxu0 0.0
      %1235 = vmatprep.subr.mxu0 0.0
      %1236 = vmatpush1.msra.mxu0 0.0
      %1237 = vmatprep.subr.mxu0 0.0
      %1238 = vmatpush1.msra.mxu0 0.0
      %1239 = vmatprep.mubr.f32.mxu0 0.0
      %1240 = vmatmul.mubr.f32.gmra.mrb[0].mxu0 %v834
      %v1241 = vpop.f32.mrb[0].mxu0
      %v1242 = vadd.f32 %v801, %v1241
      %v1243 = vpop.f32.mrb[0].mxu0
      %v1244 = vadd.f32 %v801, %v1243
      %1245 = vmatprep.mubr.f32.mxu0 0.0
      %1246 = vmatmul.mubr.f32.gmra.mrb[0].mxu0 %v837
      %v1247 = vpop.f32.mrb[0].mxu0
      %v1248 = vadd.f32 %v806, %v1247
      %v1249 = vpop.f32.mrb[0].mxu0
      %v1250 = vadd.f32 %v806, %v1249
      %1251 = vmatprep.mubr.f32.mxu0 0.0
      %1252 = vmatmul.mubr.f32.gmra.mrb[0].mxu0 %v840
      %v1253 = vpop.f32.mrb[0].mxu0
      %v1254 = vadd.f32 %v811, %v1253
      %v1255 = vpop.f32.mrb[0].mxu0
      %v1256 = vadd.f32 %v811, %v1255
      %1257 = vmatprep.mubr.f32.mxu0 0.0
      %1258 = vmatmul.mubr.f32.gmra.mrb[0].mxu0 %v843
      %v1259 = vpop.f32.mrb[0].mxu0
      %v1260 = vadd.f32 %v816, %v1259
      %v1261 = vpop.f32.mrb[0].mxu0
      %v1262 = vadd.f32 %v816, %v1261
      %1263 = vmatprep.mubr.f32.mxu0 0.0
      %1264 = vmatmul.mubr.f32.gmra.mrb[0].mxu0 %v846
      %v1265 = vpop.f32.mrb[0].mxu0
      %v1266 = vadd.f32 %v821, %v1265
      %v1267 = vpop.f32.mrb[0].mxu0
      %v1268 = vadd.f32 %v821, %v1267
      %1269 = vmatprep.mubr.f32.mxu0 0.0
      %1270 = vmatmul.mubr.f32.gmra.mrb[0].mxu0 %v849
      %v1271 = vpop.f32.mrb[0].mxu0
      %v1272 = vadd.f32 %v826, %v1271
      %v1273 = vpop.f32.mrb[0].mxu0
      %v1274 = vadd.f32 %v826, %v1273
      %1275 = vmatprep.mubr.f32.mxu0 0.0
      %1276 = vmatmul.mubr.f32.gmra.mrb[0].mxu0 %v852
      %v1277 = vpop.f32.mrb[0].mxu0
      %v1278 = vadd.f32 %v831, %v1277
      %v1279 = vpop.f32.mrb[0].mxu0
      %v1280 = vadd.f32 %v831, %v1279
      %1281 = vdwg.mxu0
      %v1282 = vmax.f32 %v921, 0.0
      %v1283 = vmax.f32 %v923, 0.0
      %v1284 = vmax.f32 %v1028, 0.0
      %v1285 = vmax.f32 %v1030, 0.0
      %v1286 = vmax.f32 %v1135, 0.0
      %v1287 = vmax.f32 %v1137, 0.0
      %v1288 = vmax.f32 %v1242, 0.0
      %v1289 = vmax.f32 %v1244, 0.0
      %v1290 = vmax.f32 %v927, 0.0
      %v1291 = vmax.f32 %v929, 0.0
      %v1292 = vmax.f32 %v1034, 0.0
      %v1293 = vmax.f32 %v1036, 0.0
      %v1294 = vmax.f32 %v1141, 0.0
      %v1295 = vmax.f32 %v1143, 0.0
      %v1296 = vmax.f32 %v1248, 0.0
      %v1297 = vmax.f32 %v1250, 0.0
      %v1298 = vmax.f32 %v933, 0.0
      %v1299 = vmax.f32 %v935, 0.0
      %v1300 = vmax.f32 %v1040, 0.0
      %v1301 = vmax.f32 %v1042, 0.0
      %v1302 = vmax.f32 %v1147, 0.0
      %v1303 = vmax.f32 %v1149, 0.0
      %v1304 = vmax.f32 %v1254, 0.0
      %v1305 = vmax.f32 %v1256, 0.0
      %v1306 = vmax.f32 %v939, 0.0
      %v1307 = vmax.f32 %v941, 0.0
      %v1308 = vmax.f32 %v1046, 0.0
      %v1309 = vmax.f32 %v1048, 0.0
      %v1310 = vmax.f32 %v1153, 0.0
      %v1311 = vmax.f32 %v1155, 0.0
      %v1312 = vmax.f32 %v1260, 0.0
      %v1313 = vmax.f32 %v1262, 0.0
      %v1314 = vmax.f32 %v945, 0.0
      %v1315 = vmax.f32 %v947, 0.0
      %v1316 = vmax.f32 %v1052, 0.0
      %v1317 = vmax.f32 %v1054, 0.0
      %v1318 = vmax.f32 %v1159, 0.0
      %v1319 = vmax.f32 %v1161, 0.0
      %v1320 = vmax.f32 %v1266, 0.0
      %v1321 = vmax.f32 %v1268, 0.0
      %v1322 = vmax.f32 %v951, 0.0
      %v1323 = vmax.f32 %v953, 0.0
      %v1324 = vmax.f32 %v1058, 0.0
      %v1325 = vmax.f32 %v1060, 0.0
      %v1326 = vmax.f32 %v1165, 0.0
      %v1327 = vmax.f32 %v1167, 0.0
      %v1328 = vmax.f32 %v1272, 0.0
      %v1329 = vmax.f32 %v1274, 0.0
      %v1330 = vmax.f32 %v957, 0.0
      %v1331 = vmax.f32 %v959, 0.0
      %v1332 = vmax.f32 %v1064, 0.0
      %v1333 = vmax.f32 %v1066, 0.0
      %v1334 = vmax.f32 %v1171, 0.0
      %v1335 = vmax.f32 %v1173, 0.0
      %v1336 = vmax.f32 %v1278, 0.0
      %v1337 = vmax.f32 %v1280, 0.0
      %s1338 = scalar_lea.vmem %s1, 112
      %v1339 = vld [vmem:[%s1338] sm:$0xff]
      %v1340 = vld [vmem:[%s1338 + $0x8] sm:$0xff]
      %v1341 = vld [vmem:[%s1338 + $0x10] sm:$0xff]
      %v1342 = vld [vmem:[%s1338 + $0x18] sm:$0xff]
      %v1343 = vld [vmem:[%s1338 + $0x20] sm:$0xff]
      %v1344 = vld [vmem:[%s1338 + $0x28] sm:$0xff]
      %v1345 = vld [vmem:[%s1338 + $0x30] sm:$0xff]
      %s1346 = scalar_lea.vmem %s2, 112
      %v1347 = vld [vmem:[%s1346] sm:$0xff]
      %v1348 = vld [vmem:[%s1346 + $0x8] sm:$0xff]
      %v1349 = vld [vmem:[%s1346 + $0x10] sm:$0xff]
      %v1350 = vld [vmem:[%s1346 + $0x18] sm:$0xff]
      %v1351 = vld [vmem:[%s1346 + $0x20] sm:$0xff]
      %v1352 = vld [vmem:[%s1346 + $0x28] sm:$0xff]
      %v1353 = vld [vmem:[%s1346 + $0x30] sm:$0xff]
      %1355 = vset.pattern.permute.xlu0 0
      %1356 = vperm.xlu0 %1355, %v1347
      %v1357 = vpop.permute.xlu0 %1356
      %1360 = vset.pattern.permute.xlu0 0
      %1361 = vperm.xlu0 %1360, %v1348
      %v1362 = vpop.permute.xlu0 %1361
      %1365 = vset.pattern.permute.xlu0 0
      %1366 = vperm.xlu0 %1365, %v1349
      %v1367 = vpop.permute.xlu0 %1366
      %1370 = vset.pattern.permute.xlu0 0
      %1371 = vperm.xlu0 %1370, %v1350
      %v1372 = vpop.permute.xlu0 %1371
      %1375 = vset.pattern.permute.xlu0 0
      %1376 = vperm.xlu0 %1375, %v1351
      %v1377 = vpop.permute.xlu0 %1376
      %1379 = vset.pattern.permute.xlu0 0
      %1380 = vperm.xlu0 %1379, %v1352
      %v1381 = vpop.permute.xlu0 %1380
      %1383 = vset.pattern.permute.xlu0 0
      %1384 = vperm.xlu0 %1383, %v1353
      %v1385 = vpop.permute.xlu0 %1384
      %v1387 = vsel %vm276, %v1339, 0
      %v1390 = vsel %vm276, %v1340, 0
      %v1393 = vsel %vm276, %v1341, 0
      %v1396 = vsel %vm276, %v1342, 0
      %v1399 = vsel %vm276, %v1343, 0
      %v1402 = vsel %vm276, %v1344, 0
      %v1405 = vsel %vm276, %v1345, 0
      %1407 = vmatprep.subr.mxu0 %v1283
      %1408 = vmatpush1.msra.mxu0 %v1282
      %1409 = vmatprep.subr.mxu0 %v1291
      %1410 = vmatpush1.msra.mxu0 %v1290
      %1411 = vmatprep.subr.mxu0 %v1299
      %1412 = vmatpush1.msra.mxu0 %v1298
      %1413 = vmatprep.subr.mxu0 %v1307
      %1414 = vmatpush1.msra.mxu0 %v1306
      %1415 = vmatprep.subr.mxu0 %v1315
      %1416 = vmatpush1.msra.mxu0 %v1314
      %1417 = vmatprep.subr.mxu0 %v1323
      %1418 = vmatpush1.msra.mxu0 %v1322
      %1419 = vmatprep.subr.mxu0 %v1331
      %1420 = vmatpush1.msra.mxu0 %v1330
      %1421 = vmatprep.subr.mxu0 0.0
      %1422 = vmatpush1.msra.mxu0 0.0
      %1423 = vmatprep.subr.mxu0 0.0
      %1424 = vmatpush1.msra.mxu0 0.0
      %1425 = vmatprep.subr.mxu0 0.0
      %1426 = vmatpush1.msra.mxu0 0.0
      %1427 = vmatprep.subr.mxu0 0.0
      %1428 = vmatpush1.msra.mxu0 0.0
      %1429 = vmatprep.subr.mxu0 0.0
      %1430 = vmatpush1.msra.mxu0 0.0
      %1431 = vmatprep.subr.mxu0 0.0
      %1432 = vmatpush1.msra.mxu0 0.0
      %1433 = vmatprep.subr.mxu0 0.0
      %1434 = vmatpush1.msra.mxu0 0.0
      %1435 = vmatprep.subr.mxu0 0.0
      %1436 = vmatpush1.msra.mxu0 0.0
      %1437 = vmatprep.subr.mxu0 0.0
      %1438 = vmatpush1.msra.mxu0 0.0
      %1439 = vmatprep.subr.mxu0 0.0
      %1440 = vmatpush1.msra.mxu0 0.0
      %1441 = vmatprep.subr.mxu0 0.0
      %1442 = vmatpush1.msra.mxu0 0.0
      %1443 = vmatprep.subr.mxu0 0.0
      %1444 = vmatpush1.msra.mxu0 0.0
      %1445 = vmatprep.subr.mxu0 0.0
      %1446 = vmatpush1.msra.mxu0 0.0
      %1447 = vmatprep.subr.mxu0 0.0
      %1448 = vmatpush1.msra.mxu0 0.0
      %1449 = vmatprep.subr.mxu0 0.0
      %1450 = vmatpush1.msra.mxu0 0.0
      %1451 = vmatprep.subr.mxu0 0.0
      %1452 = vmatpush1.msra.mxu0 0.0
      %1453 = vmatprep.subr.mxu0 0.0
      %1454 = vmatpush1.msra.mxu0 0.0
      %1455 = vmatprep.subr.mxu0 0.0
      %1456 = vmatpush1.msra.mxu0 0.0
      %1457 = vmatprep.subr.mxu0 0.0
      %1458 = vmatpush1.msra.mxu0 0.0
      %1459 = vmatprep.subr.mxu0 0.0
      %1460 = vmatpush1.msra.mxu0 0.0
      %1461 = vmatprep.subr.mxu0 0.0
      %1462 = vmatpush1.msra.mxu0 0.0
      %1463 = vmatprep.subr.mxu0 0.0
      %1464 = vmatpush1.msra.mxu0 0.0
      %1465 = vmatprep.subr.mxu0 0.0
      %1466 = vmatpush1.msra.mxu0 0.0
      %1467 = vmatprep.subr.mxu0 0.0
      %1468 = vmatpush1.msra.mxu0 0.0
      %1469 = vmatprep.subr.mxu0 0.0
      %1470 = vmatpush1.msra.mxu0 0.0
      %1471 = vmatprep.mubr.f32.mxu0 0.0
      %1472 = vmatmul.mubr.f32.gmra.mrb[0].mxu0 %v1387
      %v1473 = vpop.f32.mrb[0].mxu0
      %v1474 = vadd.f32 %v1357, %v1473
      %v1475 = vpop.f32.mrb[0].mxu0
      %v1476 = vadd.f32 %v1357, %v1475
      %1477 = vmatprep.mubr.f32.mxu0 0.0
      %1478 = vmatmul.mubr.f32.gmra.mrb[0].mxu0 %v1390
      %v1479 = vpop.f32.mrb[0].mxu0
      %v1480 = vadd.f32 %v1362, %v1479
      %v1481 = vpop.f32.mrb[0].mxu0
      %v1482 = vadd.f32 %v1362, %v1481
      %1483 = vmatprep.mubr.f32.mxu0 0.0
      %1484 = vmatmul.mubr.f32.gmra.mrb[0].mxu0 %v1393
      %v1485 = vpop.f32.mrb[0].mxu0
      %v1486 = vadd.f32 %v1367, %v1485
      %v1487 = vpop.f32.mrb[0].mxu0
      %v1488 = vadd.f32 %v1367, %v1487
      %1489 = vmatprep.mubr.f32.mxu0 0.0
      %1490 = vmatmul.mubr.f32.gmra.mrb[0].mxu0 %v1396
      %v1491 = vpop.f32.mrb[0].mxu0
      %v1492 = vadd.f32 %v1372, %v1491
      %v1493 = vpop.f32.mrb[0].mxu0
      %v1494 = vadd.f32 %v1372, %v1493
      %1495 = vmatprep.mubr.f32.mxu0 0.0
      %1496 = vmatmul.mubr.f32.gmra.mrb[0].mxu0 %v1399
      %v1497 = vpop.f32.mrb[0].mxu0
      %v1498 = vpop.f32.mrb[0].mxu0
      %1499 = vmatprep.mubr.f32.mxu0 0.0
      %1500 = vmatmul.mubr.f32.gmra.mrb[0].mxu0 %v1402
      %v1501 = vpop.f32.mrb[0].mxu0
      %v1502 = vpop.f32.mrb[0].mxu0
      %1503 = vmatprep.mubr.f32.mxu0 0.0
      %1504 = vmatmul.mubr.f32.gmra.mrb[0].mxu0 %v1405
      %v1505 = vpop.f32.mrb[0].mxu0
      %v1506 = vpop.f32.mrb[0].mxu0
      %1507 = vdwg.mxu0
      %1508 = vmatprep.subr.mxu0 %v1285
      %1509 = vmatpush1.msra.mxu0 %v1284
      %1510 = vmatprep.subr.mxu0 %v1293
      %1511 = vmatpush1.msra.mxu0 %v1292
      %1512 = vmatprep.subr.mxu0 %v1301
      %1513 = vmatpush1.msra.mxu0 %v1300
      %1514 = vmatprep.subr.mxu0 %v1309
      %1515 = vmatpush1.msra.mxu0 %v1308
      %1516 = vmatprep.subr.mxu0 %v1317
      %1517 = vmatpush1.msra.mxu0 %v1316
      %1518 = vmatprep.subr.mxu0 %v1325
      %1519 = vmatpush1.msra.mxu0 %v1324
      %1520 = vmatprep.subr.mxu0 %v1333
      %1521 = vmatpush1.msra.mxu0 %v1332
      %1522 = vmatprep.subr.mxu0 0.0
      %1523 = vmatpush1.msra.mxu0 0.0
      %1524 = vmatprep.subr.mxu0 0.0
      %1525 = vmatpush1.msra.mxu0 0.0
      %1526 = vmatprep.subr.mxu0 0.0
      %1527 = vmatpush1.msra.mxu0 0.0
      %1528 = vmatprep.subr.mxu0 0.0
      %1529 = vmatpush1.msra.mxu0 0.0
      %1530 = vmatprep.subr.mxu0 0.0
      %1531 = vmatpush1.msra.mxu0 0.0
      %1532 = vmatprep.subr.mxu0 0.0
      %1533 = vmatpush1.msra.mxu0 0.0
      %1534 = vmatprep.subr.mxu0 0.0
      %1535 = vmatpush1.msra.mxu0 0.0
      %1536 = vmatprep.subr.mxu0 0.0
      %1537 = vmatpush1.msra.mxu0 0.0
      %1538 = vmatprep.subr.mxu0 0.0
      %1539 = vmatpush1.msra.mxu0 0.0
      %1540 = vmatprep.subr.mxu0 0.0
      %1541 = vmatpush1.msra.mxu0 0.0
      %1542 = vmatprep.subr.mxu0 0.0
      %1543 = vmatpush1.msra.mxu0 0.0
      %1544 = vmatprep.subr.mxu0 0.0
      %1545 = vmatpush1.msra.mxu0 0.0
      %1546 = vmatprep.subr.mxu0 0.0
      %1547 = vmatpush1.msra.mxu0 0.0
      %1548 = vmatprep.subr.mxu0 0.0
      %1549 = vmatpush1.msra.mxu0 0.0
      %1550 = vmatprep.subr.mxu0 0.0
      %1551 = vmatpush1.msra.mxu0 0.0
      %1552 = vmatprep.subr.mxu0 0.0
      %1553 = vmatpush1.msra.mxu0 0.0
      %1554 = vmatprep.subr.mxu0 0.0
      %1555 = vmatpush1.msra.mxu0 0.0
      %1556 = vmatprep.subr.mxu0 0.0
      %1557 = vmatpush1.msra.mxu0 0.0
      %1558 = vmatprep.subr.mxu0 0.0
      %1559 = vmatpush1.msra.mxu0 0.0
      %1560 = vmatprep.subr.mxu0 0.0
      %1561 = vmatpush1.msra.mxu0 0.0
      %1562 = vmatprep.subr.mxu0 0.0
      %1563 = vmatpush1.msra.mxu0 0.0
      %1564 = vmatprep.subr.mxu0 0.0
      %1565 = vmatpush1.msra.mxu0 0.0
      %1566 = vmatprep.subr.mxu0 0.0
      %1567 = vmatpush1.msra.mxu0 0.0
      %1568 = vmatprep.subr.mxu0 0.0
      %1569 = vmatpush1.msra.mxu0 0.0
      %1570 = vmatprep.subr.mxu0 0.0
      %1571 = vmatpush1.msra.mxu0 0.0
      %1572 = vmatprep.mubr.f32.mxu0 0.0
      %1573 = vmatmul.mubr.f32.gmra.mrb[0].mxu0 %v1387
      %v1574 = vpop.f32.mrb[0].mxu0
      %v1575 = vadd.f32 %v1357, %v1574
      %v1576 = vpop.f32.mrb[0].mxu0
      %v1577 = vadd.f32 %v1357, %v1576
      %1578 = vmatprep.mubr.f32.mxu0 0.0
      %1579 = vmatmul.mubr.f32.gmra.mrb[0].mxu0 %v1390
      %v1580 = vpop.f32.mrb[0].mxu0
      %v1581 = vadd.f32 %v1362, %v1580
      %v1582 = vpop.f32.mrb[0].mxu0
      %v1583 = vadd.f32 %v1362, %v1582
      %1584 = vmatprep.mubr.f32.mxu0 0.0
      %1585 = vmatmul.mubr.f32.gmra.mrb[0].mxu0 %v1393
      %v1586 = vpop.f32.mrb[0].mxu0
      %v1587 = vadd.f32 %v1367, %v1586
      %v1588 = vpop.f32.mrb[0].mxu0
      %v1589 = vadd.f32 %v1367, %v1588
      %1590 = vmatprep.mubr.f32.mxu0 0.0
      %1591 = vmatmul.mubr.f32.gmra.mrb[0].mxu0 %v1396
      %v1592 = vpop.f32.mrb[0].mxu0
      %v1593 = vadd.f32 %v1372, %v1592
      %v1594 = vpop.f32.mrb[0].mxu0
      %v1595 = vadd.f32 %v1372, %v1594
      %1596 = vmatprep.mubr.f32.mxu0 0.0
      %1597 = vmatmul.mubr.f32.gmra.mrb[0].mxu0 %v1399
      %v1598 = vpop.f32.mrb[0].mxu0
      %v1599 = vpop.f32.mrb[0].mxu0
      %1600 = vmatprep.mubr.f32.mxu0 0.0
      %1601 = vmatmul.mubr.f32.gmra.mrb[0].mxu0 %v1402
      %v1602 = vpop.f32.mrb[0].mxu0
      %v1603 = vpop.f32.mrb[0].mxu0
      %1604 = vmatprep.mubr.f32.mxu0 0.0
      %1605 = vmatmul.mubr.f32.gmra.mrb[0].mxu0 %v1405
      %v1606 = vpop.f32.mrb[0].mxu0
      %v1607 = vpop.f32.mrb[0].mxu0
      %1608 = vdwg.mxu0
      %1609 = vmatprep.subr.mxu0 %v1287
      %1610 = vmatpush1.msra.mxu0 %v1286
      %1611 = vmatprep.subr.mxu0 %v1295
      %1612 = vmatpush1.msra.mxu0 %v1294
      %1613 = vmatprep.subr.mxu0 %v1303
      %1614 = vmatpush1.msra.mxu0 %v1302
      %1615 = vmatprep.subr.mxu0 %v1311
      %1616 = vmatpush1.msra.mxu0 %v1310
      %1617 = vmatprep.subr.mxu0 %v1319
      %1618 = vmatpush1.msra.mxu0 %v1318
      %1619 = vmatprep.subr.mxu0 %v1327
      %1620 = vmatpush1.msra.mxu0 %v1326
      %1621 = vmatprep.subr.mxu0 %v1335
      %1622 = vmatpush1.msra.mxu0 %v1334
      %1623 = vmatprep.subr.mxu0 0.0
      %1624 = vmatpush1.msra.mxu0 0.0
      %1625 = vmatprep.subr.mxu0 0.0
      %1626 = vmatpush1.msra.mxu0 0.0
      %1627 = vmatprep.subr.mxu0 0.0
      %1628 = vmatpush1.msra.mxu0 0.0
      %1629 = vmatprep.subr.mxu0 0.0
      %1630 = vmatpush1.msra.mxu0 0.0
      %1631 = vmatprep.subr.mxu0 0.0
      %1632 = vmatpush1.msra.mxu0 0.0
      %1633 = vmatprep.subr.mxu0 0.0
      %1634 = vmatpush1.msra.mxu0 0.0
      %1635 = vmatprep.subr.mxu0 0.0
      %1636 = vmatpush1.msra.mxu0 0.0
      %1637 = vmatprep.subr.mxu0 0.0
      %1638 = vmatpush1.msra.mxu0 0.0
      %1639 = vmatprep.subr.mxu0 0.0
      %1640 = vmatpush1.msra.mxu0 0.0
      %1641 = vmatprep.subr.mxu0 0.0
      %1642 = vmatpush1.msra.mxu0 0.0
      %1643 = vmatprep.subr.mxu0 0.0
      %1644 = vmatpush1.msra.mxu0 0.0
      %1645 = vmatprep.subr.mxu0 0.0
      %1646 = vmatpush1.msra.mxu0 0.0
      %1647 = vmatprep.subr.mxu0 0.0
      %1648 = vmatpush1.msra.mxu0 0.0
      %1649 = vmatprep.subr.mxu0 0.0
      %1650 = vmatpush1.msra.mxu0 0.0
      %1651 = vmatprep.subr.mxu0 0.0
      %1652 = vmatpush1.msra.mxu0 0.0
      %1653 = vmatprep.subr.mxu0 0.0
      %1654 = vmatpush1.msra.mxu0 0.0
      %1655 = vmatprep.subr.mxu0 0.0
      %1656 = vmatpush1.msra.mxu0 0.0
      %1657 = vmatprep.subr.mxu0 0.0
      %1658 = vmatpush1.msra.mxu0 0.0
      %1659 = vmatprep.subr.mxu0 0.0
      %1660 = vmatpush1.msra.mxu0 0.0
      %1661 = vmatprep.subr.mxu0 0.0
      %1662 = vmatpush1.msra.mxu0 0.0
      %1663 = vmatprep.subr.mxu0 0.0
      %1664 = vmatpush1.msra.mxu0 0.0
      %1665 = vmatprep.subr.mxu0 0.0
      %1666 = vmatpush1.msra.mxu0 0.0
      %1667 = vmatprep.subr.mxu0 0.0
      %1668 = vmatpush1.msra.mxu0 0.0
      %1669 = vmatprep.subr.mxu0 0.0
      %1670 = vmatpush1.msra.mxu0 0.0
      %1671 = vmatprep.subr.mxu0 0.0
      %1672 = vmatpush1.msra.mxu0 0.0
      %1673 = vmatprep.mubr.f32.mxu0 0.0
      %1674 = vmatmul.mubr.f32.gmra.mrb[0].mxu0 %v1387
      %v1675 = vpop.f32.mrb[0].mxu0
      %v1676 = vadd.f32 %v1357, %v1675
      %v1677 = vpop.f32.mrb[0].mxu0
      %v1678 = vadd.f32 %v1357, %v1677
      %1679 = vmatprep.mubr.f32.mxu0 0.0
      %1680 = vmatmul.mubr.f32.gmra.mrb[0].mxu0 %v1390
      %v1681 = vpop.f32.mrb[0].mxu0
      %v1682 = vadd.f32 %v1362, %v1681
      %v1683 = vpop.f32.mrb[0].mxu0
      %v1684 = vadd.f32 %v1362, %v1683
      %1685 = vmatprep.mubr.f32.mxu0 0.0
      %1686 = vmatmul.mubr.f32.gmra.mrb[0].mxu0 %v1393
      %v1687 = vpop.f32.mrb[0].mxu0
      %v1688 = vadd.f32 %v1367, %v1687
      %v1689 = vpop.f32.mrb[0].mxu0
      %v1690 = vadd.f32 %v1367, %v1689
      %1691 = vmatprep.mubr.f32.mxu0 0.0
      %1692 = vmatmul.mubr.f32.gmra.mrb[0].mxu0 %v1396
      %v1693 = vpop.f32.mrb[0].mxu0
      %v1694 = vadd.f32 %v1372, %v1693
      %v1695 = vpop.f32.mrb[0].mxu0
      %v1696 = vadd.f32 %v1372, %v1695
      %1697 = vmatprep.mubr.f32.mxu0 0.0
      %1698 = vmatmul.mubr.f32.gmra.mrb[0].mxu0 %v1399
      %v1699 = vpop.f32.mrb[0].mxu0
      %v1700 = vpop.f32.mrb[0].mxu0
      %1701 = vmatprep.mubr.f32.mxu0 0.0
      %1702 = vmatmul.mubr.f32.gmra.mrb[0].mxu0 %v1402
      %v1703 = vpop.f32.mrb[0].mxu0
      %v1704 = vpop.f32.mrb[0].mxu0
      %1705 = vmatprep.mubr.f32.mxu0 0.0
      %1706 = vmatmul.mubr.f32.gmra.mrb[0].mxu0 %v1405
      %v1707 = vpop.f32.mrb[0].mxu0
      %v1708 = vpop.f32.mrb[0].mxu0
      %1709 = vdwg.mxu0
      %1710 = vmatprep.subr.mxu0 %v1289
      %1711 = vmatpush1.msra.mxu0 %v1288
      %1712 = vmatprep.subr.mxu0 %v1297
      %1713 = vmatpush1.msra.mxu0 %v1296
      %1714 = vmatprep.subr.mxu0 %v1305
      %1715 = vmatpush1.msra.mxu0 %v1304
      %1716 = vmatprep.subr.mxu0 %v1313
      %1717 = vmatpush1.msra.mxu0 %v1312
      %1718 = vmatprep.subr.mxu0 %v1321
      %1719 = vmatpush1.msra.mxu0 %v1320
      %1720 = vmatprep.subr.mxu0 %v1329
      %1721 = vmatpush1.msra.mxu0 %v1328
      %1722 = vmatprep.subr.mxu0 %v1337
      %1723 = vmatpush1.msra.mxu0 %v1336
      %1724 = vmatprep.subr.mxu0 0.0
      %1725 = vmatpush1.msra.mxu0 0.0
      %1726 = vmatprep.subr.mxu0 0.0
      %1727 = vmatpush1.msra.mxu0 0.0
      %1728 = vmatprep.subr.mxu0 0.0
      %1729 = vmatpush1.msra.mxu0 0.0
      %1730 = vmatprep.subr.mxu0 0.0
      %1731 = vmatpush1.msra.mxu0 0.0
      %1732 = vmatprep.subr.mxu0 0.0
      %1733 = vmatpush1.msra.mxu0 0.0
      %1734 = vmatprep.subr.mxu0 0.0
      %1735 = vmatpush1.msra.mxu0 0.0
      %1736 = vmatprep.subr.mxu0 0.0
      %1737 = vmatpush1.msra.mxu0 0.0
      %1738 = vmatprep.subr.mxu0 0.0
      %1739 = vmatpush1.msra.mxu0 0.0
      %1740 = vmatprep.subr.mxu0 0.0
      %1741 = vmatpush1.msra.mxu0 0.0
      %1742 = vmatprep.subr.mxu0 0.0
      %1743 = vmatpush1.msra.mxu0 0.0
      %1744 = vmatprep.subr.mxu0 0.0
      %1745 = vmatpush1.msra.mxu0 0.0
      %1746 = vmatprep.subr.mxu0 0.0
      %1747 = vmatpush1.msra.mxu0 0.0
      %1748 = vmatprep.subr.mxu0 0.0
      %1749 = vmatpush1.msra.mxu0 0.0
      %1750 = vmatprep.subr.mxu0 0.0
      %1751 = vmatpush1.msra.mxu0 0.0
      %1752 = vmatprep.subr.mxu0 0.0
      %1753 = vmatpush1.msra.mxu0 0.0
      %1754 = vmatprep.subr.mxu0 0.0
      %1755 = vmatpush1.msra.mxu0 0.0
      %1756 = vmatprep.subr.mxu0 0.0
      %1757 = vmatpush1.msra.mxu0 0.0
      %1758 = vmatprep.subr.mxu0 0.0
      %1759 = vmatpush1.msra.mxu0 0.0
      %1760 = vmatprep.subr.mxu0 0.0
      %1761 = vmatpush1.msra.mxu0 0.0
      %1762 = vmatprep.subr.mxu0 0.0
      %1763 = vmatpush1.msra.mxu0 0.0
      %1764 = vmatprep.subr.mxu0 0.0
      %1765 = vmatpush1.msra.mxu0 0.0
      %1766 = vmatprep.subr.mxu0 0.0
      %1767 = vmatpush1.msra.mxu0 0.0
      %1768 = vmatprep.subr.mxu0 0.0
      %1769 = vmatpush1.msra.mxu0 0.0
      %1770 = vmatprep.subr.mxu0 0.0
      %1771 = vmatpush1.msra.mxu0 0.0
      %1772 = vmatprep.subr.mxu0 0.0
      %1773 = vmatpush1.msra.mxu0 0.0
      %1774 = vmatprep.mubr.f32.mxu0 0.0
      %1775 = vmatmul.mubr.f32.gmra.mrb[0].mxu0 %v1387
      %v1776 = vpop.f32.mrb[0].mxu0
      %v1777 = vadd.f32 %v1357, %v1776
      %v1778 = vpop.f32.mrb[0].mxu0
      %v1779 = vadd.f32 %v1357, %v1778
      %1780 = vmatprep.mubr.f32.mxu0 0.0
      %1781 = vmatmul.mubr.f32.gmra.mrb[0].mxu0 %v1390
      %v1782 = vpop.f32.mrb[0].mxu0
      %v1783 = vadd.f32 %v1362, %v1782
      %v1784 = vpop.f32.mrb[0].mxu0
      %v1785 = vadd.f32 %v1362, %v1784
      %1786 = vmatprep.mubr.f32.mxu0 0.0
      %1787 = vmatmul.mubr.f32.gmra.mrb[0].mxu0 %v1393
      %v1788 = vpop.f32.mrb[0].mxu0
      %v1789 = vadd.f32 %v1367, %v1788
      %v1790 = vpop.f32.mrb[0].mxu0
      %v1791 = vadd.f32 %v1367, %v1790
      %1792 = vmatprep.mubr.f32.mxu0 0.0
      %1793 = vmatmul.mubr.f32.gmra.mrb[0].mxu0 %v1396
      %v1794 = vpop.f32.mrb[0].mxu0
      %v1795 = vadd.f32 %v1372, %v1794
      %v1796 = vpop.f32.mrb[0].mxu0
      %v1797 = vadd.f32 %v1372, %v1796
      %1798 = vmatprep.mubr.f32.mxu0 0.0
      %1799 = vmatmul.mubr.f32.gmra.mrb[0].mxu0 %v1399
      %v1800 = vpop.f32.mrb[0].mxu0
      %v1801 = vpop.f32.mrb[0].mxu0
      %1802 = vmatprep.mubr.f32.mxu0 0.0
      %1803 = vmatmul.mubr.f32.gmra.mrb[0].mxu0 %v1402
      %v1804 = vpop.f32.mrb[0].mxu0
      %v1805 = vpop.f32.mrb[0].mxu0
      %1806 = vmatprep.mubr.f32.mxu0 0.0
      %1807 = vmatmul.mubr.f32.gmra.mrb[0].mxu0 %v1405
      %v1808 = vpop.f32.mrb[0].mxu0
      %v1809 = vpop.f32.mrb[0].mxu0
      %1810 = vdwg.mxu0
      %v1811 = vmax.f32 %v1474, 0.0
      %v1812 = vmax.f32 %v1476, 0.0
      %v1813 = vmax.f32 %v1575, 0.0
      %v1814 = vmax.f32 %v1577, 0.0
      %v1815 = vmax.f32 %v1676, 0.0
      %v1816 = vmax.f32 %v1678, 0.0
      %v1817 = vmax.f32 %v1777, 0.0
      %v1818 = vmax.f32 %v1779, 0.0
      %v1819 = vmax.f32 %v1480, 0.0
      %v1820 = vmax.f32 %v1482, 0.0
      %v1821 = vmax.f32 %v1581, 0.0
      %v1822 = vmax.f32 %v1583, 0.0
      %v1823 = vmax.f32 %v1682, 0.0
      %v1824 = vmax.f32 %v1684, 0.0
      %v1825 = vmax.f32 %v1783, 0.0
      %v1826 = vmax.f32 %v1785, 0.0
      %v1827 = vmax.f32 %v1486, 0.0
      %v1828 = vmax.f32 %v1488, 0.0
      %v1829 = vmax.f32 %v1587, 0.0
      %v1830 = vmax.f32 %v1589, 0.0
      %v1831 = vmax.f32 %v1688, 0.0
      %v1832 = vmax.f32 %v1690, 0.0
      %v1833 = vmax.f32 %v1789, 0.0
      %v1834 = vmax.f32 %v1791, 0.0
      %v1835 = vmax.f32 %v1492, 0.0
      %v1836 = vmax.f32 %v1494, 0.0
      %v1837 = vmax.f32 %v1593, 0.0
      %v1838 = vmax.f32 %v1595, 0.0
      %v1839 = vmax.f32 %v1694, 0.0
      %v1840 = vmax.f32 %v1696, 0.0
      %v1841 = vmax.f32 %v1795, 0.0
      %v1842 = vmax.f32 %v1797, 0.0
      %v1843 = vmax.f32 %v1811, %v1812
      %v1844 = vmax.f32 %v1819, %v1820
      %v1845 = vmax.f32 %v1827, %v1828
      %v1846 = vmax.f32 %v1835, %v1836
      %v1847 = vmax.f32 %v1843, %v1813
      %v1848 = vmax.f32 %v1844, %v1821
      %v1849 = vmax.f32 %v1845, %v1829
      %v1850 = vmax.f32 %v1846, %v1837
      %v1851 = vmax.f32 %v1847, %v1814
      %v1852 = vmax.f32 %v1848, %v1822
      %v1853 = vmax.f32 %v1849, %v1830
      %v1854 = vmax.f32 %v1850, %v1838
      %v1855 = vmax.f32 %v1851, %v1815
      %v1856 = vmax.f32 %v1852, %v1823
      %v1857 = vmax.f32 %v1853, %v1831
      %v1858 = vmax.f32 %v1854, %v1839
      %v1859 = vmax.f32 %v1855, %v1816
      %v1860 = vmax.f32 %v1856, %v1824
      %v1861 = vmax.f32 %v1857, %v1832
      %v1862 = vmax.f32 %v1858, %v1840
      %v1863 = vmax.f32 %v1859, %v1817
      %v1864 = vmax.f32 %v1860, %v1825
      %v1865 = vmax.f32 %v1861, %v1833
      %v1866 = vmax.f32 %v1862, %v1841
      %v1867 = vmax.f32 %v1863, %v1818
      %v1868 = vmax.f32 %v1864, %v1826
      %v1869 = vmax.f32 %v1865, %v1834
      %v1870 = vmax.f32 %v1866, %v1842
      %1871 = vst [vmem:[%s170] sm:$0xff] %v1867
      %1872 = vst [vmem:[%s170 + $0x8] sm:$0xff] %v1868
      %1873 = vst [vmem:[%s170 + $0x10] sm:$0xff] %v1869
      %1874 = vst [vmem:[%s170 + $0x18] sm:$0xff] %v1870
      %p1875 = scmp.lt.s32.totalorder %s14, 1
      %s1876 = scalar_select %p1875, %s14, 1
      %s1877 = smul.addr %s1876, 4
      %s1878 = smul.addr %s1877, 8
      %s1879 = scalar_lea.vmem %s3, %s1878
      // Predicated region
      $region33: #{pointnet2_msg_forward.13} parent=31 // pred_check
        %p1880 = pneg %p100
      $region34: #{pointnet2_msg_forward.13} parent=31 // pred_check_branch
        %1882 = sbr.rel (%p1880) target = $region36
      $region35: #{pointnet2_msg_forward.13} parent=31 // pred_region
        _
      $region36: #{pointnet2_msg_forward.13} parent=31 // pred_fallthru
        _
    $region32: #{pointnet2_msg_forward.13} parent=5 // pred_fallthru
      _
    %p1883 = scmp.le.s32.totalorder 2, %s9
    // Predicated region
    $region37: #{pointnet2_msg_forward.13} parent=5 // pred_check
      %p1884 = pneg %p1883
    $region38: #{pointnet2_msg_forward.13} parent=5 // pred_check_branch
      %1886 = sbr.rel (%p1884) target = $region40
    $region39: #{pointnet2_msg_forward.13} parent=5 // pred_region
      %s1887 = ssub.s32 %s9, 2
      // Predicated region
      $region41: #{pointnet2_msg_forward.13} parent=39 // pred_check
        %p1888 = pneg %p106
      $region42: #{pointnet2_msg_forward.13} parent=39 // pred_check_branch
        %1890 = sbr.rel (%p1888) target = $region44
      $region43: #{pointnet2_msg_forward.13} parent=39 // pred_region
        %p1891 = scmp.lt.s32.totalorder %s15, 1
        %s1892 = scalar_select %p1891, %s15, 1
        %s1893 = smul.addr %s1892, 4
        %s1894 = smul.addr %s1893, 8
        %s1895 = scalar_lea.vmem %s3, %s1894
      $region44: #{pointnet2_msg_forward.13} parent=39 // pred_fallthru
        _
    $region40: #{pointnet2_msg_forward.13} parent=5 // pred_fallthru
      _
  $region6: #{pointnet2_msg_forward.13} parent=0 // loop_footer
    %s13 = sadd.s32 1, %s9
  $region7: #{pointnet2_msg_forward.13} parent=0 // loop_footer_branch
    %8 = sbr.rel target = $region3
  $region8: #{pointnet2_msg_forward.13} parent=0 // loop_exit
    _

// kernel: pointnet2_msg_forward.14
$region0: #{pointnet2_msg_forward.14}
  #allocation0 [shape = 'u32[]', space=smem, size = 0x4, offset = 0x4, fixed_abs, tag = 'smem constant byte address 0x4 - core index']
  #allocation1 [shape = 'u32[144,128]{1,0:T(1,128)}', space=vmem, size = 0x12000, scoped, tag = 'internal scratch']
  %s0 = inlined_call_operand.vmem [shape: f32[2,56,256], index: 0, kind: input, shape index: {}]
  %s1 = inlined_call_operand.vmem [shape: f32[3,56,56], index: 1, kind: input, shape index: {}]
  %s2 = inlined_call_operand.vmem [shape: f32[3,56,1], index: 2, kind: input, shape index: {}]
  %s3 = inlined_call_operand.vmem [shape: f32[2,32,64], index: 3, kind: output, shape index: {}]
  %s4 = sld [smem:[#allocation0]]
  $region45: #{pointnet2_msg_forward.14} parent=0
    _
  %s6 = ssub.s32 1, %s4
  %s7 = scalar_select 0, %s6, %s4
  loop: start=0, step=1, limit=4
  $region2: #{pointnet2_msg_forward.14} parent=0 // loop_pre_header
    _
  $region3: #{pointnet2_msg_forward.14} parent=0 // loop_header
    %s9 = sphi 0, %s13
    %p10 = scmp.ge.s32.totalorder %s9, 4
    %s19 = sphi 0, %s21
    %s22 = sphi 0, %s19
    %s23 = sphi 0, %s22
    %s39 = sphi 0, %s23
    %s43 = sphi 0, %s43
    %s45 = sphi 0, %s43
    %s46 = sphi 0, %s45
    %s60 = sphi 0, %s46
    %s64 = sphi 0, %s64
    %s66 = sphi 0, %s64
    %s67 = sphi 0, %s66
    %s81 = sphi 0, %s67
    %s87 = sphi 0, %s89
    %s90 = sphi 0, %s87
    %s91 = sphi 0, %s90
    %s107 = sphi 0, %s91
  $region4: #{pointnet2_msg_forward.14} parent=0 // loop_header_branch
    %12 = sbr.rel (%p10) target = $region8
  $region5: #{pointnet2_msg_forward.14} parent=0 // loop_body
    %s14 = ssub.s32 %s9, 1
    %s15 = ssub.s32 %s9, 2
    %s16 = sadd.s32 %s9, 1
    %s17 = ssub.s32 %s9, %s16
    %p18 = scmp.eq.s32.totalorder %s17, 0
    %s20 = sadd.s32 %s19, 1
    %s21 = scalar_select %p18, %s19, %s20
    %p24 = pneg %p18
    %p25 = scmp.eq.s32.totalorder %s9, 1
    %p26 = por %p24, %p25
    %p27 = scmp.ne.s32.totalorder %s19, %s22
    %p28 = scmp.eq.s32.totalorder %s9, 0
    %p29 = por %p27, %p28
    %p30 = scmp.ne.s32.totalorder %s19, %s22
    %p31 = scmp.eq.s32.totalorder %s14, 1
    %p32 = por %p30, %p31
    %p33 = scmp.ne.s32.totalorder %s22, %s23
    %p34 = scmp.eq.s32.totalorder %s14, 0
    %p35 = por %p33, %p34
    %p36 = scmp.ne.s32.totalorder %s22, %s23
    %p37 = scmp.eq.s32.totalorder %s15, 1
    %p38 = por %p36, %p37
    %p40 = scmp.ne.s32.totalorder %s23, %s39
    %p41 = scmp.eq.s32.totalorder %s15, 0
    %p42 = por %p40, %p41
    %s44 = sadd.s32 %s43, 1
    %p47 = scmp.eq.s32.totalorder %s9, 1
    %p48 = scmp.ne.s32.totalorder %s43, %s45
    %p49 = scmp.eq.s32.totalorder %s9, 0
    %p50 = por %p48, %p49
    %p51 = scmp.ne.s32.totalorder %s43, %s45
    %p52 = scmp.eq.s32.totalorder %s14, 1
    %p53 = por %p51, %p52
    %p54 = scmp.ne.s32.totalorder %s45, %s46
    %p55 = scmp.eq.s32.totalorder %s14, 0
    %p56 = por %p54, %p55
    %p57 = scmp.ne.s32.totalorder %s45, %s46
    %p58 = scmp.eq.s32.totalorder %s15, 1
    %p59 = por %p57, %p58
    %p61 = scmp.ne.s32.totalorder %s46, %s60
    %p62 = scmp.eq.s32.totalorder %s15, 0
    %p63 = por %p61, %p62
    %s65 = sadd.s32 %s64, 1
    %p68 = scmp.eq.s32.totalorder %s9, 1
    %p69 = scmp.ne.s32.totalorder %s64, %s66
    %p70 = scmp.eq.s32.totalorder %s9, 0
    %p71 = por %p69, %p70
    %p72 = scmp.ne.s32.totalorder %s64, %s66
    %p73 = scmp.eq.s32.totalorder %s14, 1
    %p74 = por %p72, %p73
    %p75 = scmp.ne.s32.totalorder %s66, %s67
    %p76 = scmp.eq.s32.totalorder %s14, 0
    %p77 = por %p75, %p76
    %p78 = scmp.ne.s32.totalorder %s66, %s67
    %p79 = scmp.eq.s32.totalorder %s15, 1
    %p80 = por %p78, %p79
    %p82 = scmp.ne.s32.totalorder %s67, %s81
    %p83 = scmp.eq.s32.totalorder %s15, 0
    %p84 = por %p82, %p83
    %s85 = ssub.s32 %s9, %s16
    %p86 = scmp.eq.s32.totalorder %s85, 0
    %s88 = sadd.s32 %s87, 1
    %s89 = scalar_select %p86, %s87, %s88
    %p92 = pneg %p86
    %p93 = scmp.eq.s32.totalorder %s9, 1
    %p94 = por %p92, %p93
    %p95 = scmp.ne.s32.totalorder %s87, %s90
    %p96 = scmp.eq.s32.totalorder %s9, 0
    %p97 = por %p95, %p96
    %p98 = scmp.ne.s32.totalorder %s87, %s90
    %p99 = scmp.eq.s32.totalorder %s14, 1
    %p100 = por %p98, %p99
    %p101 = scmp.ne.s32.totalorder %s90, %s91
    %p102 = scmp.eq.s32.totalorder %s14, 0
    %p103 = por %p101, %p102
    %p104 = scmp.ne.s32.totalorder %s90, %s91
    %p105 = scmp.eq.s32.totalorder %s15, 1
    %p106 = por %p104, %p105
    %p108 = scmp.ne.s32.totalorder %s91, %s107
    %p109 = scmp.eq.s32.totalorder %s15, 0
    %p110 = por %p108, %p109
    %p111 = scmp.le.s32.totalorder 1, %s9
    %p112 = scmp.lt.s32.totalorder %s9, 3
    %p113 = pnand %p111, %p112
    %p114 = pneg %p113
    // Predicated region
    $region9: #{pointnet2_msg_forward.14} parent=5 // pred_check
      _
    $region10: #{pointnet2_msg_forward.14} parent=5 // pred_check_branch
      %116 = sbr.rel (%p113) target = $region12
    $region11: #{pointnet2_msg_forward.14} parent=5 // pred_region
      %s117 = ssub.s32 %s9, 1
      // Predicated region
      $region13: #{pointnet2_msg_forward.14} parent=11 // pred_check
        %p118 = pneg %p56
      $region14: #{pointnet2_msg_forward.14} parent=11 // pred_check_branch
        %120 = sbr.rel (%p118) target = $region16
      $region15: #{pointnet2_msg_forward.14} parent=11 // pred_region
        _
      $region16: #{pointnet2_msg_forward.14} parent=11 // pred_fallthru
        _
      // Predicated region
      $region17: #{pointnet2_msg_forward.14} parent=11 // pred_check
        %p121 = pneg %p77
      $region18: #{pointnet2_msg_forward.14} parent=11 // pred_check_branch
        %123 = sbr.rel (%p121) target = $region20
      $region19: #{pointnet2_msg_forward.14} parent=11 // pred_region
        _
      $region20: #{pointnet2_msg_forward.14} parent=11 // pred_fallthru
        _
    $region12: #{pointnet2_msg_forward.14} parent=5 // pred_fallthru
      _
    %p124 = scmp.lt.s32.totalorder %s9, 2
    // Predicated region
    $region21: #{pointnet2_msg_forward.14} parent=5 // pred_check
      %p125 = pneg %p124
    $region22: #{pointnet2_msg_forward.14} parent=5 // pred_check_branch
      %127 = sbr.rel (%p125) target = $region24
    $region23: #{pointnet2_msg_forward.14} parent=5 // pred_region
      // Predicated region
      $region25: #{pointnet2_msg_forward.14} parent=23 // pred_check
        %p128 = pneg %p29
      $region26: #{pointnet2_msg_forward.14} parent=23 // pred_check_branch
        %130 = sbr.rel (%p128) target = $region28
      $region27: #{pointnet2_msg_forward.14} parent=23 // pred_region
        %p131 = scmp.lt.s32.totalorder %s9, 1
        %s132 = scalar_select %p131, %s9, 1
        %s133 = smul.addr %s132, 14
        %s134 = smul.addr %s133, 8
        %s135 = scalar_lea.vmem %s0, %s134
      $region28: #{pointnet2_msg_forward.14} parent=23 // pred_fallthru
        _
    $region24: #{pointnet2_msg_forward.14} parent=5 // pred_fallthru
      _
    %p136 = scmp.le.s32.totalorder 1, %s9
    %p137 = scmp.lt.s32.totalorder %s9, 3
    %p138 = pnand %p136, %p137
    %p139 = pneg %p138
    // Predicated region
    $region29: #{pointnet2_msg_forward.14} parent=5 // pred_check
      _
    $region30: #{pointnet2_msg_forward.14} parent=5 // pred_check_branch
      %141 = sbr.rel (%p138) target = $region32
    $region31: #{pointnet2_msg_forward.14} parent=5 // pred_region
      %s142 = ssub.s32 %s9, 1
      %p143 = scmp.lt.s32.totalorder %s14, 1
      %s144 = scalar_select %p143, %s14, 1
      %s145 = smul.addr %s144, 14
      %s146 = smul.addr %s145, 8
      %s147 = scalar_lea.vmem %s0, %s146
      %p148 = pneg %p35
      %p149 = pneg %p32
      %p150 = pneg %p56
      %p151 = pneg %p53
      %p152 = pneg %p77
      %p153 = pneg %p74
      %p154 = pneg %p103
      %p155 = pneg %p100
      %p156 = scmp.lt.s32.totalorder %s14, 1
      %s157 = scalar_select %p156, %s14, 1
      %s158 = smul.addr %s157, 4
      %s159 = smul.addr %s158, 8
      %s160 = scalar_lea.vmem %s3, %s159
      %p161 = scmp.lt.s32.totalorder %s14, 1
      %s162 = scalar_select %p161, %s14, 1
      %s163 = smul.addr %s162, 14
      %s164 = smul.addr %s163, 8
      %s165 = scalar_lea.vmem %s0, %s164
      %p166 = scmp.lt.s32.totalorder %s14, 1
      %s167 = scalar_select %p166, %s14, 1
      %s168 = smul.addr %s167, 4
      %s169 = smul.addr %s168, 8
      %s170 = scalar_lea.vmem %s3, %s169
      %v171 = vld [vmem:[%s165] sm:$0xff]
      %v172 = vld [vmem:[%s165 + $0x8] sm:$0xff]
      %v173 = vld [vmem:[%s165 + $0x10] sm:$0xff]
      %v174 = vld [vmem:[%s165 + $0x18] sm:$0xff]
      %v175 = vld [vmem:[%s165 + $0x20] sm:$0xff]
      %v176 = vld [vmem:[%s165 + $0x28] sm:$0xff]
      %v177 = vld [vmem:[%s165 + $0x30] sm:$0xff]
      %v178 = vld [vmem:[%s165 + $0x38] sm:$0xff]
      %v179 = vld [vmem:[%s165 + $0x40] sm:$0xff]
      %v180 = vld [vmem:[%s165 + $0x48] sm:$0xff]
      %v181 = vld [vmem:[%s165 + $0x50] sm:$0xff]
      %v182 = vld [vmem:[%s165 + $0x58] sm:$0xff]
      %v183 = vld [vmem:[%s165 + $0x60] sm:$0xff]
      %v184 = vld [vmem:[%s165 + $0x68] sm:$0xff]
      %v185 = vld [vmem:[%s1] sm:$0xff]
      %v186 = vld [vmem:[%s1 + $0x8] sm:$0xff]
      %v187 = vld [vmem:[%s1 + $0x10] sm:$0xff]
      %v188 = vld [vmem:[%s1 + $0x18] sm:$0xff]
      %v189 = vld [vmem:[%s1 + $0x20] sm:$0xff]
      %v190 = vld [vmem:[%s1 + $0x28] sm:$0xff]
      %v191 = vld [vmem:[%s1 + $0x30] sm:$0xff]
      %v192 = vld [vmem:[%s2] sm:$0xff]
      %v193 = vld [vmem:[%s2 + $0x8] sm:$0xff]
      %v194 = vld [vmem:[%s2 + $0x10] sm:$0xff]
      %v195 = vld [vmem:[%s2 + $0x18] sm:$0xff]
      %v196 = vld [vmem:[%s2 + $0x20] sm:$0xff]
      %v197 = vld [vmem:[%s2 + $0x28] sm:$0xff]
      %v198 = vld [vmem:[%s2 + $0x30] sm:$0xff]
      %200 = vset.pattern.permute.xlu0 0
      %201 = vperm.xlu0 %200, %v192
      %v202 = vpop.permute.xlu0 %201
      %205 = vset.pattern.permute.xlu0 0
      %206 = vperm.xlu0 %205, %v193
      %v207 = vpop.permute.xlu0 %206
      %210 = vset.pattern.permute.xlu0 0
      %211 = vperm.xlu0 %210, %v194
      %v212 = vpop.permute.xlu0 %211
      %215 = vset.pattern.permute.xlu0 0
      %216 = vperm.xlu0 %215, %v195
      %v217 = vpop.permute.xlu0 %216
      %220 = vset.pattern.permute.xlu0 0
      %221 = vperm.xlu0 %220, %v196
      %v222 = vpop.permute.xlu0 %221
      %225 = vset.pattern.permute.xlu0 0
      %226 = vperm.xlu0 %225, %v197
      %v227 = vpop.permute.xlu0 %226
      %230 = vset.pattern.permute.xlu0 0
      %231 = vperm.xlu0 %230, %v198
      %v232 = vpop.permute.xlu0 %231
      %vm234 = vcmask 457728
      %v236 = vsel %vm234, %v185, 0
      %v239 = vsel %vm234, %v186, 0
      %v242 = vsel %vm234, %v187, 0
      %v245 = vsel %vm234, %v188, 0
      %v248 = vsel %vm234, %v189, 0
      %v251 = vsel %vm234, %v190, 0
      %v254 = vsel %vm234, %v191, 0
      %256 = vmatprep.subr.mxu0 %v172
      %257 = vmatpush1.msra.mxu0 %v171
      %258 = vmatprep.subr.mxu0 %v174
      %259 = vmatpush1.msra.mxu0 %v173
      %260 = vmatprep.subr.mxu0 %v176
      %261 = vmatpush1.msra.mxu0 %v175
      %262 = vmatprep.subr.mxu0 %v178
      %263 = vmatpush1.msra.mxu0 %v177
      %264 = vmatprep.subr.mxu0 %v180
      %265 = vmatpush1.msra.mxu0 %v179
      %266 = vmatprep.subr.mxu0 %v182
      %267 = vmatpush1.msra.mxu0 %v181
      %268 = vmatprep.subr.mxu0 %v184
      %269 = vmatpush1.msra.mxu0 %v183
      %270 = vmatprep.subr.mxu0 0.0
      %271 = vmatpush1.msra.mxu0 0.0
      %272 = vmatprep.subr.mxu0 0.0
      %273 = vmatpush1.msra.mxu0 0.0
      %274 = vmatprep.subr.mxu0 0.0
      %275 = vmatpush1.msra.mxu0 0.0
      %276 = vmatprep.subr.mxu0 0.0
      %277 = vmatpush1.msra.mxu0 0.0
      %278 = vmatprep.subr.mxu0 0.0
      %279 = vmatpush1.msra.mxu0 0.0
      %280 = vmatprep.subr.mxu0 0.0
      %281 = vmatpush1.msra.mxu0 0.0
      %282 = vmatprep.subr.mxu0 0.0
      %283 = vmatpush1.msra.mxu0 0.0
      %284 = vmatprep.subr.mxu0 0.0
      %285 = vmatpush1.msra.mxu0 0.0
      %286 = vmatprep.subr.mxu0 0.0
      %287 = vmatpush1.msra.mxu0 0.0
      %288 = vmatprep.subr.mxu0 0.0
      %289 = vmatpush1.msra.mxu0 0.0
      %290 = vmatprep.subr.mxu0 0.0
      %291 = vmatpush1.msra.mxu0 0.0
      %292 = vmatprep.subr.mxu0 0.0
      %293 = vmatpush1.msra.mxu0 0.0
      %294 = vmatprep.subr.mxu0 0.0
      %295 = vmatpush1.msra.mxu0 0.0
      %296 = vmatprep.subr.mxu0 0.0
      %297 = vmatpush1.msra.mxu0 0.0
      %298 = vmatprep.subr.mxu0 0.0
      %299 = vmatpush1.msra.mxu0 0.0
      %300 = vmatprep.subr.mxu0 0.0
      %301 = vmatpush1.msra.mxu0 0.0
      %302 = vmatprep.subr.mxu0 0.0
      %303 = vmatpush1.msra.mxu0 0.0
      %304 = vmatprep.subr.mxu0 0.0
      %305 = vmatpush1.msra.mxu0 0.0
      %306 = vmatprep.subr.mxu0 0.0
      %307 = vmatpush1.msra.mxu0 0.0
      %308 = vmatprep.subr.mxu0 0.0
      %309 = vmatpush1.msra.mxu0 0.0
      %310 = vmatprep.subr.mxu0 0.0
      %311 = vmatpush1.msra.mxu0 0.0
      %312 = vmatprep.subr.mxu0 0.0
      %313 = vmatpush1.msra.mxu0 0.0
      %314 = vmatprep.subr.mxu0 0.0
      %315 = vmatpush1.msra.mxu0 0.0
      %316 = vmatprep.subr.mxu0 0.0
      %317 = vmatpush1.msra.mxu0 0.0
      %318 = vmatprep.subr.mxu0 0.0
      %319 = vmatpush1.msra.mxu0 0.0
      %320 = vmatprep.mubr.f32.mxu0 0.0
      %321 = vmatmul.mubr.f32.gmra.mrb[0].mxu0 %v236
      %v322 = vpop.f32.mrb[0].mxu0
      %v323 = vadd.f32 %v202, %v322
      %v324 = vpop.f32.mrb[0].mxu0
      %v325 = vadd.f32 %v202, %v324
      %326 = vmatprep.mubr.f32.mxu0 0.0
      %327 = vmatmul.mubr.f32.gmra.mrb[0].mxu0 %v239
      %v328 = vpop.f32.mrb[0].mxu0
      %v329 = vadd.f32 %v207, %v328
      %v330 = vpop.f32.mrb[0].mxu0
      %v331 = vadd.f32 %v207, %v330
      %332 = vmatprep.mubr.f32.mxu0 0.0
      %333 = vmatmul.mubr.f32.gmra.mrb[0].mxu0 %v242
      %v334 = vpop.f32.mrb[0].mxu0
      %v335 = vadd.f32 %v212, %v334
      %v336 = vpop.f32.mrb[0].mxu0
      %v337 = vadd.f32 %v212, %v336
      %338 = vmatprep.mubr.f32.mxu0 0.0
      %339 = vmatmul.mubr.f32.gmra.mrb[0].mxu0 %v245
      %v340 = vpop.f32.mrb[0].mxu0
      %v341 = vadd.f32 %v217, %v340
      %v342 = vpop.f32.mrb[0].mxu0
      %v343 = vadd.f32 %v217, %v342
      %344 = vmatprep.mubr.f32.mxu0 0.0
      %345 = vmatmul.mubr.f32.gmra.mrb[0].mxu0 %v248
      %v346 = vpop.f32.mrb[0].mxu0
      %v347 = vadd.f32 %v222, %v346
      %v348 = vpop.f32.mrb[0].mxu0
      %v349 = vadd.f32 %v222, %v348
      %350 = vmatprep.mubr.f32.mxu0 0.0
      %351 = vmatmul.mubr.f32.gmra.mrb[0].mxu0 %v251
      %v352 = vpop.f32.mrb[0].mxu0
      %v353 = vadd.f32 %v227, %v352
      %v354 = vpop.f32.mrb[0].mxu0
      %v355 = vadd.f32 %v227, %v354
      %356 = vmatprep.mubr.f32.mxu0 0.0
      %357 = vmatmul.mubr.f32.gmra.mrb[0].mxu0 %v254
      %v358 = vpop.f32.mrb[0].mxu0
      %v359 = vadd.f32 %v232, %v358
      %v360 = vpop.f32.mrb[0].mxu0
      %v361 = vadd.f32 %v232, %v360
      %362 = vdwg.mxu0
      %v363 = vmax.f32 %v323, 0.0
      %v364 = vmax.f32 %v325, 0.0
      %v365 = vmax.f32 %v329, 0.0
      %v366 = vmax.f32 %v331, 0.0
      %v367 = vmax.f32 %v335, 0.0
      %v368 = vmax.f32 %v337, 0.0
      %v369 = vmax.f32 %v341, 0.0
      %v370 = vmax.f32 %v343, 0.0
      %v371 = vmax.f32 %v347, 0.0
      %v372 = vmax.f32 %v349, 0.0
      %v373 = vmax.f32 %v353, 0.0
      %v374 = vmax.f32 %v355, 0.0
      %v375 = vmax.f32 %v359, 0.0
      %v376 = vmax.f32 %v361, 0.0
      %s377 = scalar_lea.vmem %s1, 56
      %v378 = vld [vmem:[%s377] sm:$0xff]
      %v379 = vld [vmem:[%s377 + $0x8] sm:$0xff]
      %v380 = vld [vmem:[%s377 + $0x10] sm:$0xff]
      %v381 = vld [vmem:[%s377 + $0x18] sm:$0xff]
      %v382 = vld [vmem:[%s377 + $0x20] sm:$0xff]
      %v383 = vld [vmem:[%s377 + $0x28] sm:$0xff]
      %v384 = vld [vmem:[%s377 + $0x30] sm:$0xff]
      %s385 = scalar_lea.vmem %s2, 56
      %v386 = vld [vmem:[%s385] sm:$0xff]
      %v387 = vld [vmem:[%s385 + $0x8] sm:$0xff]
      %v388 = vld [vmem:[%s385 + $0x10] sm:$0xff]
      %v389 = vld [vmem:[%s385 + $0x18] sm:$0xff]
      %v390 = vld [vmem:[%s385 + $0x20] sm:$0xff]
      %v391 = vld [vmem:[%s385 + $0x28] sm:$0xff]
      %v392 = vld [vmem:[%s385 + $0x30] sm:$0xff]
      %394 = vset.pattern.permute.xlu0 0
      %395 = vperm.xlu0 %394, %v386
      %v396 = vpop.permute.xlu0 %395
      %399 = vset.pattern.permute.xlu0 0
      %400 = vperm.xlu0 %399, %v387
      %v401 = vpop.permute.xlu0 %400
      %404 = vset.pattern.permute.xlu0 0
      %405 = vperm.xlu0 %404, %v388
      %v406 = vpop.permute.xlu0 %405
      %409 = vset.pattern.permute.xlu0 0
      %410 = vperm.xlu0 %409, %v389
      %v411 = vpop.permute.xlu0 %410
      %414 = vset.pattern.permute.xlu0 0
      %415 = vperm.xlu0 %414, %v390
      %v416 = vpop.permute.xlu0 %415
      %419 = vset.pattern.permute.xlu0 0
      %420 = vperm.xlu0 %419, %v391
      %v421 = vpop.permute.xlu0 %420
      %424 = vset.pattern.permute.xlu0 0
      %425 = vperm.xlu0 %424, %v392
      %v426 = vpop.permute.xlu0 %425
      %v429 = vsel %vm234, %v378, 0
      %v432 = vsel %vm234, %v379, 0
      %v435 = vsel %vm234, %v380, 0
      %v438 = vsel %vm234, %v381, 0
      %v441 = vsel %vm234, %v382, 0
      %v444 = vsel %vm234, %v383, 0
      %v447 = vsel %vm234, %v384, 0
      %449 = vmatprep.subr.mxu0 %v364
      %450 = vmatpush1.msra.mxu0 %v363
      %451 = vmatprep.subr.mxu0 %v366
      %452 = vmatpush1.msra.mxu0 %v365
      %453 = vmatprep.subr.mxu0 %v368
      %454 = vmatpush1.msra.mxu0 %v367
      %455 = vmatprep.subr.mxu0 %v370
      %456 = vmatpush1.msra.mxu0 %v369
      %457 = vmatprep.subr.mxu0 %v372
      %458 = vmatpush1.msra.mxu0 %v371
      %459 = vmatprep.subr.mxu0 %v374
      %460 = vmatpush1.msra.mxu0 %v373
      %461 = vmatprep.subr.mxu0 %v376
      %462 = vmatpush1.msra.mxu0 %v375
      %463 = vmatprep.subr.mxu0 0.0
      %464 = vmatpush1.msra.mxu0 0.0
      %465 = vmatprep.subr.mxu0 0.0
      %466 = vmatpush1.msra.mxu0 0.0
      %467 = vmatprep.subr.mxu0 0.0
      %468 = vmatpush1.msra.mxu0 0.0
      %469 = vmatprep.subr.mxu0 0.0
      %470 = vmatpush1.msra.mxu0 0.0
      %471 = vmatprep.subr.mxu0 0.0
      %472 = vmatpush1.msra.mxu0 0.0
      %473 = vmatprep.subr.mxu0 0.0
      %474 = vmatpush1.msra.mxu0 0.0
      %475 = vmatprep.subr.mxu0 0.0
      %476 = vmatpush1.msra.mxu0 0.0
      %477 = vmatprep.subr.mxu0 0.0
      %478 = vmatpush1.msra.mxu0 0.0
      %479 = vmatprep.subr.mxu0 0.0
      %480 = vmatpush1.msra.mxu0 0.0
      %481 = vmatprep.subr.mxu0 0.0
      %482 = vmatpush1.msra.mxu0 0.0
      %483 = vmatprep.subr.mxu0 0.0
      %484 = vmatpush1.msra.mxu0 0.0
      %485 = vmatprep.subr.mxu0 0.0
      %486 = vmatpush1.msra.mxu0 0.0
      %487 = vmatprep.subr.mxu0 0.0
      %488 = vmatpush1.msra.mxu0 0.0
      %489 = vmatprep.subr.mxu0 0.0
      %490 = vmatpush1.msra.mxu0 0.0
      %491 = vmatprep.subr.mxu0 0.0
      %492 = vmatpush1.msra.mxu0 0.0
      %493 = vmatprep.subr.mxu0 0.0
      %494 = vmatpush1.msra.mxu0 0.0
      %495 = vmatprep.subr.mxu0 0.0
      %496 = vmatpush1.msra.mxu0 0.0
      %497 = vmatprep.subr.mxu0 0.0
      %498 = vmatpush1.msra.mxu0 0.0
      %499 = vmatprep.subr.mxu0 0.0
      %500 = vmatpush1.msra.mxu0 0.0
      %501 = vmatprep.subr.mxu0 0.0
      %502 = vmatpush1.msra.mxu0 0.0
      %503 = vmatprep.subr.mxu0 0.0
      %504 = vmatpush1.msra.mxu0 0.0
      %505 = vmatprep.subr.mxu0 0.0
      %506 = vmatpush1.msra.mxu0 0.0
      %507 = vmatprep.subr.mxu0 0.0
      %508 = vmatpush1.msra.mxu0 0.0
      %509 = vmatprep.subr.mxu0 0.0
      %510 = vmatpush1.msra.mxu0 0.0
      %511 = vmatprep.subr.mxu0 0.0
      %512 = vmatpush1.msra.mxu0 0.0
      %513 = vmatprep.mubr.f32.mxu0 0.0
      %514 = vmatmul.mubr.f32.gmra.mrb[0].mxu0 %v429
      %v515 = vpop.f32.mrb[0].mxu0
      %v516 = vadd.f32 %v396, %v515
      %v517 = vpop.f32.mrb[0].mxu0
      %v518 = vadd.f32 %v396, %v517
      %519 = vmatprep.mubr.f32.mxu0 0.0
      %520 = vmatmul.mubr.f32.gmra.mrb[0].mxu0 %v432
      %v521 = vpop.f32.mrb[0].mxu0
      %v522 = vadd.f32 %v401, %v521
      %v523 = vpop.f32.mrb[0].mxu0
      %v524 = vadd.f32 %v401, %v523
      %525 = vmatprep.mubr.f32.mxu0 0.0
      %526 = vmatmul.mubr.f32.gmra.mrb[0].mxu0 %v435
      %v527 = vpop.f32.mrb[0].mxu0
      %v528 = vadd.f32 %v406, %v527
      %v529 = vpop.f32.mrb[0].mxu0
      %v530 = vadd.f32 %v406, %v529
      %531 = vmatprep.mubr.f32.mxu0 0.0
      %532 = vmatmul.mubr.f32.gmra.mrb[0].mxu0 %v438
      %v533 = vpop.f32.mrb[0].mxu0
      %v534 = vadd.f32 %v411, %v533
      %v535 = vpop.f32.mrb[0].mxu0
      %v536 = vadd.f32 %v411, %v535
      %537 = vmatprep.mubr.f32.mxu0 0.0
      %538 = vmatmul.mubr.f32.gmra.mrb[0].mxu0 %v441
      %v539 = vpop.f32.mrb[0].mxu0
      %v540 = vadd.f32 %v416, %v539
      %v541 = vpop.f32.mrb[0].mxu0
      %v542 = vadd.f32 %v416, %v541
      %543 = vmatprep.mubr.f32.mxu0 0.0
      %544 = vmatmul.mubr.f32.gmra.mrb[0].mxu0 %v444
      %v545 = vpop.f32.mrb[0].mxu0
      %v546 = vadd.f32 %v421, %v545
      %v547 = vpop.f32.mrb[0].mxu0
      %v548 = vadd.f32 %v421, %v547
      %549 = vmatprep.mubr.f32.mxu0 0.0
      %550 = vmatmul.mubr.f32.gmra.mrb[0].mxu0 %v447
      %v551 = vpop.f32.mrb[0].mxu0
      %v552 = vadd.f32 %v426, %v551
      %v553 = vpop.f32.mrb[0].mxu0
      %v554 = vadd.f32 %v426, %v553
      %555 = vdwg.mxu0
      %v556 = vmax.f32 %v516, 0.0
      %v557 = vmax.f32 %v518, 0.0
      %v558 = vmax.f32 %v522, 0.0
      %v559 = vmax.f32 %v524, 0.0
      %v560 = vmax.f32 %v528, 0.0
      %v561 = vmax.f32 %v530, 0.0
      %v562 = vmax.f32 %v534, 0.0
      %v563 = vmax.f32 %v536, 0.0
      %v564 = vmax.f32 %v540, 0.0
      %v565 = vmax.f32 %v542, 0.0
      %v566 = vmax.f32 %v546, 0.0
      %v567 = vmax.f32 %v548, 0.0
      %v568 = vmax.f32 %v552, 0.0
      %v569 = vmax.f32 %v554, 0.0
      %s570 = scalar_lea.vmem %s1, 112
      %v571 = vld [vmem:[%s570] sm:$0xff]
      %v572 = vld [vmem:[%s570 + $0x8] sm:$0xff]
      %v573 = vld [vmem:[%s570 + $0x10] sm:$0xff]
      %v574 = vld [vmem:[%s570 + $0x18] sm:$0xff]
      %v575 = vld [vmem:[%s570 + $0x20] sm:$0xff]
      %v576 = vld [vmem:[%s570 + $0x28] sm:$0xff]
      %v577 = vld [vmem:[%s570 + $0x30] sm:$0xff]
      %s578 = scalar_lea.vmem %s2, 112
      %v579 = vld [vmem:[%s578] sm:$0xff]
      %v580 = vld [vmem:[%s578 + $0x8] sm:$0xff]
      %v581 = vld [vmem:[%s578 + $0x10] sm:$0xff]
      %v582 = vld [vmem:[%s578 + $0x18] sm:$0xff]
      %v583 = vld [vmem:[%s578 + $0x20] sm:$0xff]
      %v584 = vld [vmem:[%s578 + $0x28] sm:$0xff]
      %v585 = vld [vmem:[%s578 + $0x30] sm:$0xff]
      %587 = vset.pattern.permute.xlu0 0
      %588 = vperm.xlu0 %587, %v579
      %v589 = vpop.permute.xlu0 %588
      %592 = vset.pattern.permute.xlu0 0
      %593 = vperm.xlu0 %592, %v580
      %v594 = vpop.permute.xlu0 %593
      %597 = vset.pattern.permute.xlu0 0
      %598 = vperm.xlu0 %597, %v581
      %v599 = vpop.permute.xlu0 %598
      %602 = vset.pattern.permute.xlu0 0
      %603 = vperm.xlu0 %602, %v582
      %v604 = vpop.permute.xlu0 %603
      %607 = vset.pattern.permute.xlu0 0
      %608 = vperm.xlu0 %607, %v583
      %v609 = vpop.permute.xlu0 %608
      %611 = vset.pattern.permute.xlu0 0
      %612 = vperm.xlu0 %611, %v584
      %v613 = vpop.permute.xlu0 %612
      %615 = vset.pattern.permute.xlu0 0
      %616 = vperm.xlu0 %615, %v585
      %v617 = vpop.permute.xlu0 %616
      %v619 = vsel %vm234, %v571, 0
      %v622 = vsel %vm234, %v572, 0
      %v625 = vsel %vm234, %v573, 0
      %v628 = vsel %vm234, %v574, 0
      %v631 = vsel %vm234, %v575, 0
      %v634 = vsel %vm234, %v576, 0
      %v637 = vsel %vm234, %v577, 0
      %639 = vmatprep.subr.mxu0 %v557
      %640 = vmatpush1.msra.mxu0 %v556
      %641 = vmatprep.subr.mxu0 %v559
      %642 = vmatpush1.msra.mxu0 %v558
      %643 = vmatprep.subr.mxu0 %v561
      %644 = vmatpush1.msra.mxu0 %v560
      %645 = vmatprep.subr.mxu0 %v563
      %646 = vmatpush1.msra.mxu0 %v562
      %647 = vmatprep.subr.mxu0 %v565
      %648 = vmatpush1.msra.mxu0 %v564
      %649 = vmatprep.subr.mxu0 %v567
      %650 = vmatpush1.msra.mxu0 %v566
      %651 = vmatprep.subr.mxu0 %v569
      %652 = vmatpush1.msra.mxu0 %v568
      %653 = vmatprep.subr.mxu0 0.0
      %654 = vmatpush1.msra.mxu0 0.0
      %655 = vmatprep.subr.mxu0 0.0
      %656 = vmatpush1.msra.mxu0 0.0
      %657 = vmatprep.subr.mxu0 0.0
      %658 = vmatpush1.msra.mxu0 0.0
      %659 = vmatprep.subr.mxu0 0.0
      %660 = vmatpush1.msra.mxu0 0.0
      %661 = vmatprep.subr.mxu0 0.0
      %662 = vmatpush1.msra.mxu0 0.0
      %663 = vmatprep.subr.mxu0 0.0
      %664 = vmatpush1.msra.mxu0 0.0
      %665 = vmatprep.subr.mxu0 0.0
      %666 = vmatpush1.msra.mxu0 0.0
      %667 = vmatprep.subr.mxu0 0.0
      %668 = vmatpush1.msra.mxu0 0.0
      %669 = vmatprep.subr.mxu0 0.0
      %670 = vmatpush1.msra.mxu0 0.0
      %671 = vmatprep.subr.mxu0 0.0
      %672 = vmatpush1.msra.mxu0 0.0
      %673 = vmatprep.subr.mxu0 0.0
      %674 = vmatpush1.msra.mxu0 0.0
      %675 = vmatprep.subr.mxu0 0.0
      %676 = vmatpush1.msra.mxu0 0.0
      %677 = vmatprep.subr.mxu0 0.0
      %678 = vmatpush1.msra.mxu0 0.0
      %679 = vmatprep.subr.mxu0 0.0
      %680 = vmatpush1.msra.mxu0 0.0
      %681 = vmatprep.subr.mxu0 0.0
      %682 = vmatpush1.msra.mxu0 0.0
      %683 = vmatprep.subr.mxu0 0.0
      %684 = vmatpush1.msra.mxu0 0.0
      %685 = vmatprep.subr.mxu0 0.0
      %686 = vmatpush1.msra.mxu0 0.0
      %687 = vmatprep.subr.mxu0 0.0
      %688 = vmatpush1.msra.mxu0 0.0
      %689 = vmatprep.subr.mxu0 0.0
      %690 = vmatpush1.msra.mxu0 0.0
      %691 = vmatprep.subr.mxu0 0.0
      %692 = vmatpush1.msra.mxu0 0.0
      %693 = vmatprep.subr.mxu0 0.0
      %694 = vmatpush1.msra.mxu0 0.0
      %695 = vmatprep.subr.mxu0 0.0
      %696 = vmatpush1.msra.mxu0 0.0
      %697 = vmatprep.subr.mxu0 0.0
      %698 = vmatpush1.msra.mxu0 0.0
      %699 = vmatprep.subr.mxu0 0.0
      %700 = vmatpush1.msra.mxu0 0.0
      %701 = vmatprep.subr.mxu0 0.0
      %702 = vmatpush1.msra.mxu0 0.0
      %703 = vmatprep.mubr.f32.mxu0 0.0
      %704 = vmatmul.mubr.f32.gmra.mrb[0].mxu0 %v619
      %v705 = vpop.f32.mrb[0].mxu0
      %v706 = vadd.f32 %v589, %v705
      %v707 = vpop.f32.mrb[0].mxu0
      %v708 = vadd.f32 %v589, %v707
      %709 = vmatprep.mubr.f32.mxu0 0.0
      %710 = vmatmul.mubr.f32.gmra.mrb[0].mxu0 %v622
      %v711 = vpop.f32.mrb[0].mxu0
      %v712 = vadd.f32 %v594, %v711
      %v713 = vpop.f32.mrb[0].mxu0
      %v714 = vadd.f32 %v594, %v713
      %715 = vmatprep.mubr.f32.mxu0 0.0
      %716 = vmatmul.mubr.f32.gmra.mrb[0].mxu0 %v625
      %v717 = vpop.f32.mrb[0].mxu0
      %v718 = vadd.f32 %v599, %v717
      %v719 = vpop.f32.mrb[0].mxu0
      %v720 = vadd.f32 %v599, %v719
      %721 = vmatprep.mubr.f32.mxu0 0.0
      %722 = vmatmul.mubr.f32.gmra.mrb[0].mxu0 %v628
      %v723 = vpop.f32.mrb[0].mxu0
      %v724 = vadd.f32 %v604, %v723
      %v725 = vpop.f32.mrb[0].mxu0
      %v726 = vadd.f32 %v604, %v725
      %727 = vmatprep.mubr.f32.mxu0 0.0
      %728 = vmatmul.mubr.f32.gmra.mrb[0].mxu0 %v631
      %v729 = vpop.f32.mrb[0].mxu0
      %v730 = vpop.f32.mrb[0].mxu0
      %731 = vmatprep.mubr.f32.mxu0 0.0
      %732 = vmatmul.mubr.f32.gmra.mrb[0].mxu0 %v634
      %v733 = vpop.f32.mrb[0].mxu0
      %v734 = vpop.f32.mrb[0].mxu0
      %735 = vmatprep.mubr.f32.mxu0 0.0
      %736 = vmatmul.mubr.f32.gmra.mrb[0].mxu0 %v637
      %v737 = vpop.f32.mrb[0].mxu0
      %v738 = vpop.f32.mrb[0].mxu0
      %739 = vdwg.mxu0
      %v740 = vmax.f32 %v706, 0.0
      %v741 = vmax.f32 %v708, 0.0
      %v742 = vmax.f32 %v712, 0.0
      %v743 = vmax.f32 %v714, 0.0
      %v744 = vmax.f32 %v718, 0.0
      %v745 = vmax.f32 %v720, 0.0
      %v746 = vmax.f32 %v724, 0.0
      %v747 = vmax.f32 %v726, 0.0
      %752 = vrot.lane.b32.xlu0 %v740, 64
      %v753 = vpop.permute.xlu0 %752
      %754 = vrot.lane.b32.xlu0 %v742, 64
      %v755 = vpop.permute.xlu0 %754
      %756 = vrot.lane.b32.xlu0 %v744, 64
      %v757 = vpop.permute.xlu0 %756
      %758 = vrot.lane.b32.xlu0 %v746, 64
      %v759 = vpop.permute.xlu0 %758
      %v764 = vmax.f32 %v740, %v753
      %v765 = vmax.f32 %v742, %v755
      %v766 = vmax.f32 %v744, %v757
      %v767 = vmax.f32 %v746, %v759
      %v768 = vmax.f32 %v764, %v741
      %v769 = vmax.f32 %v765, %v743
      %v770 = vmax.f32 %v766, %v745
      %v771 = vmax.f32 %v767, %v747
      %776 = vrot.lane.b32.xlu0 %v741, 64
      %v777 = vpop.permute.xlu0 %776
      %778 = vrot.lane.b32.xlu0 %v743, 64
      %v779 = vpop.permute.xlu0 %778
      %780 = vrot.lane.b32.xlu0 %v745, 64
      %v781 = vpop.permute.xlu0 %780
      %782 = vrot.lane.b32.xlu0 %v747, 64
      %v783 = vpop.permute.xlu0 %782
      %v788 = vmax.f32 %v768, %v777
      %v789 = vmax.f32 %v769, %v779
      %v790 = vmax.f32 %v770, %v781
      %v791 = vmax.f32 %v771, %v783
      %vm792 = vcmask 523264
      %793 = vst.msk [vmem:[%s170] sm:$0xff] %vm792, %v788
      %794 = vst.msk [vmem:[%s170 + $0x8] sm:$0xff] %vm792, %v789
      %795 = vst.msk [vmem:[%s170 + $0x10] sm:$0xff] %vm792, %v790
      %796 = vst.msk [vmem:[%s170 + $0x18] sm:$0xff] %vm792, %v791
      %p797 = scmp.lt.s32.totalorder %s14, 1
      %s798 = scalar_select %p797, %s14, 1
      %s799 = smul.addr %s798, 4
      %s800 = smul.addr %s799, 8
      %s801 = scalar_lea.vmem %s3, %s800
      // Predicated region
      $region33: #{pointnet2_msg_forward.14} parent=31 // pred_check
        %p802 = pneg %p100
      $region34: #{pointnet2_msg_forward.14} parent=31 // pred_check_branch
        %804 = sbr.rel (%p802) target = $region36
      $region35: #{pointnet2_msg_forward.14} parent=31 // pred_region
        _
      $region36: #{pointnet2_msg_forward.14} parent=31 // pred_fallthru
        _
    $region32: #{pointnet2_msg_forward.14} parent=5 // pred_fallthru
      _
    %p805 = scmp.le.s32.totalorder 2, %s9
    // Predicated region
    $region37: #{pointnet2_msg_forward.14} parent=5 // pred_check
      %p806 = pneg %p805
    $region38: #{pointnet2_msg_forward.14} parent=5 // pred_check_branch
      %808 = sbr.rel (%p806) target = $region40
    $region39: #{pointnet2_msg_forward.14} parent=5 // pred_region
      %s809 = ssub.s32 %s9, 2
      // Predicated region
      $region41: #{pointnet2_msg_forward.14} parent=39 // pred_check
        %p810 = pneg %p106
      $region42: #{pointnet2_msg_forward.14} parent=39 // pred_check_branch
        %812 = sbr.rel (%p810) target = $region44
      $region43: #{pointnet2_msg_forward.14} parent=39 // pred_region
        %p813 = scmp.lt.s32.totalorder %s15, 1
        %s814 = scalar_select %p813, %s15, 1
        %s815 = smul.addr %s814, 4
        %s816 = smul.addr %s815, 8
        %s817 = scalar_lea.vmem %s3, %s816
      $region44: #{pointnet2_msg_forward.14} parent=39 // pred_fallthru
        _
    $region40: #{pointnet2_msg_forward.14} parent=5 // pred_fallthru
      _
  $region6: #{pointnet2_msg_forward.14} parent=0 // loop_footer
    %s13 = sadd.s32 1, %s9
  $region7: #{pointnet2_msg_forward.14} parent=0 // loop_footer_branch
    %8 = sbr.rel target = $region3
  $region8: #{pointnet2_msg_forward.14} parent=0 // loop_exit
    _

// kernel: pointnet2_msg_forward.15
$region0: #{pointnet2_msg_forward.15}
  #allocation0 [shape = 'u32[]', space=smem, size = 0x4, offset = 0x4, fixed_abs, tag = 'smem constant byte address 0x4 - core index']
  #allocation1 [shape = 'u32[144,128]{1,0:T(1,128)}', space=vmem, size = 0x12000, scoped, tag = 'internal scratch']
  %s0 = inlined_call_operand.vmem [shape: f32[2,56,512], index: 0, kind: input, shape index: {}]
  %s1 = inlined_call_operand.vmem [shape: f32[3,56,56], index: 1, kind: input, shape index: {}]
  %s2 = inlined_call_operand.vmem [shape: f32[3,56,1], index: 2, kind: input, shape index: {}]
  %s3 = inlined_call_operand.vmem [shape: f32[2,32,64], index: 3, kind: output, shape index: {}]
  %s4 = sld [smem:[#allocation0]]
  $region45: #{pointnet2_msg_forward.15} parent=0
    _
  %s6 = ssub.s32 1, %s4
  %s7 = scalar_select 0, %s6, %s4
  loop: start=0, step=1, limit=4
  $region2: #{pointnet2_msg_forward.15} parent=0 // loop_pre_header
    _
  $region3: #{pointnet2_msg_forward.15} parent=0 // loop_header
    %s9 = sphi 0, %s13
    %p10 = scmp.ge.s32.totalorder %s9, 4
    %s19 = sphi 0, %s21
    %s22 = sphi 0, %s19
    %s23 = sphi 0, %s22
    %s39 = sphi 0, %s23
    %s43 = sphi 0, %s43
    %s45 = sphi 0, %s43
    %s46 = sphi 0, %s45
    %s60 = sphi 0, %s46
    %s64 = sphi 0, %s64
    %s66 = sphi 0, %s64
    %s67 = sphi 0, %s66
    %s81 = sphi 0, %s67
    %s87 = sphi 0, %s89
    %s90 = sphi 0, %s87
    %s91 = sphi 0, %s90
    %s107 = sphi 0, %s91
  $region4: #{pointnet2_msg_forward.15} parent=0 // loop_header_branch
    %12 = sbr.rel (%p10) target = $region8
  $region5: #{pointnet2_msg_forward.15} parent=0 // loop_body
    %s14 = ssub.s32 %s9, 1
    %s15 = ssub.s32 %s9, 2
    %s16 = sadd.s32 %s9, 1
    %s17 = ssub.s32 %s9, %s16
    %p18 = scmp.eq.s32.totalorder %s17, 0
    %s20 = sadd.s32 %s19, 1
    %s21 = scalar_select %p18, %s19, %s20
    %p24 = pneg %p18
    %p25 = scmp.eq.s32.totalorder %s9, 1
    %p26 = por %p24, %p25
    %p27 = scmp.ne.s32.totalorder %s19, %s22
    %p28 = scmp.eq.s32.totalorder %s9, 0
    %p29 = por %p27, %p28
    %p30 = scmp.ne.s32.totalorder %s19, %s22
    %p31 = scmp.eq.s32.totalorder %s14, 1
    %p32 = por %p30, %p31
    %p33 = scmp.ne.s32.totalorder %s22, %s23
    %p34 = scmp.eq.s32.totalorder %s14, 0
    %p35 = por %p33, %p34
    %p36 = scmp.ne.s32.totalorder %s22, %s23
    %p37 = scmp.eq.s32.totalorder %s15, 1
    %p38 = por %p36, %p37
    %p40 = scmp.ne.s32.totalorder %s23, %s39
    %p41 = scmp.eq.s32.totalorder %s15, 0
    %p42 = por %p40, %p41
    %s44 = sadd.s32 %s43, 1
    %p47 = scmp.eq.s32.totalorder %s9, 1
    %p48 = scmp.ne.s32.totalorder %s43, %s45
    %p49 = scmp.eq.s32.totalorder %s9, 0
    %p50 = por %p48, %p49
    %p51 = scmp.ne.s32.totalorder %s43, %s45
    %p52 = scmp.eq.s32.totalorder %s14, 1
    %p53 = por %p51, %p52
    %p54 = scmp.ne.s32.totalorder %s45, %s46
    %p55 = scmp.eq.s32.totalorder %s14, 0
    %p56 = por %p54, %p55
    %p57 = scmp.ne.s32.totalorder %s45, %s46
    %p58 = scmp.eq.s32.totalorder %s15, 1
    %p59 = por %p57, %p58
    %p61 = scmp.ne.s32.totalorder %s46, %s60
    %p62 = scmp.eq.s32.totalorder %s15, 0
    %p63 = por %p61, %p62
    %s65 = sadd.s32 %s64, 1
    %p68 = scmp.eq.s32.totalorder %s9, 1
    %p69 = scmp.ne.s32.totalorder %s64, %s66
    %p70 = scmp.eq.s32.totalorder %s9, 0
    %p71 = por %p69, %p70
    %p72 = scmp.ne.s32.totalorder %s64, %s66
    %p73 = scmp.eq.s32.totalorder %s14, 1
    %p74 = por %p72, %p73
    %p75 = scmp.ne.s32.totalorder %s66, %s67
    %p76 = scmp.eq.s32.totalorder %s14, 0
    %p77 = por %p75, %p76
    %p78 = scmp.ne.s32.totalorder %s66, %s67
    %p79 = scmp.eq.s32.totalorder %s15, 1
    %p80 = por %p78, %p79
    %p82 = scmp.ne.s32.totalorder %s67, %s81
    %p83 = scmp.eq.s32.totalorder %s15, 0
    %p84 = por %p82, %p83
    %s85 = ssub.s32 %s9, %s16
    %p86 = scmp.eq.s32.totalorder %s85, 0
    %s88 = sadd.s32 %s87, 1
    %s89 = scalar_select %p86, %s87, %s88
    %p92 = pneg %p86
    %p93 = scmp.eq.s32.totalorder %s9, 1
    %p94 = por %p92, %p93
    %p95 = scmp.ne.s32.totalorder %s87, %s90
    %p96 = scmp.eq.s32.totalorder %s9, 0
    %p97 = por %p95, %p96
    %p98 = scmp.ne.s32.totalorder %s87, %s90
    %p99 = scmp.eq.s32.totalorder %s14, 1
    %p100 = por %p98, %p99
    %p101 = scmp.ne.s32.totalorder %s90, %s91
    %p102 = scmp.eq.s32.totalorder %s14, 0
    %p103 = por %p101, %p102
    %p104 = scmp.ne.s32.totalorder %s90, %s91
    %p105 = scmp.eq.s32.totalorder %s15, 1
    %p106 = por %p104, %p105
    %p108 = scmp.ne.s32.totalorder %s91, %s107
    %p109 = scmp.eq.s32.totalorder %s15, 0
    %p110 = por %p108, %p109
    %p111 = scmp.le.s32.totalorder 1, %s9
    %p112 = scmp.lt.s32.totalorder %s9, 3
    %p113 = pnand %p111, %p112
    %p114 = pneg %p113
    // Predicated region
    $region9: #{pointnet2_msg_forward.15} parent=5 // pred_check
      _
    $region10: #{pointnet2_msg_forward.15} parent=5 // pred_check_branch
      %116 = sbr.rel (%p113) target = $region12
    $region11: #{pointnet2_msg_forward.15} parent=5 // pred_region
      %s117 = ssub.s32 %s9, 1
      // Predicated region
      $region13: #{pointnet2_msg_forward.15} parent=11 // pred_check
        %p118 = pneg %p56
      $region14: #{pointnet2_msg_forward.15} parent=11 // pred_check_branch
        %120 = sbr.rel (%p118) target = $region16
      $region15: #{pointnet2_msg_forward.15} parent=11 // pred_region
        _
      $region16: #{pointnet2_msg_forward.15} parent=11 // pred_fallthru
        _
      // Predicated region
      $region17: #{pointnet2_msg_forward.15} parent=11 // pred_check
        %p121 = pneg %p77
      $region18: #{pointnet2_msg_forward.15} parent=11 // pred_check_branch
        %123 = sbr.rel (%p121) target = $region20
      $region19: #{pointnet2_msg_forward.15} parent=11 // pred_region
        _
      $region20: #{pointnet2_msg_forward.15} parent=11 // pred_fallthru
        _
    $region12: #{pointnet2_msg_forward.15} parent=5 // pred_fallthru
      _
    %p124 = scmp.lt.s32.totalorder %s9, 2
    // Predicated region
    $region21: #{pointnet2_msg_forward.15} parent=5 // pred_check
      %p125 = pneg %p124
    $region22: #{pointnet2_msg_forward.15} parent=5 // pred_check_branch
      %127 = sbr.rel (%p125) target = $region24
    $region23: #{pointnet2_msg_forward.15} parent=5 // pred_region
      // Predicated region
      $region25: #{pointnet2_msg_forward.15} parent=23 // pred_check
        %p128 = pneg %p29
      $region26: #{pointnet2_msg_forward.15} parent=23 // pred_check_branch
        %130 = sbr.rel (%p128) target = $region28
      $region27: #{pointnet2_msg_forward.15} parent=23 // pred_region
        %p131 = scmp.lt.s32.totalorder %s9, 1
        %s132 = scalar_select %p131, %s9, 1
        %s133 = smul.addr %s132, 28
        %s134 = smul.addr %s133, 8
        %s135 = scalar_lea.vmem %s0, %s134
      $region28: #{pointnet2_msg_forward.15} parent=23 // pred_fallthru
        _
    $region24: #{pointnet2_msg_forward.15} parent=5 // pred_fallthru
      _
    %p136 = scmp.le.s32.totalorder 1, %s9
    %p137 = scmp.lt.s32.totalorder %s9, 3
    %p138 = pnand %p136, %p137
    %p139 = pneg %p138
    // Predicated region
    $region29: #{pointnet2_msg_forward.15} parent=5 // pred_check
      _
    $region30: #{pointnet2_msg_forward.15} parent=5 // pred_check_branch
      %141 = sbr.rel (%p138) target = $region32
    $region31: #{pointnet2_msg_forward.15} parent=5 // pred_region
      %s142 = ssub.s32 %s9, 1
      %p143 = scmp.lt.s32.totalorder %s14, 1
      %s144 = scalar_select %p143, %s14, 1
      %s145 = smul.addr %s144, 28
      %s146 = smul.addr %s145, 8
      %s147 = scalar_lea.vmem %s0, %s146
      %p148 = pneg %p35
      %p149 = pneg %p32
      %p150 = pneg %p56
      %p151 = pneg %p53
      %p152 = pneg %p77
      %p153 = pneg %p74
      %p154 = pneg %p103
      %p155 = pneg %p100
      %p156 = scmp.lt.s32.totalorder %s14, 1
      %s157 = scalar_select %p156, %s14, 1
      %s158 = smul.addr %s157, 4
      %s159 = smul.addr %s158, 8
      %s160 = scalar_lea.vmem %s3, %s159
      %p161 = scmp.lt.s32.totalorder %s14, 1
      %s162 = scalar_select %p161, %s14, 1
      %s163 = smul.addr %s162, 28
      %s164 = smul.addr %s163, 8
      %s165 = scalar_lea.vmem %s0, %s164
      %p166 = scmp.lt.s32.totalorder %s14, 1
      %s167 = scalar_select %p166, %s14, 1
      %s168 = smul.addr %s167, 4
      %s169 = smul.addr %s168, 8
      %s170 = scalar_lea.vmem %s3, %s169
      %v171 = vld [vmem:[%s165] sm:$0xff]
      %v172 = vld [vmem:[%s165 + $0x8] sm:$0xff]
      %v173 = vld [vmem:[%s165 + $0x10] sm:$0xff]
      %v174 = vld [vmem:[%s165 + $0x18] sm:$0xff]
      %v175 = vld [vmem:[%s165 + $0x20] sm:$0xff]
      %v176 = vld [vmem:[%s165 + $0x28] sm:$0xff]
      %v177 = vld [vmem:[%s165 + $0x30] sm:$0xff]
      %v178 = vld [vmem:[%s165 + $0x38] sm:$0xff]
      %v179 = vld [vmem:[%s165 + $0x40] sm:$0xff]
      %v180 = vld [vmem:[%s165 + $0x48] sm:$0xff]
      %v181 = vld [vmem:[%s165 + $0x50] sm:$0xff]
      %v182 = vld [vmem:[%s165 + $0x58] sm:$0xff]
      %v183 = vld [vmem:[%s165 + $0x60] sm:$0xff]
      %v184 = vld [vmem:[%s165 + $0x68] sm:$0xff]
      %v185 = vld [vmem:[%s165 + $0x70] sm:$0xff]
      %v186 = vld [vmem:[%s165 + $0x78] sm:$0xff]
      %v187 = vld [vmem:[%s165 + $0x80] sm:$0xff]
      %v188 = vld [vmem:[%s165 + $0x88] sm:$0xff]
      %v189 = vld [vmem:[%s165 + $0x90] sm:$0xff]
      %v190 = vld [vmem:[%s165 + $0x98] sm:$0xff]
      %v191 = vld [vmem:[%s165 + $0xa0] sm:$0xff]
      %v192 = vld [vmem:[%s165 + $0xa8] sm:$0xff]
      %v193 = vld [vmem:[%s165 + $0xb0] sm:$0xff]
      %v194 = vld [vmem:[%s165 + $0xb8] sm:$0xff]
      %v195 = vld [vmem:[%s165 + $0xc0] sm:$0xff]
      %v196 = vld [vmem:[%s165 + $0xc8] sm:$0xff]
      %v197 = vld [vmem:[%s165 + $0xd0] sm:$0xff]
      %v198 = vld [vmem:[%s165 + $0xd8] sm:$0xff]
      %v199 = vld [vmem:[%s1] sm:$0xff]
      %v200 = vld [vmem:[%s1 + $0x8] sm:$0xff]
      %v201 = vld [vmem:[%s1 + $0x10] sm:$0xff]
      %v202 = vld [vmem:[%s1 + $0x18] sm:$0xff]
      %v203 = vld [vmem:[%s1 + $0x20] sm:$0xff]
      %v204 = vld [vmem:[%s1 + $0x28] sm:$0xff]
      %v205 = vld [vmem:[%s1 + $0x30] sm:$0xff]
      %v206 = vld [vmem:[%s2] sm:$0xff]
      %v207 = vld [vmem:[%s2 + $0x8] sm:$0xff]
      %v208 = vld [vmem:[%s2 + $0x10] sm:$0xff]
      %v209 = vld [vmem:[%s2 + $0x18] sm:$0xff]
      %v210 = vld [vmem:[%s2 + $0x20] sm:$0xff]
      %v211 = vld [vmem:[%s2 + $0x28] sm:$0xff]
      %v212 = vld [vmem:[%s2 + $0x30] sm:$0xff]
      %214 = vset.pattern.permute.xlu0 0
      %215 = vperm.xlu0 %214, %v206
      %v216 = vpop.permute.xlu0 %215
      %219 = vset.pattern.permute.xlu0 0
      %220 = vperm.xlu0 %219, %v207
      %v221 = vpop.permute.xlu0 %220
      %224 = vset.pattern.permute.xlu0 0
      %225 = vperm.xlu0 %224, %v208
      %v226 = vpop.permute.xlu0 %225
      %229 = vset.pattern.permute.xlu0 0
      %230 = vperm.xlu0 %229, %v209
      %v231 = vpop.permute.xlu0 %230
      %234 = vset.pattern.permute.xlu0 0
      %235 = vperm.xlu0 %234, %v210
      %v236 = vpop.permute.xlu0 %235
      %239 = vset.pattern.permute.xlu0 0
      %240 = vperm.xlu0 %239, %v211
      %v241 = vpop.permute.xlu0 %240
      %244 = vset.pattern.permute.xlu0 0
      %245 = vperm.xlu0 %244, %v212
      %v246 = vpop.permute.xlu0 %245
      %vm248 = vcmask 457728
      %v250 = vsel %vm248, %v199, 0
      %v253 = vsel %vm248, %v200, 0
      %v256 = vsel %vm248, %v201, 0
      %v259 = vsel %vm248, %v202, 0
      %v262 = vsel %vm248, %v203, 0
      %v265 = vsel %vm248, %v204, 0
      %v268 = vsel %vm248, %v205, 0
      %270 = vmatprep.subr.mxu0 %v172
      %271 = vmatpush1.msra.mxu0 %v171
      %272 = vmatprep.subr.mxu0 %v176
      %273 = vmatpush1.msra.mxu0 %v175
      %274 = vmatprep.subr.mxu0 %v180
      %275 = vmatpush1.msra.mxu0 %v179
      %276 = vmatprep.subr.mxu0 %v184
      %277 = vmatpush1.msra.mxu0 %v183
      %278 = vmatprep.subr.mxu0 %v188
      %279 = vmatpush1.msra.mxu0 %v187
      %280 = vmatprep.subr.mxu0 %v192
      %281 = vmatpush1.msra.mxu0 %v191
      %282 = vmatprep.subr.mxu0 %v196
      %283 = vmatpush1.msra.mxu0 %v195
      %284 = vmatprep.subr.mxu0 0.0
      %285 = vmatpush1.msra.mxu0 0.0
      %286 = vmatprep.subr.mxu0 0.0
      %287 = vmatpush1.msra.mxu0 0.0
      %288 = vmatprep.subr.mxu0 0.0
      %289 = vmatpush1.msra.mxu0 0.0
      %290 = vmatprep.subr.mxu0 0.0
      %291 = vmatpush1.msra.mxu0 0.0
      %292 = vmatprep.subr.mxu0 0.0
      %293 = vmatpush1.msra.mxu0 0.0
      %294 = vmatprep.subr.mxu0 0.0
      %295 = vmatpush1.msra.mxu0 0.0
      %296 = vmatprep.subr.mxu0 0.0
      %297 = vmatpush1.msra.mxu0 0.0
      %298 = vmatprep.subr.mxu0 0.0
      %299 = vmatpush1.msra.mxu0 0.0
      %300 = vmatprep.subr.mxu0 0.0
      %301 = vmatpush1.msra.mxu0 0.0
      %302 = vmatprep.subr.mxu0 0.0
      %303 = vmatpush1.msra.mxu0 0.0
      %304 = vmatprep.subr.mxu0 0.0
      %305 = vmatpush1.msra.mxu0 0.0
      %306 = vmatprep.subr.mxu0 0.0
      %307 = vmatpush1.msra.mxu0 0.0
      %308 = vmatprep.subr.mxu0 0.0
      %309 = vmatpush1.msra.mxu0 0.0
      %310 = vmatprep.subr.mxu0 0.0
      %311 = vmatpush1.msra.mxu0 0.0
      %312 = vmatprep.subr.mxu0 0.0
      %313 = vmatpush1.msra.mxu0 0.0
      %314 = vmatprep.subr.mxu0 0.0
      %315 = vmatpush1.msra.mxu0 0.0
      %316 = vmatprep.subr.mxu0 0.0
      %317 = vmatpush1.msra.mxu0 0.0
      %318 = vmatprep.subr.mxu0 0.0
      %319 = vmatpush1.msra.mxu0 0.0
      %320 = vmatprep.subr.mxu0 0.0
      %321 = vmatpush1.msra.mxu0 0.0
      %322 = vmatprep.subr.mxu0 0.0
      %323 = vmatpush1.msra.mxu0 0.0
      %324 = vmatprep.subr.mxu0 0.0
      %325 = vmatpush1.msra.mxu0 0.0
      %326 = vmatprep.subr.mxu0 0.0
      %327 = vmatpush1.msra.mxu0 0.0
      %328 = vmatprep.subr.mxu0 0.0
      %329 = vmatpush1.msra.mxu0 0.0
      %330 = vmatprep.subr.mxu0 0.0
      %331 = vmatpush1.msra.mxu0 0.0
      %332 = vmatprep.subr.mxu0 0.0
      %333 = vmatpush1.msra.mxu0 0.0
      %334 = vmatprep.mubr.f32.mxu0 0.0
      %335 = vmatmul.mubr.f32.gmra.mrb[0].mxu0 %v250
      %v336 = vpop.f32.mrb[0].mxu0
      %v337 = vadd.f32 %v216, %v336
      %v338 = vpop.f32.mrb[0].mxu0
      %v339 = vadd.f32 %v216, %v338
      %340 = vmatprep.mubr.f32.mxu0 0.0
      %341 = vmatmul.mubr.f32.gmra.mrb[0].mxu0 %v253
      %v342 = vpop.f32.mrb[0].mxu0
      %v343 = vadd.f32 %v221, %v342
      %v344 = vpop.f32.mrb[0].mxu0
      %v345 = vadd.f32 %v221, %v344
      %346 = vmatprep.mubr.f32.mxu0 0.0
      %347 = vmatmul.mubr.f32.gmra.mrb[0].mxu0 %v256
      %v348 = vpop.f32.mrb[0].mxu0
      %v349 = vadd.f32 %v226, %v348
      %v350 = vpop.f32.mrb[0].mxu0
      %v351 = vadd.f32 %v226, %v350
      %352 = vmatprep.mubr.f32.mxu0 0.0
      %353 = vmatmul.mubr.f32.gmra.mrb[0].mxu0 %v259
      %v354 = vpop.f32.mrb[0].mxu0
      %v355 = vadd.f32 %v231, %v354
      %v356 = vpop.f32.mrb[0].mxu0
      %v357 = vadd.f32 %v231, %v356
      %358 = vmatprep.mubr.f32.mxu0 0.0
      %359 = vmatmul.mubr.f32.gmra.mrb[0].mxu0 %v262
      %v360 = vpop.f32.mrb[0].mxu0
      %v361 = vadd.f32 %v236, %v360
      %v362 = vpop.f32.mrb[0].mxu0
      %v363 = vadd.f32 %v236, %v362
      %364 = vmatprep.mubr.f32.mxu0 0.0
      %365 = vmatmul.mubr.f32.gmra.mrb[0].mxu0 %v265
      %v366 = vpop.f32.mrb[0].mxu0
      %v367 = vadd.f32 %v241, %v366
      %v368 = vpop.f32.mrb[0].mxu0
      %v369 = vadd.f32 %v241, %v368
      %370 = vmatprep.mubr.f32.mxu0 0.0
      %371 = vmatmul.mubr.f32.gmra.mrb[0].mxu0 %v268
      %v372 = vpop.f32.mrb[0].mxu0
      %v373 = vadd.f32 %v246, %v372
      %v374 = vpop.f32.mrb[0].mxu0
      %v375 = vadd.f32 %v246, %v374
      %376 = vdwg.mxu0
      %377 = vmatprep.subr.mxu0 %v174
      %378 = vmatpush1.msra.mxu0 %v173
      %379 = vmatprep.subr.mxu0 %v178
      %380 = vmatpush1.msra.mxu0 %v177
      %381 = vmatprep.subr.mxu0 %v182
      %382 = vmatpush1.msra.mxu0 %v181
      %383 = vmatprep.subr.mxu0 %v186
      %384 = vmatpush1.msra.mxu0 %v185
      %385 = vmatprep.subr.mxu0 %v190
      %386 = vmatpush1.msra.mxu0 %v189
      %387 = vmatprep.subr.mxu0 %v194
      %388 = vmatpush1.msra.mxu0 %v193
      %389 = vmatprep.subr.mxu0 %v198
      %390 = vmatpush1.msra.mxu0 %v197
      %391 = vmatprep.subr.mxu0 0.0
      %392 = vmatpush1.msra.mxu0 0.0
      %393 = vmatprep.subr.mxu0 0.0
      %394 = vmatpush1.msra.mxu0 0.0
      %395 = vmatprep.subr.mxu0 0.0
      %396 = vmatpush1.msra.mxu0 0.0
      %397 = vmatprep.subr.mxu0 0.0
      %398 = vmatpush1.msra.mxu0 0.0
      %399 = vmatprep.subr.mxu0 0.0
      %400 = vmatpush1.msra.mxu0 0.0
      %401 = vmatprep.subr.mxu0 0.0
      %402 = vmatpush1.msra.mxu0 0.0
      %403 = vmatprep.subr.mxu0 0.0
      %404 = vmatpush1.msra.mxu0 0.0
      %405 = vmatprep.subr.mxu0 0.0
      %406 = vmatpush1.msra.mxu0 0.0
      %407 = vmatprep.subr.mxu0 0.0
      %408 = vmatpush1.msra.mxu0 0.0
      %409 = vmatprep.subr.mxu0 0.0
      %410 = vmatpush1.msra.mxu0 0.0
      %411 = vmatprep.subr.mxu0 0.0
      %412 = vmatpush1.msra.mxu0 0.0
      %413 = vmatprep.subr.mxu0 0.0
      %414 = vmatpush1.msra.mxu0 0.0
      %415 = vmatprep.subr.mxu0 0.0
      %416 = vmatpush1.msra.mxu0 0.0
      %417 = vmatprep.subr.mxu0 0.0
      %418 = vmatpush1.msra.mxu0 0.0
      %419 = vmatprep.subr.mxu0 0.0
      %420 = vmatpush1.msra.mxu0 0.0
      %421 = vmatprep.subr.mxu0 0.0
      %422 = vmatpush1.msra.mxu0 0.0
      %423 = vmatprep.subr.mxu0 0.0
      %424 = vmatpush1.msra.mxu0 0.0
      %425 = vmatprep.subr.mxu0 0.0
      %426 = vmatpush1.msra.mxu0 0.0
      %427 = vmatprep.subr.mxu0 0.0
      %428 = vmatpush1.msra.mxu0 0.0
      %429 = vmatprep.subr.mxu0 0.0
      %430 = vmatpush1.msra.mxu0 0.0
      %431 = vmatprep.subr.mxu0 0.0
      %432 = vmatpush1.msra.mxu0 0.0
      %433 = vmatprep.subr.mxu0 0.0
      %434 = vmatpush1.msra.mxu0 0.0
      %435 = vmatprep.subr.mxu0 0.0
      %436 = vmatpush1.msra.mxu0 0.0
      %437 = vmatprep.subr.mxu0 0.0
      %438 = vmatpush1.msra.mxu0 0.0
      %439 = vmatprep.subr.mxu0 0.0
      %440 = vmatpush1.msra.mxu0 0.0
      %441 = vmatprep.mubr.f32.mxu0 0.0
      %442 = vmatmul.mubr.f32.gmra.mrb[0].mxu0 %v250
      %v443 = vpop.f32.mrb[0].mxu0
      %v444 = vadd.f32 %v216, %v443
      %v445 = vpop.f32.mrb[0].mxu0
      %v446 = vadd.f32 %v216, %v445
      %447 = vmatprep.mubr.f32.mxu0 0.0
      %448 = vmatmul.mubr.f32.gmra.mrb[0].mxu0 %v253
      %v449 = vpop.f32.mrb[0].mxu0
      %v450 = vadd.f32 %v221, %v449
      %v451 = vpop.f32.mrb[0].mxu0
      %v452 = vadd.f32 %v221, %v451
      %453 = vmatprep.mubr.f32.mxu0 0.0
      %454 = vmatmul.mubr.f32.gmra.mrb[0].mxu0 %v256
      %v455 = vpop.f32.mrb[0].mxu0
      %v456 = vadd.f32 %v226, %v455
      %v457 = vpop.f32.mrb[0].mxu0
      %v458 = vadd.f32 %v226, %v457
      %459 = vmatprep.mubr.f32.mxu0 0.0
      %460 = vmatmul.mubr.f32.gmra.mrb[0].mxu0 %v259
      %v461 = vpop.f32.mrb[0].mxu0
      %v462 = vadd.f32 %v231, %v461
      %v463 = vpop.f32.mrb[0].mxu0
      %v464 = vadd.f32 %v231, %v463
      %465 = vmatprep.mubr.f32.mxu0 0.0
      %466 = vmatmul.mubr.f32.gmra.mrb[0].mxu0 %v262
      %v467 = vpop.f32.mrb[0].mxu0
      %v468 = vadd.f32 %v236, %v467
      %v469 = vpop.f32.mrb[0].mxu0
      %v470 = vadd.f32 %v236, %v469
      %471 = vmatprep.mubr.f32.mxu0 0.0
      %472 = vmatmul.mubr.f32.gmra.mrb[0].mxu0 %v265
      %v473 = vpop.f32.mrb[0].mxu0
      %v474 = vadd.f32 %v241, %v473
      %v475 = vpop.f32.mrb[0].mxu0
      %v476 = vadd.f32 %v241, %v475
      %477 = vmatprep.mubr.f32.mxu0 0.0
      %478 = vmatmul.mubr.f32.gmra.mrb[0].mxu0 %v268
      %v479 = vpop.f32.mrb[0].mxu0
      %v480 = vadd.f32 %v246, %v479
      %v481 = vpop.f32.mrb[0].mxu0
      %v482 = vadd.f32 %v246, %v481
      %483 = vdwg.mxu0
      %v484 = vmax.f32 %v337, 0.0
      %v485 = vmax.f32 %v339, 0.0
      %v486 = vmax.f32 %v444, 0.0
      %v487 = vmax.f32 %v446, 0.0
      %v488 = vmax.f32 %v343, 0.0
      %v489 = vmax.f32 %v345, 0.0
      %v490 = vmax.f32 %v450, 0.0
      %v491 = vmax.f32 %v452, 0.0
      %v492 = vmax.f32 %v349, 0.0
      %v493 = vmax.f32 %v351, 0.0
      %v494 = vmax.f32 %v456, 0.0
      %v495 = vmax.f32 %v458, 0.0
      %v496 = vmax.f32 %v355, 0.0
      %v497 = vmax.f32 %v357, 0.0
      %v498 = vmax.f32 %v462, 0.0
      %v499 = vmax.f32 %v464, 0.0
      %v500 = vmax.f32 %v361, 0.0
      %v501 = vmax.f32 %v363, 0.0
      %v502 = vmax.f32 %v468, 0.0
      %v503 = vmax.f32 %v470, 0.0
      %v504 = vmax.f32 %v367, 0.0
      %v505 = vmax.f32 %v369, 0.0
      %v506 = vmax.f32 %v474, 0.0
      %v507 = vmax.f32 %v476, 0.0
      %v508 = vmax.f32 %v373, 0.0
      %v509 = vmax.f32 %v375, 0.0
      %v510 = vmax.f32 %v480, 0.0
      %v511 = vmax.f32 %v482, 0.0
      %s512 = scalar_lea.vmem %s1, 56
      %v513 = vld [vmem:[%s512] sm:$0xff]
      %v514 = vld [vmem:[%s512 + $0x8] sm:$0xff]
      %v515 = vld [vmem:[%s512 + $0x10] sm:$0xff]
      %v516 = vld [vmem:[%s512 + $0x18] sm:$0xff]
      %v517 = vld [vmem:[%s512 + $0x20] sm:$0xff]
      %v518 = vld [vmem:[%s512 + $0x28] sm:$0xff]
      %v519 = vld [vmem:[%s512 + $0x30] sm:$0xff]
      %s520 = scalar_lea.vmem %s2, 56
      %v521 = vld [vmem:[%s520] sm:$0xff]
      %v522 = vld [vmem:[%s520 + $0x8] sm:$0xff]
      %v523 = vld [vmem:[%s520 + $0x10] sm:$0xff]
      %v524 = vld [vmem:[%s520 + $0x18] sm:$0xff]
      %v525 = vld [vmem:[%s520 + $0x20] sm:$0xff]
      %v526 = vld [vmem:[%s520 + $0x28] sm:$0xff]
      %v527 = vld [vmem:[%s520 + $0x30] sm:$0xff]
      %529 = vset.pattern.permute.xlu0 0
      %530 = vperm.xlu0 %529, %v521
      %v531 = vpop.permute.xlu0 %530
      %534 = vset.pattern.permute.xlu0 0
      %535 = vperm.xlu0 %534, %v522
      %v536 = vpop.permute.xlu0 %535
      %539 = vset.pattern.permute.xlu0 0
      %540 = vperm.xlu0 %539, %v523
      %v541 = vpop.permute.xlu0 %540
      %544 = vset.pattern.permute.xlu0 0
      %545 = vperm.xlu0 %544, %v524
      %v546 = vpop.permute.xlu0 %545
      %549 = vset.pattern.permute.xlu0 0
      %550 = vperm.xlu0 %549, %v525
      %v551 = vpop.permute.xlu0 %550
      %554 = vset.pattern.permute.xlu0 0
      %555 = vperm.xlu0 %554, %v526
      %v556 = vpop.permute.xlu0 %555
      %559 = vset.pattern.permute.xlu0 0
      %560 = vperm.xlu0 %559, %v527
      %v561 = vpop.permute.xlu0 %560
      %v564 = vsel %vm248, %v513, 0
      %v567 = vsel %vm248, %v514, 0
      %v570 = vsel %vm248, %v515, 0
      %v573 = vsel %vm248, %v516, 0
      %v576 = vsel %vm248, %v517, 0
      %v579 = vsel %vm248, %v518, 0
      %v582 = vsel %vm248, %v519, 0
      %584 = vmatprep.subr.mxu0 %v485
      %585 = vmatpush1.msra.mxu0 %v484
      %586 = vmatprep.subr.mxu0 %v489
      %587 = vmatpush1.msra.mxu0 %v488
      %588 = vmatprep.subr.mxu0 %v493
      %589 = vmatpush1.msra.mxu0 %v492
      %590 = vmatprep.subr.mxu0 %v497
      %591 = vmatpush1.msra.mxu0 %v496
      %592 = vmatprep.subr.mxu0 %v501
      %593 = vmatpush1.msra.mxu0 %v500
      %594 = vmatprep.subr.mxu0 %v505
      %595 = vmatpush1.msra.mxu0 %v504
      %596 = vmatprep.subr.mxu0 %v509
      %597 = vmatpush1.msra.mxu0 %v508
      %598 = vmatprep.subr.mxu0 0.0
      %599 = vmatpush1.msra.mxu0 0.0
      %600 = vmatprep.subr.mxu0 0.0
      %601 = vmatpush1.msra.mxu0 0.0
      %602 = vmatprep.subr.mxu0 0.0
      %603 = vmatpush1.msra.mxu0 0.0
      %604 = vmatprep.subr.mxu0 0.0
      %605 = vmatpush1.msra.mxu0 0.0
      %606 = vmatprep.subr.mxu0 0.0
      %607 = vmatpush1.msra.mxu0 0.0
      %608 = vmatprep.subr.mxu0 0.0
      %609 = vmatpush1.msra.mxu0 0.0
      %610 = vmatprep.subr.mxu0 0.0
      %611 = vmatpush1.msra.mxu0 0.0
      %612 = vmatprep.subr.mxu0 0.0
      %613 = vmatpush1.msra.mxu0 0.0
      %614 = vmatprep.subr.mxu0 0.0
      %615 = vmatpush1.msra.mxu0 0.0
      %616 = vmatprep.subr.mxu0 0.0
      %617 = vmatpush1.msra.mxu0 0.0
      %618 = vmatprep.subr.mxu0 0.0
      %619 = vmatpush1.msra.mxu0 0.0
      %620 = vmatprep.subr.mxu0 0.0
      %621 = vmatpush1.msra.mxu0 0.0
      %622 = vmatprep.subr.mxu0 0.0
      %623 = vmatpush1.msra.mxu0 0.0
      %624 = vmatprep.subr.mxu0 0.0
      %625 = vmatpush1.msra.mxu0 0.0
      %626 = vmatprep.subr.mxu0 0.0
      %627 = vmatpush1.msra.mxu0 0.0
      %628 = vmatprep.subr.mxu0 0.0
      %629 = vmatpush1.msra.mxu0 0.0
      %630 = vmatprep.subr.mxu0 0.0
      %631 = vmatpush1.msra.mxu0 0.0
      %632 = vmatprep.subr.mxu0 0.0
      %633 = vmatpush1.msra.mxu0 0.0
      %634 = vmatprep.subr.mxu0 0.0
      %635 = vmatpush1.msra.mxu0 0.0
      %636 = vmatprep.subr.mxu0 0.0
      %637 = vmatpush1.msra.mxu0 0.0
      %638 = vmatprep.subr.mxu0 0.0
      %639 = vmatpush1.msra.mxu0 0.0
      %640 = vmatprep.subr.mxu0 0.0
      %641 = vmatpush1.msra.mxu0 0.0
      %642 = vmatprep.subr.mxu0 0.0
      %643 = vmatpush1.msra.mxu0 0.0
      %644 = vmatprep.subr.mxu0 0.0
      %645 = vmatpush1.msra.mxu0 0.0
      %646 = vmatprep.subr.mxu0 0.0
      %647 = vmatpush1.msra.mxu0 0.0
      %648 = vmatprep.mubr.f32.mxu0 0.0
      %649 = vmatmul.mubr.f32.gmra.mrb[0].mxu0 %v564
      %v650 = vpop.f32.mrb[0].mxu0
      %v651 = vadd.f32 %v531, %v650
      %v652 = vpop.f32.mrb[0].mxu0
      %v653 = vadd.f32 %v531, %v652
      %654 = vmatprep.mubr.f32.mxu0 0.0
      %655 = vmatmul.mubr.f32.gmra.mrb[0].mxu0 %v567
      %v656 = vpop.f32.mrb[0].mxu0
      %v657 = vadd.f32 %v536, %v656
      %v658 = vpop.f32.mrb[0].mxu0
      %v659 = vadd.f32 %v536, %v658
      %660 = vmatprep.mubr.f32.mxu0 0.0
      %661 = vmatmul.mubr.f32.gmra.mrb[0].mxu0 %v570
      %v662 = vpop.f32.mrb[0].mxu0
      %v663 = vadd.f32 %v541, %v662
      %v664 = vpop.f32.mrb[0].mxu0
      %v665 = vadd.f32 %v541, %v664
      %666 = vmatprep.mubr.f32.mxu0 0.0
      %667 = vmatmul.mubr.f32.gmra.mrb[0].mxu0 %v573
      %v668 = vpop.f32.mrb[0].mxu0
      %v669 = vadd.f32 %v546, %v668
      %v670 = vpop.f32.mrb[0].mxu0
      %v671 = vadd.f32 %v546, %v670
      %672 = vmatprep.mubr.f32.mxu0 0.0
      %673 = vmatmul.mubr.f32.gmra.mrb[0].mxu0 %v576
      %v674 = vpop.f32.mrb[0].mxu0
      %v675 = vadd.f32 %v551, %v674
      %v676 = vpop.f32.mrb[0].mxu0
      %v677 = vadd.f32 %v551, %v676
      %678 = vmatprep.mubr.f32.mxu0 0.0
      %679 = vmatmul.mubr.f32.gmra.mrb[0].mxu0 %v579
      %v680 = vpop.f32.mrb[0].mxu0
      %v681 = vadd.f32 %v556, %v680
      %v682 = vpop.f32.mrb[0].mxu0
      %v683 = vadd.f32 %v556, %v682
      %684 = vmatprep.mubr.f32.mxu0 0.0
      %685 = vmatmul.mubr.f32.gmra.mrb[0].mxu0 %v582
      %v686 = vpop.f32.mrb[0].mxu0
      %v687 = vadd.f32 %v561, %v686
      %v688 = vpop.f32.mrb[0].mxu0
      %v689 = vadd.f32 %v561, %v688
      %690 = vdwg.mxu0
      %691 = vmatprep.subr.mxu0 %v487
      %692 = vmatpush1.msra.mxu0 %v486
      %693 = vmatprep.subr.mxu0 %v491
      %694 = vmatpush1.msra.mxu0 %v490
      %695 = vmatprep.subr.mxu0 %v495
      %696 = vmatpush1.msra.mxu0 %v494
      %697 = vmatprep.subr.mxu0 %v499
      %698 = vmatpush1.msra.mxu0 %v498
      %699 = vmatprep.subr.mxu0 %v503
      %700 = vmatpush1.msra.mxu0 %v502
      %701 = vmatprep.subr.mxu0 %v507
      %702 = vmatpush1.msra.mxu0 %v506
      %703 = vmatprep.subr.mxu0 %v511
      %704 = vmatpush1.msra.mxu0 %v510
      %705 = vmatprep.subr.mxu0 0.0
      %706 = vmatpush1.msra.mxu0 0.0
      %707 = vmatprep.subr.mxu0 0.0
      %708 = vmatpush1.msra.mxu0 0.0
      %709 = vmatprep.subr.mxu0 0.0
      %710 = vmatpush1.msra.mxu0 0.0
      %711 = vmatprep.subr.mxu0 0.0
      %712 = vmatpush1.msra.mxu0 0.0
      %713 = vmatprep.subr.mxu0 0.0
      %714 = vmatpush1.msra.mxu0 0.0
      %715 = vmatprep.subr.mxu0 0.0
      %716 = vmatpush1.msra.mxu0 0.0
      %717 = vmatprep.subr.mxu0 0.0
      %718 = vmatpush1.msra.mxu0 0.0
      %719 = vmatprep.subr.mxu0 0.0
      %720 = vmatpush1.msra.mxu0 0.0
      %721 = vmatprep.subr.mxu0 0.0
      %722 = vmatpush1.msra.mxu0 0.0
      %723 = vmatprep.subr.mxu0 0.0
      %724 = vmatpush1.msra.mxu0 0.0
      %725 = vmatprep.subr.mxu0 0.0
      %726 = vmatpush1.msra.mxu0 0.0
      %727 = vmatprep.subr.mxu0 0.0
      %728 = vmatpush1.msra.mxu0 0.0
      %729 = vmatprep.subr.mxu0 0.0
      %730 = vmatpush1.msra.mxu0 0.0
      %731 = vmatprep.subr.mxu0 0.0
      %732 = vmatpush1.msra.mxu0 0.0
      %733 = vmatprep.subr.mxu0 0.0
      %734 = vmatpush1.msra.mxu0 0.0
      %735 = vmatprep.subr.mxu0 0.0
      %736 = vmatpush1.msra.mxu0 0.0
      %737 = vmatprep.subr.mxu0 0.0
      %738 = vmatpush1.msra.mxu0 0.0
      %739 = vmatprep.subr.mxu0 0.0
      %740 = vmatpush1.msra.mxu0 0.0
      %741 = vmatprep.subr.mxu0 0.0
      %742 = vmatpush1.msra.mxu0 0.0
      %743 = vmatprep.subr.mxu0 0.0
      %744 = vmatpush1.msra.mxu0 0.0
      %745 = vmatprep.subr.mxu0 0.0
      %746 = vmatpush1.msra.mxu0 0.0
      %747 = vmatprep.subr.mxu0 0.0
      %748 = vmatpush1.msra.mxu0 0.0
      %749 = vmatprep.subr.mxu0 0.0
      %750 = vmatpush1.msra.mxu0 0.0
      %751 = vmatprep.subr.mxu0 0.0
      %752 = vmatpush1.msra.mxu0 0.0
      %753 = vmatprep.subr.mxu0 0.0
      %754 = vmatpush1.msra.mxu0 0.0
      %755 = vmatprep.mubr.f32.mxu0 0.0
      %756 = vmatmul.mubr.f32.gmra.mrb[0].mxu0 %v564
      %v757 = vpop.f32.mrb[0].mxu0
      %v758 = vadd.f32 %v531, %v757
      %v759 = vpop.f32.mrb[0].mxu0
      %v760 = vadd.f32 %v531, %v759
      %761 = vmatprep.mubr.f32.mxu0 0.0
      %762 = vmatmul.mubr.f32.gmra.mrb[0].mxu0 %v567
      %v763 = vpop.f32.mrb[0].mxu0
      %v764 = vadd.f32 %v536, %v763
      %v765 = vpop.f32.mrb[0].mxu0
      %v766 = vadd.f32 %v536, %v765
      %767 = vmatprep.mubr.f32.mxu0 0.0
      %768 = vmatmul.mubr.f32.gmra.mrb[0].mxu0 %v570
      %v769 = vpop.f32.mrb[0].mxu0
      %v770 = vadd.f32 %v541, %v769
      %v771 = vpop.f32.mrb[0].mxu0
      %v772 = vadd.f32 %v541, %v771
      %773 = vmatprep.mubr.f32.mxu0 0.0
      %774 = vmatmul.mubr.f32.gmra.mrb[0].mxu0 %v573
      %v775 = vpop.f32.mrb[0].mxu0
      %v776 = vadd.f32 %v546, %v775
      %v777 = vpop.f32.mrb[0].mxu0
      %v778 = vadd.f32 %v546, %v777
      %779 = vmatprep.mubr.f32.mxu0 0.0
      %780 = vmatmul.mubr.f32.gmra.mrb[0].mxu0 %v576
      %v781 = vpop.f32.mrb[0].mxu0
      %v782 = vadd.f32 %v551, %v781
      %v783 = vpop.f32.mrb[0].mxu0
      %v784 = vadd.f32 %v551, %v783
      %785 = vmatprep.mubr.f32.mxu0 0.0
      %786 = vmatmul.mubr.f32.gmra.mrb[0].mxu0 %v579
      %v787 = vpop.f32.mrb[0].mxu0
      %v788 = vadd.f32 %v556, %v787
      %v789 = vpop.f32.mrb[0].mxu0
      %v790 = vadd.f32 %v556, %v789
      %791 = vmatprep.mubr.f32.mxu0 0.0
      %792 = vmatmul.mubr.f32.gmra.mrb[0].mxu0 %v582
      %v793 = vpop.f32.mrb[0].mxu0
      %v794 = vadd.f32 %v561, %v793
      %v795 = vpop.f32.mrb[0].mxu0
      %v796 = vadd.f32 %v561, %v795
      %797 = vdwg.mxu0
      %v798 = vmax.f32 %v651, 0.0
      %v799 = vmax.f32 %v653, 0.0
      %v800 = vmax.f32 %v758, 0.0
      %v801 = vmax.f32 %v760, 0.0
      %v802 = vmax.f32 %v657, 0.0
      %v803 = vmax.f32 %v659, 0.0
      %v804 = vmax.f32 %v764, 0.0
      %v805 = vmax.f32 %v766, 0.0
      %v806 = vmax.f32 %v663, 0.0
      %v807 = vmax.f32 %v665, 0.0
      %v808 = vmax.f32 %v770, 0.0
      %v809 = vmax.f32 %v772, 0.0
      %v810 = vmax.f32 %v669, 0.0
      %v811 = vmax.f32 %v671, 0.0
      %v812 = vmax.f32 %v776, 0.0
      %v813 = vmax.f32 %v778, 0.0
      %v814 = vmax.f32 %v675, 0.0
      %v815 = vmax.f32 %v677, 0.0
      %v816 = vmax.f32 %v782, 0.0
      %v817 = vmax.f32 %v784, 0.0
      %v818 = vmax.f32 %v681, 0.0
      %v819 = vmax.f32 %v683, 0.0
      %v820 = vmax.f32 %v788, 0.0
      %v821 = vmax.f32 %v790, 0.0
      %v822 = vmax.f32 %v687, 0.0
      %v823 = vmax.f32 %v689, 0.0
      %v824 = vmax.f32 %v794, 0.0
      %v825 = vmax.f32 %v796, 0.0
      %s826 = scalar_lea.vmem %s1, 112
      %v827 = vld [vmem:[%s826] sm:$0xff]
      %v828 = vld [vmem:[%s826 + $0x8] sm:$0xff]
      %v829 = vld [vmem:[%s826 + $0x10] sm:$0xff]
      %v830 = vld [vmem:[%s826 + $0x18] sm:$0xff]
      %v831 = vld [vmem:[%s826 + $0x20] sm:$0xff]
      %v832 = vld [vmem:[%s826 + $0x28] sm:$0xff]
      %v833 = vld [vmem:[%s826 + $0x30] sm:$0xff]
      %s834 = scalar_lea.vmem %s2, 112
      %v835 = vld [vmem:[%s834] sm:$0xff]
      %v836 = vld [vmem:[%s834 + $0x8] sm:$0xff]
      %v837 = vld [vmem:[%s834 + $0x10] sm:$0xff]
      %v838 = vld [vmem:[%s834 + $0x18] sm:$0xff]
      %v839 = vld [vmem:[%s834 + $0x20] sm:$0xff]
      %v840 = vld [vmem:[%s834 + $0x28] sm:$0xff]
      %v841 = vld [vmem:[%s834 + $0x30] sm:$0xff]
      %843 = vset.pattern.permute.xlu0 0
      %844 = vperm.xlu0 %843, %v835
      %v845 = vpop.permute.xlu0 %844
      %848 = vset.pattern.permute.xlu0 0
      %849 = vperm.xlu0 %848, %v836
      %v850 = vpop.permute.xlu0 %849
      %853 = vset.pattern.permute.xlu0 0
      %854 = vperm.xlu0 %853, %v837
      %v855 = vpop.permute.xlu0 %854
      %858 = vset.pattern.permute.xlu0 0
      %859 = vperm.xlu0 %858, %v838
      %v860 = vpop.permute.xlu0 %859
      %863 = vset.pattern.permute.xlu0 0
      %864 = vperm.xlu0 %863, %v839
      %v865 = vpop.permute.xlu0 %864
      %867 = vset.pattern.permute.xlu0 0
      %868 = vperm.xlu0 %867, %v840
      %v869 = vpop.permute.xlu0 %868
      %871 = vset.pattern.permute.xlu0 0
      %872 = vperm.xlu0 %871, %v841
      %v873 = vpop.permute.xlu0 %872
      %v875 = vsel %vm248, %v827, 0
      %v878 = vsel %vm248, %v828, 0
      %v881 = vsel %vm248, %v829, 0
      %v884 = vsel %vm248, %v830, 0
      %v887 = vsel %vm248, %v831, 0
      %v890 = vsel %vm248, %v832, 0
      %v893 = vsel %vm248, %v833, 0
      %895 = vmatprep.subr.mxu0 %v799
      %896 = vmatpush1.msra.mxu0 %v798
      %897 = vmatprep.subr.mxu0 %v803
      %898 = vmatpush1.msra.mxu0 %v802
      %899 = vmatprep.subr.mxu0 %v807
      %900 = vmatpush1.msra.mxu0 %v806
      %901 = vmatprep.subr.mxu0 %v811
      %902 = vmatpush1.msra.mxu0 %v810
      %903 = vmatprep.subr.mxu0 %v815
      %904 = vmatpush1.msra.mxu0 %v814
      %905 = vmatprep.subr.mxu0 %v819
      %906 = vmatpush1.msra.mxu0 %v818
      %907 = vmatprep.subr.mxu0 %v823
      %908 = vmatpush1.msra.mxu0 %v822
      %909 = vmatprep.subr.mxu0 0.0
      %910 = vmatpush1.msra.mxu0 0.0
      %911 = vmatprep.subr.mxu0 0.0
      %912 = vmatpush1.msra.mxu0 0.0
      %913 = vmatprep.subr.mxu0 0.0
      %914 = vmatpush1.msra.mxu0 0.0
      %915 = vmatprep.subr.mxu0 0.0
      %916 = vmatpush1.msra.mxu0 0.0
      %917 = vmatprep.subr.mxu0 0.0
      %918 = vmatpush1.msra.mxu0 0.0
      %919 = vmatprep.subr.mxu0 0.0
      %920 = vmatpush1.msra.mxu0 0.0
      %921 = vmatprep.subr.mxu0 0.0
      %922 = vmatpush1.msra.mxu0 0.0
      %923 = vmatprep.subr.mxu0 0.0
      %924 = vmatpush1.msra.mxu0 0.0
      %925 = vmatprep.subr.mxu0 0.0
      %926 = vmatpush1.msra.mxu0 0.0
      %927 = vmatprep.subr.mxu0 0.0
      %928 = vmatpush1.msra.mxu0 0.0
      %929 = vmatprep.subr.mxu0 0.0
      %930 = vmatpush1.msra.mxu0 0.0
      %931 = vmatprep.subr.mxu0 0.0
      %932 = vmatpush1.msra.mxu0 0.0
      %933 = vmatprep.subr.mxu0 0.0
      %934 = vmatpush1.msra.mxu0 0.0
      %935 = vmatprep.subr.mxu0 0.0
      %936 = vmatpush1.msra.mxu0 0.0
      %937 = vmatprep.subr.mxu0 0.0
      %938 = vmatpush1.msra.mxu0 0.0
      %939 = vmatprep.subr.mxu0 0.0
      %940 = vmatpush1.msra.mxu0 0.0
      %941 = vmatprep.subr.mxu0 0.0
      %942 = vmatpush1.msra.mxu0 0.0
      %943 = vmatprep.subr.mxu0 0.0
      %944 = vmatpush1.msra.mxu0 0.0
      %945 = vmatprep.subr.mxu0 0.0
      %946 = vmatpush1.msra.mxu0 0.0
      %947 = vmatprep.subr.mxu0 0.0
      %948 = vmatpush1.msra.mxu0 0.0
      %949 = vmatprep.subr.mxu0 0.0
      %950 = vmatpush1.msra.mxu0 0.0
      %951 = vmatprep.subr.mxu0 0.0
      %952 = vmatpush1.msra.mxu0 0.0
      %953 = vmatprep.subr.mxu0 0.0
      %954 = vmatpush1.msra.mxu0 0.0
      %955 = vmatprep.subr.mxu0 0.0
      %956 = vmatpush1.msra.mxu0 0.0
      %957 = vmatprep.subr.mxu0 0.0
      %958 = vmatpush1.msra.mxu0 0.0
      %959 = vmatprep.mubr.f32.mxu0 0.0
      %960 = vmatmul.mubr.f32.gmra.mrb[0].mxu0 %v875
      %v961 = vpop.f32.mrb[0].mxu0
      %v962 = vadd.f32 %v845, %v961
      %v963 = vpop.f32.mrb[0].mxu0
      %v964 = vadd.f32 %v845, %v963
      %965 = vmatprep.mubr.f32.mxu0 0.0
      %966 = vmatmul.mubr.f32.gmra.mrb[0].mxu0 %v878
      %v967 = vpop.f32.mrb[0].mxu0
      %v968 = vadd.f32 %v850, %v967
      %v969 = vpop.f32.mrb[0].mxu0
      %v970 = vadd.f32 %v850, %v969
      %971 = vmatprep.mubr.f32.mxu0 0.0
      %972 = vmatmul.mubr.f32.gmra.mrb[0].mxu0 %v881
      %v973 = vpop.f32.mrb[0].mxu0
      %v974 = vadd.f32 %v855, %v973
      %v975 = vpop.f32.mrb[0].mxu0
      %v976 = vadd.f32 %v855, %v975
      %977 = vmatprep.mubr.f32.mxu0 0.0
      %978 = vmatmul.mubr.f32.gmra.mrb[0].mxu0 %v884
      %v979 = vpop.f32.mrb[0].mxu0
      %v980 = vadd.f32 %v860, %v979
      %v981 = vpop.f32.mrb[0].mxu0
      %v982 = vadd.f32 %v860, %v981
      %983 = vmatprep.mubr.f32.mxu0 0.0
      %984 = vmatmul.mubr.f32.gmra.mrb[0].mxu0 %v887
      %v985 = vpop.f32.mrb[0].mxu0
      %v986 = vpop.f32.mrb[0].mxu0
      %987 = vmatprep.mubr.f32.mxu0 0.0
      %988 = vmatmul.mubr.f32.gmra.mrb[0].mxu0 %v890
      %v989 = vpop.f32.mrb[0].mxu0
      %v990 = vpop.f32.mrb[0].mxu0
      %991 = vmatprep.mubr.f32.mxu0 0.0
      %992 = vmatmul.mubr.f32.gmra.mrb[0].mxu0 %v893
      %v993 = vpop.f32.mrb[0].mxu0
      %v994 = vpop.f32.mrb[0].mxu0
      %995 = vdwg.mxu0
      %996 = vmatprep.subr.mxu0 %v801
      %997 = vmatpush1.msra.mxu0 %v800
      %998 = vmatprep.subr.mxu0 %v805
      %999 = vmatpush1.msra.mxu0 %v804
      %1000 = vmatprep.subr.mxu0 %v809
      %1001 = vmatpush1.msra.mxu0 %v808
      %1002 = vmatprep.subr.mxu0 %v813
      %1003 = vmatpush1.msra.mxu0 %v812
      %1004 = vmatprep.subr.mxu0 %v817
      %1005 = vmatpush1.msra.mxu0 %v816
      %1006 = vmatprep.subr.mxu0 %v821
      %1007 = vmatpush1.msra.mxu0 %v820
      %1008 = vmatprep.subr.mxu0 %v825
      %1009 = vmatpush1.msra.mxu0 %v824
      %1010 = vmatprep.subr.mxu0 0.0
      %1011 = vmatpush1.msra.mxu0 0.0
      %1012 = vmatprep.subr.mxu0 0.0
      %1013 = vmatpush1.msra.mxu0 0.0
      %1014 = vmatprep.subr.mxu0 0.0
      %1015 = vmatpush1.msra.mxu0 0.0
      %1016 = vmatprep.subr.mxu0 0.0
      %1017 = vmatpush1.msra.mxu0 0.0
      %1018 = vmatprep.subr.mxu0 0.0
      %1019 = vmatpush1.msra.mxu0 0.0
      %1020 = vmatprep.subr.mxu0 0.0
      %1021 = vmatpush1.msra.mxu0 0.0
      %1022 = vmatprep.subr.mxu0 0.0
      %1023 = vmatpush1.msra.mxu0 0.0
      %1024 = vmatprep.subr.mxu0 0.0
      %1025 = vmatpush1.msra.mxu0 0.0
      %1026 = vmatprep.subr.mxu0 0.0
      %1027 = vmatpush1.msra.mxu0 0.0
      %1028 = vmatprep.subr.mxu0 0.0
      %1029 = vmatpush1.msra.mxu0 0.0
      %1030 = vmatprep.subr.mxu0 0.0
      %1031 = vmatpush1.msra.mxu0 0.0
      %1032 = vmatprep.subr.mxu0 0.0
      %1033 = vmatpush1.msra.mxu0 0.0
      %1034 = vmatprep.subr.mxu0 0.0
      %1035 = vmatpush1.msra.mxu0 0.0
      %1036 = vmatprep.subr.mxu0 0.0
      %1037 = vmatpush1.msra.mxu0 0.0
      %1038 = vmatprep.subr.mxu0 0.0
      %1039 = vmatpush1.msra.mxu0 0.0
      %1040 = vmatprep.subr.mxu0 0.0
      %1041 = vmatpush1.msra.mxu0 0.0
      %1042 = vmatprep.subr.mxu0 0.0
      %1043 = vmatpush1.msra.mxu0 0.0
      %1044 = vmatprep.subr.mxu0 0.0
      %1045 = vmatpush1.msra.mxu0 0.0
      %1046 = vmatprep.subr.mxu0 0.0
      %1047 = vmatpush1.msra.mxu0 0.0
      %1048 = vmatprep.subr.mxu0 0.0
      %1049 = vmatpush1.msra.mxu0 0.0
      %1050 = vmatprep.subr.mxu0 0.0
      %1051 = vmatpush1.msra.mxu0 0.0
      %1052 = vmatprep.subr.mxu0 0.0
      %1053 = vmatpush1.msra.mxu0 0.0
      %1054 = vmatprep.subr.mxu0 0.0
      %1055 = vmatpush1.msra.mxu0 0.0
      %1056 = vmatprep.subr.mxu0 0.0
      %1057 = vmatpush1.msra.mxu0 0.0
      %1058 = vmatprep.subr.mxu0 0.0
      %1059 = vmatpush1.msra.mxu0 0.0
      %1060 = vmatprep.mubr.f32.mxu0 0.0
      %1061 = vmatmul.mubr.f32.gmra.mrb[0].mxu0 %v875
      %v1062 = vpop.f32.mrb[0].mxu0
      %v1063 = vadd.f32 %v845, %v1062
      %v1064 = vpop.f32.mrb[0].mxu0
      %v1065 = vadd.f32 %v845, %v1064
      %1066 = vmatprep.mubr.f32.mxu0 0.0
      %1067 = vmatmul.mubr.f32.gmra.mrb[0].mxu0 %v878
      %v1068 = vpop.f32.mrb[0].mxu0
      %v1069 = vadd.f32 %v850, %v1068
      %v1070 = vpop.f32.mrb[0].mxu0
      %v1071 = vadd.f32 %v850, %v1070
      %1072 = vmatprep.mubr.f32.mxu0 0.0
      %1073 = vmatmul.mubr.f32.gmra.mrb[0].mxu0 %v881
      %v1074 = vpop.f32.mrb[0].mxu0
      %v1075 = vadd.f32 %v855, %v1074
      %v1076 = vpop.f32.mrb[0].mxu0
      %v1077 = vadd.f32 %v855, %v1076
      %1078 = vmatprep.mubr.f32.mxu0 0.0
      %1079 = vmatmul.mubr.f32.gmra.mrb[0].mxu0 %v884
      %v1080 = vpop.f32.mrb[0].mxu0
      %v1081 = vadd.f32 %v860, %v1080
      %v1082 = vpop.f32.mrb[0].mxu0
      %v1083 = vadd.f32 %v860, %v1082
      %1084 = vmatprep.mubr.f32.mxu0 0.0
      %1085 = vmatmul.mubr.f32.gmra.mrb[0].mxu0 %v887
      %v1086 = vpop.f32.mrb[0].mxu0
      %v1087 = vpop.f32.mrb[0].mxu0
      %1088 = vmatprep.mubr.f32.mxu0 0.0
      %1089 = vmatmul.mubr.f32.gmra.mrb[0].mxu0 %v890
      %v1090 = vpop.f32.mrb[0].mxu0
      %v1091 = vpop.f32.mrb[0].mxu0
      %1092 = vmatprep.mubr.f32.mxu0 0.0
      %1093 = vmatmul.mubr.f32.gmra.mrb[0].mxu0 %v893
      %v1094 = vpop.f32.mrb[0].mxu0
      %v1095 = vpop.f32.mrb[0].mxu0
      %1096 = vdwg.mxu0
      %v1097 = vmax.f32 %v962, 0.0
      %v1098 = vmax.f32 %v964, 0.0
      %v1099 = vmax.f32 %v1063, 0.0
      %v1100 = vmax.f32 %v1065, 0.0
      %v1101 = vmax.f32 %v968, 0.0
      %v1102 = vmax.f32 %v970, 0.0
      %v1103 = vmax.f32 %v1069, 0.0
      %v1104 = vmax.f32 %v1071, 0.0
      %v1105 = vmax.f32 %v974, 0.0
      %v1106 = vmax.f32 %v976, 0.0
      %v1107 = vmax.f32 %v1075, 0.0
      %v1108 = vmax.f32 %v1077, 0.0
      %v1109 = vmax.f32 %v980, 0.0
      %v1110 = vmax.f32 %v982, 0.0
      %v1111 = vmax.f32 %v1081, 0.0
      %v1112 = vmax.f32 %v1083, 0.0
      %1117 = vrot.lane.b32.xlu0 %v1097, 64
      %v1118 = vpop.permute.xlu0 %1117
      %1119 = vrot.lane.b32.xlu0 %v1101, 64
      %v1120 = vpop.permute.xlu0 %1119
      %1121 = vrot.lane.b32.xlu0 %v1105, 64
      %v1122 = vpop.permute.xlu0 %1121
      %1123 = vrot.lane.b32.xlu0 %v1109, 64
      %v1124 = vpop.permute.xlu0 %1123
      %v1129 = vmax.f32 %v1097, %v1118
      %v1130 = vmax.f32 %v1101, %v1120
      %v1131 = vmax.f32 %v1105, %v1122
      %v1132 = vmax.f32 %v1109, %v1124
      %v1133 = vmax.f32 %v1129, %v1098
      %v1134 = vmax.f32 %v1130, %v1102
      %v1135 = vmax.f32 %v1131, %v1106
      %v1136 = vmax.f32 %v1132, %v1110
      %1141 = vrot.lane.b32.xlu0 %v1098, 64
      %v1142 = vpop.permute.xlu0 %1141
      %1143 = vrot.lane.b32.xlu0 %v1102, 64
      %v1144 = vpop.permute.xlu0 %1143
      %1145 = vrot.lane.b32.xlu0 %v1106, 64
      %v1146 = vpop.permute.xlu0 %1145
      %1147 = vrot.lane.b32.xlu0 %v1110, 64
      %v1148 = vpop.permute.xlu0 %1147
      %v1153 = vmax.f32 %v1133, %v1142
      %v1154 = vmax.f32 %v1134, %v1144
      %v1155 = vmax.f32 %v1135, %v1146
      %v1156 = vmax.f32 %v1136, %v1148
      %v1157 = vmax.f32 %v1153, %v1099
      %v1158 = vmax.f32 %v1154, %v1103
      %v1159 = vmax.f32 %v1155, %v1107
      %v1160 = vmax.f32 %v1156, %v1111
      %1165 = vrot.lane.b32.xlu0 %v1099, 64
      %v1166 = vpop.permute.xlu0 %1165
      %1167 = vrot.lane.b32.xlu0 %v1103, 64
      %v1168 = vpop.permute.xlu0 %1167
      %1169 = vrot.lane.b32.xlu0 %v1107, 64
      %v1170 = vpop.permute.xlu0 %1169
      %1171 = vrot.lane.b32.xlu0 %v1111, 64
      %v1172 = vpop.permute.xlu0 %1171
      %v1177 = vmax.f32 %v1157, %v1166
      %v1178 = vmax.f32 %v1158, %v1168
      %v1179 = vmax.f32 %v1159, %v1170
      %v1180 = vmax.f32 %v1160, %v1172
      %v1181 = vmax.f32 %v1177, %v1100
      %v1182 = vmax.f32 %v1178, %v1104
      %v1183 = vmax.f32 %v1179, %v1108
      %v1184 = vmax.f32 %v1180, %v1112
      %1189 = vrot.lane.b32.xlu0 %v1100, 64
      %v1190 = vpop.permute.xlu0 %1189
      %1191 = vrot.lane.b32.xlu0 %v1104, 64
      %v1192 = vpop.permute.xlu0 %1191
      %1193 = vrot.lane.b32.xlu0 %v1108, 64
      %v1194 = vpop.permute.xlu0 %1193
      %1195 = vrot.lane.b32.xlu0 %v1112, 64
      %v1196 = vpop.permute.xlu0 %1195
      %v1201 = vmax.f32 %v1181, %v1190
      %v1202 = vmax.f32 %v1182, %v1192
      %v1203 = vmax.f32 %v1183, %v1194
      %v1204 = vmax.f32 %v1184, %v1196
      %vm1205 = vcmask 523264
      %1206 = vst.msk [vmem:[%s170] sm:$0xff] %vm1205, %v1201
      %1207 = vst.msk [vmem:[%s170 + $0x8] sm:$0xff] %vm1205, %v1202
      %1208 = vst.msk [vmem:[%s170 + $0x10] sm:$0xff] %vm1205, %v1203
      %1209 = vst.msk [vmem:[%s170 + $0x18] sm:$0xff] %vm1205, %v1204
      %p1210 = scmp.lt.s32.totalorder %s14, 1
      %s1211 = scalar_select %p1210, %s14, 1
      %s1212 = smul.addr %s1211, 4
      %s1213 = smul.addr %s1212, 8
      %s1214 = scalar_lea.vmem %s3, %s1213
      // Predicated region
      $region33: #{pointnet2_msg_forward.15} parent=31 // pred_check
        %p1215 = pneg %p100
      $region34: #{pointnet2_msg_forward.15} parent=31 // pred_check_branch
        %1217 = sbr.rel (%p1215) target = $region36
      $region35: #{pointnet2_msg_forward.15} parent=31 // pred_region
        _
      $region36: #{pointnet2_msg_forward.15} parent=31 // pred_fallthru
        _
    $region32: #{pointnet2_msg_forward.15} parent=5 // pred_fallthru
      _
    %p1218 = scmp.le.s32.totalorder 2, %s9
    // Predicated region
    $region37: #{pointnet2_msg_forward.15} parent=5 // pred_check
      %p1219 = pneg %p1218
    $region38: #{pointnet2_msg_forward.15} parent=5 // pred_check_branch
      %1221 = sbr.rel (%p1219) target = $region40
    $region39: #{pointnet2_msg_forward.15} parent=5 // pred_region
      %s1222 = ssub.s32 %s9, 2
      // Predicated region
      $region41: #{pointnet2_msg_forward.15} parent=39 // pred_check
        %p1223 = pneg %p106
      $region42: #{pointnet2_msg_forward.15} parent=39 // pred_check_branch
        %1225 = sbr.rel (%p1223) target = $region44
      $region43: #{pointnet2_msg_forward.15} parent=39 // pred_region
        %p1226 = scmp.lt.s32.totalorder %s15, 1
        %s1227 = scalar_select %p1226, %s15, 1
        %s1228 = smul.addr %s1227, 4
        %s1229 = smul.addr %s1228, 8
        %s1230 = scalar_lea.vmem %s3, %s1229
      $region44: #{pointnet2_msg_forward.15} parent=39 // pred_fallthru
        _
    $region40: #{pointnet2_msg_forward.15} parent=5 // pred_fallthru
      _
  $region6: #{pointnet2_msg_forward.15} parent=0 // loop_footer
    %s13 = sadd.s32 1, %s9
  $region7: #{pointnet2_msg_forward.15} parent=0 // loop_footer_branch
    %8 = sbr.rel target = $region3
  $region8: #{pointnet2_msg_forward.15} parent=0 // loop_exit
    _

// kernel: pointnet2_msg_forward.16
$region0: #{pointnet2_msg_forward.16}
  #allocation0 [shape = 'u32[]', space=smem, size = 0x4, offset = 0x4, fixed_abs, tag = 'smem constant byte address 0x4 - core index']
  #allocation1 [shape = 'u32[144,128]{1,0:T(1,128)}', space=vmem, size = 0x12000, scoped, tag = 'internal scratch']
  %s0 = inlined_call_operand.vmem [shape: f32[2,112,128], index: 0, kind: input, shape index: {}]
  %s1 = inlined_call_operand.vmem [shape: f32[2,112,112], index: 1, kind: input, shape index: {}]
  %s2 = inlined_call_operand.vmem [shape: f32[2,112,1], index: 2, kind: input, shape index: {}]
  %s3 = inlined_call_operand.vmem [shape: f32[2,64,128], index: 3, kind: output, shape index: {}]
  %s4 = sld [smem:[#allocation0]]
  $region45: #{pointnet2_msg_forward.16} parent=0
    _
  %s6 = ssub.s32 1, %s4
  %s7 = scalar_select 0, %s6, %s4
  loop: start=0, step=1, limit=4
  $region2: #{pointnet2_msg_forward.16} parent=0 // loop_pre_header
    _
  $region3: #{pointnet2_msg_forward.16} parent=0 // loop_header
    %s9 = sphi 0, %s13
    %p10 = scmp.ge.s32.totalorder %s9, 4
    %s19 = sphi 0, %s21
    %s22 = sphi 0, %s19
    %s23 = sphi 0, %s22
    %s39 = sphi 0, %s23
    %s43 = sphi 0, %s43
    %s45 = sphi 0, %s43
    %s46 = sphi 0, %s45
    %s60 = sphi 0, %s46
    %s64 = sphi 0, %s64
    %s66 = sphi 0, %s64
    %s67 = sphi 0, %s66
    %s81 = sphi 0, %s67
    %s87 = sphi 0, %s89
    %s90 = sphi 0, %s87
    %s91 = sphi 0, %s90
    %s107 = sphi 0, %s91
  $region4: #{pointnet2_msg_forward.16} parent=0 // loop_header_branch
    %12 = sbr.rel (%p10) target = $region8
  $region5: #{pointnet2_msg_forward.16} parent=0 // loop_body
    %s14 = ssub.s32 %s9, 1
    %s15 = ssub.s32 %s9, 2
    %s16 = sadd.s32 %s9, 1
    %s17 = ssub.s32 %s9, %s16
    %p18 = scmp.eq.s32.totalorder %s17, 0
    %s20 = sadd.s32 %s19, 1
    %s21 = scalar_select %p18, %s19, %s20
    %p24 = pneg %p18
    %p25 = scmp.eq.s32.totalorder %s9, 1
    %p26 = por %p24, %p25
    %p27 = scmp.ne.s32.totalorder %s19, %s22
    %p28 = scmp.eq.s32.totalorder %s9, 0
    %p29 = por %p27, %p28
    %p30 = scmp.ne.s32.totalorder %s19, %s22
    %p31 = scmp.eq.s32.totalorder %s14, 1
    %p32 = por %p30, %p31
    %p33 = scmp.ne.s32.totalorder %s22, %s23
    %p34 = scmp.eq.s32.totalorder %s14, 0
    %p35 = por %p33, %p34
    %p36 = scmp.ne.s32.totalorder %s22, %s23
    %p37 = scmp.eq.s32.totalorder %s15, 1
    %p38 = por %p36, %p37
    %p40 = scmp.ne.s32.totalorder %s23, %s39
    %p41 = scmp.eq.s32.totalorder %s15, 0
    %p42 = por %p40, %p41
    %s44 = sadd.s32 %s43, 1
    %p47 = scmp.eq.s32.totalorder %s9, 1
    %p48 = scmp.ne.s32.totalorder %s43, %s45
    %p49 = scmp.eq.s32.totalorder %s9, 0
    %p50 = por %p48, %p49
    %p51 = scmp.ne.s32.totalorder %s43, %s45
    %p52 = scmp.eq.s32.totalorder %s14, 1
    %p53 = por %p51, %p52
    %p54 = scmp.ne.s32.totalorder %s45, %s46
    %p55 = scmp.eq.s32.totalorder %s14, 0
    %p56 = por %p54, %p55
    %p57 = scmp.ne.s32.totalorder %s45, %s46
    %p58 = scmp.eq.s32.totalorder %s15, 1
    %p59 = por %p57, %p58
    %p61 = scmp.ne.s32.totalorder %s46, %s60
    %p62 = scmp.eq.s32.totalorder %s15, 0
    %p63 = por %p61, %p62
    %s65 = sadd.s32 %s64, 1
    %p68 = scmp.eq.s32.totalorder %s9, 1
    %p69 = scmp.ne.s32.totalorder %s64, %s66
    %p70 = scmp.eq.s32.totalorder %s9, 0
    %p71 = por %p69, %p70
    %p72 = scmp.ne.s32.totalorder %s64, %s66
    %p73 = scmp.eq.s32.totalorder %s14, 1
    %p74 = por %p72, %p73
    %p75 = scmp.ne.s32.totalorder %s66, %s67
    %p76 = scmp.eq.s32.totalorder %s14, 0
    %p77 = por %p75, %p76
    %p78 = scmp.ne.s32.totalorder %s66, %s67
    %p79 = scmp.eq.s32.totalorder %s15, 1
    %p80 = por %p78, %p79
    %p82 = scmp.ne.s32.totalorder %s67, %s81
    %p83 = scmp.eq.s32.totalorder %s15, 0
    %p84 = por %p82, %p83
    %s85 = ssub.s32 %s9, %s16
    %p86 = scmp.eq.s32.totalorder %s85, 0
    %s88 = sadd.s32 %s87, 1
    %s89 = scalar_select %p86, %s87, %s88
    %p92 = pneg %p86
    %p93 = scmp.eq.s32.totalorder %s9, 1
    %p94 = por %p92, %p93
    %p95 = scmp.ne.s32.totalorder %s87, %s90
    %p96 = scmp.eq.s32.totalorder %s9, 0
    %p97 = por %p95, %p96
    %p98 = scmp.ne.s32.totalorder %s87, %s90
    %p99 = scmp.eq.s32.totalorder %s14, 1
    %p100 = por %p98, %p99
    %p101 = scmp.ne.s32.totalorder %s90, %s91
    %p102 = scmp.eq.s32.totalorder %s14, 0
    %p103 = por %p101, %p102
    %p104 = scmp.ne.s32.totalorder %s90, %s91
    %p105 = scmp.eq.s32.totalorder %s15, 1
    %p106 = por %p104, %p105
    %p108 = scmp.ne.s32.totalorder %s91, %s107
    %p109 = scmp.eq.s32.totalorder %s15, 0
    %p110 = por %p108, %p109
    %p111 = scmp.le.s32.totalorder 1, %s9
    %p112 = scmp.lt.s32.totalorder %s9, 3
    %p113 = pnand %p111, %p112
    %p114 = pneg %p113
    // Predicated region
    $region9: #{pointnet2_msg_forward.16} parent=5 // pred_check
      _
    $region10: #{pointnet2_msg_forward.16} parent=5 // pred_check_branch
      %116 = sbr.rel (%p113) target = $region12
    $region11: #{pointnet2_msg_forward.16} parent=5 // pred_region
      %s117 = ssub.s32 %s9, 1
      // Predicated region
      $region13: #{pointnet2_msg_forward.16} parent=11 // pred_check
        %p118 = pneg %p56
      $region14: #{pointnet2_msg_forward.16} parent=11 // pred_check_branch
        %120 = sbr.rel (%p118) target = $region16
      $region15: #{pointnet2_msg_forward.16} parent=11 // pred_region
        _
      $region16: #{pointnet2_msg_forward.16} parent=11 // pred_fallthru
        _
      // Predicated region
      $region17: #{pointnet2_msg_forward.16} parent=11 // pred_check
        %p121 = pneg %p77
      $region18: #{pointnet2_msg_forward.16} parent=11 // pred_check_branch
        %123 = sbr.rel (%p121) target = $region20
      $region19: #{pointnet2_msg_forward.16} parent=11 // pred_region
        _
      $region20: #{pointnet2_msg_forward.16} parent=11 // pred_fallthru
        _
    $region12: #{pointnet2_msg_forward.16} parent=5 // pred_fallthru
      _
    %p124 = scmp.lt.s32.totalorder %s9, 2
    // Predicated region
    $region21: #{pointnet2_msg_forward.16} parent=5 // pred_check
      %p125 = pneg %p124
    $region22: #{pointnet2_msg_forward.16} parent=5 // pred_check_branch
      %127 = sbr.rel (%p125) target = $region24
    $region23: #{pointnet2_msg_forward.16} parent=5 // pred_region
      // Predicated region
      $region25: #{pointnet2_msg_forward.16} parent=23 // pred_check
        %p128 = pneg %p29
      $region26: #{pointnet2_msg_forward.16} parent=23 // pred_check_branch
        %130 = sbr.rel (%p128) target = $region28
      $region27: #{pointnet2_msg_forward.16} parent=23 // pred_region
        %p131 = scmp.lt.s32.totalorder %s9, 1
        %s132 = scalar_select %p131, %s9, 1
        %s133 = smul.addr %s132, 14
        %s134 = smul.addr %s133, 8
        %s135 = scalar_lea.vmem %s0, %s134
      $region28: #{pointnet2_msg_forward.16} parent=23 // pred_fallthru
        _
    $region24: #{pointnet2_msg_forward.16} parent=5 // pred_fallthru
      _
    %p136 = scmp.le.s32.totalorder 1, %s9
    %p137 = scmp.lt.s32.totalorder %s9, 3
    %p138 = pnand %p136, %p137
    %p139 = pneg %p138
    // Predicated region
    $region29: #{pointnet2_msg_forward.16} parent=5 // pred_check
      _
    $region30: #{pointnet2_msg_forward.16} parent=5 // pred_check_branch
      %141 = sbr.rel (%p138) target = $region32
    $region31: #{pointnet2_msg_forward.16} parent=5 // pred_region
      %s142 = ssub.s32 %s9, 1
      %p143 = scmp.lt.s32.totalorder %s14, 1
      %s144 = scalar_select %p143, %s14, 1
      %s145 = smul.addr %s144, 14
      %s146 = smul.addr %s145, 8
      %s147 = scalar_lea.vmem %s0, %s146
      %p148 = pneg %p35
      %p149 = pneg %p32
      %p150 = pneg %p56
      %p151 = pneg %p53
      %p152 = pneg %p77
      %p153 = pneg %p74
      %p154 = pneg %p103
      %p155 = pneg %p100
      %p156 = scmp.lt.s32.totalorder %s14, 1
      %s157 = scalar_select %p156, %s14, 1
      %s158 = smul.addr %s157, 8
      %s159 = smul.addr %s158, 8
      %s160 = scalar_lea.vmem %s3, %s159
      %p161 = scmp.lt.s32.totalorder %s14, 1
      %s162 = scalar_select %p161, %s14, 1
      %s163 = smul.addr %s162, 14
      %s164 = smul.addr %s163, 8
      %s165 = scalar_lea.vmem %s0, %s164
      %p166 = scmp.lt.s32.totalorder %s14, 1
      %s167 = scalar_select %p166, %s14, 1
      %s168 = smul.addr %s167, 8
      %s169 = smul.addr %s168, 8
      %s170 = scalar_lea.vmem %s3, %s169
      %v171 = vld [vmem:[%s165] sm:$0xff]
      %v172 = vld [vmem:[%s165 + $0x8] sm:$0xff]
      %v173 = vld [vmem:[%s165 + $0x10] sm:$0xff]
      %v174 = vld [vmem:[%s165 + $0x18] sm:$0xff]
      %v175 = vld [vmem:[%s165 + $0x20] sm:$0xff]
      %v176 = vld [vmem:[%s165 + $0x28] sm:$0xff]
      %v177 = vld [vmem:[%s165 + $0x30] sm:$0xff]
      %v178 = vld [vmem:[%s165 + $0x38] sm:$0xff]
      %v179 = vld [vmem:[%s165 + $0x40] sm:$0xff]
      %v180 = vld [vmem:[%s165 + $0x48] sm:$0xff]
      %v181 = vld [vmem:[%s165 + $0x50] sm:$0xff]
      %v182 = vld [vmem:[%s165 + $0x58] sm:$0xff]
      %v183 = vld [vmem:[%s165 + $0x60] sm:$0xff]
      %v184 = vld [vmem:[%s165 + $0x68] sm:$0xff]
      %v185 = vld [vmem:[%s1] sm:$0xff]
      %v186 = vld [vmem:[%s1 + $0x8] sm:$0xff]
      %v187 = vld [vmem:[%s1 + $0x10] sm:$0xff]
      %v188 = vld [vmem:[%s1 + $0x18] sm:$0xff]
      %v189 = vld [vmem:[%s1 + $0x20] sm:$0xff]
      %v190 = vld [vmem:[%s1 + $0x28] sm:$0xff]
      %v191 = vld [vmem:[%s1 + $0x30] sm:$0xff]
      %v192 = vld [vmem:[%s1 + $0x38] sm:$0xff]
      %v193 = vld [vmem:[%s1 + $0x40] sm:$0xff]
      %v194 = vld [vmem:[%s1 + $0x48] sm:$0xff]
      %v195 = vld [vmem:[%s1 + $0x50] sm:$0xff]
      %v196 = vld [vmem:[%s1 + $0x58] sm:$0xff]
      %v197 = vld [vmem:[%s1 + $0x60] sm:$0xff]
      %v198 = vld [vmem:[%s1 + $0x68] sm:$0xff]
      %v199 = vld [vmem:[%s2] sm:$0xff]
      %v200 = vld [vmem:[%s2 + $0x8] sm:$0xff]
      %v201 = vld [vmem:[%s2 + $0x10] sm:$0xff]
      %v202 = vld [vmem:[%s2 + $0x18] sm:$0xff]
      %v203 = vld [vmem:[%s2 + $0x20] sm:$0xff]
      %v204 = vld [vmem:[%s2 + $0x28] sm:$0xff]
      %v205 = vld [vmem:[%s2 + $0x30] sm:$0xff]
      %v206 = vld [vmem:[%s2 + $0x38] sm:$0xff]
      %v207 = vld [vmem:[%s2 + $0x40] sm:$0xff]
      %v208 = vld [vmem:[%s2 + $0x48] sm:$0xff]
      %v209 = vld [vmem:[%s2 + $0x50] sm:$0xff]
      %v210 = vld [vmem:[%s2 + $0x58] sm:$0xff]
      %v211 = vld [vmem:[%s2 + $0x60] sm:$0xff]
      %v212 = vld [vmem:[%s2 + $0x68] sm:$0xff]
      %214 = vset.pattern.permute.xlu0 0
      %215 = vperm.xlu0 %214, %v199
      %v216 = vpop.permute.xlu0 %215
      %219 = vset.pattern.permute.xlu0 0
      %220 = vperm.xlu0 %219, %v200
      %v221 = vpop.permute.xlu0 %220
      %224 = vset.pattern.permute.xlu0 0
      %225 = vperm.xlu0 %224, %v201
      %v226 = vpop.permute.xlu0 %225
      %229 = vset.pattern.permute.xlu0 0
      %230 = vperm.xlu0 %229, %v202
      %v231 = vpop.permute.xlu0 %230
      %234 = vset.pattern.permute.xlu0 0
      %235 = vperm.xlu0 %234, %v203
      %v236 = vpop.permute.xlu0 %235
      %239 = vset.pattern.permute.xlu0 0
      %240 = vperm.xlu0 %239, %v204
      %v241 = vpop.permute.xlu0 %240
      %244 = vset.pattern.permute.xlu0 0
      %245 = vperm.xlu0 %244, %v205
      %v246 = vpop.permute.xlu0 %245
      %249 = vset.pattern.permute.xlu0 0
      %250 = vperm.xlu0 %249, %v206
      %v251 = vpop.permute.xlu0 %250
      %254 = vset.pattern.permute.xlu0 0
      %255 = vperm.xlu0 %254, %v207
      %v256 = vpop.permute.xlu0 %255
      %259 = vset.pattern.permute.xlu0 0
      %260 = vperm.xlu0 %259, %v208
      %v261 = vpop.permute.xlu0 %260
      %264 = vset.pattern.permute.xlu0 0
      %265 = vperm.xlu0 %264, %v209
      %v266 = vpop.permute.xlu0 %265
      %269 = vset.pattern.permute.xlu0 0
      %270 = vperm.xlu0 %269, %v210
      %v271 = vpop.permute.xlu0 %270
      %274 = vset.pattern.permute.xlu0 0
      %275 = vperm.xlu0 %274, %v211
      %v276 = vpop.permute.xlu0 %275
      %279 = vset.pattern.permute.xlu0 0
      %280 = vperm.xlu0 %279, %v212
      %v281 = vpop.permute.xlu0 %280
      %vm283 = vcmask 916480
      %v285 = vsel %vm283, %v185, 0
      %v288 = vsel %vm283, %v186, 0
      %v291 = vsel %vm283, %v187, 0
      %v294 = vsel %vm283, %v188, 0
      %v297 = vsel %vm283, %v189, 0
      %v300 = vsel %vm283, %v190, 0
      %v303 = vsel %vm283, %v191, 0
      %v306 = vsel %vm283, %v192, 0
      %v309 = vsel %vm283, %v193, 0
      %v312 = vsel %vm283, %v194, 0
      %v315 = vsel %vm283, %v195, 0
      %v318 = vsel %vm283, %v196, 0
      %v321 = vsel %vm283, %v197, 0
      %v324 = vsel %vm283, %v198, 0
      %326 = vmatprep.subr.mxu0 0.0
      %327 = vmatpush1.msra.mxu0 %v171
      %328 = vmatprep.subr.mxu0 0.0
      %329 = vmatpush1.msra.mxu0 %v172
      %330 = vmatprep.subr.mxu0 0.0
      %331 = vmatpush1.msra.mxu0 %v173
      %332 = vmatprep.subr.mxu0 0.0
      %333 = vmatpush1.msra.mxu0 %v174
      %334 = vmatprep.subr.mxu0 0.0
      %335 = vmatpush1.msra.mxu0 %v175
      %336 = vmatprep.subr.mxu0 0.0
      %337 = vmatpush1.msra.mxu0 %v176
      %338 = vmatprep.subr.mxu0 0.0
      %339 = vmatpush1.msra.mxu0 %v177
      %340 = vmatprep.subr.mxu0 0.0
      %341 = vmatpush1.msra.mxu0 %v178
      %342 = vmatprep.subr.mxu0 0.0
      %343 = vmatpush1.msra.mxu0 %v179
      %344 = vmatprep.subr.mxu0 0.0
      %345 = vmatpush1.msra.mxu0 %v180
      %346 = vmatprep.subr.mxu0 0.0
      %347 = vmatpush1.msra.mxu0 %v181
      %348 = vmatprep.subr.mxu0 0.0
      %349 = vmatpush1.msra.mxu0 %v182
      %350 = vmatprep.subr.mxu0 0.0
      %351 = vmatpush1.msra.mxu0 %v183
      %352 = vmatprep.subr.mxu0 0.0
      %353 = vmatpush1.msra.mxu0 %v184
      %354 = vmatprep.subr.mxu0 0.0
      %355 = vmatpush1.msra.mxu0 0.0
      %356 = vmatprep.subr.mxu0 0.0
      %357 = vmatpush1.msra.mxu0 0.0
      %358 = vmatprep.subr.mxu0 0.0
      %359 = vmatpush1.msra.mxu0 0.0
      %360 = vmatprep.subr.mxu0 0.0
      %361 = vmatpush1.msra.mxu0 0.0
      %362 = vmatprep.subr.mxu0 0.0
      %363 = vmatpush1.msra.mxu0 0.0
      %364 = vmatprep.subr.mxu0 0.0
      %365 = vmatpush1.msra.mxu0 0.0
      %366 = vmatprep.subr.mxu0 0.0
      %367 = vmatpush1.msra.mxu0 0.0
      %368 = vmatprep.subr.mxu0 0.0
      %369 = vmatpush1.msra.mxu0 0.0
      %370 = vmatprep.subr.mxu0 0.0
      %371 = vmatpush1.msra.mxu0 0.0
      %372 = vmatprep.subr.mxu0 0.0
      %373 = vmatpush1.msra.mxu0 0.0
      %374 = vmatprep.subr.mxu0 0.0
      %375 = vmatpush1.msra.mxu0 0.0
      %376 = vmatprep.subr.mxu0 0.0
      %377 = vmatpush1.msra.mxu0 0.0
      %378 = vmatprep.subr.mxu0 0.0
      %379 = vmatpush1.msra.mxu0 0.0
      %380 = vmatprep.subr.mxu0 0.0
      %381 = vmatpush1.msra.mxu0 0.0
      %382 = vmatprep.subr.mxu0 0.0
      %383 = vmatpush1.msra.mxu0 0.0
      %384 = vmatprep.subr.mxu0 0.0
      %385 = vmatpush1.msra.mxu0 0.0
      %386 = vmatprep.subr.mxu0 0.0
      %387 = vmatpush1.msra.mxu0 0.0
      %388 = vmatprep.subr.mxu0 0.0
      %389 = vmatpush1.msra.mxu0 0.0
      %390 = vmatprep.mubr.f32.mxu0 0.0
      %391 = vmatmul.mubr.f32.gmra.mrb[0].mxu0 %v285
      %v392 = vpop.f32.mrb[0].mxu0
      %v393 = vadd.f32 %v216, %v392
      %v394 = vpop.f32.mrb[0].mxu0
      %395 = vmatprep.mubr.f32.mxu0 0.0
      %396 = vmatmul.mubr.f32.gmra.mrb[0].mxu0 %v288
      %v397 = vpop.f32.mrb[0].mxu0
      %v398 = vadd.f32 %v221, %v397
      %v399 = vpop.f32.mrb[0].mxu0
      %400 = vmatprep.mubr.f32.mxu0 0.0
      %401 = vmatmul.mubr.f32.gmra.mrb[0].mxu0 %v291
      %v402 = vpop.f32.mrb[0].mxu0
      %v403 = vadd.f32 %v226, %v402
      %v404 = vpop.f32.mrb[0].mxu0
      %405 = vmatprep.mubr.f32.mxu0 0.0
      %406 = vmatmul.mubr.f32.gmra.mrb[0].mxu0 %v294
      %v407 = vpop.f32.mrb[0].mxu0
      %v408 = vadd.f32 %v231, %v407
      %v409 = vpop.f32.mrb[0].mxu0
      %410 = vmatprep.mubr.f32.mxu0 0.0
      %411 = vmatmul.mubr.f32.gmra.mrb[0].mxu0 %v297
      %v412 = vpop.f32.mrb[0].mxu0
      %v413 = vadd.f32 %v236, %v412
      %v414 = vpop.f32.mrb[0].mxu0
      %415 = vmatprep.mubr.f32.mxu0 0.0
      %416 = vmatmul.mubr.f32.gmra.mrb[0].mxu0 %v300
      %v417 = vpop.f32.mrb[0].mxu0
      %v418 = vadd.f32 %v241, %v417
      %v419 = vpop.f32.mrb[0].mxu0
      %420 = vmatprep.mubr.f32.mxu0 0.0
      %421 = vmatmul.mubr.f32.gmra.mrb[0].mxu0 %v303
      %v422 = vpop.f32.mrb[0].mxu0
      %v423 = vadd.f32 %v246, %v422
      %v424 = vpop.f32.mrb[0].mxu0
      %425 = vmatprep.mubr.f32.mxu0 0.0
      %426 = vmatmul.mubr.f32.gmra.mrb[0].mxu0 %v306
      %v427 = vpop.f32.mrb[0].mxu0
      %v428 = vadd.f32 %v251, %v427
      %v429 = vpop.f32.mrb[0].mxu0
      %430 = vmatprep.mubr.f32.mxu0 0.0
      %431 = vmatmul.mubr.f32.gmra.mrb[0].mxu0 %v309
      %v432 = vpop.f32.mrb[0].mxu0
      %v433 = vadd.f32 %v256, %v432
      %v434 = vpop.f32.mrb[0].mxu0
      %435 = vmatprep.mubr.f32.mxu0 0.0
      %436 = vmatmul.mubr.f32.gmra.mrb[0].mxu0 %v312
      %v437 = vpop.f32.mrb[0].mxu0
      %v438 = vadd.f32 %v261, %v437
      %v439 = vpop.f32.mrb[0].mxu0
      %440 = vmatprep.mubr.f32.mxu0 0.0
      %441 = vmatmul.mubr.f32.gmra.mrb[0].mxu0 %v315
      %v442 = vpop.f32.mrb[0].mxu0
      %v443 = vadd.f32 %v266, %v442
      %v444 = vpop.f32.mrb[0].mxu0
      %445 = vmatprep.mubr.f32.mxu0 0.0
      %446 = vmatmul.mubr.f32.gmra.mrb[0].mxu0 %v318
      %v447 = vpop.f32.mrb[0].mxu0
      %v448 = vadd.f32 %v271, %v447
      %v449 = vpop.f32.mrb[0].mxu0
      %450 = vmatprep.mubr.f32.mxu0 0.0
      %451 = vmatmul.mubr.f32.gmra.mrb[0].mxu0 %v321
      %v452 = vpop.f32.mrb[0].mxu0
      %v453 = vadd.f32 %v276, %v452
      %v454 = vpop.f32.mrb[0].mxu0
      %455 = vmatprep.mubr.f32.mxu0 0.0
      %456 = vmatmul.mubr.f32.gmra.mrb[0].mxu0 %v324
      %v457 = vpop.f32.mrb[0].mxu0
      %v458 = vadd.f32 %v281, %v457
      %v459 = vpop.f32.mrb[0].mxu0
      %460 = vdwg.mxu0
      %v461 = vmax.f32 %v393, 0.0
      %v462 = vmax.f32 %v398, 0.0
      %v463 = vmax.f32 %v403, 0.0
      %v464 = vmax.f32 %v408, 0.0
      %v465 = vmax.f32 %v413, 0.0
      %v466 = vmax.f32 %v418, 0.0
      %v467 = vmax.f32 %v423, 0.0
      %v468 = vmax.f32 %v428, 0.0
      %v469 = vmax.f32 %v433, 0.0
      %v470 = vmax.f32 %v438, 0.0
      %v471 = vmax.f32 %v443, 0.0
      %v472 = vmax.f32 %v448, 0.0
      %v473 = vmax.f32 %v453, 0.0
      %v474 = vmax.f32 %v458, 0.0
      %s475 = scalar_lea.vmem %s1, 112
      %v476 = vld [vmem:[%s475] sm:$0xff]
      %v477 = vld [vmem:[%s475 + $0x8] sm:$0xff]
      %v478 = vld [vmem:[%s475 + $0x10] sm:$0xff]
      %v479 = vld [vmem:[%s475 + $0x18] sm:$0xff]
      %v480 = vld [vmem:[%s475 + $0x20] sm:$0xff]
      %v481 = vld [vmem:[%s475 + $0x28] sm:$0xff]
      %v482 = vld [vmem:[%s475 + $0x30] sm:$0xff]
      %v483 = vld [vmem:[%s475 + $0x38] sm:$0xff]
      %v484 = vld [vmem:[%s475 + $0x40] sm:$0xff]
      %v485 = vld [vmem:[%s475 + $0x48] sm:$0xff]
      %v486 = vld [vmem:[%s475 + $0x50] sm:$0xff]
      %v487 = vld [vmem:[%s475 + $0x58] sm:$0xff]
      %v488 = vld [vmem:[%s475 + $0x60] sm:$0xff]
      %v489 = vld [vmem:[%s475 + $0x68] sm:$0xff]
      %s490 = scalar_lea.vmem %s2, 112
      %v491 = vld [vmem:[%s490] sm:$0xff]
      %v492 = vld [vmem:[%s490 + $0x8] sm:$0xff]
      %v493 = vld [vmem:[%s490 + $0x10] sm:$0xff]
      %v494 = vld [vmem:[%s490 + $0x18] sm:$0xff]
      %v495 = vld [vmem:[%s490 + $0x20] sm:$0xff]
      %v496 = vld [vmem:[%s490 + $0x28] sm:$0xff]
      %v497 = vld [vmem:[%s490 + $0x30] sm:$0xff]
      %v498 = vld [vmem:[%s490 + $0x38] sm:$0xff]
      %v499 = vld [vmem:[%s490 + $0x40] sm:$0xff]
      %v500 = vld [vmem:[%s490 + $0x48] sm:$0xff]
      %v501 = vld [vmem:[%s490 + $0x50] sm:$0xff]
      %v502 = vld [vmem:[%s490 + $0x58] sm:$0xff]
      %v503 = vld [vmem:[%s490 + $0x60] sm:$0xff]
      %v504 = vld [vmem:[%s490 + $0x68] sm:$0xff]
      %506 = vset.pattern.permute.xlu0 0
      %507 = vperm.xlu0 %506, %v491
      %v508 = vpop.permute.xlu0 %507
      %511 = vset.pattern.permute.xlu0 0
      %512 = vperm.xlu0 %511, %v492
      %v513 = vpop.permute.xlu0 %512
      %516 = vset.pattern.permute.xlu0 0
      %517 = vperm.xlu0 %516, %v493
      %v518 = vpop.permute.xlu0 %517
      %521 = vset.pattern.permute.xlu0 0
      %522 = vperm.xlu0 %521, %v494
      %v523 = vpop.permute.xlu0 %522
      %526 = vset.pattern.permute.xlu0 0
      %527 = vperm.xlu0 %526, %v495
      %v528 = vpop.permute.xlu0 %527
      %531 = vset.pattern.permute.xlu0 0
      %532 = vperm.xlu0 %531, %v496
      %v533 = vpop.permute.xlu0 %532
      %536 = vset.pattern.permute.xlu0 0
      %537 = vperm.xlu0 %536, %v497
      %v538 = vpop.permute.xlu0 %537
      %541 = vset.pattern.permute.xlu0 0
      %542 = vperm.xlu0 %541, %v498
      %v543 = vpop.permute.xlu0 %542
      %546 = vset.pattern.permute.xlu0 0
      %547 = vperm.xlu0 %546, %v499
      %v548 = vpop.permute.xlu0 %547
      %550 = vset.pattern.permute.xlu0 0
      %551 = vperm.xlu0 %550, %v500
      %v552 = vpop.permute.xlu0 %551
      %554 = vset.pattern.permute.xlu0 0
      %555 = vperm.xlu0 %554, %v501
      %v556 = vpop.permute.xlu0 %555
      %558 = vset.pattern.permute.xlu0 0
      %559 = vperm.xlu0 %558, %v502
      %v560 = vpop.permute.xlu0 %559
      %562 = vset.pattern.permute.xlu0 0
      %563 = vperm.xlu0 %562, %v503
      %v564 = vpop.permute.xlu0 %563
      %566 = vset.pattern.permute.xlu0 0
      %567 = vperm.xlu0 %566, %v504
      %v568 = vpop.permute.xlu0 %567
      %v570 = vsel %vm283, %v476, 0
      %v573 = vsel %vm283, %v477, 0
      %v576 = vsel %vm283, %v478, 0
      %v579 = vsel %vm283, %v479, 0
      %v582 = vsel %vm283, %v480, 0
      %v585 = vsel %vm283, %v481, 0
      %v588 = vsel %vm283, %v482, 0
      %v591 = vsel %vm283, %v483, 0
      %v594 = vsel %vm283, %v484, 0
      %v597 = vsel %vm283, %v485, 0
      %v600 = vsel %vm283, %v486, 0
      %v603 = vsel %vm283, %v487, 0
      %v606 = vsel %vm283, %v488, 0
      %v609 = vsel %vm283, %v489, 0
      %611 = vmatprep.subr.mxu0 0.0
      %612 = vmatpush1.msra.mxu0 %v461
      %613 = vmatprep.subr.mxu0 0.0
      %614 = vmatpush1.msra.mxu0 %v462
      %615 = vmatprep.subr.mxu0 0.0
      %616 = vmatpush1.msra.mxu0 %v463
      %617 = vmatprep.subr.mxu0 0.0
      %618 = vmatpush1.msra.mxu0 %v464
      %619 = vmatprep.subr.mxu0 0.0
      %620 = vmatpush1.msra.mxu0 %v465
      %621 = vmatprep.subr.mxu0 0.0
      %622 = vmatpush1.msra.mxu0 %v466
      %623 = vmatprep.subr.mxu0 0.0
      %624 = vmatpush1.msra.mxu0 %v467
      %625 = vmatprep.subr.mxu0 0.0
      %626 = vmatpush1.msra.mxu0 %v468
      %627 = vmatprep.subr.mxu0 0.0
      %628 = vmatpush1.msra.mxu0 %v469
      %629 = vmatprep.subr.mxu0 0.0
      %630 = vmatpush1.msra.mxu0 %v470
      %631 = vmatprep.subr.mxu0 0.0
      %632 = vmatpush1.msra.mxu0 %v471
      %633 = vmatprep.subr.mxu0 0.0
      %634 = vmatpush1.msra.mxu0 %v472
      %635 = vmatprep.subr.mxu0 0.0
      %636 = vmatpush1.msra.mxu0 %v473
      %637 = vmatprep.subr.mxu0 0.0
      %638 = vmatpush1.msra.mxu0 %v474
      %639 = vmatprep.subr.mxu0 0.0
      %640 = vmatpush1.msra.mxu0 0.0
      %641 = vmatprep.subr.mxu0 0.0
      %642 = vmatpush1.msra.mxu0 0.0
      %643 = vmatprep.subr.mxu0 0.0
      %644 = vmatpush1.msra.mxu0 0.0
      %645 = vmatprep.subr.mxu0 0.0
      %646 = vmatpush1.msra.mxu0 0.0
      %647 = vmatprep.subr.mxu0 0.0
      %648 = vmatpush1.msra.mxu0 0.0
      %649 = vmatprep.subr.mxu0 0.0
      %650 = vmatpush1.msra.mxu0 0.0
      %651 = vmatprep.subr.mxu0 0.0
      %652 = vmatpush1.msra.mxu0 0.0
      %653 = vmatprep.subr.mxu0 0.0
      %654 = vmatpush1.msra.mxu0 0.0
      %655 = vmatprep.subr.mxu0 0.0
      %656 = vmatpush1.msra.mxu0 0.0
      %657 = vmatprep.subr.mxu0 0.0
      %658 = vmatpush1.msra.mxu0 0.0
      %659 = vmatprep.subr.mxu0 0.0
      %660 = vmatpush1.msra.mxu0 0.0
      %661 = vmatprep.subr.mxu0 0.0
      %662 = vmatpush1.msra.mxu0 0.0
      %663 = vmatprep.subr.mxu0 0.0
      %664 = vmatpush1.msra.mxu0 0.0
      %665 = vmatprep.subr.mxu0 0.0
      %666 = vmatpush1.msra.mxu0 0.0
      %667 = vmatprep.subr.mxu0 0.0
      %668 = vmatpush1.msra.mxu0 0.0
      %669 = vmatprep.subr.mxu0 0.0
      %670 = vmatpush1.msra.mxu0 0.0
      %671 = vmatprep.subr.mxu0 0.0
      %672 = vmatpush1.msra.mxu0 0.0
      %673 = vmatprep.subr.mxu0 0.0
      %674 = vmatpush1.msra.mxu0 0.0
      %675 = vmatprep.mubr.f32.mxu0 0.0
      %676 = vmatmul.mubr.f32.gmra.mrb[0].mxu0 %v570
      %v677 = vpop.f32.mrb[0].mxu0
      %v678 = vadd.f32 %v508, %v677
      %v679 = vpop.f32.mrb[0].mxu0
      %680 = vmatprep.mubr.f32.mxu0 0.0
      %681 = vmatmul.mubr.f32.gmra.mrb[0].mxu0 %v573
      %v682 = vpop.f32.mrb[0].mxu0
      %v683 = vadd.f32 %v513, %v682
      %v684 = vpop.f32.mrb[0].mxu0
      %685 = vmatprep.mubr.f32.mxu0 0.0
      %686 = vmatmul.mubr.f32.gmra.mrb[0].mxu0 %v576
      %v687 = vpop.f32.mrb[0].mxu0
      %v688 = vadd.f32 %v518, %v687
      %v689 = vpop.f32.mrb[0].mxu0
      %690 = vmatprep.mubr.f32.mxu0 0.0
      %691 = vmatmul.mubr.f32.gmra.mrb[0].mxu0 %v579
      %v692 = vpop.f32.mrb[0].mxu0
      %v693 = vadd.f32 %v523, %v692
      %v694 = vpop.f32.mrb[0].mxu0
      %695 = vmatprep.mubr.f32.mxu0 0.0
      %696 = vmatmul.mubr.f32.gmra.mrb[0].mxu0 %v582
      %v697 = vpop.f32.mrb[0].mxu0
      %v698 = vadd.f32 %v528, %v697
      %v699 = vpop.f32.mrb[0].mxu0
      %700 = vmatprep.mubr.f32.mxu0 0.0
      %701 = vmatmul.mubr.f32.gmra.mrb[0].mxu0 %v585
      %v702 = vpop.f32.mrb[0].mxu0
      %v703 = vadd.f32 %v533, %v702
      %v704 = vpop.f32.mrb[0].mxu0
      %705 = vmatprep.mubr.f32.mxu0 0.0
      %706 = vmatmul.mubr.f32.gmra.mrb[0].mxu0 %v588
      %v707 = vpop.f32.mrb[0].mxu0
      %v708 = vadd.f32 %v538, %v707
      %v709 = vpop.f32.mrb[0].mxu0
      %710 = vmatprep.mubr.f32.mxu0 0.0
      %711 = vmatmul.mubr.f32.gmra.mrb[0].mxu0 %v591
      %v712 = vpop.f32.mrb[0].mxu0
      %v713 = vadd.f32 %v543, %v712
      %v714 = vpop.f32.mrb[0].mxu0
      %715 = vmatprep.mubr.f32.mxu0 0.0
      %716 = vmatmul.mubr.f32.gmra.mrb[0].mxu0 %v594
      %v717 = vpop.f32.mrb[0].mxu0
      %v718 = vpop.f32.mrb[0].mxu0
      %719 = vmatprep.mubr.f32.mxu0 0.0
      %720 = vmatmul.mubr.f32.gmra.mrb[0].mxu0 %v597
      %v721 = vpop.f32.mrb[0].mxu0
      %v722 = vpop.f32.mrb[0].mxu0
      %723 = vmatprep.mubr.f32.mxu0 0.0
      %724 = vmatmul.mubr.f32.gmra.mrb[0].mxu0 %v600
      %v725 = vpop.f32.mrb[0].mxu0
      %v726 = vpop.f32.mrb[0].mxu0
      %727 = vmatprep.mubr.f32.mxu0 0.0
      %728 = vmatmul.mubr.f32.gmra.mrb[0].mxu0 %v603
      %v729 = vpop.f32.mrb[0].mxu0
      %v730 = vpop.f32.mrb[0].mxu0
      %731 = vmatprep.mubr.f32.mxu0 0.0
      %732 = vmatmul.mubr.f32.gmra.mrb[0].mxu0 %v606
      %v733 = vpop.f32.mrb[0].mxu0
      %v734 = vpop.f32.mrb[0].mxu0
      %735 = vmatprep.mubr.f32.mxu0 0.0
      %736 = vmatmul.mubr.f32.gmra.mrb[0].mxu0 %v609
      %v737 = vpop.f32.mrb[0].mxu0
      %v738 = vpop.f32.mrb[0].mxu0
      %739 = vdwg.mxu0
      %v740 = vmax.f32 %v678, 0.0
      %v741 = vmax.f32 %v683, 0.0
      %v742 = vmax.f32 %v688, 0.0
      %v743 = vmax.f32 %v693, 0.0
      %v744 = vmax.f32 %v698, 0.0
      %v745 = vmax.f32 %v703, 0.0
      %v746 = vmax.f32 %v708, 0.0
      %v747 = vmax.f32 %v713, 0.0
      %748 = vst [vmem:[%s170] sm:$0xff] %v740
      %749 = vst [vmem:[%s170 + $0x8] sm:$0xff] %v741
      %750 = vst [vmem:[%s170 + $0x10] sm:$0xff] %v742
      %751 = vst [vmem:[%s170 + $0x18] sm:$0xff] %v743
      %752 = vst [vmem:[%s170 + $0x20] sm:$0xff] %v744
      %753 = vst [vmem:[%s170 + $0x28] sm:$0xff] %v745
      %754 = vst [vmem:[%s170 + $0x30] sm:$0xff] %v746
      %755 = vst [vmem:[%s170 + $0x38] sm:$0xff] %v747
      %p756 = scmp.lt.s32.totalorder %s14, 1
      %s757 = scalar_select %p756, %s14, 1
      %s758 = smul.addr %s757, 8
      %s759 = smul.addr %s758, 8
      %s760 = scalar_lea.vmem %s3, %s759
      // Predicated region
      $region33: #{pointnet2_msg_forward.16} parent=31 // pred_check
        %p761 = pneg %p100
      $region34: #{pointnet2_msg_forward.16} parent=31 // pred_check_branch
        %763 = sbr.rel (%p761) target = $region36
      $region35: #{pointnet2_msg_forward.16} parent=31 // pred_region
        _
      $region36: #{pointnet2_msg_forward.16} parent=31 // pred_fallthru
        _
    $region32: #{pointnet2_msg_forward.16} parent=5 // pred_fallthru
      _
    %p764 = scmp.le.s32.totalorder 2, %s9
    // Predicated region
    $region37: #{pointnet2_msg_forward.16} parent=5 // pred_check
      %p765 = pneg %p764
    $region38: #{pointnet2_msg_forward.16} parent=5 // pred_check_branch
      %767 = sbr.rel (%p765) target = $region40
    $region39: #{pointnet2_msg_forward.16} parent=5 // pred_region
      %s768 = ssub.s32 %s9, 2
      // Predicated region
      $region41: #{pointnet2_msg_forward.16} parent=39 // pred_check
        %p769 = pneg %p106
      $region42: #{pointnet2_msg_forward.16} parent=39 // pred_check_branch
        %771 = sbr.rel (%p769) target = $region44
      $region43: #{pointnet2_msg_forward.16} parent=39 // pred_region
        %p772 = scmp.lt.s32.totalorder %s15, 1
        %s773 = scalar_select %p772, %s15, 1
        %s774 = smul.addr %s773, 8
        %s775 = smul.addr %s774, 8
        %s776 = scalar_lea.vmem %s3, %s775
      $region44: #{pointnet2_msg_forward.16} parent=39 // pred_fallthru
        _
    $region40: #{pointnet2_msg_forward.16} parent=5 // pred_fallthru
      _
  $region6: #{pointnet2_msg_forward.16} parent=0 // loop_footer
    %s13 = sadd.s32 1, %s9
  $region7: #{pointnet2_msg_forward.16} parent=0 // loop_footer_branch
    %8 = sbr.rel target = $region3
  $region8: #{pointnet2_msg_forward.16} parent=0 // loop_exit
    _

// kernel: pointnet2_msg_forward.17
$region0: #{pointnet2_msg_forward.17}
  #allocation0 [shape = 'u32[]', space=smem, size = 0x4, offset = 0x4, fixed_abs, tag = 'smem constant byte address 0x4 - core index']
  #allocation1 [shape = 'u32[144,128]{1,0:T(1,128)}', space=vmem, size = 0x12000, scoped, tag = 'internal scratch']
  %s0 = inlined_call_operand.vmem [shape: f32[2,112,128], index: 0, kind: input, shape index: {}]
  %s1 = inlined_call_operand.vmem [shape: f32[2,112,112], index: 1, kind: input, shape index: {}]
  %s2 = inlined_call_operand.vmem [shape: f32[2,112,1], index: 2, kind: input, shape index: {}]
  %s3 = inlined_call_operand.vmem [shape: f32[2,32,128], index: 3, kind: output, shape index: {}]
  %s4 = sld [smem:[#allocation0]]
  $region45: #{pointnet2_msg_forward.17} parent=0
    _
  %s6 = ssub.s32 1, %s4
  %s7 = scalar_select 0, %s6, %s4
  loop: start=0, step=1, limit=4
  $region2: #{pointnet2_msg_forward.17} parent=0 // loop_pre_header
    _
  $region3: #{pointnet2_msg_forward.17} parent=0 // loop_header
    %s9 = sphi 0, %s13
    %p10 = scmp.ge.s32.totalorder %s9, 4
    %s19 = sphi 0, %s21
    %s22 = sphi 0, %s19
    %s23 = sphi 0, %s22
    %s39 = sphi 0, %s23
    %s43 = sphi 0, %s43
    %s45 = sphi 0, %s43
    %s46 = sphi 0, %s45
    %s60 = sphi 0, %s46
    %s64 = sphi 0, %s64
    %s66 = sphi 0, %s64
    %s67 = sphi 0, %s66
    %s81 = sphi 0, %s67
    %s87 = sphi 0, %s89
    %s90 = sphi 0, %s87
    %s91 = sphi 0, %s90
    %s107 = sphi 0, %s91
  $region4: #{pointnet2_msg_forward.17} parent=0 // loop_header_branch
    %12 = sbr.rel (%p10) target = $region8
  $region5: #{pointnet2_msg_forward.17} parent=0 // loop_body
    %s14 = ssub.s32 %s9, 1
    %s15 = ssub.s32 %s9, 2
    %s16 = sadd.s32 %s9, 1
    %s17 = ssub.s32 %s9, %s16
    %p18 = scmp.eq.s32.totalorder %s17, 0
    %s20 = sadd.s32 %s19, 1
    %s21 = scalar_select %p18, %s19, %s20
    %p24 = pneg %p18
    %p25 = scmp.eq.s32.totalorder %s9, 1
    %p26 = por %p24, %p25
    %p27 = scmp.ne.s32.totalorder %s19, %s22
    %p28 = scmp.eq.s32.totalorder %s9, 0
    %p29 = por %p27, %p28
    %p30 = scmp.ne.s32.totalorder %s19, %s22
    %p31 = scmp.eq.s32.totalorder %s14, 1
    %p32 = por %p30, %p31
    %p33 = scmp.ne.s32.totalorder %s22, %s23
    %p34 = scmp.eq.s32.totalorder %s14, 0
    %p35 = por %p33, %p34
    %p36 = scmp.ne.s32.totalorder %s22, %s23
    %p37 = scmp.eq.s32.totalorder %s15, 1
    %p38 = por %p36, %p37
    %p40 = scmp.ne.s32.totalorder %s23, %s39
    %p41 = scmp.eq.s32.totalorder %s15, 0
    %p42 = por %p40, %p41
    %s44 = sadd.s32 %s43, 1
    %p47 = scmp.eq.s32.totalorder %s9, 1
    %p48 = scmp.ne.s32.totalorder %s43, %s45
    %p49 = scmp.eq.s32.totalorder %s9, 0
    %p50 = por %p48, %p49
    %p51 = scmp.ne.s32.totalorder %s43, %s45
    %p52 = scmp.eq.s32.totalorder %s14, 1
    %p53 = por %p51, %p52
    %p54 = scmp.ne.s32.totalorder %s45, %s46
    %p55 = scmp.eq.s32.totalorder %s14, 0
    %p56 = por %p54, %p55
    %p57 = scmp.ne.s32.totalorder %s45, %s46
    %p58 = scmp.eq.s32.totalorder %s15, 1
    %p59 = por %p57, %p58
    %p61 = scmp.ne.s32.totalorder %s46, %s60
    %p62 = scmp.eq.s32.totalorder %s15, 0
    %p63 = por %p61, %p62
    %s65 = sadd.s32 %s64, 1
    %p68 = scmp.eq.s32.totalorder %s9, 1
    %p69 = scmp.ne.s32.totalorder %s64, %s66
    %p70 = scmp.eq.s32.totalorder %s9, 0
    %p71 = por %p69, %p70
    %p72 = scmp.ne.s32.totalorder %s64, %s66
    %p73 = scmp.eq.s32.totalorder %s14, 1
    %p74 = por %p72, %p73
    %p75 = scmp.ne.s32.totalorder %s66, %s67
    %p76 = scmp.eq.s32.totalorder %s14, 0
    %p77 = por %p75, %p76
    %p78 = scmp.ne.s32.totalorder %s66, %s67
    %p79 = scmp.eq.s32.totalorder %s15, 1
    %p80 = por %p78, %p79
    %p82 = scmp.ne.s32.totalorder %s67, %s81
    %p83 = scmp.eq.s32.totalorder %s15, 0
    %p84 = por %p82, %p83
    %s85 = ssub.s32 %s9, %s16
    %p86 = scmp.eq.s32.totalorder %s85, 0
    %s88 = sadd.s32 %s87, 1
    %s89 = scalar_select %p86, %s87, %s88
    %p92 = pneg %p86
    %p93 = scmp.eq.s32.totalorder %s9, 1
    %p94 = por %p92, %p93
    %p95 = scmp.ne.s32.totalorder %s87, %s90
    %p96 = scmp.eq.s32.totalorder %s9, 0
    %p97 = por %p95, %p96
    %p98 = scmp.ne.s32.totalorder %s87, %s90
    %p99 = scmp.eq.s32.totalorder %s14, 1
    %p100 = por %p98, %p99
    %p101 = scmp.ne.s32.totalorder %s90, %s91
    %p102 = scmp.eq.s32.totalorder %s14, 0
    %p103 = por %p101, %p102
    %p104 = scmp.ne.s32.totalorder %s90, %s91
    %p105 = scmp.eq.s32.totalorder %s15, 1
    %p106 = por %p104, %p105
    %p108 = scmp.ne.s32.totalorder %s91, %s107
    %p109 = scmp.eq.s32.totalorder %s15, 0
    %p110 = por %p108, %p109
    %p111 = scmp.le.s32.totalorder 1, %s9
    %p112 = scmp.lt.s32.totalorder %s9, 3
    %p113 = pnand %p111, %p112
    %p114 = pneg %p113
    // Predicated region
    $region9: #{pointnet2_msg_forward.17} parent=5 // pred_check
      _
    $region10: #{pointnet2_msg_forward.17} parent=5 // pred_check_branch
      %116 = sbr.rel (%p113) target = $region12
    $region11: #{pointnet2_msg_forward.17} parent=5 // pred_region
      %s117 = ssub.s32 %s9, 1
      // Predicated region
      $region13: #{pointnet2_msg_forward.17} parent=11 // pred_check
        %p118 = pneg %p56
      $region14: #{pointnet2_msg_forward.17} parent=11 // pred_check_branch
        %120 = sbr.rel (%p118) target = $region16
      $region15: #{pointnet2_msg_forward.17} parent=11 // pred_region
        _
      $region16: #{pointnet2_msg_forward.17} parent=11 // pred_fallthru
        _
      // Predicated region
      $region17: #{pointnet2_msg_forward.17} parent=11 // pred_check
        %p121 = pneg %p77
      $region18: #{pointnet2_msg_forward.17} parent=11 // pred_check_branch
        %123 = sbr.rel (%p121) target = $region20
      $region19: #{pointnet2_msg_forward.17} parent=11 // pred_region
        _
      $region20: #{pointnet2_msg_forward.17} parent=11 // pred_fallthru
        _
    $region12: #{pointnet2_msg_forward.17} parent=5 // pred_fallthru
      _
    %p124 = scmp.lt.s32.totalorder %s9, 2
    // Predicated region
    $region21: #{pointnet2_msg_forward.17} parent=5 // pred_check
      %p125 = pneg %p124
    $region22: #{pointnet2_msg_forward.17} parent=5 // pred_check_branch
      %127 = sbr.rel (%p125) target = $region24
    $region23: #{pointnet2_msg_forward.17} parent=5 // pred_region
      // Predicated region
      $region25: #{pointnet2_msg_forward.17} parent=23 // pred_check
        %p128 = pneg %p29
      $region26: #{pointnet2_msg_forward.17} parent=23 // pred_check_branch
        %130 = sbr.rel (%p128) target = $region28
      $region27: #{pointnet2_msg_forward.17} parent=23 // pred_region
        %p131 = scmp.lt.s32.totalorder %s9, 1
        %s132 = scalar_select %p131, %s9, 1
        %s133 = smul.addr %s132, 14
        %s134 = smul.addr %s133, 8
        %s135 = scalar_lea.vmem %s0, %s134
      $region28: #{pointnet2_msg_forward.17} parent=23 // pred_fallthru
        _
    $region24: #{pointnet2_msg_forward.17} parent=5 // pred_fallthru
      _
    %p136 = scmp.le.s32.totalorder 1, %s9
    %p137 = scmp.lt.s32.totalorder %s9, 3
    %p138 = pnand %p136, %p137
    %p139 = pneg %p138
    // Predicated region
    $region29: #{pointnet2_msg_forward.17} parent=5 // pred_check
      _
    $region30: #{pointnet2_msg_forward.17} parent=5 // pred_check_branch
      %141 = sbr.rel (%p138) target = $region32
    $region31: #{pointnet2_msg_forward.17} parent=5 // pred_region
      %s142 = ssub.s32 %s9, 1
      %p143 = scmp.lt.s32.totalorder %s14, 1
      %s144 = scalar_select %p143, %s14, 1
      %s145 = smul.addr %s144, 14
      %s146 = smul.addr %s145, 8
      %s147 = scalar_lea.vmem %s0, %s146
      %p148 = pneg %p35
      %p149 = pneg %p32
      %p150 = pneg %p56
      %p151 = pneg %p53
      %p152 = pneg %p77
      %p153 = pneg %p74
      %p154 = pneg %p103
      %p155 = pneg %p100
      %p156 = scmp.lt.s32.totalorder %s14, 1
      %s157 = scalar_select %p156, %s14, 1
      %s158 = smul.addr %s157, 4
      %s159 = smul.addr %s158, 8
      %s160 = scalar_lea.vmem %s3, %s159
      %p161 = scmp.lt.s32.totalorder %s14, 1
      %s162 = scalar_select %p161, %s14, 1
      %s163 = smul.addr %s162, 14
      %s164 = smul.addr %s163, 8
      %s165 = scalar_lea.vmem %s0, %s164
      %p166 = scmp.lt.s32.totalorder %s14, 1
      %s167 = scalar_select %p166, %s14, 1
      %s168 = smul.addr %s167, 4
      %s169 = smul.addr %s168, 8
      %s170 = scalar_lea.vmem %s3, %s169
      %v171 = vld [vmem:[%s165] sm:$0xff]
      %v172 = vld [vmem:[%s165 + $0x8] sm:$0xff]
      %v173 = vld [vmem:[%s165 + $0x10] sm:$0xff]
      %v174 = vld [vmem:[%s165 + $0x18] sm:$0xff]
      %v175 = vld [vmem:[%s165 + $0x20] sm:$0xff]
      %v176 = vld [vmem:[%s165 + $0x28] sm:$0xff]
      %v177 = vld [vmem:[%s165 + $0x30] sm:$0xff]
      %v178 = vld [vmem:[%s165 + $0x38] sm:$0xff]
      %v179 = vld [vmem:[%s165 + $0x40] sm:$0xff]
      %v180 = vld [vmem:[%s165 + $0x48] sm:$0xff]
      %v181 = vld [vmem:[%s165 + $0x50] sm:$0xff]
      %v182 = vld [vmem:[%s165 + $0x58] sm:$0xff]
      %v183 = vld [vmem:[%s165 + $0x60] sm:$0xff]
      %v184 = vld [vmem:[%s165 + $0x68] sm:$0xff]
      %v185 = vld [vmem:[%s1] sm:$0xff]
      %v186 = vld [vmem:[%s1 + $0x8] sm:$0xff]
      %v187 = vld [vmem:[%s1 + $0x10] sm:$0xff]
      %v188 = vld [vmem:[%s1 + $0x18] sm:$0xff]
      %v189 = vld [vmem:[%s1 + $0x20] sm:$0xff]
      %v190 = vld [vmem:[%s1 + $0x28] sm:$0xff]
      %v191 = vld [vmem:[%s1 + $0x30] sm:$0xff]
      %v192 = vld [vmem:[%s1 + $0x38] sm:$0xff]
      %v193 = vld [vmem:[%s1 + $0x40] sm:$0xff]
      %v194 = vld [vmem:[%s1 + $0x48] sm:$0xff]
      %v195 = vld [vmem:[%s1 + $0x50] sm:$0xff]
      %v196 = vld [vmem:[%s1 + $0x58] sm:$0xff]
      %v197 = vld [vmem:[%s1 + $0x60] sm:$0xff]
      %v198 = vld [vmem:[%s1 + $0x68] sm:$0xff]
      %v199 = vld [vmem:[%s2] sm:$0xff]
      %v200 = vld [vmem:[%s2 + $0x8] sm:$0xff]
      %v201 = vld [vmem:[%s2 + $0x10] sm:$0xff]
      %v202 = vld [vmem:[%s2 + $0x18] sm:$0xff]
      %v203 = vld [vmem:[%s2 + $0x20] sm:$0xff]
      %v204 = vld [vmem:[%s2 + $0x28] sm:$0xff]
      %v205 = vld [vmem:[%s2 + $0x30] sm:$0xff]
      %v206 = vld [vmem:[%s2 + $0x38] sm:$0xff]
      %v207 = vld [vmem:[%s2 + $0x40] sm:$0xff]
      %v208 = vld [vmem:[%s2 + $0x48] sm:$0xff]
      %v209 = vld [vmem:[%s2 + $0x50] sm:$0xff]
      %v210 = vld [vmem:[%s2 + $0x58] sm:$0xff]
      %v211 = vld [vmem:[%s2 + $0x60] sm:$0xff]
      %v212 = vld [vmem:[%s2 + $0x68] sm:$0xff]
      %214 = vset.pattern.permute.xlu0 0
      %215 = vperm.xlu0 %214, %v199
      %v216 = vpop.permute.xlu0 %215
      %219 = vset.pattern.permute.xlu0 0
      %220 = vperm.xlu0 %219, %v200
      %v221 = vpop.permute.xlu0 %220
      %224 = vset.pattern.permute.xlu0 0
      %225 = vperm.xlu0 %224, %v201
      %v226 = vpop.permute.xlu0 %225
      %229 = vset.pattern.permute.xlu0 0
      %230 = vperm.xlu0 %229, %v202
      %v231 = vpop.permute.xlu0 %230
      %234 = vset.pattern.permute.xlu0 0
      %235 = vperm.xlu0 %234, %v203
      %v236 = vpop.permute.xlu0 %235
      %239 = vset.pattern.permute.xlu0 0
      %240 = vperm.xlu0 %239, %v204
      %v241 = vpop.permute.xlu0 %240
      %244 = vset.pattern.permute.xlu0 0
      %245 = vperm.xlu0 %244, %v205
      %v246 = vpop.permute.xlu0 %245
      %249 = vset.pattern.permute.xlu0 0
      %250 = vperm.xlu0 %249, %v206
      %v251 = vpop.permute.xlu0 %250
      %254 = vset.pattern.permute.xlu0 0
      %255 = vperm.xlu0 %254, %v207
      %v256 = vpop.permute.xlu0 %255
      %259 = vset.pattern.permute.xlu0 0
      %260 = vperm.xlu0 %259, %v208
      %v261 = vpop.permute.xlu0 %260
      %264 = vset.pattern.permute.xlu0 0
      %265 = vperm.xlu0 %264, %v209
      %v266 = vpop.permute.xlu0 %265
      %269 = vset.pattern.permute.xlu0 0
      %270 = vperm.xlu0 %269, %v210
      %v271 = vpop.permute.xlu0 %270
      %274 = vset.pattern.permute.xlu0 0
      %275 = vperm.xlu0 %274, %v211
      %v276 = vpop.permute.xlu0 %275
      %279 = vset.pattern.permute.xlu0 0
      %280 = vperm.xlu0 %279, %v212
      %v281 = vpop.permute.xlu0 %280
      %vm283 = vcmask 916480
      %v285 = vsel %vm283, %v185, 0
      %v288 = vsel %vm283, %v186, 0
      %v291 = vsel %vm283, %v187, 0
      %v294 = vsel %vm283, %v188, 0
      %v297 = vsel %vm283, %v189, 0
      %v300 = vsel %vm283, %v190, 0
      %v303 = vsel %vm283, %v191, 0
      %v306 = vsel %vm283, %v192, 0
      %v309 = vsel %vm283, %v193, 0
      %v312 = vsel %vm283, %v194, 0
      %v315 = vsel %vm283, %v195, 0
      %v318 = vsel %vm283, %v196, 0
      %v321 = vsel %vm283, %v197, 0
      %v324 = vsel %vm283, %v198, 0
      %326 = vmatprep.subr.mxu0 0.0
      %327 = vmatpush1.msra.mxu0 %v171
      %328 = vmatprep.subr.mxu0 0.0
      %329 = vmatpush1.msra.mxu0 %v172
      %330 = vmatprep.subr.mxu0 0.0
      %331 = vmatpush1.msra.mxu0 %v173
      %332 = vmatprep.subr.mxu0 0.0
      %333 = vmatpush1.msra.mxu0 %v174
      %334 = vmatprep.subr.mxu0 0.0
      %335 = vmatpush1.msra.mxu0 %v175
      %336 = vmatprep.subr.mxu0 0.0
      %337 = vmatpush1.msra.mxu0 %v176
      %338 = vmatprep.subr.mxu0 0.0
      %339 = vmatpush1.msra.mxu0 %v177
      %340 = vmatprep.subr.mxu0 0.0
      %341 = vmatpush1.msra.mxu0 %v178
      %342 = vmatprep.subr.mxu0 0.0
      %343 = vmatpush1.msra.mxu0 %v179
      %344 = vmatprep.subr.mxu0 0.0
      %345 = vmatpush1.msra.mxu0 %v180
      %346 = vmatprep.subr.mxu0 0.0
      %347 = vmatpush1.msra.mxu0 %v181
      %348 = vmatprep.subr.mxu0 0.0
      %349 = vmatpush1.msra.mxu0 %v182
      %350 = vmatprep.subr.mxu0 0.0
      %351 = vmatpush1.msra.mxu0 %v183
      %352 = vmatprep.subr.mxu0 0.0
      %353 = vmatpush1.msra.mxu0 %v184
      %354 = vmatprep.subr.mxu0 0.0
      %355 = vmatpush1.msra.mxu0 0.0
      %356 = vmatprep.subr.mxu0 0.0
      %357 = vmatpush1.msra.mxu0 0.0
      %358 = vmatprep.subr.mxu0 0.0
      %359 = vmatpush1.msra.mxu0 0.0
      %360 = vmatprep.subr.mxu0 0.0
      %361 = vmatpush1.msra.mxu0 0.0
      %362 = vmatprep.subr.mxu0 0.0
      %363 = vmatpush1.msra.mxu0 0.0
      %364 = vmatprep.subr.mxu0 0.0
      %365 = vmatpush1.msra.mxu0 0.0
      %366 = vmatprep.subr.mxu0 0.0
      %367 = vmatpush1.msra.mxu0 0.0
      %368 = vmatprep.subr.mxu0 0.0
      %369 = vmatpush1.msra.mxu0 0.0
      %370 = vmatprep.subr.mxu0 0.0
      %371 = vmatpush1.msra.mxu0 0.0
      %372 = vmatprep.subr.mxu0 0.0
      %373 = vmatpush1.msra.mxu0 0.0
      %374 = vmatprep.subr.mxu0 0.0
      %375 = vmatpush1.msra.mxu0 0.0
      %376 = vmatprep.subr.mxu0 0.0
      %377 = vmatpush1.msra.mxu0 0.0
      %378 = vmatprep.subr.mxu0 0.0
      %379 = vmatpush1.msra.mxu0 0.0
      %380 = vmatprep.subr.mxu0 0.0
      %381 = vmatpush1.msra.mxu0 0.0
      %382 = vmatprep.subr.mxu0 0.0
      %383 = vmatpush1.msra.mxu0 0.0
      %384 = vmatprep.subr.mxu0 0.0
      %385 = vmatpush1.msra.mxu0 0.0
      %386 = vmatprep.subr.mxu0 0.0
      %387 = vmatpush1.msra.mxu0 0.0
      %388 = vmatprep.subr.mxu0 0.0
      %389 = vmatpush1.msra.mxu0 0.0
      %390 = vmatprep.mubr.f32.mxu0 0.0
      %391 = vmatmul.mubr.f32.gmra.mrb[0].mxu0 %v285
      %v392 = vpop.f32.mrb[0].mxu0
      %v393 = vadd.f32 %v216, %v392
      %v394 = vpop.f32.mrb[0].mxu0
      %395 = vmatprep.mubr.f32.mxu0 0.0
      %396 = vmatmul.mubr.f32.gmra.mrb[0].mxu0 %v288
      %v397 = vpop.f32.mrb[0].mxu0
      %v398 = vadd.f32 %v221, %v397
      %v399 = vpop.f32.mrb[0].mxu0
      %400 = vmatprep.mubr.f32.mxu0 0.0
      %401 = vmatmul.mubr.f32.gmra.mrb[0].mxu0 %v291
      %v402 = vpop.f32.mrb[0].mxu0
      %v403 = vadd.f32 %v226, %v402
      %v404 = vpop.f32.mrb[0].mxu0
      %405 = vmatprep.mubr.f32.mxu0 0.0
      %406 = vmatmul.mubr.f32.gmra.mrb[0].mxu0 %v294
      %v407 = vpop.f32.mrb[0].mxu0
      %v408 = vadd.f32 %v231, %v407
      %v409 = vpop.f32.mrb[0].mxu0
      %410 = vmatprep.mubr.f32.mxu0 0.0
      %411 = vmatmul.mubr.f32.gmra.mrb[0].mxu0 %v297
      %v412 = vpop.f32.mrb[0].mxu0
      %v413 = vadd.f32 %v236, %v412
      %v414 = vpop.f32.mrb[0].mxu0
      %415 = vmatprep.mubr.f32.mxu0 0.0
      %416 = vmatmul.mubr.f32.gmra.mrb[0].mxu0 %v300
      %v417 = vpop.f32.mrb[0].mxu0
      %v418 = vadd.f32 %v241, %v417
      %v419 = vpop.f32.mrb[0].mxu0
      %420 = vmatprep.mubr.f32.mxu0 0.0
      %421 = vmatmul.mubr.f32.gmra.mrb[0].mxu0 %v303
      %v422 = vpop.f32.mrb[0].mxu0
      %v423 = vadd.f32 %v246, %v422
      %v424 = vpop.f32.mrb[0].mxu0
      %425 = vmatprep.mubr.f32.mxu0 0.0
      %426 = vmatmul.mubr.f32.gmra.mrb[0].mxu0 %v306
      %v427 = vpop.f32.mrb[0].mxu0
      %v428 = vadd.f32 %v251, %v427
      %v429 = vpop.f32.mrb[0].mxu0
      %430 = vmatprep.mubr.f32.mxu0 0.0
      %431 = vmatmul.mubr.f32.gmra.mrb[0].mxu0 %v309
      %v432 = vpop.f32.mrb[0].mxu0
      %v433 = vadd.f32 %v256, %v432
      %v434 = vpop.f32.mrb[0].mxu0
      %435 = vmatprep.mubr.f32.mxu0 0.0
      %436 = vmatmul.mubr.f32.gmra.mrb[0].mxu0 %v312
      %v437 = vpop.f32.mrb[0].mxu0
      %v438 = vadd.f32 %v261, %v437
      %v439 = vpop.f32.mrb[0].mxu0
      %440 = vmatprep.mubr.f32.mxu0 0.0
      %441 = vmatmul.mubr.f32.gmra.mrb[0].mxu0 %v315
      %v442 = vpop.f32.mrb[0].mxu0
      %v443 = vadd.f32 %v266, %v442
      %v444 = vpop.f32.mrb[0].mxu0
      %445 = vmatprep.mubr.f32.mxu0 0.0
      %446 = vmatmul.mubr.f32.gmra.mrb[0].mxu0 %v318
      %v447 = vpop.f32.mrb[0].mxu0
      %v448 = vadd.f32 %v271, %v447
      %v449 = vpop.f32.mrb[0].mxu0
      %450 = vmatprep.mubr.f32.mxu0 0.0
      %451 = vmatmul.mubr.f32.gmra.mrb[0].mxu0 %v321
      %v452 = vpop.f32.mrb[0].mxu0
      %v453 = vadd.f32 %v276, %v452
      %v454 = vpop.f32.mrb[0].mxu0
      %455 = vmatprep.mubr.f32.mxu0 0.0
      %456 = vmatmul.mubr.f32.gmra.mrb[0].mxu0 %v324
      %v457 = vpop.f32.mrb[0].mxu0
      %v458 = vadd.f32 %v281, %v457
      %v459 = vpop.f32.mrb[0].mxu0
      %460 = vdwg.mxu0
      %v461 = vmax.f32 %v393, 0.0
      %v462 = vmax.f32 %v398, 0.0
      %v463 = vmax.f32 %v403, 0.0
      %v464 = vmax.f32 %v408, 0.0
      %v465 = vmax.f32 %v413, 0.0
      %v466 = vmax.f32 %v418, 0.0
      %v467 = vmax.f32 %v423, 0.0
      %v468 = vmax.f32 %v428, 0.0
      %v469 = vmax.f32 %v433, 0.0
      %v470 = vmax.f32 %v438, 0.0
      %v471 = vmax.f32 %v443, 0.0
      %v472 = vmax.f32 %v448, 0.0
      %v473 = vmax.f32 %v453, 0.0
      %v474 = vmax.f32 %v458, 0.0
      %s475 = scalar_lea.vmem %s1, 112
      %v476 = vld [vmem:[%s475] sm:$0xff]
      %v477 = vld [vmem:[%s475 + $0x8] sm:$0xff]
      %v478 = vld [vmem:[%s475 + $0x10] sm:$0xff]
      %v479 = vld [vmem:[%s475 + $0x18] sm:$0xff]
      %v480 = vld [vmem:[%s475 + $0x20] sm:$0xff]
      %v481 = vld [vmem:[%s475 + $0x28] sm:$0xff]
      %v482 = vld [vmem:[%s475 + $0x30] sm:$0xff]
      %v483 = vld [vmem:[%s475 + $0x38] sm:$0xff]
      %v484 = vld [vmem:[%s475 + $0x40] sm:$0xff]
      %v485 = vld [vmem:[%s475 + $0x48] sm:$0xff]
      %v486 = vld [vmem:[%s475 + $0x50] sm:$0xff]
      %v487 = vld [vmem:[%s475 + $0x58] sm:$0xff]
      %v488 = vld [vmem:[%s475 + $0x60] sm:$0xff]
      %v489 = vld [vmem:[%s475 + $0x68] sm:$0xff]
      %s490 = scalar_lea.vmem %s2, 112
      %v491 = vld [vmem:[%s490] sm:$0xff]
      %v492 = vld [vmem:[%s490 + $0x8] sm:$0xff]
      %v493 = vld [vmem:[%s490 + $0x10] sm:$0xff]
      %v494 = vld [vmem:[%s490 + $0x18] sm:$0xff]
      %v495 = vld [vmem:[%s490 + $0x20] sm:$0xff]
      %v496 = vld [vmem:[%s490 + $0x28] sm:$0xff]
      %v497 = vld [vmem:[%s490 + $0x30] sm:$0xff]
      %v498 = vld [vmem:[%s490 + $0x38] sm:$0xff]
      %v499 = vld [vmem:[%s490 + $0x40] sm:$0xff]
      %v500 = vld [vmem:[%s490 + $0x48] sm:$0xff]
      %v501 = vld [vmem:[%s490 + $0x50] sm:$0xff]
      %v502 = vld [vmem:[%s490 + $0x58] sm:$0xff]
      %v503 = vld [vmem:[%s490 + $0x60] sm:$0xff]
      %v504 = vld [vmem:[%s490 + $0x68] sm:$0xff]
      %506 = vset.pattern.permute.xlu0 0
      %507 = vperm.xlu0 %506, %v491
      %v508 = vpop.permute.xlu0 %507
      %511 = vset.pattern.permute.xlu0 0
      %512 = vperm.xlu0 %511, %v492
      %v513 = vpop.permute.xlu0 %512
      %516 = vset.pattern.permute.xlu0 0
      %517 = vperm.xlu0 %516, %v493
      %v518 = vpop.permute.xlu0 %517
      %521 = vset.pattern.permute.xlu0 0
      %522 = vperm.xlu0 %521, %v494
      %v523 = vpop.permute.xlu0 %522
      %526 = vset.pattern.permute.xlu0 0
      %527 = vperm.xlu0 %526, %v495
      %v528 = vpop.permute.xlu0 %527
      %530 = vset.pattern.permute.xlu0 0
      %531 = vperm.xlu0 %530, %v496
      %v532 = vpop.permute.xlu0 %531
      %534 = vset.pattern.permute.xlu0 0
      %535 = vperm.xlu0 %534, %v497
      %v536 = vpop.permute.xlu0 %535
      %538 = vset.pattern.permute.xlu0 0
      %539 = vperm.xlu0 %538, %v498
      %v540 = vpop.permute.xlu0 %539
      %542 = vset.pattern.permute.xlu0 0
      %543 = vperm.xlu0 %542, %v499
      %v544 = vpop.permute.xlu0 %543
      %546 = vset.pattern.permute.xlu0 0
      %547 = vperm.xlu0 %546, %v500
      %v548 = vpop.permute.xlu0 %547
      %550 = vset.pattern.permute.xlu0 0
      %551 = vperm.xlu0 %550, %v501
      %v552 = vpop.permute.xlu0 %551
      %554 = vset.pattern.permute.xlu0 0
      %555 = vperm.xlu0 %554, %v502
      %v556 = vpop.permute.xlu0 %555
      %558 = vset.pattern.permute.xlu0 0
      %559 = vperm.xlu0 %558, %v503
      %v560 = vpop.permute.xlu0 %559
      %562 = vset.pattern.permute.xlu0 0
      %563 = vperm.xlu0 %562, %v504
      %v564 = vpop.permute.xlu0 %563
      %v566 = vsel %vm283, %v476, 0
      %v569 = vsel %vm283, %v477, 0
      %v572 = vsel %vm283, %v478, 0
      %v575 = vsel %vm283, %v479, 0
      %v578 = vsel %vm283, %v480, 0
      %v581 = vsel %vm283, %v481, 0
      %v584 = vsel %vm283, %v482, 0
      %v587 = vsel %vm283, %v483, 0
      %v590 = vsel %vm283, %v484, 0
      %v593 = vsel %vm283, %v485, 0
      %v596 = vsel %vm283, %v486, 0
      %v599 = vsel %vm283, %v487, 0
      %v602 = vsel %vm283, %v488, 0
      %v605 = vsel %vm283, %v489, 0
      %607 = vmatprep.subr.mxu0 0.0
      %608 = vmatpush1.msra.mxu0 %v461
      %609 = vmatprep.subr.mxu0 0.0
      %610 = vmatpush1.msra.mxu0 %v462
      %611 = vmatprep.subr.mxu0 0.0
      %612 = vmatpush1.msra.mxu0 %v463
      %613 = vmatprep.subr.mxu0 0.0
      %614 = vmatpush1.msra.mxu0 %v464
      %615 = vmatprep.subr.mxu0 0.0
      %616 = vmatpush1.msra.mxu0 %v465
      %617 = vmatprep.subr.mxu0 0.0
      %618 = vmatpush1.msra.mxu0 %v466
      %619 = vmatprep.subr.mxu0 0.0
      %620 = vmatpush1.msra.mxu0 %v467
      %621 = vmatprep.subr.mxu0 0.0
      %622 = vmatpush1.msra.mxu0 %v468
      %623 = vmatprep.subr.mxu0 0.0
      %624 = vmatpush1.msra.mxu0 %v469
      %625 = vmatprep.subr.mxu0 0.0
      %626 = vmatpush1.msra.mxu0 %v470
      %627 = vmatprep.subr.mxu0 0.0
      %628 = vmatpush1.msra.mxu0 %v471
      %629 = vmatprep.subr.mxu0 0.0
      %630 = vmatpush1.msra.mxu0 %v472
      %631 = vmatprep.subr.mxu0 0.0
      %632 = vmatpush1.msra.mxu0 %v473
      %633 = vmatprep.subr.mxu0 0.0
      %634 = vmatpush1.msra.mxu0 %v474
      %635 = vmatprep.subr.mxu0 0.0
      %636 = vmatpush1.msra.mxu0 0.0
      %637 = vmatprep.subr.mxu0 0.0
      %638 = vmatpush1.msra.mxu0 0.0
      %639 = vmatprep.subr.mxu0 0.0
      %640 = vmatpush1.msra.mxu0 0.0
      %641 = vmatprep.subr.mxu0 0.0
      %642 = vmatpush1.msra.mxu0 0.0
      %643 = vmatprep.subr.mxu0 0.0
      %644 = vmatpush1.msra.mxu0 0.0
      %645 = vmatprep.subr.mxu0 0.0
      %646 = vmatpush1.msra.mxu0 0.0
      %647 = vmatprep.subr.mxu0 0.0
      %648 = vmatpush1.msra.mxu0 0.0
      %649 = vmatprep.subr.mxu0 0.0
      %650 = vmatpush1.msra.mxu0 0.0
      %651 = vmatprep.subr.mxu0 0.0
      %652 = vmatpush1.msra.mxu0 0.0
      %653 = vmatprep.subr.mxu0 0.0
      %654 = vmatpush1.msra.mxu0 0.0
      %655 = vmatprep.subr.mxu0 0.0
      %656 = vmatpush1.msra.mxu0 0.0
      %657 = vmatprep.subr.mxu0 0.0
      %658 = vmatpush1.msra.mxu0 0.0
      %659 = vmatprep.subr.mxu0 0.0
      %660 = vmatpush1.msra.mxu0 0.0
      %661 = vmatprep.subr.mxu0 0.0
      %662 = vmatpush1.msra.mxu0 0.0
      %663 = vmatprep.subr.mxu0 0.0
      %664 = vmatpush1.msra.mxu0 0.0
      %665 = vmatprep.subr.mxu0 0.0
      %666 = vmatpush1.msra.mxu0 0.0
      %667 = vmatprep.subr.mxu0 0.0
      %668 = vmatpush1.msra.mxu0 0.0
      %669 = vmatprep.subr.mxu0 0.0
      %670 = vmatpush1.msra.mxu0 0.0
      %671 = vmatprep.mubr.f32.mxu0 0.0
      %672 = vmatmul.mubr.f32.gmra.mrb[0].mxu0 %v566
      %v673 = vpop.f32.mrb[0].mxu0
      %v674 = vadd.f32 %v508, %v673
      %v675 = vpop.f32.mrb[0].mxu0
      %676 = vmatprep.mubr.f32.mxu0 0.0
      %677 = vmatmul.mubr.f32.gmra.mrb[0].mxu0 %v569
      %v678 = vpop.f32.mrb[0].mxu0
      %v679 = vadd.f32 %v513, %v678
      %v680 = vpop.f32.mrb[0].mxu0
      %681 = vmatprep.mubr.f32.mxu0 0.0
      %682 = vmatmul.mubr.f32.gmra.mrb[0].mxu0 %v572
      %v683 = vpop.f32.mrb[0].mxu0
      %v684 = vadd.f32 %v518, %v683
      %v685 = vpop.f32.mrb[0].mxu0
      %686 = vmatprep.mubr.f32.mxu0 0.0
      %687 = vmatmul.mubr.f32.gmra.mrb[0].mxu0 %v575
      %v688 = vpop.f32.mrb[0].mxu0
      %v689 = vadd.f32 %v523, %v688
      %v690 = vpop.f32.mrb[0].mxu0
      %691 = vmatprep.mubr.f32.mxu0 0.0
      %692 = vmatmul.mubr.f32.gmra.mrb[0].mxu0 %v578
      %v693 = vpop.f32.mrb[0].mxu0
      %v694 = vpop.f32.mrb[0].mxu0
      %695 = vmatprep.mubr.f32.mxu0 0.0
      %696 = vmatmul.mubr.f32.gmra.mrb[0].mxu0 %v581
      %v697 = vpop.f32.mrb[0].mxu0
      %v698 = vpop.f32.mrb[0].mxu0
      %699 = vmatprep.mubr.f32.mxu0 0.0
      %700 = vmatmul.mubr.f32.gmra.mrb[0].mxu0 %v584
      %v701 = vpop.f32.mrb[0].mxu0
      %v702 = vpop.f32.mrb[0].mxu0
      %703 = vmatprep.mubr.f32.mxu0 0.0
      %704 = vmatmul.mubr.f32.gmra.mrb[0].mxu0 %v587
      %v705 = vpop.f32.mrb[0].mxu0
      %v706 = vpop.f32.mrb[0].mxu0
      %707 = vmatprep.mubr.f32.mxu0 0.0
      %708 = vmatmul.mubr.f32.gmra.mrb[0].mxu0 %v590
      %v709 = vpop.f32.mrb[0].mxu0
      %v710 = vpop.f32.mrb[0].mxu0
      %711 = vmatprep.mubr.f32.mxu0 0.0
      %712 = vmatmul.mubr.f32.gmra.mrb[0].mxu0 %v593
      %v713 = vpop.f32.mrb[0].mxu0
      %v714 = vpop.f32.mrb[0].mxu0
      %715 = vmatprep.mubr.f32.mxu0 0.0
      %716 = vmatmul.mubr.f32.gmra.mrb[0].mxu0 %v596
      %v717 = vpop.f32.mrb[0].mxu0
      %v718 = vpop.f32.mrb[0].mxu0
      %719 = vmatprep.mubr.f32.mxu0 0.0
      %720 = vmatmul.mubr.f32.gmra.mrb[0].mxu0 %v599
      %v721 = vpop.f32.mrb[0].mxu0
      %v722 = vpop.f32.mrb[0].mxu0
      %723 = vmatprep.mubr.f32.mxu0 0.0
      %724 = vmatmul.mubr.f32.gmra.mrb[0].mxu0 %v602
      %v725 = vpop.f32.mrb[0].mxu0
      %v726 = vpop.f32.mrb[0].mxu0
      %727 = vmatprep.mubr.f32.mxu0 0.0
      %728 = vmatmul.mubr.f32.gmra.mrb[0].mxu0 %v605
      %v729 = vpop.f32.mrb[0].mxu0
      %v730 = vpop.f32.mrb[0].mxu0
      %731 = vdwg.mxu0
      %v732 = vmax.f32 %v674, 0.0
      %v733 = vmax.f32 %v679, 0.0
      %v734 = vmax.f32 %v684, 0.0
      %v735 = vmax.f32 %v689, 0.0
      %736 = vst [vmem:[%s170] sm:$0xff] %v732
      %737 = vst [vmem:[%s170 + $0x8] sm:$0xff] %v733
      %738 = vst [vmem:[%s170 + $0x10] sm:$0xff] %v734
      %739 = vst [vmem:[%s170 + $0x18] sm:$0xff] %v735
      %p740 = scmp.lt.s32.totalorder %s14, 1
      %s741 = scalar_select %p740, %s14, 1
      %s742 = smul.addr %s741, 4
      %s743 = smul.addr %s742, 8
      %s744 = scalar_lea.vmem %s3, %s743
      // Predicated region
      $region33: #{pointnet2_msg_forward.17} parent=31 // pred_check
        %p745 = pneg %p100
      $region34: #{pointnet2_msg_forward.17} parent=31 // pred_check_branch
        %747 = sbr.rel (%p745) target = $region36
      $region35: #{pointnet2_msg_forward.17} parent=31 // pred_region
        _
      $region36: #{pointnet2_msg_forward.17} parent=31 // pred_fallthru
        _
    $region32: #{pointnet2_msg_forward.17} parent=5 // pred_fallthru
      _
    %p748 = scmp.le.s32.totalorder 2, %s9
    // Predicated region
    $region37: #{pointnet2_msg_forward.17} parent=5 // pred_check
      %p749 = pneg %p748
    $region38: #{pointnet2_msg_forward.17} parent=5 // pred_check_branch
      %751 = sbr.rel (%p749) target = $region40
    $region39: #{pointnet2_msg_forward.17} parent=5 // pred_region
      %s752 = ssub.s32 %s9, 2
      // Predicated region
      $region41: #{pointnet2_msg_forward.17} parent=39 // pred_check
        %p753 = pneg %p106
      $region42: #{pointnet2_msg_forward.17} parent=39 // pred_check_branch
        %755 = sbr.rel (%p753) target = $region44
      $region43: #{pointnet2_msg_forward.17} parent=39 // pred_region
        %p756 = scmp.lt.s32.totalorder %s15, 1
        %s757 = scalar_select %p756, %s15, 1
        %s758 = smul.addr %s757, 4
        %s759 = smul.addr %s758, 8
        %s760 = scalar_lea.vmem %s3, %s759
      $region44: #{pointnet2_msg_forward.17} parent=39 // pred_fallthru
        _
    $region40: #{pointnet2_msg_forward.17} parent=5 // pred_fallthru
      _
  $region6: #{pointnet2_msg_forward.17} parent=0 // loop_footer
    %s13 = sadd.s32 1, %s9
  $region7: #{pointnet2_msg_forward.17} parent=0 // loop_footer_branch
    %8 = sbr.rel target = $region3
  $region8: #{pointnet2_msg_forward.17} parent=0 // loop_exit
    _

// kernel: pointnet2_msg_forward.18
$region0: #{pointnet2_msg_forward.18}
  #allocation0 [shape = 'u32[]', space=smem, size = 0x4, offset = 0x4, fixed_abs, tag = 'smem constant byte address 0x4 - core index']
  #allocation1 [shape = 'u32[144,128]{1,0:T(1,128)}', space=vmem, size = 0x12000, scoped, tag = 'internal scratch']
  %s0 = inlined_call_operand.vmem [shape: f32[2,40,256], index: 0, kind: input, shape index: {}]
  %s1 = inlined_call_operand.vmem [shape: f32[3,40,40], index: 1, kind: input, shape index: {}]
  %s2 = inlined_call_operand.vmem [shape: f32[3,40,1], index: 2, kind: input, shape index: {}]
  %s3 = inlined_call_operand.vmem [shape: f32[2,32,256], index: 3, kind: output, shape index: {}]
  %s4 = sld [smem:[#allocation0]]
  $region45: #{pointnet2_msg_forward.18} parent=0
    _
  %s6 = ssub.s32 1, %s4
  %s7 = scalar_select 0, %s6, %s4
  loop: start=0, step=1, limit=4
  $region2: #{pointnet2_msg_forward.18} parent=0 // loop_pre_header
    _
  $region3: #{pointnet2_msg_forward.18} parent=0 // loop_header
    %s9 = sphi 0, %s13
    %p10 = scmp.ge.s32.totalorder %s9, 4
    %s19 = sphi 0, %s21
    %s22 = sphi 0, %s19
    %s23 = sphi 0, %s22
    %s39 = sphi 0, %s23
    %s43 = sphi 0, %s43
    %s45 = sphi 0, %s43
    %s46 = sphi 0, %s45
    %s60 = sphi 0, %s46
    %s64 = sphi 0, %s64
    %s66 = sphi 0, %s64
    %s67 = sphi 0, %s66
    %s81 = sphi 0, %s67
    %s87 = sphi 0, %s89
    %s90 = sphi 0, %s87
    %s91 = sphi 0, %s90
    %s107 = sphi 0, %s91
  $region4: #{pointnet2_msg_forward.18} parent=0 // loop_header_branch
    %12 = sbr.rel (%p10) target = $region8
  $region5: #{pointnet2_msg_forward.18} parent=0 // loop_body
    %s14 = ssub.s32 %s9, 1
    %s15 = ssub.s32 %s9, 2
    %s16 = sadd.s32 %s9, 1
    %s17 = ssub.s32 %s9, %s16
    %p18 = scmp.eq.s32.totalorder %s17, 0
    %s20 = sadd.s32 %s19, 1
    %s21 = scalar_select %p18, %s19, %s20
    %p24 = pneg %p18
    %p25 = scmp.eq.s32.totalorder %s9, 1
    %p26 = por %p24, %p25
    %p27 = scmp.ne.s32.totalorder %s19, %s22
    %p28 = scmp.eq.s32.totalorder %s9, 0
    %p29 = por %p27, %p28
    %p30 = scmp.ne.s32.totalorder %s19, %s22
    %p31 = scmp.eq.s32.totalorder %s14, 1
    %p32 = por %p30, %p31
    %p33 = scmp.ne.s32.totalorder %s22, %s23
    %p34 = scmp.eq.s32.totalorder %s14, 0
    %p35 = por %p33, %p34
    %p36 = scmp.ne.s32.totalorder %s22, %s23
    %p37 = scmp.eq.s32.totalorder %s15, 1
    %p38 = por %p36, %p37
    %p40 = scmp.ne.s32.totalorder %s23, %s39
    %p41 = scmp.eq.s32.totalorder %s15, 0
    %p42 = por %p40, %p41
    %s44 = sadd.s32 %s43, 1
    %p47 = scmp.eq.s32.totalorder %s9, 1
    %p48 = scmp.ne.s32.totalorder %s43, %s45
    %p49 = scmp.eq.s32.totalorder %s9, 0
    %p50 = por %p48, %p49
    %p51 = scmp.ne.s32.totalorder %s43, %s45
    %p52 = scmp.eq.s32.totalorder %s14, 1
    %p53 = por %p51, %p52
    %p54 = scmp.ne.s32.totalorder %s45, %s46
    %p55 = scmp.eq.s32.totalorder %s14, 0
    %p56 = por %p54, %p55
    %p57 = scmp.ne.s32.totalorder %s45, %s46
    %p58 = scmp.eq.s32.totalorder %s15, 1
    %p59 = por %p57, %p58
    %p61 = scmp.ne.s32.totalorder %s46, %s60
    %p62 = scmp.eq.s32.totalorder %s15, 0
    %p63 = por %p61, %p62
    %s65 = sadd.s32 %s64, 1
    %p68 = scmp.eq.s32.totalorder %s9, 1
    %p69 = scmp.ne.s32.totalorder %s64, %s66
    %p70 = scmp.eq.s32.totalorder %s9, 0
    %p71 = por %p69, %p70
    %p72 = scmp.ne.s32.totalorder %s64, %s66
    %p73 = scmp.eq.s32.totalorder %s14, 1
    %p74 = por %p72, %p73
    %p75 = scmp.ne.s32.totalorder %s66, %s67
    %p76 = scmp.eq.s32.totalorder %s14, 0
    %p77 = por %p75, %p76
    %p78 = scmp.ne.s32.totalorder %s66, %s67
    %p79 = scmp.eq.s32.totalorder %s15, 1
    %p80 = por %p78, %p79
    %p82 = scmp.ne.s32.totalorder %s67, %s81
    %p83 = scmp.eq.s32.totalorder %s15, 0
    %p84 = por %p82, %p83
    %s85 = ssub.s32 %s9, %s16
    %p86 = scmp.eq.s32.totalorder %s85, 0
    %s88 = sadd.s32 %s87, 1
    %s89 = scalar_select %p86, %s87, %s88
    %p92 = pneg %p86
    %p93 = scmp.eq.s32.totalorder %s9, 1
    %p94 = por %p92, %p93
    %p95 = scmp.ne.s32.totalorder %s87, %s90
    %p96 = scmp.eq.s32.totalorder %s9, 0
    %p97 = por %p95, %p96
    %p98 = scmp.ne.s32.totalorder %s87, %s90
    %p99 = scmp.eq.s32.totalorder %s14, 1
    %p100 = por %p98, %p99
    %p101 = scmp.ne.s32.totalorder %s90, %s91
    %p102 = scmp.eq.s32.totalorder %s14, 0
    %p103 = por %p101, %p102
    %p104 = scmp.ne.s32.totalorder %s90, %s91
    %p105 = scmp.eq.s32.totalorder %s15, 1
    %p106 = por %p104, %p105
    %p108 = scmp.ne.s32.totalorder %s91, %s107
    %p109 = scmp.eq.s32.totalorder %s15, 0
    %p110 = por %p108, %p109
    %p111 = scmp.le.s32.totalorder 1, %s9
    %p112 = scmp.lt.s32.totalorder %s9, 3
    %p113 = pnand %p111, %p112
    %p114 = pneg %p113
    // Predicated region
    $region9: #{pointnet2_msg_forward.18} parent=5 // pred_check
      _
    $region10: #{pointnet2_msg_forward.18} parent=5 // pred_check_branch
      %116 = sbr.rel (%p113) target = $region12
    $region11: #{pointnet2_msg_forward.18} parent=5 // pred_region
      %s117 = ssub.s32 %s9, 1
      // Predicated region
      $region13: #{pointnet2_msg_forward.18} parent=11 // pred_check
        %p118 = pneg %p56
      $region14: #{pointnet2_msg_forward.18} parent=11 // pred_check_branch
        %120 = sbr.rel (%p118) target = $region16
      $region15: #{pointnet2_msg_forward.18} parent=11 // pred_region
        _
      $region16: #{pointnet2_msg_forward.18} parent=11 // pred_fallthru
        _
      // Predicated region
      $region17: #{pointnet2_msg_forward.18} parent=11 // pred_check
        %p121 = pneg %p77
      $region18: #{pointnet2_msg_forward.18} parent=11 // pred_check_branch
        %123 = sbr.rel (%p121) target = $region20
      $region19: #{pointnet2_msg_forward.18} parent=11 // pred_region
        _
      $region20: #{pointnet2_msg_forward.18} parent=11 // pred_fallthru
        _
    $region12: #{pointnet2_msg_forward.18} parent=5 // pred_fallthru
      _
    %p124 = scmp.lt.s32.totalorder %s9, 2
    // Predicated region
    $region21: #{pointnet2_msg_forward.18} parent=5 // pred_check
      %p125 = pneg %p124
    $region22: #{pointnet2_msg_forward.18} parent=5 // pred_check_branch
      %127 = sbr.rel (%p125) target = $region24
    $region23: #{pointnet2_msg_forward.18} parent=5 // pred_region
      // Predicated region
      $region25: #{pointnet2_msg_forward.18} parent=23 // pred_check
        %p128 = pneg %p29
      $region26: #{pointnet2_msg_forward.18} parent=23 // pred_check_branch
        %130 = sbr.rel (%p128) target = $region28
      $region27: #{pointnet2_msg_forward.18} parent=23 // pred_region
        %p131 = scmp.lt.s32.totalorder %s9, 1
        %s132 = scalar_select %p131, %s9, 1
        %s133 = smul.addr %s132, 10
        %s134 = smul.addr %s133, 8
        %s135 = scalar_lea.vmem %s0, %s134
      $region28: #{pointnet2_msg_forward.18} parent=23 // pred_fallthru
        _
    $region24: #{pointnet2_msg_forward.18} parent=5 // pred_fallthru
      _
    %p136 = scmp.le.s32.totalorder 1, %s9
    %p137 = scmp.lt.s32.totalorder %s9, 3
    %p138 = pnand %p136, %p137
    %p139 = pneg %p138
    // Predicated region
    $region29: #{pointnet2_msg_forward.18} parent=5 // pred_check
      _
    $region30: #{pointnet2_msg_forward.18} parent=5 // pred_check_branch
      %141 = sbr.rel (%p138) target = $region32
    $region31: #{pointnet2_msg_forward.18} parent=5 // pred_region
      %s142 = ssub.s32 %s9, 1
      %p143 = scmp.lt.s32.totalorder %s14, 1
      %s144 = scalar_select %p143, %s14, 1
      %s145 = smul.addr %s144, 10
      %s146 = smul.addr %s145, 8
      %s147 = scalar_lea.vmem %s0, %s146
      %p148 = pneg %p35
      %p149 = pneg %p32
      %p150 = pneg %p56
      %p151 = pneg %p53
      %p152 = pneg %p77
      %p153 = pneg %p74
      %p154 = pneg %p103
      %p155 = pneg %p100
      %p156 = scmp.lt.s32.totalorder %s14, 1
      %s157 = scalar_select %p156, %s14, 1
      %s158 = smul.addr %s157, 8
      %s159 = smul.addr %s158, 8
      %s160 = scalar_lea.vmem %s3, %s159
      %p161 = scmp.lt.s32.totalorder %s14, 1
      %s162 = scalar_select %p161, %s14, 1
      %s163 = smul.addr %s162, 10
      %s164 = smul.addr %s163, 8
      %s165 = scalar_lea.vmem %s0, %s164
      %p166 = scmp.lt.s32.totalorder %s14, 1
      %s167 = scalar_select %p166, %s14, 1
      %s168 = smul.addr %s167, 8
      %s169 = smul.addr %s168, 8
      %s170 = scalar_lea.vmem %s3, %s169
      %v171 = vld [vmem:[%s165] sm:$0xff]
      %v172 = vld [vmem:[%s165 + $0x8] sm:$0xff]
      %v173 = vld [vmem:[%s165 + $0x10] sm:$0xff]
      %v174 = vld [vmem:[%s165 + $0x18] sm:$0xff]
      %v175 = vld [vmem:[%s165 + $0x20] sm:$0xff]
      %v176 = vld [vmem:[%s165 + $0x28] sm:$0xff]
      %v177 = vld [vmem:[%s165 + $0x30] sm:$0xff]
      %v178 = vld [vmem:[%s165 + $0x38] sm:$0xff]
      %v179 = vld [vmem:[%s165 + $0x40] sm:$0xff]
      %v180 = vld [vmem:[%s165 + $0x48] sm:$0xff]
      %v181 = vld [vmem:[%s1] sm:$0xff]
      %v182 = vld [vmem:[%s1 + $0x8] sm:$0xff]
      %v183 = vld [vmem:[%s1 + $0x10] sm:$0xff]
      %v184 = vld [vmem:[%s1 + $0x18] sm:$0xff]
      %v185 = vld [vmem:[%s1 + $0x20] sm:$0xff]
      %v186 = vld [vmem:[%s2] sm:$0xff]
      %v187 = vld [vmem:[%s2 + $0x8] sm:$0xff]
      %v188 = vld [vmem:[%s2 + $0x10] sm:$0xff]
      %v189 = vld [vmem:[%s2 + $0x18] sm:$0xff]
      %v190 = vld [vmem:[%s2 + $0x20] sm:$0xff]
      %192 = vset.pattern.permute.xlu0 0
      %193 = vperm.xlu0 %192, %v186
      %v194 = vpop.permute.xlu0 %193
      %197 = vset.pattern.permute.xlu0 0
      %198 = vperm.xlu0 %197, %v187
      %v199 = vpop.permute.xlu0 %198
      %202 = vset.pattern.permute.xlu0 0
      %203 = vperm.xlu0 %202, %v188
      %v204 = vpop.permute.xlu0 %203
      %207 = vset.pattern.permute.xlu0 0
      %208 = vperm.xlu0 %207, %v189
      %v209 = vpop.permute.xlu0 %208
      %212 = vset.pattern.permute.xlu0 0
      %213 = vperm.xlu0 %212, %v190
      %v214 = vpop.permute.xlu0 %213
      %vm216 = vcmask 326656
      %v218 = vsel %vm216, %v181, 0
      %v221 = vsel %vm216, %v182, 0
      %v224 = vsel %vm216, %v183, 0
      %v227 = vsel %vm216, %v184, 0
      %v230 = vsel %vm216, %v185, 0
      %232 = vmatprep.subr.mxu0 %v172
      %233 = vmatpush1.msra.mxu0 %v171
      %234 = vmatprep.subr.mxu0 %v174
      %235 = vmatpush1.msra.mxu0 %v173
      %236 = vmatprep.subr.mxu0 %v176
      %237 = vmatpush1.msra.mxu0 %v175
      %238 = vmatprep.subr.mxu0 %v178
      %239 = vmatpush1.msra.mxu0 %v177
      %240 = vmatprep.subr.mxu0 %v180
      %241 = vmatpush1.msra.mxu0 %v179
      %242 = vmatprep.subr.mxu0 0.0
      %243 = vmatpush1.msra.mxu0 0.0
      %244 = vmatprep.subr.mxu0 0.0
      %245 = vmatpush1.msra.mxu0 0.0
      %246 = vmatprep.subr.mxu0 0.0
      %247 = vmatpush1.msra.mxu0 0.0
      %248 = vmatprep.subr.mxu0 0.0
      %249 = vmatpush1.msra.mxu0 0.0
      %250 = vmatprep.subr.mxu0 0.0
      %251 = vmatpush1.msra.mxu0 0.0
      %252 = vmatprep.subr.mxu0 0.0
      %253 = vmatpush1.msra.mxu0 0.0
      %254 = vmatprep.subr.mxu0 0.0
      %255 = vmatpush1.msra.mxu0 0.0
      %256 = vmatprep.subr.mxu0 0.0
      %257 = vmatpush1.msra.mxu0 0.0
      %258 = vmatprep.subr.mxu0 0.0
      %259 = vmatpush1.msra.mxu0 0.0
      %260 = vmatprep.subr.mxu0 0.0
      %261 = vmatpush1.msra.mxu0 0.0
      %262 = vmatprep.subr.mxu0 0.0
      %263 = vmatpush1.msra.mxu0 0.0
      %264 = vmatprep.subr.mxu0 0.0
      %265 = vmatpush1.msra.mxu0 0.0
      %266 = vmatprep.subr.mxu0 0.0
      %267 = vmatpush1.msra.mxu0 0.0
      %268 = vmatprep.subr.mxu0 0.0
      %269 = vmatpush1.msra.mxu0 0.0
      %270 = vmatprep.subr.mxu0 0.0
      %271 = vmatpush1.msra.mxu0 0.0
      %272 = vmatprep.subr.mxu0 0.0
      %273 = vmatpush1.msra.mxu0 0.0
      %274 = vmatprep.subr.mxu0 0.0
      %275 = vmatpush1.msra.mxu0 0.0
      %276 = vmatprep.subr.mxu0 0.0
      %277 = vmatpush1.msra.mxu0 0.0
      %278 = vmatprep.subr.mxu0 0.0
      %279 = vmatpush1.msra.mxu0 0.0
      %280 = vmatprep.subr.mxu0 0.0
      %281 = vmatpush1.msra.mxu0 0.0
      %282 = vmatprep.subr.mxu0 0.0
      %283 = vmatpush1.msra.mxu0 0.0
      %284 = vmatprep.subr.mxu0 0.0
      %285 = vmatpush1.msra.mxu0 0.0
      %286 = vmatprep.subr.mxu0 0.0
      %287 = vmatpush1.msra.mxu0 0.0
      %288 = vmatprep.subr.mxu0 0.0
      %289 = vmatpush1.msra.mxu0 0.0
      %290 = vmatprep.subr.mxu0 0.0
      %291 = vmatpush1.msra.mxu0 0.0
      %292 = vmatprep.subr.mxu0 0.0
      %293 = vmatpush1.msra.mxu0 0.0
      %294 = vmatprep.subr.mxu0 0.0
      %295 = vmatpush1.msra.mxu0 0.0
      %296 = vmatprep.mubr.f32.mxu0 0.0
      %297 = vmatmul.mubr.f32.gmra.mrb[0].mxu0 %v218
      %v298 = vpop.f32.mrb[0].mxu0
      %v299 = vadd.f32 %v194, %v298
      %v300 = vpop.f32.mrb[0].mxu0
      %v301 = vadd.f32 %v194, %v300
      %302 = vmatprep.mubr.f32.mxu0 0.0
      %303 = vmatmul.mubr.f32.gmra.mrb[0].mxu0 %v221
      %v304 = vpop.f32.mrb[0].mxu0
      %v305 = vadd.f32 %v199, %v304
      %v306 = vpop.f32.mrb[0].mxu0
      %v307 = vadd.f32 %v199, %v306
      %308 = vmatprep.mubr.f32.mxu0 0.0
      %309 = vmatmul.mubr.f32.gmra.mrb[0].mxu0 %v224
      %v310 = vpop.f32.mrb[0].mxu0
      %v311 = vadd.f32 %v204, %v310
      %v312 = vpop.f32.mrb[0].mxu0
      %v313 = vadd.f32 %v204, %v312
      %314 = vmatprep.mubr.f32.mxu0 0.0
      %315 = vmatmul.mubr.f32.gmra.mrb[0].mxu0 %v227
      %v316 = vpop.f32.mrb[0].mxu0
      %v317 = vadd.f32 %v209, %v316
      %v318 = vpop.f32.mrb[0].mxu0
      %v319 = vadd.f32 %v209, %v318
      %320 = vmatprep.mubr.f32.mxu0 0.0
      %321 = vmatmul.mubr.f32.gmra.mrb[0].mxu0 %v230
      %v322 = vpop.f32.mrb[0].mxu0
      %v323 = vadd.f32 %v214, %v322
      %v324 = vpop.f32.mrb[0].mxu0
      %v325 = vadd.f32 %v214, %v324
      %326 = vdwg.mxu0
      %v327 = vmax.f32 %v299, 0.0
      %v328 = vmax.f32 %v301, 0.0
      %v329 = vmax.f32 %v305, 0.0
      %v330 = vmax.f32 %v307, 0.0
      %v331 = vmax.f32 %v311, 0.0
      %v332 = vmax.f32 %v313, 0.0
      %v333 = vmax.f32 %v317, 0.0
      %v334 = vmax.f32 %v319, 0.0
      %v335 = vmax.f32 %v323, 0.0
      %v336 = vmax.f32 %v325, 0.0
      %s337 = scalar_lea.vmem %s1, 40
      %v338 = vld [vmem:[%s337] sm:$0xff]
      %v339 = vld [vmem:[%s337 + $0x8] sm:$0xff]
      %v340 = vld [vmem:[%s337 + $0x10] sm:$0xff]
      %v341 = vld [vmem:[%s337 + $0x18] sm:$0xff]
      %v342 = vld [vmem:[%s337 + $0x20] sm:$0xff]
      %s343 = scalar_lea.vmem %s2, 40
      %v344 = vld [vmem:[%s343] sm:$0xff]
      %v345 = vld [vmem:[%s343 + $0x8] sm:$0xff]
      %v346 = vld [vmem:[%s343 + $0x10] sm:$0xff]
      %v347 = vld [vmem:[%s343 + $0x18] sm:$0xff]
      %v348 = vld [vmem:[%s343 + $0x20] sm:$0xff]
      %350 = vset.pattern.permute.xlu0 0
      %351 = vperm.xlu0 %350, %v344
      %v352 = vpop.permute.xlu0 %351
      %355 = vset.pattern.permute.xlu0 0
      %356 = vperm.xlu0 %355, %v345
      %v357 = vpop.permute.xlu0 %356
      %360 = vset.pattern.permute.xlu0 0
      %361 = vperm.xlu0 %360, %v346
      %v362 = vpop.permute.xlu0 %361
      %365 = vset.pattern.permute.xlu0 0
      %366 = vperm.xlu0 %365, %v347
      %v367 = vpop.permute.xlu0 %366
      %370 = vset.pattern.permute.xlu0 0
      %371 = vperm.xlu0 %370, %v348
      %v372 = vpop.permute.xlu0 %371
      %v375 = vsel %vm216, %v338, 0
      %v378 = vsel %vm216, %v339, 0
      %v381 = vsel %vm216, %v340, 0
      %v384 = vsel %vm216, %v341, 0
      %v387 = vsel %vm216, %v342, 0
      %389 = vmatprep.subr.mxu0 %v328
      %390 = vmatpush1.msra.mxu0 %v327
      %391 = vmatprep.subr.mxu0 %v330
      %392 = vmatpush1.msra.mxu0 %v329
      %393 = vmatprep.subr.mxu0 %v332
      %394 = vmatpush1.msra.mxu0 %v331
      %395 = vmatprep.subr.mxu0 %v334
      %396 = vmatpush1.msra.mxu0 %v333
      %397 = vmatprep.subr.mxu0 %v336
      %398 = vmatpush1.msra.mxu0 %v335
      %399 = vmatprep.subr.mxu0 0.0
      %400 = vmatpush1.msra.mxu0 0.0
      %401 = vmatprep.subr.mxu0 0.0
      %402 = vmatpush1.msra.mxu0 0.0
      %403 = vmatprep.subr.mxu0 0.0
      %404 = vmatpush1.msra.mxu0 0.0
      %405 = vmatprep.subr.mxu0 0.0
      %406 = vmatpush1.msra.mxu0 0.0
      %407 = vmatprep.subr.mxu0 0.0
      %408 = vmatpush1.msra.mxu0 0.0
      %409 = vmatprep.subr.mxu0 0.0
      %410 = vmatpush1.msra.mxu0 0.0
      %411 = vmatprep.subr.mxu0 0.0
      %412 = vmatpush1.msra.mxu0 0.0
      %413 = vmatprep.subr.mxu0 0.0
      %414 = vmatpush1.msra.mxu0 0.0
      %415 = vmatprep.subr.mxu0 0.0
      %416 = vmatpush1.msra.mxu0 0.0
      %417 = vmatprep.subr.mxu0 0.0
      %418 = vmatpush1.msra.mxu0 0.0
      %419 = vmatprep.subr.mxu0 0.0
      %420 = vmatpush1.msra.mxu0 0.0
      %421 = vmatprep.subr.mxu0 0.0
      %422 = vmatpush1.msra.mxu0 0.0
      %423 = vmatprep.subr.mxu0 0.0
      %424 = vmatpush1.msra.mxu0 0.0
      %425 = vmatprep.subr.mxu0 0.0
      %426 = vmatpush1.msra.mxu0 0.0
      %427 = vmatprep.subr.mxu0 0.0
      %428 = vmatpush1.msra.mxu0 0.0
      %429 = vmatprep.subr.mxu0 0.0
      %430 = vmatpush1.msra.mxu0 0.0
      %431 = vmatprep.subr.mxu0 0.0
      %432 = vmatpush1.msra.mxu0 0.0
      %433 = vmatprep.subr.mxu0 0.0
      %434 = vmatpush1.msra.mxu0 0.0
      %435 = vmatprep.subr.mxu0 0.0
      %436 = vmatpush1.msra.mxu0 0.0
      %437 = vmatprep.subr.mxu0 0.0
      %438 = vmatpush1.msra.mxu0 0.0
      %439 = vmatprep.subr.mxu0 0.0
      %440 = vmatpush1.msra.mxu0 0.0
      %441 = vmatprep.subr.mxu0 0.0
      %442 = vmatpush1.msra.mxu0 0.0
      %443 = vmatprep.subr.mxu0 0.0
      %444 = vmatpush1.msra.mxu0 0.0
      %445 = vmatprep.subr.mxu0 0.0
      %446 = vmatpush1.msra.mxu0 0.0
      %447 = vmatprep.subr.mxu0 0.0
      %448 = vmatpush1.msra.mxu0 0.0
      %449 = vmatprep.subr.mxu0 0.0
      %450 = vmatpush1.msra.mxu0 0.0
      %451 = vmatprep.subr.mxu0 0.0
      %452 = vmatpush1.msra.mxu0 0.0
      %453 = vmatprep.mubr.f32.mxu0 0.0
      %454 = vmatmul.mubr.f32.gmra.mrb[0].mxu0 %v375
      %v455 = vpop.f32.mrb[0].mxu0
      %v456 = vadd.f32 %v352, %v455
      %v457 = vpop.f32.mrb[0].mxu0
      %v458 = vadd.f32 %v352, %v457
      %459 = vmatprep.mubr.f32.mxu0 0.0
      %460 = vmatmul.mubr.f32.gmra.mrb[0].mxu0 %v378
      %v461 = vpop.f32.mrb[0].mxu0
      %v462 = vadd.f32 %v357, %v461
      %v463 = vpop.f32.mrb[0].mxu0
      %v464 = vadd.f32 %v357, %v463
      %465 = vmatprep.mubr.f32.mxu0 0.0
      %466 = vmatmul.mubr.f32.gmra.mrb[0].mxu0 %v381
      %v467 = vpop.f32.mrb[0].mxu0
      %v468 = vadd.f32 %v362, %v467
      %v469 = vpop.f32.mrb[0].mxu0
      %v470 = vadd.f32 %v362, %v469
      %471 = vmatprep.mubr.f32.mxu0 0.0
      %472 = vmatmul.mubr.f32.gmra.mrb[0].mxu0 %v384
      %v473 = vpop.f32.mrb[0].mxu0
      %v474 = vadd.f32 %v367, %v473
      %v475 = vpop.f32.mrb[0].mxu0
      %v476 = vadd.f32 %v367, %v475
      %477 = vmatprep.mubr.f32.mxu0 0.0
      %478 = vmatmul.mubr.f32.gmra.mrb[0].mxu0 %v387
      %v479 = vpop.f32.mrb[0].mxu0
      %v480 = vadd.f32 %v372, %v479
      %v481 = vpop.f32.mrb[0].mxu0
      %v482 = vadd.f32 %v372, %v481
      %483 = vdwg.mxu0
      %v484 = vmax.f32 %v456, 0.0
      %v485 = vmax.f32 %v458, 0.0
      %v486 = vmax.f32 %v462, 0.0
      %v487 = vmax.f32 %v464, 0.0
      %v488 = vmax.f32 %v468, 0.0
      %v489 = vmax.f32 %v470, 0.0
      %v490 = vmax.f32 %v474, 0.0
      %v491 = vmax.f32 %v476, 0.0
      %v492 = vmax.f32 %v480, 0.0
      %v493 = vmax.f32 %v482, 0.0
      %s494 = scalar_lea.vmem %s1, 80
      %v495 = vld [vmem:[%s494] sm:$0xff]
      %v496 = vld [vmem:[%s494 + $0x8] sm:$0xff]
      %v497 = vld [vmem:[%s494 + $0x10] sm:$0xff]
      %v498 = vld [vmem:[%s494 + $0x18] sm:$0xff]
      %v499 = vld [vmem:[%s494 + $0x20] sm:$0xff]
      %s500 = scalar_lea.vmem %s2, 80
      %v501 = vld [vmem:[%s500] sm:$0xff]
      %v502 = vld [vmem:[%s500 + $0x8] sm:$0xff]
      %v503 = vld [vmem:[%s500 + $0x10] sm:$0xff]
      %v504 = vld [vmem:[%s500 + $0x18] sm:$0xff]
      %v505 = vld [vmem:[%s500 + $0x20] sm:$0xff]
      %507 = vset.pattern.permute.xlu0 0
      %508 = vperm.xlu0 %507, %v501
      %v509 = vpop.permute.xlu0 %508
      %512 = vset.pattern.permute.xlu0 0
      %513 = vperm.xlu0 %512, %v502
      %v514 = vpop.permute.xlu0 %513
      %517 = vset.pattern.permute.xlu0 0
      %518 = vperm.xlu0 %517, %v503
      %v519 = vpop.permute.xlu0 %518
      %522 = vset.pattern.permute.xlu0 0
      %523 = vperm.xlu0 %522, %v504
      %v524 = vpop.permute.xlu0 %523
      %527 = vset.pattern.permute.xlu0 0
      %528 = vperm.xlu0 %527, %v505
      %v529 = vpop.permute.xlu0 %528
      %v531 = vsel %vm216, %v495, 0
      %v534 = vsel %vm216, %v496, 0
      %v537 = vsel %vm216, %v497, 0
      %v540 = vsel %vm216, %v498, 0
      %v543 = vsel %vm216, %v499, 0
      %545 = vmatprep.subr.mxu0 %v485
      %546 = vmatpush1.msra.mxu0 %v484
      %547 = vmatprep.subr.mxu0 %v487
      %548 = vmatpush1.msra.mxu0 %v486
      %549 = vmatprep.subr.mxu0 %v489
      %550 = vmatpush1.msra.mxu0 %v488
      %551 = vmatprep.subr.mxu0 %v491
      %552 = vmatpush1.msra.mxu0 %v490
      %553 = vmatprep.subr.mxu0 %v493
      %554 = vmatpush1.msra.mxu0 %v492
      %555 = vmatprep.subr.mxu0 0.0
      %556 = vmatpush1.msra.mxu0 0.0
      %557 = vmatprep.subr.mxu0 0.0
      %558 = vmatpush1.msra.mxu0 0.0
      %559 = vmatprep.subr.mxu0 0.0
      %560 = vmatpush1.msra.mxu0 0.0
      %561 = vmatprep.subr.mxu0 0.0
      %562 = vmatpush1.msra.mxu0 0.0
      %563 = vmatprep.subr.mxu0 0.0
      %564 = vmatpush1.msra.mxu0 0.0
      %565 = vmatprep.subr.mxu0 0.0
      %566 = vmatpush1.msra.mxu0 0.0
      %567 = vmatprep.subr.mxu0 0.0
      %568 = vmatpush1.msra.mxu0 0.0
      %569 = vmatprep.subr.mxu0 0.0
      %570 = vmatpush1.msra.mxu0 0.0
      %571 = vmatprep.subr.mxu0 0.0
      %572 = vmatpush1.msra.mxu0 0.0
      %573 = vmatprep.subr.mxu0 0.0
      %574 = vmatpush1.msra.mxu0 0.0
      %575 = vmatprep.subr.mxu0 0.0
      %576 = vmatpush1.msra.mxu0 0.0
      %577 = vmatprep.subr.mxu0 0.0
      %578 = vmatpush1.msra.mxu0 0.0
      %579 = vmatprep.subr.mxu0 0.0
      %580 = vmatpush1.msra.mxu0 0.0
      %581 = vmatprep.subr.mxu0 0.0
      %582 = vmatpush1.msra.mxu0 0.0
      %583 = vmatprep.subr.mxu0 0.0
      %584 = vmatpush1.msra.mxu0 0.0
      %585 = vmatprep.subr.mxu0 0.0
      %586 = vmatpush1.msra.mxu0 0.0
      %587 = vmatprep.subr.mxu0 0.0
      %588 = vmatpush1.msra.mxu0 0.0
      %589 = vmatprep.subr.mxu0 0.0
      %590 = vmatpush1.msra.mxu0 0.0
      %591 = vmatprep.subr.mxu0 0.0
      %592 = vmatpush1.msra.mxu0 0.0
      %593 = vmatprep.subr.mxu0 0.0
      %594 = vmatpush1.msra.mxu0 0.0
      %595 = vmatprep.subr.mxu0 0.0
      %596 = vmatpush1.msra.mxu0 0.0
      %597 = vmatprep.subr.mxu0 0.0
      %598 = vmatpush1.msra.mxu0 0.0
      %599 = vmatprep.subr.mxu0 0.0
      %600 = vmatpush1.msra.mxu0 0.0
      %601 = vmatprep.subr.mxu0 0.0
      %602 = vmatpush1.msra.mxu0 0.0
      %603 = vmatprep.subr.mxu0 0.0
      %604 = vmatpush1.msra.mxu0 0.0
      %605 = vmatprep.subr.mxu0 0.0
      %606 = vmatpush1.msra.mxu0 0.0
      %607 = vmatprep.subr.mxu0 0.0
      %608 = vmatpush1.msra.mxu0 0.0
      %609 = vmatprep.mubr.f32.mxu0 0.0
      %610 = vmatmul.mubr.f32.gmra.mrb[0].mxu0 %v531
      %v611 = vpop.f32.mrb[0].mxu0
      %v612 = vadd.f32 %v509, %v611
      %v613 = vpop.f32.mrb[0].mxu0
      %v614 = vadd.f32 %v509, %v613
      %615 = vmatprep.mubr.f32.mxu0 0.0
      %616 = vmatmul.mubr.f32.gmra.mrb[0].mxu0 %v534
      %v617 = vpop.f32.mrb[0].mxu0
      %v618 = vadd.f32 %v514, %v617
      %v619 = vpop.f32.mrb[0].mxu0
      %v620 = vadd.f32 %v514, %v619
      %621 = vmatprep.mubr.f32.mxu0 0.0
      %622 = vmatmul.mubr.f32.gmra.mrb[0].mxu0 %v537
      %v623 = vpop.f32.mrb[0].mxu0
      %v624 = vadd.f32 %v519, %v623
      %v625 = vpop.f32.mrb[0].mxu0
      %v626 = vadd.f32 %v519, %v625
      %627 = vmatprep.mubr.f32.mxu0 0.0
      %628 = vmatmul.mubr.f32.gmra.mrb[0].mxu0 %v540
      %v629 = vpop.f32.mrb[0].mxu0
      %v630 = vadd.f32 %v524, %v629
      %v631 = vpop.f32.mrb[0].mxu0
      %v632 = vadd.f32 %v524, %v631
      %633 = vmatprep.mubr.f32.mxu0 0.0
      %634 = vmatmul.mubr.f32.gmra.mrb[0].mxu0 %v543
      %v635 = vpop.f32.mrb[0].mxu0
      %v636 = vpop.f32.mrb[0].mxu0
      %637 = vdwg.mxu0
      %v638 = vmax.f32 %v612, 0.0
      %v639 = vmax.f32 %v614, 0.0
      %v640 = vmax.f32 %v618, 0.0
      %v641 = vmax.f32 %v620, 0.0
      %v642 = vmax.f32 %v624, 0.0
      %v643 = vmax.f32 %v626, 0.0
      %v644 = vmax.f32 %v630, 0.0
      %v645 = vmax.f32 %v632, 0.0
      %646 = vst [vmem:[%s170] sm:$0xff] %v638
      %647 = vst [vmem:[%s170 + $0x8] sm:$0xff] %v639
      %648 = vst [vmem:[%s170 + $0x10] sm:$0xff] %v640
      %649 = vst [vmem:[%s170 + $0x18] sm:$0xff] %v641
      %650 = vst [vmem:[%s170 + $0x20] sm:$0xff] %v642
      %651 = vst [vmem:[%s170 + $0x28] sm:$0xff] %v643
      %652 = vst [vmem:[%s170 + $0x30] sm:$0xff] %v644
      %653 = vst [vmem:[%s170 + $0x38] sm:$0xff] %v645
      %p654 = scmp.lt.s32.totalorder %s14, 1
      %s655 = scalar_select %p654, %s14, 1
      %s656 = smul.addr %s655, 8
      %s657 = smul.addr %s656, 8
      %s658 = scalar_lea.vmem %s3, %s657
      // Predicated region
      $region33: #{pointnet2_msg_forward.18} parent=31 // pred_check
        %p659 = pneg %p100
      $region34: #{pointnet2_msg_forward.18} parent=31 // pred_check_branch
        %661 = sbr.rel (%p659) target = $region36
      $region35: #{pointnet2_msg_forward.18} parent=31 // pred_region
        _
      $region36: #{pointnet2_msg_forward.18} parent=31 // pred_fallthru
        _
    $region32: #{pointnet2_msg_forward.18} parent=5 // pred_fallthru
      _
    %p662 = scmp.le.s32.totalorder 2, %s9
    // Predicated region
    $region37: #{pointnet2_msg_forward.18} parent=5 // pred_check
      %p663 = pneg %p662
    $region38: #{pointnet2_msg_forward.18} parent=5 // pred_check_branch
      %665 = sbr.rel (%p663) target = $region40
    $region39: #{pointnet2_msg_forward.18} parent=5 // pred_region
      %s666 = ssub.s32 %s9, 2
      // Predicated region
      $region41: #{pointnet2_msg_forward.18} parent=39 // pred_check
        %p667 = pneg %p106
      $region42: #{pointnet2_msg_forward.18} parent=39 // pred_check_branch
        %669 = sbr.rel (%p667) target = $region44
      $region43: #{pointnet2_msg_forward.18} parent=39 // pred_region
        %p670 = scmp.lt.s32.totalorder %s15, 1
        %s671 = scalar_select %p670, %s15, 1
        %s672 = smul.addr %s671, 8
        %s673 = smul.addr %s672, 8
        %s674 = scalar_lea.vmem %s3, %s673
      $region44: #{pointnet2_msg_forward.18} parent=39 // pred_fallthru
        _
    $region40: #{pointnet2_msg_forward.18} parent=5 // pred_fallthru
      _
  $region6: #{pointnet2_msg_forward.18} parent=0 // loop_footer
    %s13 = sadd.s32 1, %s9
  $region7: #{pointnet2_msg_forward.18} parent=0 // loop_footer_branch
    %8 = sbr.rel target = $region3
  $region8: #{pointnet2_msg_forward.18} parent=0 // loop_exit
    _

// kernel: pointnet2_msg_forward.19
$region0: #{pointnet2_msg_forward.19}
  #allocation0 [shape = 'u32[]', space=smem, size = 0x4, offset = 0x4, fixed_abs, tag = 'smem constant byte address 0x4 - core index']
  #allocation1 [shape = 'u32[144,128]{1,0:T(1,128)}', space=vmem, size = 0x12000, scoped, tag = 'internal scratch']
  %s0 = inlined_call_operand.vmem [shape: f32[2,32,256], index: 0, kind: input, shape index: {}]
  %s1 = inlined_call_operand.vmem [shape: f32[3,64,64], index: 1, kind: input, shape index: {}]
  %s2 = inlined_call_operand.vmem [shape: f32[3,64,1], index: 2, kind: input, shape index: {}]
  %s3 = inlined_call_operand.vmem [shape: f32[2,6,256], index: 3, kind: output, shape index: {}]
  %s4 = sld [smem:[#allocation0]]
  $region45: #{pointnet2_msg_forward.19} parent=0
    _
  %s6 = ssub.s32 1, %s4
  %s7 = scalar_select 0, %s6, %s4
  loop: start=0, step=1, limit=4
  $region2: #{pointnet2_msg_forward.19} parent=0 // loop_pre_header
    _
  $region3: #{pointnet2_msg_forward.19} parent=0 // loop_header
    %s9 = sphi 0, %s13
    %p10 = scmp.ge.s32.totalorder %s9, 4
    %s19 = sphi 0, %s21
    %s22 = sphi 0, %s19
    %s23 = sphi 0, %s22
    %s39 = sphi 0, %s23
    %s43 = sphi 0, %s43
    %s45 = sphi 0, %s43
    %s46 = sphi 0, %s45
    %s60 = sphi 0, %s46
    %s64 = sphi 0, %s64
    %s66 = sphi 0, %s64
    %s67 = sphi 0, %s66
    %s81 = sphi 0, %s67
    %s87 = sphi 0, %s89
    %s90 = sphi 0, %s87
    %s91 = sphi 0, %s90
    %s107 = sphi 0, %s91
  $region4: #{pointnet2_msg_forward.19} parent=0 // loop_header_branch
    %12 = sbr.rel (%p10) target = $region8
  $region5: #{pointnet2_msg_forward.19} parent=0 // loop_body
    %s14 = ssub.s32 %s9, 1
    %s15 = ssub.s32 %s9, 2
    %s16 = sadd.s32 %s9, 1
    %s17 = ssub.s32 %s9, %s16
    %p18 = scmp.eq.s32.totalorder %s17, 0
    %s20 = sadd.s32 %s19, 1
    %s21 = scalar_select %p18, %s19, %s20
    %p24 = pneg %p18
    %p25 = scmp.eq.s32.totalorder %s9, 1
    %p26 = por %p24, %p25
    %p27 = scmp.ne.s32.totalorder %s19, %s22
    %p28 = scmp.eq.s32.totalorder %s9, 0
    %p29 = por %p27, %p28
    %p30 = scmp.ne.s32.totalorder %s19, %s22
    %p31 = scmp.eq.s32.totalorder %s14, 1
    %p32 = por %p30, %p31
    %p33 = scmp.ne.s32.totalorder %s22, %s23
    %p34 = scmp.eq.s32.totalorder %s14, 0
    %p35 = por %p33, %p34
    %p36 = scmp.ne.s32.totalorder %s22, %s23
    %p37 = scmp.eq.s32.totalorder %s15, 1
    %p38 = por %p36, %p37
    %p40 = scmp.ne.s32.totalorder %s23, %s39
    %p41 = scmp.eq.s32.totalorder %s15, 0
    %p42 = por %p40, %p41
    %s44 = sadd.s32 %s43, 1
    %p47 = scmp.eq.s32.totalorder %s9, 1
    %p48 = scmp.ne.s32.totalorder %s43, %s45
    %p49 = scmp.eq.s32.totalorder %s9, 0
    %p50 = por %p48, %p49
    %p51 = scmp.ne.s32.totalorder %s43, %s45
    %p52 = scmp.eq.s32.totalorder %s14, 1
    %p53 = por %p51, %p52
    %p54 = scmp.ne.s32.totalorder %s45, %s46
    %p55 = scmp.eq.s32.totalorder %s14, 0
    %p56 = por %p54, %p55
    %p57 = scmp.ne.s32.totalorder %s45, %s46
    %p58 = scmp.eq.s32.totalorder %s15, 1
    %p59 = por %p57, %p58
    %p61 = scmp.ne.s32.totalorder %s46, %s60
    %p62 = scmp.eq.s32.totalorder %s15, 0
    %p63 = por %p61, %p62
    %s65 = sadd.s32 %s64, 1
    %p68 = scmp.eq.s32.totalorder %s9, 1
    %p69 = scmp.ne.s32.totalorder %s64, %s66
    %p70 = scmp.eq.s32.totalorder %s9, 0
    %p71 = por %p69, %p70
    %p72 = scmp.ne.s32.totalorder %s64, %s66
    %p73 = scmp.eq.s32.totalorder %s14, 1
    %p74 = por %p72, %p73
    %p75 = scmp.ne.s32.totalorder %s66, %s67
    %p76 = scmp.eq.s32.totalorder %s14, 0
    %p77 = por %p75, %p76
    %p78 = scmp.ne.s32.totalorder %s66, %s67
    %p79 = scmp.eq.s32.totalorder %s15, 1
    %p80 = por %p78, %p79
    %p82 = scmp.ne.s32.totalorder %s67, %s81
    %p83 = scmp.eq.s32.totalorder %s15, 0
    %p84 = por %p82, %p83
    %s85 = ssub.s32 %s9, %s16
    %p86 = scmp.eq.s32.totalorder %s85, 0
    %s88 = sadd.s32 %s87, 1
    %s89 = scalar_select %p86, %s87, %s88
    %p92 = pneg %p86
    %p93 = scmp.eq.s32.totalorder %s9, 1
    %p94 = por %p92, %p93
    %p95 = scmp.ne.s32.totalorder %s87, %s90
    %p96 = scmp.eq.s32.totalorder %s9, 0
    %p97 = por %p95, %p96
    %p98 = scmp.ne.s32.totalorder %s87, %s90
    %p99 = scmp.eq.s32.totalorder %s14, 1
    %p100 = por %p98, %p99
    %p101 = scmp.ne.s32.totalorder %s90, %s91
    %p102 = scmp.eq.s32.totalorder %s14, 0
    %p103 = por %p101, %p102
    %p104 = scmp.ne.s32.totalorder %s90, %s91
    %p105 = scmp.eq.s32.totalorder %s15, 1
    %p106 = por %p104, %p105
    %p108 = scmp.ne.s32.totalorder %s91, %s107
    %p109 = scmp.eq.s32.totalorder %s15, 0
    %p110 = por %p108, %p109
    %p111 = scmp.le.s32.totalorder 1, %s9
    %p112 = scmp.lt.s32.totalorder %s9, 3
    %p113 = pnand %p111, %p112
    %p114 = pneg %p113
    // Predicated region
    $region9: #{pointnet2_msg_forward.19} parent=5 // pred_check
      _
    $region10: #{pointnet2_msg_forward.19} parent=5 // pred_check_branch
      %116 = sbr.rel (%p113) target = $region12
    $region11: #{pointnet2_msg_forward.19} parent=5 // pred_region
      %s117 = ssub.s32 %s9, 1
      // Predicated region
      $region13: #{pointnet2_msg_forward.19} parent=11 // pred_check
        %p118 = pneg %p56
      $region14: #{pointnet2_msg_forward.19} parent=11 // pred_check_branch
        %120 = sbr.rel (%p118) target = $region16
      $region15: #{pointnet2_msg_forward.19} parent=11 // pred_region
        _
      $region16: #{pointnet2_msg_forward.19} parent=11 // pred_fallthru
        _
      // Predicated region
      $region17: #{pointnet2_msg_forward.19} parent=11 // pred_check
        %p121 = pneg %p77
      $region18: #{pointnet2_msg_forward.19} parent=11 // pred_check_branch
        %123 = sbr.rel (%p121) target = $region20
      $region19: #{pointnet2_msg_forward.19} parent=11 // pred_region
        _
      $region20: #{pointnet2_msg_forward.19} parent=11 // pred_fallthru
        _
    $region12: #{pointnet2_msg_forward.19} parent=5 // pred_fallthru
      _
    %p124 = scmp.lt.s32.totalorder %s9, 2
    // Predicated region
    $region21: #{pointnet2_msg_forward.19} parent=5 // pred_check
      %p125 = pneg %p124
    $region22: #{pointnet2_msg_forward.19} parent=5 // pred_check_branch
      %127 = sbr.rel (%p125) target = $region24
    $region23: #{pointnet2_msg_forward.19} parent=5 // pred_region
      // Predicated region
      $region25: #{pointnet2_msg_forward.19} parent=23 // pred_check
        %p128 = pneg %p29
      $region26: #{pointnet2_msg_forward.19} parent=23 // pred_check_branch
        %130 = sbr.rel (%p128) target = $region28
      $region27: #{pointnet2_msg_forward.19} parent=23 // pred_region
        %p131 = scmp.lt.s32.totalorder %s9, 1
        %s132 = scalar_select %p131, %s9, 1
        %s133 = smul.addr %s132, 8
        %s134 = smul.addr %s133, 8
        %s135 = scalar_lea.vmem %s0, %s134
      $region28: #{pointnet2_msg_forward.19} parent=23 // pred_fallthru
        _
    $region24: #{pointnet2_msg_forward.19} parent=5 // pred_fallthru
      _
    %p136 = scmp.le.s32.totalorder 1, %s9
    %p137 = scmp.lt.s32.totalorder %s9, 3
    %p138 = pnand %p136, %p137
    %p139 = pneg %p138
    // Predicated region
    $region29: #{pointnet2_msg_forward.19} parent=5 // pred_check
      _
    $region30: #{pointnet2_msg_forward.19} parent=5 // pred_check_branch
      %141 = sbr.rel (%p138) target = $region32
    $region31: #{pointnet2_msg_forward.19} parent=5 // pred_region
      %s142 = ssub.s32 %s9, 1
      %p143 = scmp.lt.s32.totalorder %s14, 1
      %s144 = scalar_select %p143, %s14, 1
      %s145 = smul.addr %s144, 8
      %s146 = smul.addr %s145, 8
      %s147 = scalar_lea.vmem %s0, %s146
      %p148 = pneg %p35
      %p149 = pneg %p32
      %p150 = pneg %p56
      %p151 = pneg %p53
      %p152 = pneg %p77
      %p153 = pneg %p74
      %p154 = pneg %p103
      %p155 = pneg %p100
      %p156 = scmp.lt.s32.totalorder %s14, 1
      %s157 = scalar_select %p156, %s14, 1
      %s158 = smul.addr %s157, 2
      %s159 = smul.addr %s158, 8
      %s160 = scalar_lea.vmem %s3, %s159
      %p161 = scmp.lt.s32.totalorder %s14, 1
      %s162 = scalar_select %p161, %s14, 1
      %s163 = smul.addr %s162, 8
      %s164 = smul.addr %s163, 8
      %s165 = scalar_lea.vmem %s0, %s164
      %p166 = scmp.lt.s32.totalorder %s14, 1
      %s167 = scalar_select %p166, %s14, 1
      %s168 = smul.addr %s167, 2
      %s169 = smul.addr %s168, 8
      %s170 = scalar_lea.vmem %s3, %s169
      %v171 = vld [vmem:[%s165] sm:$0xff]
      %v172 = vld [vmem:[%s165 + $0x8] sm:$0xff]
      %v173 = vld [vmem:[%s165 + $0x10] sm:$0xff]
      %v174 = vld [vmem:[%s165 + $0x18] sm:$0xff]
      %v175 = vld [vmem:[%s165 + $0x20] sm:$0xff]
      %v176 = vld [vmem:[%s165 + $0x28] sm:$0xff]
      %v177 = vld [vmem:[%s165 + $0x30] sm:$0xff]
      %v178 = vld [vmem:[%s165 + $0x38] sm:$0xff]
      %v179 = vld [vmem:[%s1] sm:$0xff]
      %v180 = vld [vmem:[%s1 + $0x8] sm:$0xff]
      %v181 = vld [vmem:[%s1 + $0x10] sm:$0xff]
      %v182 = vld [vmem:[%s1 + $0x18] sm:$0xff]
      %v183 = vld [vmem:[%s1 + $0x20] sm:$0xff]
      %v184 = vld [vmem:[%s1 + $0x28] sm:$0xff]
      %v185 = vld [vmem:[%s1 + $0x30] sm:$0xff]
      %v186 = vld [vmem:[%s1 + $0x38] sm:$0xff]
      %v187 = vld [vmem:[%s2] sm:$0xff]
      %v188 = vld [vmem:[%s2 + $0x8] sm:$0xff]
      %v189 = vld [vmem:[%s2 + $0x10] sm:$0xff]
      %v190 = vld [vmem:[%s2 + $0x18] sm:$0xff]
      %v191 = vld [vmem:[%s2 + $0x20] sm:$0xff]
      %v192 = vld [vmem:[%s2 + $0x28] sm:$0xff]
      %v193 = vld [vmem:[%s2 + $0x30] sm:$0xff]
      %v194 = vld [vmem:[%s2 + $0x38] sm:$0xff]
      %196 = vset.pattern.permute.xlu0 0
      %197 = vperm.xlu0 %196, %v187
      %v198 = vpop.permute.xlu0 %197
      %201 = vset.pattern.permute.xlu0 0
      %202 = vperm.xlu0 %201, %v188
      %v203 = vpop.permute.xlu0 %202
      %206 = vset.pattern.permute.xlu0 0
      %207 = vperm.xlu0 %206, %v189
      %v208 = vpop.permute.xlu0 %207
      %211 = vset.pattern.permute.xlu0 0
      %212 = vperm.xlu0 %211, %v190
      %v213 = vpop.permute.xlu0 %212
      %216 = vset.pattern.permute.xlu0 0
      %217 = vperm.xlu0 %216, %v191
      %v218 = vpop.permute.xlu0 %217
      %221 = vset.pattern.permute.xlu0 0
      %222 = vperm.xlu0 %221, %v192
      %v223 = vpop.permute.xlu0 %222
      %226 = vset.pattern.permute.xlu0 0
      %227 = vperm.xlu0 %226, %v193
      %v228 = vpop.permute.xlu0 %227
      %231 = vset.pattern.permute.xlu0 0
      %232 = vperm.xlu0 %231, %v194
      %v233 = vpop.permute.xlu0 %232
      %vm235 = vcmask 261120
      %v237 = vsel %vm235, %v179, 0
      %v240 = vsel %vm235, %v180, 0
      %v243 = vsel %vm235, %v181, 0
      %v246 = vsel %vm235, %v182, 0
      %v249 = vsel %vm235, %v183, 0
      %v252 = vsel %vm235, %v184, 0
      %v255 = vsel %vm235, %v185, 0
      %v258 = vsel %vm235, %v186, 0
      %260 = vmatprep.subr.mxu0 %v172
      %261 = vmatpush1.msra.mxu0 %v171
      %262 = vmatprep.subr.mxu0 %v174
      %263 = vmatpush1.msra.mxu0 %v173
      %264 = vmatprep.subr.mxu0 %v176
      %265 = vmatpush1.msra.mxu0 %v175
      %266 = vmatprep.subr.mxu0 %v178
      %267 = vmatpush1.msra.mxu0 %v177
      %268 = vmatprep.subr.mxu0 0.0
      %269 = vmatpush1.msra.mxu0 0.0
      %270 = vmatprep.subr.mxu0 0.0
      %271 = vmatpush1.msra.mxu0 0.0
      %272 = vmatprep.subr.mxu0 0.0
      %273 = vmatpush1.msra.mxu0 0.0
      %274 = vmatprep.subr.mxu0 0.0
      %275 = vmatpush1.msra.mxu0 0.0
      %276 = vmatprep.subr.mxu0 0.0
      %277 = vmatpush1.msra.mxu0 0.0
      %278 = vmatprep.subr.mxu0 0.0
      %279 = vmatpush1.msra.mxu0 0.0
      %280 = vmatprep.subr.mxu0 0.0
      %281 = vmatpush1.msra.mxu0 0.0
      %282 = vmatprep.subr.mxu0 0.0
      %283 = vmatpush1.msra.mxu0 0.0
      %284 = vmatprep.subr.mxu0 0.0
      %285 = vmatpush1.msra.mxu0 0.0
      %286 = vmatprep.subr.mxu0 0.0
      %287 = vmatpush1.msra.mxu0 0.0
      %288 = vmatprep.subr.mxu0 0.0
      %289 = vmatpush1.msra.mxu0 0.0
      %290 = vmatprep.subr.mxu0 0.0
      %291 = vmatpush1.msra.mxu0 0.0
      %292 = vmatprep.subr.mxu0 0.0
      %293 = vmatpush1.msra.mxu0 0.0
      %294 = vmatprep.subr.mxu0 0.0
      %295 = vmatpush1.msra.mxu0 0.0
      %296 = vmatprep.subr.mxu0 0.0
      %297 = vmatpush1.msra.mxu0 0.0
      %298 = vmatprep.subr.mxu0 0.0
      %299 = vmatpush1.msra.mxu0 0.0
      %300 = vmatprep.subr.mxu0 0.0
      %301 = vmatpush1.msra.mxu0 0.0
      %302 = vmatprep.subr.mxu0 0.0
      %303 = vmatpush1.msra.mxu0 0.0
      %304 = vmatprep.subr.mxu0 0.0
      %305 = vmatpush1.msra.mxu0 0.0
      %306 = vmatprep.subr.mxu0 0.0
      %307 = vmatpush1.msra.mxu0 0.0
      %308 = vmatprep.subr.mxu0 0.0
      %309 = vmatpush1.msra.mxu0 0.0
      %310 = vmatprep.subr.mxu0 0.0
      %311 = vmatpush1.msra.mxu0 0.0
      %312 = vmatprep.subr.mxu0 0.0
      %313 = vmatpush1.msra.mxu0 0.0
      %314 = vmatprep.subr.mxu0 0.0
      %315 = vmatpush1.msra.mxu0 0.0
      %316 = vmatprep.subr.mxu0 0.0
      %317 = vmatpush1.msra.mxu0 0.0
      %318 = vmatprep.subr.mxu0 0.0
      %319 = vmatpush1.msra.mxu0 0.0
      %320 = vmatprep.subr.mxu0 0.0
      %321 = vmatpush1.msra.mxu0 0.0
      %322 = vmatprep.subr.mxu0 0.0
      %323 = vmatpush1.msra.mxu0 0.0
      %324 = vmatprep.mubr.f32.mxu0 0.0
      %325 = vmatmul.mubr.f32.gmra.mrb[0].mxu0 %v237
      %v326 = vpop.f32.mrb[0].mxu0
      %v327 = vadd.f32 %v198, %v326
      %v328 = vpop.f32.mrb[0].mxu0
      %v329 = vadd.f32 %v198, %v328
      %330 = vmatprep.mubr.f32.mxu0 0.0
      %331 = vmatmul.mubr.f32.gmra.mrb[0].mxu0 %v240
      %v332 = vpop.f32.mrb[0].mxu0
      %v333 = vadd.f32 %v203, %v332
      %v334 = vpop.f32.mrb[0].mxu0
      %v335 = vadd.f32 %v203, %v334
      %336 = vmatprep.mubr.f32.mxu0 0.0
      %337 = vmatmul.mubr.f32.gmra.mrb[0].mxu0 %v243
      %v338 = vpop.f32.mrb[0].mxu0
      %v339 = vadd.f32 %v208, %v338
      %v340 = vpop.f32.mrb[0].mxu0
      %v341 = vadd.f32 %v208, %v340
      %342 = vmatprep.mubr.f32.mxu0 0.0
      %343 = vmatmul.mubr.f32.gmra.mrb[0].mxu0 %v246
      %v344 = vpop.f32.mrb[0].mxu0
      %v345 = vadd.f32 %v213, %v344
      %v346 = vpop.f32.mrb[0].mxu0
      %v347 = vadd.f32 %v213, %v346
      %348 = vmatprep.mubr.f32.mxu0 0.0
      %349 = vmatmul.mubr.f32.gmra.mrb[0].mxu0 %v249
      %v350 = vpop.f32.mrb[0].mxu0
      %v351 = vadd.f32 %v218, %v350
      %v352 = vpop.f32.mrb[0].mxu0
      %v353 = vadd.f32 %v218, %v352
      %354 = vmatprep.mubr.f32.mxu0 0.0
      %355 = vmatmul.mubr.f32.gmra.mrb[0].mxu0 %v252
      %v356 = vpop.f32.mrb[0].mxu0
      %v357 = vadd.f32 %v223, %v356
      %v358 = vpop.f32.mrb[0].mxu0
      %v359 = vadd.f32 %v223, %v358
      %360 = vmatprep.mubr.f32.mxu0 0.0
      %361 = vmatmul.mubr.f32.gmra.mrb[0].mxu0 %v255
      %v362 = vpop.f32.mrb[0].mxu0
      %v363 = vadd.f32 %v228, %v362
      %v364 = vpop.f32.mrb[0].mxu0
      %v365 = vadd.f32 %v228, %v364
      %366 = vmatprep.mubr.f32.mxu0 0.0
      %367 = vmatmul.mubr.f32.gmra.mrb[0].mxu0 %v258
      %v368 = vpop.f32.mrb[0].mxu0
      %v369 = vadd.f32 %v233, %v368
      %v370 = vpop.f32.mrb[0].mxu0
      %v371 = vadd.f32 %v233, %v370
      %372 = vdwg.mxu0
      %v373 = vmax.f32 %v327, 0.0
      %v374 = vmax.f32 %v329, 0.0
      %v375 = vmax.f32 %v333, 0.0
      %v376 = vmax.f32 %v335, 0.0
      %v377 = vmax.f32 %v339, 0.0
      %v378 = vmax.f32 %v341, 0.0
      %v379 = vmax.f32 %v345, 0.0
      %v380 = vmax.f32 %v347, 0.0
      %v381 = vmax.f32 %v351, 0.0
      %v382 = vmax.f32 %v353, 0.0
      %v383 = vmax.f32 %v357, 0.0
      %v384 = vmax.f32 %v359, 0.0
      %v385 = vmax.f32 %v363, 0.0
      %v386 = vmax.f32 %v365, 0.0
      %v387 = vmax.f32 %v369, 0.0
      %v388 = vmax.f32 %v371, 0.0
      %s389 = scalar_lea.vmem %s1, 64
      %v390 = vld [vmem:[%s389] sm:$0xff]
      %v391 = vld [vmem:[%s389 + $0x8] sm:$0xff]
      %v392 = vld [vmem:[%s389 + $0x10] sm:$0xff]
      %v393 = vld [vmem:[%s389 + $0x18] sm:$0xff]
      %v394 = vld [vmem:[%s389 + $0x20] sm:$0xff]
      %v395 = vld [vmem:[%s389 + $0x28] sm:$0xff]
      %v396 = vld [vmem:[%s389 + $0x30] sm:$0xff]
      %v397 = vld [vmem:[%s389 + $0x38] sm:$0xff]
      %s398 = scalar_lea.vmem %s2, 64
      %v399 = vld [vmem:[%s398] sm:$0xff]
      %v400 = vld [vmem:[%s398 + $0x8] sm:$0xff]
      %v401 = vld [vmem:[%s398 + $0x10] sm:$0xff]
      %v402 = vld [vmem:[%s398 + $0x18] sm:$0xff]
      %v403 = vld [vmem:[%s398 + $0x20] sm:$0xff]
      %v404 = vld [vmem:[%s398 + $0x28] sm:$0xff]
      %v405 = vld [vmem:[%s398 + $0x30] sm:$0xff]
      %v406 = vld [vmem:[%s398 + $0x38] sm:$0xff]
      %408 = vset.pattern.permute.xlu0 0
      %409 = vperm.xlu0 %408, %v399
      %v410 = vpop.permute.xlu0 %409
      %413 = vset.pattern.permute.xlu0 0
      %414 = vperm.xlu0 %413, %v400
      %v415 = vpop.permute.xlu0 %414
      %418 = vset.pattern.permute.xlu0 0
      %419 = vperm.xlu0 %418, %v401
      %v420 = vpop.permute.xlu0 %419
      %423 = vset.pattern.permute.xlu0 0
      %424 = vperm.xlu0 %423, %v402
      %v425 = vpop.permute.xlu0 %424
      %428 = vset.pattern.permute.xlu0 0
      %429 = vperm.xlu0 %428, %v403
      %v430 = vpop.permute.xlu0 %429
      %433 = vset.pattern.permute.xlu0 0
      %434 = vperm.xlu0 %433, %v404
      %v435 = vpop.permute.xlu0 %434
      %438 = vset.pattern.permute.xlu0 0
      %439 = vperm.xlu0 %438, %v405
      %v440 = vpop.permute.xlu0 %439
      %443 = vset.pattern.permute.xlu0 0
      %444 = vperm.xlu0 %443, %v406
      %v445 = vpop.permute.xlu0 %444
      %vm447 = vcmask 523264
      %v449 = vsel %vm447, %v390, 0
      %v452 = vsel %vm447, %v391, 0
      %v455 = vsel %vm447, %v392, 0
      %v458 = vsel %vm447, %v393, 0
      %v461 = vsel %vm447, %v394, 0
      %v464 = vsel %vm447, %v395, 0
      %v467 = vsel %vm447, %v396, 0
      %v470 = vsel %vm447, %v397, 0
      %472 = vmatprep.subr.mxu0 %v374
      %473 = vmatpush1.msra.mxu0 %v373
      %474 = vmatprep.subr.mxu0 %v376
      %475 = vmatpush1.msra.mxu0 %v375
      %476 = vmatprep.subr.mxu0 %v378
      %477 = vmatpush1.msra.mxu0 %v377
      %478 = vmatprep.subr.mxu0 %v380
      %479 = vmatpush1.msra.mxu0 %v379
      %480 = vmatprep.subr.mxu0 %v382
      %481 = vmatpush1.msra.mxu0 %v381
      %482 = vmatprep.subr.mxu0 %v384
      %483 = vmatpush1.msra.mxu0 %v383
      %484 = vmatprep.subr.mxu0 %v386
      %485 = vmatpush1.msra.mxu0 %v385
      %486 = vmatprep.subr.mxu0 %v388
      %487 = vmatpush1.msra.mxu0 %v387
      %488 = vmatprep.subr.mxu0 0.0
      %489 = vmatpush1.msra.mxu0 0.0
      %490 = vmatprep.subr.mxu0 0.0
      %491 = vmatpush1.msra.mxu0 0.0
      %492 = vmatprep.subr.mxu0 0.0
      %493 = vmatpush1.msra.mxu0 0.0
      %494 = vmatprep.subr.mxu0 0.0
      %495 = vmatpush1.msra.mxu0 0.0
      %496 = vmatprep.subr.mxu0 0.0
      %497 = vmatpush1.msra.mxu0 0.0
      %498 = vmatprep.subr.mxu0 0.0
      %499 = vmatpush1.msra.mxu0 0.0
      %500 = vmatprep.subr.mxu0 0.0
      %501 = vmatpush1.msra.mxu0 0.0
      %502 = vmatprep.subr.mxu0 0.0
      %503 = vmatpush1.msra.mxu0 0.0
      %504 = vmatprep.subr.mxu0 0.0
      %505 = vmatpush1.msra.mxu0 0.0
      %506 = vmatprep.subr.mxu0 0.0
      %507 = vmatpush1.msra.mxu0 0.0
      %508 = vmatprep.subr.mxu0 0.0
      %509 = vmatpush1.msra.mxu0 0.0
      %510 = vmatprep.subr.mxu0 0.0
      %511 = vmatpush1.msra.mxu0 0.0
      %512 = vmatprep.subr.mxu0 0.0
      %513 = vmatpush1.msra.mxu0 0.0
      %514 = vmatprep.subr.mxu0 0.0
      %515 = vmatpush1.msra.mxu0 0.0
      %516 = vmatprep.subr.mxu0 0.0
      %517 = vmatpush1.msra.mxu0 0.0
      %518 = vmatprep.subr.mxu0 0.0
      %519 = vmatpush1.msra.mxu0 0.0
      %520 = vmatprep.subr.mxu0 0.0
      %521 = vmatpush1.msra.mxu0 0.0
      %522 = vmatprep.subr.mxu0 0.0
      %523 = vmatpush1.msra.mxu0 0.0
      %524 = vmatprep.subr.mxu0 0.0
      %525 = vmatpush1.msra.mxu0 0.0
      %526 = vmatprep.subr.mxu0 0.0
      %527 = vmatpush1.msra.mxu0 0.0
      %528 = vmatprep.subr.mxu0 0.0
      %529 = vmatpush1.msra.mxu0 0.0
      %530 = vmatprep.subr.mxu0 0.0
      %531 = vmatpush1.msra.mxu0 0.0
      %532 = vmatprep.subr.mxu0 0.0
      %533 = vmatpush1.msra.mxu0 0.0
      %534 = vmatprep.subr.mxu0 0.0
      %535 = vmatpush1.msra.mxu0 0.0
      %536 = vmatprep.mubr.f32.mxu0 0.0
      %537 = vmatmul.mubr.f32.gmra.mrb[0].mxu0 %v449
      %v538 = vpop.f32.mrb[0].mxu0
      %v539 = vadd.f32 %v410, %v538
      %v540 = vpop.f32.mrb[0].mxu0
      %v541 = vadd.f32 %v410, %v540
      %542 = vmatprep.mubr.f32.mxu0 0.0
      %543 = vmatmul.mubr.f32.gmra.mrb[0].mxu0 %v452
      %v544 = vpop.f32.mrb[0].mxu0
      %v545 = vadd.f32 %v415, %v544
      %v546 = vpop.f32.mrb[0].mxu0
      %v547 = vadd.f32 %v415, %v546
      %548 = vmatprep.mubr.f32.mxu0 0.0
      %549 = vmatmul.mubr.f32.gmra.mrb[0].mxu0 %v455
      %v550 = vpop.f32.mrb[0].mxu0
      %v551 = vadd.f32 %v420, %v550
      %v552 = vpop.f32.mrb[0].mxu0
      %v553 = vadd.f32 %v420, %v552
      %554 = vmatprep.mubr.f32.mxu0 0.0
      %555 = vmatmul.mubr.f32.gmra.mrb[0].mxu0 %v458
      %v556 = vpop.f32.mrb[0].mxu0
      %v557 = vadd.f32 %v425, %v556
      %v558 = vpop.f32.mrb[0].mxu0
      %v559 = vadd.f32 %v425, %v558
      %560 = vmatprep.mubr.f32.mxu0 0.0
      %561 = vmatmul.mubr.f32.gmra.mrb[0].mxu0 %v461
      %v562 = vpop.f32.mrb[0].mxu0
      %v563 = vadd.f32 %v430, %v562
      %v564 = vpop.f32.mrb[0].mxu0
      %v565 = vadd.f32 %v430, %v564
      %566 = vmatprep.mubr.f32.mxu0 0.0
      %567 = vmatmul.mubr.f32.gmra.mrb[0].mxu0 %v464
      %v568 = vpop.f32.mrb[0].mxu0
      %v569 = vadd.f32 %v435, %v568
      %v570 = vpop.f32.mrb[0].mxu0
      %v571 = vadd.f32 %v435, %v570
      %572 = vmatprep.mubr.f32.mxu0 0.0
      %573 = vmatmul.mubr.f32.gmra.mrb[0].mxu0 %v467
      %v574 = vpop.f32.mrb[0].mxu0
      %v575 = vadd.f32 %v440, %v574
      %v576 = vpop.f32.mrb[0].mxu0
      %v577 = vadd.f32 %v440, %v576
      %578 = vmatprep.mubr.f32.mxu0 0.0
      %579 = vmatmul.mubr.f32.gmra.mrb[0].mxu0 %v470
      %v580 = vpop.f32.mrb[0].mxu0
      %v581 = vadd.f32 %v445, %v580
      %v582 = vpop.f32.mrb[0].mxu0
      %v583 = vadd.f32 %v445, %v582
      %584 = vdwg.mxu0
      %v585 = vmax.f32 %v539, 0.0
      %v586 = vmax.f32 %v541, 0.0
      %v587 = vmax.f32 %v545, 0.0
      %v588 = vmax.f32 %v547, 0.0
      %v589 = vmax.f32 %v551, 0.0
      %v590 = vmax.f32 %v553, 0.0
      %v591 = vmax.f32 %v557, 0.0
      %v592 = vmax.f32 %v559, 0.0
      %v593 = vmax.f32 %v563, 0.0
      %v594 = vmax.f32 %v565, 0.0
      %v595 = vmax.f32 %v569, 0.0
      %v596 = vmax.f32 %v571, 0.0
      %v597 = vmax.f32 %v575, 0.0
      %v598 = vmax.f32 %v577, 0.0
      %v599 = vmax.f32 %v581, 0.0
      %v600 = vmax.f32 %v583, 0.0
      %s601 = scalar_lea.vmem %s1, 128
      %v602 = vld [vmem:[%s601] sm:$0xff]
      %v603 = vld [vmem:[%s601 + $0x8] sm:$0xff]
      %v604 = vld [vmem:[%s601 + $0x10] sm:$0xff]
      %v605 = vld [vmem:[%s601 + $0x18] sm:$0xff]
      %v606 = vld [vmem:[%s601 + $0x20] sm:$0xff]
      %v607 = vld [vmem:[%s601 + $0x28] sm:$0xff]
      %v608 = vld [vmem:[%s601 + $0x30] sm:$0xff]
      %v609 = vld [vmem:[%s601 + $0x38] sm:$0xff]
      %s610 = scalar_lea.vmem %s2, 128
      %v611 = vld [vmem:[%s610] sm:$0xff]
      %v612 = vld [vmem:[%s610 + $0x8] sm:$0xff]
      %v613 = vld [vmem:[%s610 + $0x10] sm:$0xff]
      %v614 = vld [vmem:[%s610 + $0x18] sm:$0xff]
      %v615 = vld [vmem:[%s610 + $0x20] sm:$0xff]
      %v616 = vld [vmem:[%s610 + $0x28] sm:$0xff]
      %v617 = vld [vmem:[%s610 + $0x30] sm:$0xff]
      %v618 = vld [vmem:[%s610 + $0x38] sm:$0xff]
      %620 = vset.pattern.permute.xlu0 0
      %621 = vperm.xlu0 %620, %v611
      %v622 = vpop.permute.xlu0 %621
      %625 = vset.pattern.permute.xlu0 0
      %626 = vperm.xlu0 %625, %v612
      %v627 = vpop.permute.xlu0 %626
      %629 = vset.pattern.permute.xlu0 0
      %630 = vperm.xlu0 %629, %v613
      %v631 = vpop.permute.xlu0 %630
      %633 = vset.pattern.permute.xlu0 0
      %634 = vperm.xlu0 %633, %v614
      %v635 = vpop.permute.xlu0 %634
      %637 = vset.pattern.permute.xlu0 0
      %638 = vperm.xlu0 %637, %v615
      %v639 = vpop.permute.xlu0 %638
      %641 = vset.pattern.permute.xlu0 0
      %642 = vperm.xlu0 %641, %v616
      %v643 = vpop.permute.xlu0 %642
      %645 = vset.pattern.permute.xlu0 0
      %646 = vperm.xlu0 %645, %v617
      %v647 = vpop.permute.xlu0 %646
      %649 = vset.pattern.permute.xlu0 0
      %650 = vperm.xlu0 %649, %v618
      %v651 = vpop.permute.xlu0 %650
      %v653 = vsel %vm447, %v602, 0
      %v656 = vsel %vm447, %v603, 0
      %v659 = vsel %vm447, %v604, 0
      %v662 = vsel %vm447, %v605, 0
      %v665 = vsel %vm447, %v606, 0
      %v668 = vsel %vm447, %v607, 0
      %v671 = vsel %vm447, %v608, 0
      %v674 = vsel %vm447, %v609, 0
      %676 = vmatprep.subr.mxu0 %v586
      %677 = vmatpush1.msra.mxu0 %v585
      %678 = vmatprep.subr.mxu0 %v588
      %679 = vmatpush1.msra.mxu0 %v587
      %680 = vmatprep.subr.mxu0 %v590
      %681 = vmatpush1.msra.mxu0 %v589
      %682 = vmatprep.subr.mxu0 %v592
      %683 = vmatpush1.msra.mxu0 %v591
      %684 = vmatprep.subr.mxu0 %v594
      %685 = vmatpush1.msra.mxu0 %v593
      %686 = vmatprep.subr.mxu0 %v596
      %687 = vmatpush1.msra.mxu0 %v595
      %688 = vmatprep.subr.mxu0 %v598
      %689 = vmatpush1.msra.mxu0 %v597
      %690 = vmatprep.subr.mxu0 %v600
      %691 = vmatpush1.msra.mxu0 %v599
      %692 = vmatprep.subr.mxu0 0.0
      %693 = vmatpush1.msra.mxu0 0.0
      %694 = vmatprep.subr.mxu0 0.0
      %695 = vmatpush1.msra.mxu0 0.0
      %696 = vmatprep.subr.mxu0 0.0
      %697 = vmatpush1.msra.mxu0 0.0
      %698 = vmatprep.subr.mxu0 0.0
      %699 = vmatpush1.msra.mxu0 0.0
      %700 = vmatprep.subr.mxu0 0.0
      %701 = vmatpush1.msra.mxu0 0.0
      %702 = vmatprep.subr.mxu0 0.0
      %703 = vmatpush1.msra.mxu0 0.0
      %704 = vmatprep.subr.mxu0 0.0
      %705 = vmatpush1.msra.mxu0 0.0
      %706 = vmatprep.subr.mxu0 0.0
      %707 = vmatpush1.msra.mxu0 0.0
      %708 = vmatprep.subr.mxu0 0.0
      %709 = vmatpush1.msra.mxu0 0.0
      %710 = vmatprep.subr.mxu0 0.0
      %711 = vmatpush1.msra.mxu0 0.0
      %712 = vmatprep.subr.mxu0 0.0
      %713 = vmatpush1.msra.mxu0 0.0
      %714 = vmatprep.subr.mxu0 0.0
      %715 = vmatpush1.msra.mxu0 0.0
      %716 = vmatprep.subr.mxu0 0.0
      %717 = vmatpush1.msra.mxu0 0.0
      %718 = vmatprep.subr.mxu0 0.0
      %719 = vmatpush1.msra.mxu0 0.0
      %720 = vmatprep.subr.mxu0 0.0
      %721 = vmatpush1.msra.mxu0 0.0
      %722 = vmatprep.subr.mxu0 0.0
      %723 = vmatpush1.msra.mxu0 0.0
      %724 = vmatprep.subr.mxu0 0.0
      %725 = vmatpush1.msra.mxu0 0.0
      %726 = vmatprep.subr.mxu0 0.0
      %727 = vmatpush1.msra.mxu0 0.0
      %728 = vmatprep.subr.mxu0 0.0
      %729 = vmatpush1.msra.mxu0 0.0
      %730 = vmatprep.subr.mxu0 0.0
      %731 = vmatpush1.msra.mxu0 0.0
      %732 = vmatprep.subr.mxu0 0.0
      %733 = vmatpush1.msra.mxu0 0.0
      %734 = vmatprep.subr.mxu0 0.0
      %735 = vmatpush1.msra.mxu0 0.0
      %736 = vmatprep.subr.mxu0 0.0
      %737 = vmatpush1.msra.mxu0 0.0
      %738 = vmatprep.subr.mxu0 0.0
      %739 = vmatpush1.msra.mxu0 0.0
      %740 = vmatprep.mubr.f32.mxu0 0.0
      %741 = vmatmul.mubr.f32.gmra.mrb[0].mxu0 %v653
      %v742 = vpop.f32.mrb[0].mxu0
      %v743 = vadd.f32 %v622, %v742
      %v744 = vpop.f32.mrb[0].mxu0
      %v745 = vadd.f32 %v622, %v744
      %746 = vmatprep.mubr.f32.mxu0 0.0
      %747 = vmatmul.mubr.f32.gmra.mrb[0].mxu0 %v656
      %v748 = vpop.f32.mrb[0].mxu0
      %v749 = vpop.f32.mrb[0].mxu0
      %750 = vmatprep.mubr.f32.mxu0 0.0
      %751 = vmatmul.mubr.f32.gmra.mrb[0].mxu0 %v659
      %v752 = vpop.f32.mrb[0].mxu0
      %v753 = vpop.f32.mrb[0].mxu0
      %754 = vmatprep.mubr.f32.mxu0 0.0
      %755 = vmatmul.mubr.f32.gmra.mrb[0].mxu0 %v662
      %v756 = vpop.f32.mrb[0].mxu0
      %v757 = vpop.f32.mrb[0].mxu0
      %758 = vmatprep.mubr.f32.mxu0 0.0
      %759 = vmatmul.mubr.f32.gmra.mrb[0].mxu0 %v665
      %v760 = vpop.f32.mrb[0].mxu0
      %v761 = vpop.f32.mrb[0].mxu0
      %762 = vmatprep.mubr.f32.mxu0 0.0
      %763 = vmatmul.mubr.f32.gmra.mrb[0].mxu0 %v668
      %v764 = vpop.f32.mrb[0].mxu0
      %v765 = vpop.f32.mrb[0].mxu0
      %766 = vmatprep.mubr.f32.mxu0 0.0
      %767 = vmatmul.mubr.f32.gmra.mrb[0].mxu0 %v671
      %v768 = vpop.f32.mrb[0].mxu0
      %v769 = vpop.f32.mrb[0].mxu0
      %770 = vmatprep.mubr.f32.mxu0 0.0
      %771 = vmatmul.mubr.f32.gmra.mrb[0].mxu0 %v674
      %v772 = vpop.f32.mrb[0].mxu0
      %v773 = vpop.f32.mrb[0].mxu0
      %774 = vdwg.mxu0
      %775 = vst [vmem:[%s170] sm:$0x3f] %v743
      %776 = vst [vmem:[%s170 + $0x8] sm:$0x3f] %v745
      %p777 = scmp.lt.s32.totalorder %s14, 1
      %s778 = scalar_select %p777, %s14, 1
      %s779 = smul.addr %s778, 2
      %s780 = smul.addr %s779, 8
      %s781 = scalar_lea.vmem %s3, %s780
      // Predicated region
      $region33: #{pointnet2_msg_forward.19} parent=31 // pred_check
        %p782 = pneg %p100
      $region34: #{pointnet2_msg_forward.19} parent=31 // pred_check_branch
        %784 = sbr.rel (%p782) target = $region36
      $region35: #{pointnet2_msg_forward.19} parent=31 // pred_region
        _
      $region36: #{pointnet2_msg_forward.19} parent=31 // pred_fallthru
        _
    $region32: #{pointnet2_msg_forward.19} parent=5 // pred_fallthru
      _
    %p785 = scmp.le.s32.totalorder 2, %s9
    // Predicated region
    $region37: #{pointnet2_msg_forward.19} parent=5 // pred_check
      %p786 = pneg %p785
    $region38: #{pointnet2_msg_forward.19} parent=5 // pred_check_branch
      %788 = sbr.rel (%p786) target = $region40
    $region39: #{pointnet2_msg_forward.19} parent=5 // pred_region
      %s789 = ssub.s32 %s9, 2
      // Predicated region
      $region41: #{pointnet2_msg_forward.19} parent=39 // pred_check
        %p790 = pneg %p106
      $region42: #{pointnet2_msg_forward.19} parent=39 // pred_check_branch
        %792 = sbr.rel (%p790) target = $region44
      $region43: #{pointnet2_msg_forward.19} parent=39 // pred_region
        %p793 = scmp.lt.s32.totalorder %s15, 1
        %s794 = scalar_select %p793, %s15, 1
        %s795 = smul.addr %s794, 2
        %s796 = smul.addr %s795, 8
        %s797 = scalar_lea.vmem %s3, %s796
      $region44: #{pointnet2_msg_forward.19} parent=39 // pred_fallthru
        _
    $region40: #{pointnet2_msg_forward.19} parent=5 // pred_fallthru
      _
  $region6: #{pointnet2_msg_forward.19} parent=0 // loop_footer
    %s13 = sadd.s32 1, %s9
  $region7: #{pointnet2_msg_forward.19} parent=0 // loop_footer_branch
    %8 = sbr.rel target = $region3
  $region8: #{pointnet2_msg_forward.19} parent=0 // loop_exit
    _

</llo_original>
